<compile_context>
chip_gen: v7x
topology: tpu7x:2x2x1
jax: 0.10.0
libtpu: 0.0.40
codegen_flags: <defaults>
</compile_context>

<pallas_src>
import functools

import jax
import jax.numpy as jnp
from jax.experimental import pallas as pl
from jax.experimental.pallas import tpu as pltpu


def _softmax_last(x):
    x = x - jnp.max(x, axis=-1, keepdims=True)
    e = jnp.exp(x)
    return e / jnp.sum(e, axis=-1, keepdims=True)


def _layer_norm(v, gamma, beta, eps=1e-6):
    mu = jnp.mean(v, axis=-1, keepdims=True)
    var = jnp.mean((v - mu) ** 2, axis=-1, keepdims=True)
    return (v - mu) * jax.lax.rsqrt(var + eps) * gamma + beta


def _cab_kernel(x_ref, r_ref, wq_ref, wkv_ref, wfc_ref, afc_ref, ln_ref,
                o_ref, q_sc, m_sc, l_sc, acc_sc, *, num_heads, khw_valid):
    # x_ref   : (1, N, C)   f32   component sequence (residual / query source)
    # r_ref   : (1, kt, C)  bf16  one KHW chunk of the reference sequence
    # wq_ref  : (C, C)      bf16  Wq in PyTorch [out, in] layout
    # wkv_ref : (2C, C)     bf16  [Wk ; Wv] stacked, [out, in] layout
    # wfc_ref : (C, C)      bf16  multihead_concat_fc weight, [out, in] layout
    # afc_ref : (2, C)      f32   GFP attn_fc weight split into [w_a ; w_b]
    # ln_ref  : (4, C)      f32   [gat_gamma, gat_beta, out_gamma, out_beta]
    # scratch : q_sc (N, C) bf16 ; m_sc/l_sc (N, H) f32 ; acc_sc (N, C) f32
    kv = pl.program_id(1)
    n_kv = pl.num_programs(1)
    N = x_ref.shape[1]
    C = x_ref.shape[2]
    kt = r_ref.shape[1]
    H = num_heads
    d = C // H

    # ---- per-batch-element init (first KHW chunk) ----
    @pl.when(kv == 0)
    def _init():
        x_bf = x_ref[0].astype(jnp.bfloat16)
        # Q = x @ Wq^T   (A @ B^T contraction over the shared `in` axis)
        q = jax.lax.dot_general(x_bf, wq_ref[...], (((1,), (1,)), ((), ())),
                                preferred_element_type=jnp.float32)
        q_sc[...] = q.astype(jnp.bfloat16)
        m_sc[...] = jnp.full(m_sc.shape, -jnp.inf, m_sc.dtype)
        l_sc[...] = jnp.zeros(l_sc.shape, l_sc.dtype)
        acc_sc[...] = jnp.zeros(acc_sc.shape, acc_sc.dtype)

    # ---- fused K/V projection for this chunk, produced TRANSPOSED ----
    #   kvT = [Wk ; Wv] @ r^T -> (2C, kt); per-head K/V blocks are sublane slices.
    r = r_ref[0]                                                       # (kt, C) bf16
    kvT = jax.lax.dot_general(wkv_ref[...], r, (((1,), (1,)), ((), ())),
                              preferred_element_type=jnp.float32)
    kvT = kvT.astype(jnp.bfloat16)                                     # (2C, kt)

    # mask padded reference rows (only compiled when KHW was padded)
    if khw_valid is not None:
        key_idx = kv * kt + jax.lax.broadcasted_iota(jnp.int32, (1, kt), 1)
        pad_bias = jnp.where(key_idx < khw_valid, 0.0, -1e30).astype(jnp.float32)
    else:
        pad_bias = None

    # ---- per-head online-softmax cross attention (no 1/sqrt(d): matches PyTorch) ----
    for h in range(H):
        lo, hi = h * d, (h + 1) * d
        q_h = q_sc[:, lo:hi]                                           # (N, d)   bf16
        kT_h = kvT[lo:hi, :]                                           # (d, kt)  bf16 (sublane slice)
        vT_h = kvT[C + lo:C + hi, :]                                   # (d, kt)  bf16 (sublane slice)
        # scores = Q_h @ K_h^T  (plain MXU matmul)
        s = jax.lax.dot_general(q_h, kT_h, (((1,), (0,)), ((), ())),
                                preferred_element_type=jnp.float32)    # (N, kt) f32
        if pad_bias is not None:
            s = s + pad_bias
        m_prev = m_sc[:, h:h + 1]                                      # (N, 1)
        m_new = jnp.maximum(m_prev, jnp.max(s, axis=-1, keepdims=True))
        alpha = jnp.exp(m_prev - m_new)
        p = jnp.exp(s - m_new)                                         # (N, kt)
        l_sc[:, h:h + 1] = alpha * l_sc[:, h:h + 1] + jnp.sum(p, axis=-1, keepdims=True)
        # out_h = P @ V_h  computed as  P @ (V_h^T)^T  (A @ B^T contraction)
        out_h = jax.lax.dot_general(p.astype(jnp.bfloat16), vT_h,
                                    (((1,), (1,)), ((), ())),
                                    preferred_element_type=jnp.float32)  # (N, d)
        acc_sc[:, lo:hi] = alpha * acc_sc[:, lo:hi] + out_h
        m_sc[:, h:h + 1] = m_new

    # ---- finalize on the last KHW chunk ----
    @pl.when(kv == n_kv - 1)
    def _finalize():
        x = x_ref[0].astype(jnp.float32)                               # (N, C) residual

        # Normalize per head in place (exact division), then ONE full-C-contraction
        # multihead_concat_fc matmul over the lane-dense accumulator.
        for h in range(H):
            lo, hi = h * d, (h + 1) * d
            acc_sc[:, lo:hi] = acc_sc[:, lo:hi] / l_sc[:, h:h + 1]
        attn_bf = acc_sc[...].astype(jnp.bfloat16)                     # (N, C)
        fc = jax.lax.dot_general(attn_bf, wfc_ref[...], (((1,), (1,)), ((), ())),
                                 preferred_element_type=jnp.float32)   # (N, C)

        # ---- GFP (adj_matrix=None path), f32 epilogue ----
        # attn_fc(cat(x_i, x_j)) = <x_i, w_a> + <x_j, w_b>
        a_col = jnp.sum(fc * afc_ref[0:1, :], axis=-1, keepdims=True)  # (N, 1)
        b_row = jax.lax.dot_general(afc_ref[1:2, :], fc, (((1,), (1,)), ((), ())),
                                    preferred_element_type=jnp.float32)  # (1, N), no transpose
        attn_scores = a_col + b_row                                    # (N, N)
        sim = _softmax_last(jax.lax.dot_general(fc, fc, (((1,), (1,)), ((), ())),
                                                preferred_element_type=jnp.float32))
        w_attn = _softmax_last(attn_scores + sim)                      # (N, N)
        # TODO(synk): dropout on w_attn is identity (eval mode); GFP.W is declared
        #             but unused in the reference forward so it is not implemented.
        g = jax.lax.dot_general(w_attn, fc, (((1,), (0,)), ((), ())),
                                preferred_element_type=jnp.float32)    # (N, C)
        g = _layer_norm(g + fc, ln_ref[0:1, :], ln_ref[1:2, :])        # GFP layer_norm
        y = _layer_norm(g + x, ln_ref[2:3, :], ln_ref[3:4, :])         # outer residual LN
        o_ref[0] = y.astype(o_ref.dtype)


def _vmem_capacity_bytes():
    try:
        return int(pltpu.get_tpu_info().vmem_capacity_bytes)
    except Exception:
        return 64 << 20   # conservative: v7x per-TensorCore VMEM


def _pick_kv_tile(khw, n, c, num_heads, budget_bytes, max_tile=2048):
    """Largest reference-chunk length fitting the VMEM budget.
    Returns (kv_tile, padded_khw); padded_khw > khw means the kernel masks the tail."""
    f32, bf16 = 4, 2
    fixed = (2 * 4 * c * c * bf16            # Wq + [Wk;Wv] + Wfc (worst case 2 buffers)
             + 2 * 6 * c * f32               # attn_fc + LN params
             + 2 * 2 * n * c * f32           # x / out blocks (2 buffers each)
             + n * c * (bf16 + f32)          # Q + accumulator scratch
             + 2 * n * num_heads * f32       # m / l scratch
             + (4 << 20))                    # compiler-internal / misc headroom
    per_row = (2 * c * bf16                  # reference chunk (2 buffers)
               + 2 * c * (f32 + bf16)        # fused K/V projection (f32 acc + bf16 copy)
               + 2 * n * f32)                # per-head scores / probs
    cap = max(8, min(max_tile, max(budget_bytes - fixed, 64 * per_row) // per_row))
    if khw <= cap:
        return khw, khw                      # single chunk, full-dim block
    # Prefer an exact divisor (multiple of 8) near the cap: no padding, no masking.
    hi = cap - cap % 8
    lo = max(8, hi // 2)
    for t in range(hi, lo - 1, -8):
        if khw % t == 0:
            return t, khw
    # Otherwise pad KHW up to a multiple of a 128-aligned tile and mask in-kernel.
    t = max(128, cap - cap % 128) if cap >= 128 else max(8, cap - cap % 8)
    return t, ((khw + t - 1) // t) * t


def _vmem_limit_bytes(n, c, kt, num_heads, vmem_cap, weight_buffers):
    f32, bf16 = 4, 2
    blocks = 2 * (2 * n * c * f32 + kt * c * bf16)          # x/out + ref chunk (2 buffers)
    weights = weight_buffers * 4 * c * c * bf16 + 2 * 6 * c * f32
    scratch = n * c * (bf16 + f32) + 2 * n * num_heads * f32
    work = 2 * c * kt * (f32 + bf16) + 2 * n * kt * f32
    need = blocks + weights + scratch + work + (4 << 20)
    cap = int(vmem_cap * 0.85)                              # headroom below physical VMEM
    return int(min(max(need, min(32 << 20, cap)), cap))


def component_attention_block(component_sequence, reference_map_list, params,
                              num_heads=8, kv_tile=None):
    """params: wq/wk/wv/wfc ([C, C], PyTorch [out, in] layout), attn_fc ([1, 2C]),
    gat_gamma/gat_beta/out_gamma/out_beta ([C]).

    NOTE: for peak MXU/DMA efficiency C should be a multiple of 128 (v5e) /
    256 (v6e, v7x) and the kv tile a multiple of 256; smaller values are
    functionally correct but underfill the hardware."""
    B, N, C = component_sequence.shape
    _, K, _, Hs, Ws = reference_map_list.shape
    KHW = K * Hs * Ws
    assert C % num_heads == 0

    # 'b k c h w -> b (k h w) c', shipped to the kernel as bf16 (halves DMA bytes).
    # TODO(synk): if the reference maps are reused across calls, hoist this transpose
    #             out of the per-call path (it is a full extra HBM pass).
    ref_seq = jnp.transpose(reference_map_list, (0, 1, 3, 4, 2)).reshape(B, KHW, C)
    ref_seq = ref_seq.astype(jnp.bfloat16)

    vmem_cap = _vmem_capacity_bytes()
    budget = int(vmem_cap * 0.8)

    if kv_tile is None:
        kv_tile, khw_pad = _pick_kv_tile(KHW, N, C, num_heads, budget)
    else:
        khw_pad = ((KHW + kv_tile - 1) // kv_tile) * kv_tile
        assert kv_tile % 8 == 0 or kv_tile == khw_pad
    if khw_pad != KHW:
        ref_seq = jnp.pad(ref_seq, ((0, 0), (0, khw_pad - KHW), (0, 0)))
    n_kv = khw_pad // kv_tile
    khw_valid = KHW if khw_pad != KHW else None

    # Weights in PyTorch [out, in] layout: the kernel contracts over the shared `in`
    # axis of both operands (pure A @ B^T MXU forms, no transposes anywhere).
    wq = params["wq"].astype(jnp.bfloat16)
    wkv = jnp.concatenate([params["wk"], params["wv"]], axis=0).astype(jnp.bfloat16)
    wfc = params["wfc"].astype(jnp.bfloat16)
    afc = params["attn_fc"].reshape(2, C).astype(jnp.float32)          # [w_a ; w_b]
    ln = jnp.stack([params["gat_gamma"], params["gat_beta"],
                    params["out_gamma"], params["out_beta"]], axis=0).astype(jnp.float32)
    x_f32 = component_sequence.astype(jnp.float32)

    kernel = functools.partial(_cab_kernel, num_heads=num_heads, khw_valid=khw_valid)

    def _call(weight_pipeline_mode, weight_buffers):
        def wspec(shape):
            if weight_pipeline_mode is None:
                return pl.BlockSpec(shape, lambda b, kv: (0, 0))
            return pl.BlockSpec(shape, lambda b, kv: (0, 0),
                                pipeline_mode=weight_pipeline_mode)

        return pl.pallas_call(
            kernel,
            grid=(B, n_kv),
            in_specs=[
                pl.BlockSpec((1, N, C), lambda b, kv: (b, 0, 0)),          # x (f32)
                pl.BlockSpec((1, kv_tile, C), lambda b, kv: (b, kv, 0)),   # ref chunk (bf16)
                wspec((C, C)),                                             # Wq
                wspec((2 * C, C)),                                         # [Wk ; Wv]
                wspec((C, C)),                                             # Wfc
                pl.BlockSpec((2, C), lambda b, kv: (0, 0)),                # GFP attn_fc
                pl.BlockSpec((4, C), lambda b, kv: (0, 0)),                # LayerNorm params
            ],
            out_specs=pl.BlockSpec((1, N, C), lambda b, kv: (b, 0, 0)),
            out_shape=jax.ShapeDtypeStruct((B, N, C), jnp.float32),
            scratch_shapes=[
                pltpu.VMEM((N, C), jnp.bfloat16),          # Q projection
                pltpu.VMEM((N, num_heads), jnp.float32),   # online-softmax running max
                pltpu.VMEM((N, num_heads), jnp.float32),   # online-softmax running sum
                pltpu.VMEM((N, C), jnp.float32),           # attention accumulator (lane-dense)
            ],
            compiler_params=pltpu.CompilerParams(
                dimension_semantics=("parallel", "arbitrary"),
                vmem_limit_bytes=_vmem_limit_bytes(N, C, kv_tile, num_heads,
                                                   vmem_cap, weight_buffers)),
        )(x_f32, ref_seq, wq, wkv, wfc, afc, ln)

    # Constant-index weight blocks only need a single VMEM buffer (halves weight-resident
    # VMEM); fall back to the default double-buffered pipeline if Buffered(1) is rejected.
    try:
        return _call(pl.Buffered(1), 1)
    except Exception:
        return _call(None, 2)


def init_params(key, num_channels):
    C = num_channels
    ks = jax.random.split(key, 5)
    scale = 1.0 / jnp.sqrt(C)
    return {
        "wq": jax.random.normal(ks[0], (C, C), jnp.float32) * scale,
        "wk": jax.random.normal(ks[1], (C, C), jnp.float32) * scale,
        "wv": jax.random.normal(ks[2], (C, C), jnp.float32) * scale,
        "wfc": jax.random.normal(ks[3], (C, C), jnp.float32) * scale,
        "attn_fc": jax.random.normal(ks[4], (1, 2 * C), jnp.float32) * scale,
        "gat_gamma": jnp.ones((C,), jnp.float32),
        "gat_beta": jnp.zeros((C,), jnp.float32),
        "out_gamma": jnp.ones((C,), jnp.float32),
        "out_beta": jnp.zeros((C,), jnp.float32),
    }


def _reference_forward(x, ref_maps, params, num_heads):
    """Pure-JAX f32 re-implementation of the PyTorch module (parity check)."""
    B, N, C = x.shape
    d = C // num_heads
    ref_seq = jnp.transpose(ref_maps, (0, 1, 3, 4, 2)).reshape(B, -1, C)
    q = x @ params["wq"].T
    k = ref_seq @ params["wk"].T
    v = ref_seq @ params["wv"].T
    qh = q.reshape(B, N, num_heads, d).transpose(0, 2, 1, 3)
    kh = k.reshape(B, -1, num_heads, d).transpose(0, 2, 1, 3)
    vh = v.reshape(B, -1, num_heads, d).transpose(0, 2, 1, 3)
    p = jax.nn.softmax(jnp.einsum("bmnd,bmkd->bmnk", qh, kh), axis=-1)   # no 1/sqrt(d)
    o = jnp.einsum("bmnk,bmkd->bmnd", p, vh).transpose(0, 2, 1, 3).reshape(B, N, C)
    fc = o @ params["wfc"].T
    afc = params["attn_fc"].reshape(2, C)
    attn_scores = (fc @ afc[0])[:, :, None] + (fc @ afc[1])[:, None, :]
    sim = jax.nn.softmax(jnp.einsum("bnc,bmc->bnm", fc, fc), axis=-1)
    w_attn = jax.nn.softmax(attn_scores + sim, axis=-1)
    g = jnp.einsum("bnm,bmc->bnc", w_attn, fc)

    def ln(val, gamma, beta):
        mu = val.mean(-1, keepdims=True)
        var = ((val - mu) ** 2).mean(-1, keepdims=True)
        return (val - mu) / jnp.sqrt(var + 1e-6) * gamma + beta

    g = ln(g + fc, params["gat_gamma"], params["gat_beta"])
    return ln(g + x, params["out_gamma"], params["out_beta"])


if __name__ == "__main__":
    # Small shapes consistent with the module's forward signature:
    #   component_sequence : [B, N, C],  reference_map_list : [B, K, C, H, W]
    B, N, C = 2, 8, 32
    K, Hs, Ws = 2, 4, 4
    num_heads = 8

    key = jax.random.PRNGKey(0)
    k_comp, k_ref, k_par = jax.random.split(key, 3)
    component_sequence = jax.random.normal(k_comp, (B, N, C), jnp.float32)
    reference_map_list = jax.random.normal(k_ref, (B, K, C, Hs, Ws), jnp.float32)
    params = init_params(k_par, C)

    # kv_tile=16 splits KHW=32 into 2 chunks to exercise the online-softmax path.
    out = component_attention_block(component_sequence, reference_map_list,
                                    params, num_heads=num_heads, kv_tile=16)
    out = jax.block_until_ready(out)
    assert out.shape == (B, N, C)
    assert bool(jnp.all(jnp.isfinite(out)))

    ref = _reference_forward(component_sequence, reference_map_list, params, num_heads)
    max_err = float(jnp.max(jnp.abs(out - ref)))
    assert max_err < 0.25, f"kernel/reference mismatch: max_err={max_err}"
    print("KERNEL_OK")
</pallas_src>

<mosaic_0001>
module attributes {stable_mosaic.version = 11 : i64} {
  func.func @_cab_kernel(%arg0: i32, %arg1: i32, %arg2: memref<1x8x32xf32, #tpu.memory_space<vmem>>, %arg3: memref<1x16x32xbf16, #tpu.memory_space<vmem>>, %arg4: memref<32x32xbf16, #tpu.memory_space<vmem>>, %arg5: memref<64x32xbf16, #tpu.memory_space<vmem>>, %arg6: memref<32x32xbf16, #tpu.memory_space<vmem>>, %arg7: memref<2x32xf32, #tpu.memory_space<vmem>>, %arg8: memref<4x32xf32, #tpu.memory_space<vmem>>, %arg9: memref<1x8x32xf32, #tpu.memory_space<vmem>>, %arg10: memref<8x32xbf16, #tpu.memory_space<vmem>>, %arg11: memref<8x8xf32, #tpu.memory_space<vmem>>, %arg12: memref<8x8xf32, #tpu.memory_space<vmem>>, %arg13: memref<8x32xf32, #tpu.memory_space<vmem>>) attributes {dimension_semantics = [#tpu.dimension_semantics<parallel>, #tpu.dimension_semantics<arbitrary>], iteration_bounds = array<i64: 2, 2>, scalar_prefetch = 0 : i64, scratch_operands = 4 : i64, tpu.core_type = #tpu.core_type<tc>, window_params = [{transform_indices = @transform_0, window_bounds = array<i64: 1, 8, 32>}, {transform_indices = @transform_1, window_bounds = array<i64: 1, 16, 32>}, {pipeline_mode = #tpu.pipeline_mode<synchronous>, transform_indices = @transform_2, window_bounds = array<i64: 32, 32>}, {pipeline_mode = #tpu.pipeline_mode<synchronous>, transform_indices = @transform_3, window_bounds = array<i64: 64, 32>}, {pipeline_mode = #tpu.pipeline_mode<synchronous>, transform_indices = @transform_4, window_bounds = array<i64: 32, 32>}, {pipeline_mode = #tpu.pipeline_mode<synchronous>, transform_indices = @transform_5, window_bounds = array<i64: 2, 32>}, {pipeline_mode = #tpu.pipeline_mode<synchronous>, transform_indices = @transform_6, window_bounds = array<i64: 4, 32>}, {transform_indices = @transform_7, window_bounds = array<i64: 1, 8, 32>}]} {
    %c0_i32 = arith.constant 0 : i32
    %0 = arith.cmpi eq, %arg1, %c0_i32 : i32
    %1 = arith.extui %0 : i1 to i32
    %c0_i32_0 = arith.constant 0 : i32
    %2 = arith.cmpi ne, %1, %c0_i32_0 : i32
    scf.if %2 {
      %c0_137 = arith.constant 0 : index
      %c0_138 = arith.constant 0 : index
      %c0_139 = arith.constant 0 : index
      %227 = vector.load %arg2[%c0_137, %c0_138, %c0_139] : memref<1x8x32xf32, #tpu.memory_space<vmem>>, vector<1x8x32xf32>
      %228 = vector.shape_cast %227 : vector<1x8x32xf32> to vector<8x32xf32>
      %229 = arith.truncf %228 : vector<8x32xf32> to vector<8x32xbf16>
      %c0_140 = arith.constant 0 : index
      %c0_141 = arith.constant 0 : index
      %230 = vector.load %arg4[%c0_140, %c0_141] : memref<32x32xbf16, #tpu.memory_space<vmem>>, vector<32x32xbf16>
      %cst_142 = arith.constant dense<0.000000e+00> : vector<8x32xf32>
      %231 = tpu.matmul %229, %230, %cst_142 {dimension_numbers = #tpu.dot_dimension_numbers<[1], [1], [0], [0], [0, 0, 1, 0], [], []>} : vector<8x32xbf16>, vector<32x32xbf16>, vector<8x32xf32> -> vector<8x32xf32>
      %232 = arith.truncf %231 : vector<8x32xf32> to vector<8x32xbf16>
      %c0_143 = arith.constant 0 : index
      %c0_144 = arith.constant 0 : index
      %233 = vector.load %arg10[%c0_143, %c0_144] : memref<8x32xbf16, #tpu.memory_space<vmem>>, vector<8x32xbf16>
      tpu.vector_store %arg10[%c0_143, %c0_144], %232 {strides = array<i32>} : memref<8x32xbf16, #tpu.memory_space<vmem>>, vector<8x32xbf16>,
      %cst_145 = arith.constant 0xFF800000 : f32
      %234 = vector.broadcast %cst_145 : f32 to vector<8x8xf32>
      %c0_146 = arith.constant 0 : index
      %c0_147 = arith.constant 0 : index
      %235 = vector.load %arg11[%c0_146, %c0_147] : memref<8x8xf32, #tpu.memory_space<vmem>>, vector<8x8xf32>
      tpu.vector_store %arg11[%c0_146, %c0_147], %234 {strides = array<i32>} : memref<8x8xf32, #tpu.memory_space<vmem>>, vector<8x8xf32>,
      %cst_148 = arith.constant 0.000000e+00 : f32
      %236 = vector.broadcast %cst_148 : f32 to vector<8x8xf32>
      %c0_149 = arith.constant 0 : index
      %c0_150 = arith.constant 0 : index
      %237 = vector.load %arg12[%c0_149, %c0_150] : memref<8x8xf32, #tpu.memory_space<vmem>>, vector<8x8xf32>
      tpu.vector_store %arg12[%c0_149, %c0_150], %236 {strides = array<i32>} : memref<8x8xf32, #tpu.memory_space<vmem>>, vector<8x8xf32>,
      %cst_151 = arith.constant 0.000000e+00 : f32
      %238 = vector.broadcast %cst_151 : f32 to vector<8x32xf32>
      %c0_152 = arith.constant 0 : index
      %c0_153 = arith.constant 0 : index
      %239 = vector.load %arg13[%c0_152, %c0_153] : memref<8x32xf32, #tpu.memory_space<vmem>>, vector<8x32xf32>
      tpu.vector_store %arg13[%c0_152, %c0_153], %238 {strides = array<i32>} : memref<8x32xf32, #tpu.memory_space<vmem>>, vector<8x32xf32>,
    } else {
    }
    %c0 = arith.constant 0 : index
    %c0_1 = arith.constant 0 : index
    %c0_2 = arith.constant 0 : index
    %3 = vector.load %arg3[%c0, %c0_1, %c0_2] : memref<1x16x32xbf16, #tpu.memory_space<vmem>>, vector<1x16x32xbf16>
    %4 = vector.shape_cast %3 : vector<1x16x32xbf16> to vector<16x32xbf16>
    %c0_3 = arith.constant 0 : index
    %c0_4 = arith.constant 0 : index
    %5 = vector.load %arg5[%c0_3, %c0_4] : memref<64x32xbf16, #tpu.memory_space<vmem>>, vector<64x32xbf16>
    %cst = arith.constant dense<0.000000e+00> : vector<64x16xf32>
    %6 = tpu.matmul %5, %4, %cst {dimension_numbers = #tpu.dot_dimension_numbers<[1], [1], [0], [0], [0, 0, 1, 0], [], []>} : vector<64x32xbf16>, vector<16x32xbf16>, vector<64x16xf32> -> vector<64x16xf32>
    %7 = arith.truncf %6 : vector<64x16xf32> to vector<64x16xbf16>
    %c0_5 = arith.constant 0 : index
    %c0_6 = arith.constant 0 : index
    %8 = vector.load %arg10[%c0_5, %c0_6] : memref<8x32xbf16, #tpu.memory_space<vmem>>, vector<8x4xbf16>
    %9 = vector.extract_strided_slice %7 {offsets = [0, 0], sizes = [4, 16], strides = [1, 1]} : vector<64x16xbf16> to vector<4x16xbf16>
    %10 = vector.extract_strided_slice %7 {offsets = [32, 0], sizes = [4, 16], strides = [1, 1]} : vector<64x16xbf16> to vector<4x16xbf16>
    %cst_7 = arith.constant dense<0.000000e+00> : vector<8x16xf32>
    %11 = tpu.matmul %8, %9, %cst_7 {dimension_numbers = #tpu.dot_dimension_numbers<[1], [0], [0], [1], [0, 0, 1, 1], [], []>} : vector<8x4xbf16>, vector<4x16xbf16>, vector<8x16xf32> -> vector<8x16xf32>
    %c0_8 = arith.constant 0 : index
    %c0_9 = arith.constant 0 : index
    %12 = vector.load %arg11[%c0_8, %c0_9] : memref<8x8xf32, #tpu.memory_space<vmem>>, vector<8x1xf32>
    %cst_10 = arith.constant dense<0xFF800000> : vector<8xf32>
    %13 = vector.multi_reduction <maximumf>, %11, %cst_10 [1] : vector<8x16xf32> to vector<8xf32>
    %14 = vector.shape_cast %13 : vector<8xf32> to vector<8x1xf32>
    %15 = arith.maximumf %12, %14 : vector<8x1xf32>
    %16 = arith.subf %12, %15 : vector<8x1xf32>
    %17 = math.exp %16 : vector<8x1xf32>
    %18 = vector.broadcast %15 : vector<8x1xf32> to vector<8x16xf32>
    %19 = arith.subf %11, %18 : vector<8x16xf32>
    %20 = math.exp %19 : vector<8x16xf32>
    %c0_11 = arith.constant 0 : index
    %c0_12 = arith.constant 0 : index
    %21 = vector.load %arg12[%c0_11, %c0_12] : memref<8x8xf32, #tpu.memory_space<vmem>>, vector<8x1xf32>
    %22 = arith.mulf %17, %21 : vector<8x1xf32>
    %cst_13 = arith.constant dense<0.000000e+00> : vector<8xf32>
    %23 = vector.multi_reduction <add>, %20, %cst_13 [1] : vector<8x16xf32> to vector<8xf32>
    %24 = vector.shape_cast %23 : vector<8xf32> to vector<8x1xf32>
    %25 = arith.addf %22, %24 : vector<8x1xf32>
    %c0_14 = arith.constant 0 : index
    %c0_15 = arith.constant 0 : index
    %26 = vector.load %arg12[%c0_14, %c0_15] : memref<8x8xf32, #tpu.memory_space<vmem>>, vector<8x1xf32>
    tpu.vector_store %arg12[%c0_14, %c0_15], %25 {strides = array<i32>} : memref<8x8xf32, #tpu.memory_space<vmem>>, vector<8x1xf32>,
    %27 = arith.truncf %20 : vector<8x16xf32> to vector<8x16xbf16>
    %cst_16 = arith.constant dense<0.000000e+00> : vector<8x4xf32>
    %28 = tpu.matmul %27, %10, %cst_16 {dimension_numbers = #tpu.dot_dimension_numbers<[1], [1], [0], [0], [0, 0, 1, 0], [], []>} : vector<8x16xbf16>, vector<4x16xbf16>, vector<8x4xf32> -> vector<8x4xf32>
    %c0_17 = arith.constant 0 : index
    %c0_18 = arith.constant 0 : index
    %29 = vector.load %arg13[%c0_17, %c0_18] : memref<8x32xf32, #tpu.memory_space<vmem>>, vector<8x4xf32>
    %30 = vector.broadcast %17 : vector<8x1xf32> to vector<8x4xf32>
    %31 = arith.mulf %30, %29 : vector<8x4xf32>
    %32 = arith.addf %31, %28 : vector<8x4xf32>
    %c0_19 = arith.constant 0 : index
    %c0_20 = arith.constant 0 : index
    %33 = vector.load %arg13[%c0_19, %c0_20] : memref<8x32xf32, #tpu.memory_space<vmem>>, vector<8x4xf32>
    tpu.vector_store %arg13[%c0_19, %c0_20], %32 {strides = array<i32>} : memref<8x32xf32, #tpu.memory_space<vmem>>, vector<8x4xf32>,
    %c0_21 = arith.constant 0 : index
    %c0_22 = arith.constant 0 : index
    %34 = vector.load %arg11[%c0_21, %c0_22] : memref<8x8xf32, #tpu.memory_space<vmem>>, vector<8x1xf32>
    tpu.vector_store %arg11[%c0_21, %c0_22], %15 {strides = array<i32>} : memref<8x8xf32, #tpu.memory_space<vmem>>, vector<8x1xf32>,
    %c0_23 = arith.constant 0 : index
    %c4 = arith.constant 4 : index
    %35 = vector.load %arg10[%c0_23, %c4] : memref<8x32xbf16, #tpu.memory_space<vmem>>, vector<8x4xbf16>
    %36 = vector.extract_strided_slice %7 {offsets = [4, 0], sizes = [4, 16], strides = [1, 1]} : vector<64x16xbf16> to vector<4x16xbf16>
    %37 = vector.extract_strided_slice %7 {offsets = [36, 0], sizes = [4, 16], strides = [1, 1]} : vector<64x16xbf16> to vector<4x16xbf16>
    %cst_24 = arith.constant dense<0.000000e+00> : vector<8x16xf32>
    %38 = tpu.matmul %35, %36, %cst_24 {dimension_numbers = #tpu.dot_dimension_numbers<[1], [0], [0], [1], [0, 0, 1, 1], [], []>} : vector<8x4xbf16>, vector<4x16xbf16>, vector<8x16xf32> -> vector<8x16xf32>
    %c0_25 = arith.constant 0 : index
    %c1 = arith.constant 1 : index
    %39 = vector.load %arg11[%c0_25, %c1] : memref<8x8xf32, #tpu.memory_space<vmem>>, vector<8x1xf32>
    %cst_26 = arith.constant dense<0xFF800000> : vector<8xf32>
    %40 = vector.multi_reduction <maximumf>, %38, %cst_26 [1] : vector<8x16xf32> to vector<8xf32>
    %41 = vector.shape_cast %40 : vector<8xf32> to vector<8x1xf32>
    %42 = arith.maximumf %39, %41 : vector<8x1xf32>
    %43 = arith.subf %39, %42 : vector<8x1xf32>
    %44 = math.exp %43 : vector<8x1xf32>
    %45 = vector.broadcast %42 : vector<8x1xf32> to vector<8x16xf32>
    %46 = arith.subf %38, %45 : vector<8x16xf32>
    %47 = math.exp %46 : vector<8x16xf32>
    %c0_27 = arith.constant 0 : index
    %c1_28 = arith.constant 1 : index
    %48 = vector.load %arg12[%c0_27, %c1_28] : memref<8x8xf32, #tpu.memory_space<vmem>>, vector<8x1xf32>
    %49 = arith.mulf %44, %48 : vector<8x1xf32>
    %cst_29 = arith.constant dense<0.000000e+00> : vector<8xf32>
    %50 = vector.multi_reduction <add>, %47, %cst_29 [1] : vector<8x16xf32> to vector<8xf32>
    %51 = vector.shape_cast %50 : vector<8xf32> to vector<8x1xf32>
    %52 = arith.addf %49, %51 : vector<8x1xf32>
    %c0_30 = arith.constant 0 : index
    %c1_31 = arith.constant 1 : index
    %53 = vector.load %arg12[%c0_30, %c1_31] : memref<8x8xf32, #tpu.memory_space<vmem>>, vector<8x1xf32>
    tpu.vector_store %arg12[%c0_30, %c1_31], %52 {strides = array<i32>} : memref<8x8xf32, #tpu.memory_space<vmem>>, vector<8x1xf32>,
    %54 = arith.truncf %47 : vector<8x16xf32> to vector<8x16xbf16>
    %cst_32 = arith.constant dense<0.000000e+00> : vector<8x4xf32>
    %55 = tpu.matmul %54, %37, %cst_32 {dimension_numbers = #tpu.dot_dimension_numbers<[1], [1], [0], [0], [0, 0, 1, 0], [], []>} : vector<8x16xbf16>, vector<4x16xbf16>, vector<8x4xf32> -> vector<8x4xf32>
    %c0_33 = arith.constant 0 : index
    %c4_34 = arith.constant 4 : index
    %56 = vector.load %arg13[%c0_33, %c4_34] : memref<8x32xf32, #tpu.memory_space<vmem>>, vector<8x4xf32>
    %57 = vector.broadcast %44 : vector<8x1xf32> to vector<8x4xf32>
    %58 = arith.mulf %57, %56 : vector<8x4xf32>
    %59 = arith.addf %58, %55 : vector<8x4xf32>
    %c0_35 = arith.constant 0 : index
    %c4_36 = arith.constant 4 : index
    %60 = vector.load %arg13[%c0_35, %c4_36] : memref<8x32xf32, #tpu.memory_space<vmem>>, vector<8x4xf32>
    tpu.vector_store %arg13[%c0_35, %c4_36], %59 {strides = array<i32>} : memref<8x32xf32, #tpu.memory_space<vmem>>, vector<8x4xf32>,
    %c0_37 = arith.constant 0 : index
    %c1_38 = arith.constant 1 : index
    %61 = vector.load %arg11[%c0_37, %c1_38] : memref<8x8xf32, #tpu.memory_space<vmem>>, vector<8x1xf32>
    tpu.vector_store %arg11[%c0_37, %c1_38], %42 {strides = array<i32>} : memref<8x8xf32, #tpu.memory_space<vmem>>, vector<8x1xf32>,
    %c0_39 = arith.constant 0 : index
    %c8 = arith.constant 8 : index
    %62 = vector.load %arg10[%c0_39, %c8] : memref<8x32xbf16, #tpu.memory_space<vmem>>, vector<8x4xbf16>
    %63 = vector.extract_strided_slice %7 {offsets = [8, 0], sizes = [4, 16], strides = [1, 1]} : vector<64x16xbf16> to vector<4x16xbf16>
    %64 = vector.extract_strided_slice %7 {offsets = [40, 0], sizes = [4, 16], strides = [1, 1]} : vector<64x16xbf16> to vector<4x16xbf16>
    %cst_40 = arith.constant dense<0.000000e+00> : vector<8x16xf32>
    %65 = tpu.matmul %62, %63, %cst_40 {dimension_numbers = #tpu.dot_dimension_numbers<[1], [0], [0], [1], [0, 0, 1, 1], [], []>} : vector<8x4xbf16>, vector<4x16xbf16>, vector<8x16xf32> -> vector<8x16xf32>
    %c0_41 = arith.constant 0 : index
    %c2 = arith.constant 2 : index
    %66 = vector.load %arg11[%c0_41, %c2] : memref<8x8xf32, #tpu.memory_space<vmem>>, vector<8x1xf32>
    %cst_42 = arith.constant dense<0xFF800000> : vector<8xf32>
    %67 = vector.multi_reduction <maximumf>, %65, %cst_42 [1] : vector<8x16xf32> to vector<8xf32>
    %68 = vector.shape_cast %67 : vector<8xf32> to vector<8x1xf32>
    %69 = arith.maximumf %66, %68 : vector<8x1xf32>
    %70 = arith.subf %66, %69 : vector<8x1xf32>
    %71 = math.exp %70 : vector<8x1xf32>
    %72 = vector.broadcast %69 : vector<8x1xf32> to vector<8x16xf32>
    %73 = arith.subf %65, %72 : vector<8x16xf32>
    %74 = math.exp %73 : vector<8x16xf32>
    %c0_43 = arith.constant 0 : index
    %c2_44 = arith.constant 2 : index
    %75 = vector.load %arg12[%c0_43, %c2_44] : memref<8x8xf32, #tpu.memory_space<vmem>>, vector<8x1xf32>
    %76 = arith.mulf %71, %75 : vector<8x1xf32>
    %cst_45 = arith.constant dense<0.000000e+00> : vector<8xf32>
    %77 = vector.multi_reduction <add>, %74, %cst_45 [1] : vector<8x16xf32> to vector<8xf32>
    %78 = vector.shape_cast %77 : vector<8xf32> to vector<8x1xf32>
    %79 = arith.addf %76, %78 : vector<8x1xf32>
    %c0_46 = arith.constant 0 : index
    %c2_47 = arith.constant 2 : index
    %80 = vector.load %arg12[%c0_46, %c2_47] : memref<8x8xf32, #tpu.memory_space<vmem>>, vector<8x1xf32>
    tpu.vector_store %arg12[%c0_46, %c2_47], %79 {strides = array<i32>} : memref<8x8xf32, #tpu.memory_space<vmem>>, vector<8x1xf32>,
    %81 = arith.truncf %74 : vector<8x16xf32> to vector<8x16xbf16>
    %cst_48 = arith.constant dense<0.000000e+00> : vector<8x4xf32>
    %82 = tpu.matmul %81, %64, %cst_48 {dimension_numbers = #tpu.dot_dimension_numbers<[1], [1], [0], [0], [0, 0, 1, 0], [], []>} : vector<8x16xbf16>, vector<4x16xbf16>, vector<8x4xf32> -> vector<8x4xf32>
    %c0_49 = arith.constant 0 : index
    %c8_50 = arith.constant 8 : index
    %83 = vector.load %arg13[%c0_49, %c8_50] : memref<8x32xf32, #tpu.memory_space<vmem>>, vector<8x4xf32>
    %84 = vector.broadcast %71 : vector<8x1xf32> to vector<8x4xf32>
    %85 = arith.mulf %84, %83 : vector<8x4xf32>
    %86 = arith.addf %85, %82 : vector<8x4xf32>
    %c0_51 = arith.constant 0 : index
    %c8_52 = arith.constant 8 : index
    %87 = vector.load %arg13[%c0_51, %c8_52] : memref<8x32xf32, #tpu.memory_space<vmem>>, vector<8x4xf32>
    tpu.vector_store %arg13[%c0_51, %c8_52], %86 {strides = array<i32>} : memref<8x32xf32, #tpu.memory_space<vmem>>, vector<8x4xf32>,
    %c0_53 = arith.constant 0 : index
    %c2_54 = arith.constant 2 : index
    %88 = vector.load %arg11[%c0_53, %c2_54] : memref<8x8xf32, #tpu.memory_space<vmem>>, vector<8x1xf32>
    tpu.vector_store %arg11[%c0_53, %c2_54], %69 {strides = array<i32>} : memref<8x8xf32, #tpu.memory_space<vmem>>, vector<8x1xf32>,
    %c0_55 = arith.constant 0 : index
    %c12 = arith.constant 12 : index
    %89 = vector.load %arg10[%c0_55, %c12] : memref<8x32xbf16, #tpu.memory_space<vmem>>, vector<8x4xbf16>
    %90 = vector.extract_strided_slice %7 {offsets = [12, 0], sizes = [4, 16], strides = [1, 1]} : vector<64x16xbf16> to vector<4x16xbf16>
    %91 = vector.extract_strided_slice %7 {offsets = [44, 0], sizes = [4, 16], strides = [1, 1]} : vector<64x16xbf16> to vector<4x16xbf16>
    %cst_56 = arith.constant dense<0.000000e+00> : vector<8x16xf32>
    %92 = tpu.matmul %89, %90, %cst_56 {dimension_numbers = #tpu.dot_dimension_numbers<[1], [0], [0], [1], [0, 0, 1, 1], [], []>} : vector<8x4xbf16>, vector<4x16xbf16>, vector<8x16xf32> -> vector<8x16xf32>
    %c0_57 = arith.constant 0 : index
    %c3 = arith.constant 3 : index
    %93 = vector.load %arg11[%c0_57, %c3] : memref<8x8xf32, #tpu.memory_space<vmem>>, vector<8x1xf32>
    %cst_58 = arith.constant dense<0xFF800000> : vector<8xf32>
    %94 = vector.multi_reduction <maximumf>, %92, %cst_58 [1] : vector<8x16xf32> to vector<8xf32>
    %95 = vector.shape_cast %94 : vector<8xf32> to vector<8x1xf32>
    %96 = arith.maximumf %93, %95 : vector<8x1xf32>
    %97 = arith.subf %93, %96 : vector<8x1xf32>
    %98 = math.exp %97 : vector<8x1xf32>
    %99 = vector.broadcast %96 : vector<8x1xf32> to vector<8x16xf32>
    %100 = arith.subf %92, %99 : vector<8x16xf32>
    %101 = math.exp %100 : vector<8x16xf32>
    %c0_59 = arith.constant 0 : index
    %c3_60 = arith.constant 3 : index
    %102 = vector.load %arg12[%c0_59, %c3_60] : memref<8x8xf32, #tpu.memory_space<vmem>>, vector<8x1xf32>
    %103 = arith.mulf %98, %102 : vector<8x1xf32>
    %cst_61 = arith.constant dense<0.000000e+00> : vector<8xf32>
    %104 = vector.multi_reduction <add>, %101, %cst_61 [1] : vector<8x16xf32> to vector<8xf32>
    %105 = vector.shape_cast %104 : vector<8xf32> to vector<8x1xf32>
    %106 = arith.addf %103, %105 : vector<8x1xf32>
    %c0_62 = arith.constant 0 : index
    %c3_63 = arith.constant 3 : index
    %107 = vector.load %arg12[%c0_62, %c3_63] : memref<8x8xf32, #tpu.memory_space<vmem>>, vector<8x1xf32>
    tpu.vector_store %arg12[%c0_62, %c3_63], %106 {strides = array<i32>} : memref<8x8xf32, #tpu.memory_space<vmem>>, vector<8x1xf32>,
    %108 = arith.truncf %101 : vector<8x16xf32> to vector<8x16xbf16>
    %cst_64 = arith.constant dense<0.000000e+00> : vector<8x4xf32>
    %109 = tpu.matmul %108, %91, %cst_64 {dimension_numbers = #tpu.dot_dimension_numbers<[1], [1], [0], [0], [0, 0, 1, 0], [], []>} : vector<8x16xbf16>, vector<4x16xbf16>, vector<8x4xf32> -> vector<8x4xf32>
    %c0_65 = arith.constant 0 : index
    %c12_66 = arith.constant 12 : index
    %110 = vector.load %arg13[%c0_65, %c12_66] : memref<8x32xf32, #tpu.memory_space<vmem>>, vector<8x4xf32>
    %111 = vector.broadcast %98 : vector<8x1xf32> to vector<8x4xf32>
    %112 = arith.mulf %111, %110 : vector<8x4xf32>
    %113 = arith.addf %112, %109 : vector<8x4xf32>
    %c0_67 = arith.constant 0 : index
    %c12_68 = arith.constant 12 : index
    %114 = vector.load %arg13[%c0_67, %c12_68] : memref<8x32xf32, #tpu.memory_space<vmem>>, vector<8x4xf32>
    tpu.vector_store %arg13[%c0_67, %c12_68], %113 {strides = array<i32>} : memref<8x32xf32, #tpu.memory_space<vmem>>, vector<8x4xf32>,
    %c0_69 = arith.constant 0 : index
    %c3_70 = arith.constant 3 : index
    %115 = vector.load %arg11[%c0_69, %c3_70] : memref<8x8xf32, #tpu.memory_space<vmem>>, vector<8x1xf32>
    tpu.vector_store %arg11[%c0_69, %c3_70], %96 {strides = array<i32>} : memref<8x8xf32, #tpu.memory_space<vmem>>, vector<8x1xf32>,
    %c0_71 = arith.constant 0 : index
    %c16 = arith.constant 16 : index
    %116 = vector.load %arg10[%c0_71, %c16] : memref<8x32xbf16, #tpu.memory_space<vmem>>, vector<8x4xbf16>
    %117 = vector.extract_strided_slice %7 {offsets = [16, 0], sizes = [4, 16], strides = [1, 1]} : vector<64x16xbf16> to vector<4x16xbf16>
    %118 = vector.extract_strided_slice %7 {offsets = [48, 0], sizes = [4, 16], strides = [1, 1]} : vector<64x16xbf16> to vector<4x16xbf16>
    %cst_72 = arith.constant dense<0.000000e+00> : vector<8x16xf32>
    %119 = tpu.matmul %116, %117, %cst_72 {dimension_numbers = #tpu.dot_dimension_numbers<[1], [0], [0], [1], [0, 0, 1, 1], [], []>} : vector<8x4xbf16>, vector<4x16xbf16>, vector<8x16xf32> -> vector<8x16xf32>
    %c0_73 = arith.constant 0 : index
    %c4_74 = arith.constant 4 : index
    %120 = vector.load %arg11[%c0_73, %c4_74] : memref<8x8xf32, #tpu.memory_space<vmem>>, vector<8x1xf32>
    %cst_75 = arith.constant dense<0xFF800000> : vector<8xf32>
    %121 = vector.multi_reduction <maximumf>, %119, %cst_75 [1] : vector<8x16xf32> to vector<8xf32>
    %122 = vector.shape_cast %121 : vector<8xf32> to vector<8x1xf32>
    %123 = arith.maximumf %120, %122 : vector<8x1xf32>
    %124 = arith.subf %120, %123 : vector<8x1xf32>
    %125 = math.exp %124 : vector<8x1xf32>
    %126 = vector.broadcast %123 : vector<8x1xf32> to vector<8x16xf32>
    %127 = arith.subf %119, %126 : vector<8x16xf32>
    %128 = math.exp %127 : vector<8x16xf32>
    %c0_76 = arith.constant 0 : index
    %c4_77 = arith.constant 4 : index
    %129 = vector.load %arg12[%c0_76, %c4_77] : memref<8x8xf32, #tpu.memory_space<vmem>>, vector<8x1xf32>
    %130 = arith.mulf %125, %129 : vector<8x1xf32>
    %cst_78 = arith.constant dense<0.000000e+00> : vector<8xf32>
    %131 = vector.multi_reduction <add>, %128, %cst_78 [1] : vector<8x16xf32> to vector<8xf32>
    %132 = vector.shape_cast %131 : vector<8xf32> to vector<8x1xf32>
    %133 = arith.addf %130, %132 : vector<8x1xf32>
    %c0_79 = arith.constant 0 : index
    %c4_80 = arith.constant 4 : index
    %134 = vector.load %arg12[%c0_79, %c4_80] : memref<8x8xf32, #tpu.memory_space<vmem>>, vector<8x1xf32>
    tpu.vector_store %arg12[%c0_79, %c4_80], %133 {strides = array<i32>} : memref<8x8xf32, #tpu.memory_space<vmem>>, vector<8x1xf32>,
    %135 = arith.truncf %128 : vector<8x16xf32> to vector<8x16xbf16>
    %cst_81 = arith.constant dense<0.000000e+00> : vector<8x4xf32>
    %136 = tpu.matmul %135, %118, %cst_81 {dimension_numbers = #tpu.dot_dimension_numbers<[1], [1], [0], [0], [0, 0, 1, 0], [], []>} : vector<8x16xbf16>, vector<4x16xbf16>, vector<8x4xf32> -> vector<8x4xf32>
    %c0_82 = arith.constant 0 : index
    %c16_83 = arith.constant 16 : index
    %137 = vector.load %arg13[%c0_82, %c16_83] : memref<8x32xf32, #tpu.memory_space<vmem>>, vector<8x4xf32>
    %138 = vector.broadcast %125 : vector<8x1xf32> to vector<8x4xf32>
    %139 = arith.mulf %138, %137 : vector<8x4xf32>
    %140 = arith.addf %139, %136 : vector<8x4xf32>
    %c0_84 = arith.constant 0 : index
    %c16_85 = arith.constant 16 : index
    %141 = vector.load %arg13[%c0_84, %c16_85] : memref<8x32xf32, #tpu.memory_space<vmem>>, vector<8x4xf32>
    tpu.vector_store %arg13[%c0_84, %c16_85], %140 {strides = array<i32>} : memref<8x32xf32, #tpu.memory_space<vmem>>, vector<8x4xf32>,
    %c0_86 = arith.constant 0 : index
    %c4_87 = arith.constant 4 : index
    %142 = vector.load %arg11[%c0_86, %c4_87] : memref<8x8xf32, #tpu.memory_space<vmem>>, vector<8x1xf32>
    tpu.vector_store %arg11[%c0_86, %c4_87], %123 {strides = array<i32>} : memref<8x8xf32, #tpu.memory_space<vmem>>, vector<8x1xf32>,
    %c0_88 = arith.constant 0 : index
    %c20 = arith.constant 20 : index
    %143 = vector.load %arg10[%c0_88, %c20] : memref<8x32xbf16, #tpu.memory_space<vmem>>, vector<8x4xbf16>
    %144 = vector.extract_strided_slice %7 {offsets = [20, 0], sizes = [4, 16], strides = [1, 1]} : vector<64x16xbf16> to vector<4x16xbf16>
    %145 = vector.extract_strided_slice %7 {offsets = [52, 0], sizes = [4, 16], strides = [1, 1]} : vector<64x16xbf16> to vector<4x16xbf16>
    %cst_89 = arith.constant dense<0.000000e+00> : vector<8x16xf32>
    %146 = tpu.matmul %143, %144, %cst_89 {dimension_numbers = #tpu.dot_dimension_numbers<[1], [0], [0], [1], [0, 0, 1, 1], [], []>} : vector<8x4xbf16>, vector<4x16xbf16>, vector<8x16xf32> -> vector<8x16xf32>
    %c0_90 = arith.constant 0 : index
    %c5 = arith.constant 5 : index
    %147 = vector.load %arg11[%c0_90, %c5] : memref<8x8xf32, #tpu.memory_space<vmem>>, vector<8x1xf32>
    %cst_91 = arith.constant dense<0xFF800000> : vector<8xf32>
    %148 = vector.multi_reduction <maximumf>, %146, %cst_91 [1] : vector<8x16xf32> to vector<8xf32>
    %149 = vector.shape_cast %148 : vector<8xf32> to vector<8x1xf32>
    %150 = arith.maximumf %147, %149 : vector<8x1xf32>
    %151 = arith.subf %147, %150 : vector<8x1xf32>
    %152 = math.exp %151 : vector<8x1xf32>
    %153 = vector.broadcast %150 : vector<8x1xf32> to vector<8x16xf32>
    %154 = arith.subf %146, %153 : vector<8x16xf32>
    %155 = math.exp %154 : vector<8x16xf32>
    %c0_92 = arith.constant 0 : index
    %c5_93 = arith.constant 5 : index
    %156 = vector.load %arg12[%c0_92, %c5_93] : memref<8x8xf32, #tpu.memory_space<vmem>>, vector<8x1xf32>
    %157 = arith.mulf %152, %156 : vector<8x1xf32>
    %cst_94 = arith.constant dense<0.000000e+00> : vector<8xf32>
    %158 = vector.multi_reduction <add>, %155, %cst_94 [1] : vector<8x16xf32> to vector<8xf32>
    %159 = vector.shape_cast %158 : vector<8xf32> to vector<8x1xf32>
    %160 = arith.addf %157, %159 : vector<8x1xf32>
    %c0_95 = arith.constant 0 : index
    %c5_96 = arith.constant 5 : index
    %161 = vector.load %arg12[%c0_95, %c5_96] : memref<8x8xf32, #tpu.memory_space<vmem>>, vector<8x1xf32>
    tpu.vector_store %arg12[%c0_95, %c5_96], %160 {strides = array<i32>} : memref<8x8xf32, #tpu.memory_space<vmem>>, vector<8x1xf32>,
    %162 = arith.truncf %155 : vector<8x16xf32> to vector<8x16xbf16>
    %cst_97 = arith.constant dense<0.000000e+00> : vector<8x4xf32>
    %163 = tpu.matmul %162, %145, %cst_97 {dimension_numbers = #tpu.dot_dimension_numbers<[1], [1], [0], [0], [0, 0, 1, 0], [], []>} : vector<8x16xbf16>, vector<4x16xbf16>, vector<8x4xf32> -> vector<8x4xf32>
    %c0_98 = arith.constant 0 : index
    %c20_99 = arith.constant 20 : index
    %164 = vector.load %arg13[%c0_98, %c20_99] : memref<8x32xf32, #tpu.memory_space<vmem>>, vector<8x4xf32>
    %165 = vector.broadcast %152 : vector<8x1xf32> to vector<8x4xf32>
    %166 = arith.mulf %165, %164 : vector<8x4xf32>
    %167 = arith.addf %166, %163 : vector<8x4xf32>
    %c0_100 = arith.constant 0 : index
    %c20_101 = arith.constant 20 : index
    %168 = vector.load %arg13[%c0_100, %c20_101] : memref<8x32xf32, #tpu.memory_space<vmem>>, vector<8x4xf32>
    tpu.vector_store %arg13[%c0_100, %c20_101], %167 {strides = array<i32>} : memref<8x32xf32, #tpu.memory_space<vmem>>, vector<8x4xf32>,
    %c0_102 = arith.constant 0 : index
    %c5_103 = arith.constant 5 : index
    %169 = vector.load %arg11[%c0_102, %c5_103] : memref<8x8xf32, #tpu.memory_space<vmem>>, vector<8x1xf32>
    tpu.vector_store %arg11[%c0_102, %c5_103], %150 {strides = array<i32>} : memref<8x8xf32, #tpu.memory_space<vmem>>, vector<8x1xf32>,
    %c0_104 = arith.constant 0 : index
    %c24 = arith.constant 24 : index
    %170 = vector.load %arg10[%c0_104, %c24] : memref<8x32xbf16, #tpu.memory_space<vmem>>, vector<8x4xbf16>
    %171 = vector.extract_strided_slice %7 {offsets = [24, 0], sizes = [4, 16], strides = [1, 1]} : vector<64x16xbf16> to vector<4x16xbf16>
    %172 = vector.extract_strided_slice %7 {offsets = [56, 0], sizes = [4, 16], strides = [1, 1]} : vector<64x16xbf16> to vector<4x16xbf16>
    %cst_105 = arith.constant dense<0.000000e+00> : vector<8x16xf32>
    %173 = tpu.matmul %170, %171, %cst_105 {dimension_numbers = #tpu.dot_dimension_numbers<[1], [0], [0], [1], [0, 0, 1, 1], [], []>} : vector<8x4xbf16>, vector<4x16xbf16>, vector<8x16xf32> -> vector<8x16xf32>
    %c0_106 = arith.constant 0 : index
    %c6 = arith.constant 6 : index
    %174 = vector.load %arg11[%c0_106, %c6] : memref<8x8xf32, #tpu.memory_space<vmem>>, vector<8x1xf32>
    %cst_107 = arith.constant dense<0xFF800000> : vector<8xf32>
    %175 = vector.multi_reduction <maximumf>, %173, %cst_107 [1] : vector<8x16xf32> to vector<8xf32>
    %176 = vector.shape_cast %175 : vector<8xf32> to vector<8x1xf32>
    %177 = arith.maximumf %174, %176 : vector<8x1xf32>
    %178 = arith.subf %174, %177 : vector<8x1xf32>
    %179 = math.exp %178 : vector<8x1xf32>
    %180 = vector.broadcast %177 : vector<8x1xf32> to vector<8x16xf32>
    %181 = arith.subf %173, %180 : vector<8x16xf32>
    %182 = math.exp %181 : vector<8x16xf32>
    %c0_108 = arith.constant 0 : index
    %c6_109 = arith.constant 6 : index
    %183 = vector.load %arg12[%c0_108, %c6_109] : memref<8x8xf32, #tpu.memory_space<vmem>>, vector<8x1xf32>
    %184 = arith.mulf %179, %183 : vector<8x1xf32>
    %cst_110 = arith.constant dense<0.000000e+00> : vector<8xf32>
    %185 = vector.multi_reduction <add>, %182, %cst_110 [1] : vector<8x16xf32> to vector<8xf32>
    %186 = vector.shape_cast %185 : vector<8xf32> to vector<8x1xf32>
    %187 = arith.addf %184, %186 : vector<8x1xf32>
    %c0_111 = arith.constant 0 : index
    %c6_112 = arith.constant 6 : index
    %188 = vector.load %arg12[%c0_111, %c6_112] : memref<8x8xf32, #tpu.memory_space<vmem>>, vector<8x1xf32>
    tpu.vector_store %arg12[%c0_111, %c6_112], %187 {strides = array<i32>} : memref<8x8xf32, #tpu.memory_space<vmem>>, vector<8x1xf32>,
    %189 = arith.truncf %182 : vector<8x16xf32> to vector<8x16xbf16>
    %cst_113 = arith.constant dense<0.000000e+00> : vector<8x4xf32>
    %190 = tpu.matmul %189, %172, %cst_113 {dimension_numbers = #tpu.dot_dimension_numbers<[1], [1], [0], [0], [0, 0, 1, 0], [], []>} : vector<8x16xbf16>, vector<4x16xbf16>, vector<8x4xf32> -> vector<8x4xf32>
    %c0_114 = arith.constant 0 : index
    %c24_115 = arith.constant 24 : index
    %191 = vector.load %arg13[%c0_114, %c24_115] : memref<8x32xf32, #tpu.memory_space<vmem>>, vector<8x4xf32>
    %192 = vector.broadcast %179 : vector<8x1xf32> to vector<8x4xf32>
    %193 = arith.mulf %192, %191 : vector<8x4xf32>
    %194 = arith.addf %193, %190 : vector<8x4xf32>
    %c0_116 = arith.constant 0 : index
    %c24_117 = arith.constant 24 : index
    %195 = vector.load %arg13[%c0_116, %c24_117] : memref<8x32xf32, #tpu.memory_space<vmem>>, vector<8x4xf32>
    tpu.vector_store %arg13[%c0_116, %c24_117], %194 {strides = array<i32>} : memref<8x32xf32, #tpu.memory_space<vmem>>, vector<8x4xf32>,
    %c0_118 = arith.constant 0 : index
    %c6_119 = arith.constant 6 : index
    %196 = vector.load %arg11[%c0_118, %c6_119] : memref<8x8xf32, #tpu.memory_space<vmem>>, vector<8x1xf32>
    tpu.vector_store %arg11[%c0_118, %c6_119], %177 {strides = array<i32>} : memref<8x8xf32, #tpu.memory_space<vmem>>, vector<8x1xf32>,
    %c0_120 = arith.constant 0 : index
    %c28 = arith.constant 28 : index
    %197 = vector.load %arg10[%c0_120, %c28] : memref<8x32xbf16, #tpu.memory_space<vmem>>, vector<8x4xbf16>
    %198 = vector.extract_strided_slice %7 {offsets = [28, 0], sizes = [4, 16], strides = [1, 1]} : vector<64x16xbf16> to vector<4x16xbf16>
    %199 = vector.extract_strided_slice %7 {offsets = [60, 0], sizes = [4, 16], strides = [1, 1]} : vector<64x16xbf16> to vector<4x16xbf16>
    %cst_121 = arith.constant dense<0.000000e+00> : vector<8x16xf32>
    %200 = tpu.matmul %197, %198, %cst_121 {dimension_numbers = #tpu.dot_dimension_numbers<[1], [0], [0], [1], [0, 0, 1, 1], [], []>} : vector<8x4xbf16>, vector<4x16xbf16>, vector<8x16xf32> -> vector<8x16xf32>
    %c0_122 = arith.constant 0 : index
    %c7 = arith.constant 7 : index
    %201 = vector.load %arg11[%c0_122, %c7] : memref<8x8xf32, #tpu.memory_space<vmem>>, vector<8x1xf32>
    %cst_123 = arith.constant dense<0xFF800000> : vector<8xf32>
    %202 = vector.multi_reduction <maximumf>, %200, %cst_123 [1] : vector<8x16xf32> to vector<8xf32>
    %203 = vector.shape_cast %202 : vector<8xf32> to vector<8x1xf32>
    %204 = arith.maximumf %201, %203 : vector<8x1xf32>
    %205 = arith.subf %201, %204 : vector<8x1xf32>
    %206 = math.exp %205 : vector<8x1xf32>
    %207 = vector.broadcast %204 : vector<8x1xf32> to vector<8x16xf32>
    %208 = arith.subf %200, %207 : vector<8x16xf32>
    %209 = math.exp %208 : vector<8x16xf32>
    %c0_124 = arith.constant 0 : index
    %c7_125 = arith.constant 7 : index
    %210 = vector.load %arg12[%c0_124, %c7_125] : memref<8x8xf32, #tpu.memory_space<vmem>>, vector<8x1xf32>
    %211 = arith.mulf %206, %210 : vector<8x1xf32>
    %cst_126 = arith.constant dense<0.000000e+00> : vector<8xf32>
    %212 = vector.multi_reduction <add>, %209, %cst_126 [1] : vector<8x16xf32> to vector<8xf32>
    %213 = vector.shape_cast %212 : vector<8xf32> to vector<8x1xf32>
    %214 = arith.addf %211, %213 : vector<8x1xf32>
    %c0_127 = arith.constant 0 : index
    %c7_128 = arith.constant 7 : index
    %215 = vector.load %arg12[%c0_127, %c7_128] : memref<8x8xf32, #tpu.memory_space<vmem>>, vector<8x1xf32>
    tpu.vector_store %arg12[%c0_127, %c7_128], %214 {strides = array<i32>} : memref<8x8xf32, #tpu.memory_space<vmem>>, vector<8x1xf32>,
    %216 = arith.truncf %209 : vector<8x16xf32> to vector<8x16xbf16>
    %cst_129 = arith.constant dense<0.000000e+00> : vector<8x4xf32>
    %217 = tpu.matmul %216, %199, %cst_129 {dimension_numbers = #tpu.dot_dimension_numbers<[1], [1], [0], [0], [0, 0, 1, 0], [], []>} : vector<8x16xbf16>, vector<4x16xbf16>, vector<8x4xf32> -> vector<8x4xf32>
    %c0_130 = arith.constant 0 : index
    %c28_131 = arith.constant 28 : index
    %218 = vector.load %arg13[%c0_130, %c28_131] : memref<8x32xf32, #tpu.memory_space<vmem>>, vector<8x4xf32>
    %219 = vector.broadcast %206 : vector<8x1xf32> to vector<8x4xf32>
    %220 = arith.mulf %219, %218 : vector<8x4xf32>
    %221 = arith.addf %220, %217 : vector<8x4xf32>
    %c0_132 = arith.constant 0 : index
    %c28_133 = arith.constant 28 : index
    %222 = vector.load %arg13[%c0_132, %c28_133] : memref<8x32xf32, #tpu.memory_space<vmem>>, vector<8x4xf32>
    tpu.vector_store %arg13[%c0_132, %c28_133], %221 {strides = array<i32>} : memref<8x32xf32, #tpu.memory_space<vmem>>, vector<8x4xf32>,
    %c0_134 = arith.constant 0 : index
    %c7_135 = arith.constant 7 : index
    %223 = vector.load %arg11[%c0_134, %c7_135] : memref<8x8xf32, #tpu.memory_space<vmem>>, vector<8x1xf32>
    tpu.vector_store %arg11[%c0_134, %c7_135], %204 {strides = array<i32>} : memref<8x8xf32, #tpu.memory_space<vmem>>, vector<8x1xf32>,
    %c1_i32 = arith.constant 1 : i32
    %224 = arith.cmpi eq, %arg1, %c1_i32 : i32
    %225 = arith.extui %224 : i1 to i32
    %c0_i32_136 = arith.constant 0 : i32
    %226 = arith.cmpi ne, %225, %c0_i32_136 : i32
    scf.if %226 {
      %c0_137 = arith.constant 0 : index
      %c0_138 = arith.constant 0 : index
      %c0_139 = arith.constant 0 : index
      %227 = vector.load %arg2[%c0_137, %c0_138, %c0_139] : memref<1x8x32xf32, #tpu.memory_space<vmem>>, vector<1x8x32xf32>
      %228 = vector.shape_cast %227 : vector<1x8x32xf32> to vector<8x32xf32>
      %c0_140 = arith.constant 0 : index
      %c0_141 = arith.constant 0 : index
      %229 = vector.load %arg13[%c0_140, %c0_141] : memref<8x32xf32, #tpu.memory_space<vmem>>, vector<8x4xf32>
      %c0_142 = arith.constant 0 : index
      %c0_143 = arith.constant 0 : index
      %230 = vector.load %arg12[%c0_142, %c0_143] : memref<8x8xf32, #tpu.memory_space<vmem>>, vector<8x1xf32>
      %231 = vector.broadcast %230 : vector<8x1xf32> to vector<8x4xf32>
      %232 = arith.divf %229, %231 : vector<8x4xf32>
      %c0_144 = arith.constant 0 : index
      %c0_145 = arith.constant 0 : index
      %233 = vector.load %arg13[%c0_144, %c0_145] : memref<8x32xf32, #tpu.memory_space<vmem>>, vector<8x4xf32>
      tpu.vector_store %arg13[%c0_144, %c0_145], %232 {strides = array<i32>} : memref<8x32xf32, #tpu.memory_space<vmem>>, vector<8x4xf32>,
      %c0_146 = arith.constant 0 : index
      %c4_147 = arith.constant 4 : index
      %234 = vector.load %arg13[%c0_146, %c4_147] : memref<8x32xf32, #tpu.memory_space<vmem>>, vector<8x4xf32>
      %c0_148 = arith.constant 0 : index
      %c1_149 = arith.constant 1 : index
      %235 = vector.load %arg12[%c0_148, %c1_149] : memref<8x8xf32, #tpu.memory_space<vmem>>, vector<8x1xf32>
      %236 = vector.broadcast %235 : vector<8x1xf32> to vector<8x4xf32>
      %237 = arith.divf %234, %236 : vector<8x4xf32>
      %c0_150 = arith.constant 0 : index
      %c4_151 = arith.constant 4 : index
      %238 = vector.load %arg13[%c0_150, %c4_151] : memref<8x32xf32, #tpu.memory_space<vmem>>, vector<8x4xf32>
      tpu.vector_store %arg13[%c0_150, %c4_151], %237 {strides = array<i32>} : memref<8x32xf32, #tpu.memory_space<vmem>>, vector<8x4xf32>,
      %c0_152 = arith.constant 0 : index
      %c8_153 = arith.constant 8 : index
      %239 = vector.load %arg13[%c0_152, %c8_153] : memref<8x32xf32, #tpu.memory_space<vmem>>, vector<8x4xf32>
      %c0_154 = arith.constant 0 : index
      %c2_155 = arith.constant 2 : index
      %240 = vector.load %arg12[%c0_154, %c2_155] : memref<8x8xf32, #tpu.memory_space<vmem>>, vector<8x1xf32>
      %241 = vector.broadcast %240 : vector<8x1xf32> to vector<8x4xf32>
      %242 = arith.divf %239, %241 : vector<8x4xf32>
      %c0_156 = arith.constant 0 : index
      %c8_157 = arith.constant 8 : index
      %243 = vector.load %arg13[%c0_156, %c8_157] : memref<8x32xf32, #tpu.memory_space<vmem>>, vector<8x4xf32>
      tpu.vector_store %arg13[%c0_156, %c8_157], %242 {strides = array<i32>} : memref<8x32xf32, #tpu.memory_space<vmem>>, vector<8x4xf32>,
      %c0_158 = arith.constant 0 : index
      %c12_159 = arith.constant 12 : index
      %244 = vector.load %arg13[%c0_158, %c12_159] : memref<8x32xf32, #tpu.memory_space<vmem>>, vector<8x4xf32>
      %c0_160 = arith.constant 0 : index
      %c3_161 = arith.constant 3 : index
      %245 = vector.load %arg12[%c0_160, %c3_161] : memref<8x8xf32, #tpu.memory_space<vmem>>, vector<8x1xf32>
      %246 = vector.broadcast %245 : vector<8x1xf32> to vector<8x4xf32>
      %247 = arith.divf %244, %246 : vector<8x4xf32>
      %c0_162 = arith.constant 0 : index
      %c12_163 = arith.constant 12 : index
      %248 = vector.load %arg13[%c0_162, %c12_163] : memref<8x32xf32, #tpu.memory_space<vmem>>, vector<8x4xf32>
      tpu.vector_store %arg13[%c0_162, %c12_163], %247 {strides = array<i32>} : memref<8x32xf32, #tpu.memory_space<vmem>>, vector<8x4xf32>,
      %c0_164 = arith.constant 0 : index
      %c16_165 = arith.constant 16 : index
      %249 = vector.load %arg13[%c0_164, %c16_165] : memref<8x32xf32, #tpu.memory_space<vmem>>, vector<8x4xf32>
      %c0_166 = arith.constant 0 : index
      %c4_167 = arith.constant 4 : index
      %250 = vector.load %arg12[%c0_166, %c4_167] : memref<8x8xf32, #tpu.memory_space<vmem>>, vector<8x1xf32>
      %251 = vector.broadcast %250 : vector<8x1xf32> to vector<8x4xf32>
      %252 = arith.divf %249, %251 : vector<8x4xf32>
      %c0_168 = arith.constant 0 : index
      %c16_169 = arith.constant 16 : index
      %253 = vector.load %arg13[%c0_168, %c16_169] : memref<8x32xf32, #tpu.memory_space<vmem>>, vector<8x4xf32>
      tpu.vector_store %arg13[%c0_168, %c16_169], %252 {strides = array<i32>} : memref<8x32xf32, #tpu.memory_space<vmem>>, vector<8x4xf32>,
      %c0_170 = arith.constant 0 : index
      %c20_171 = arith.constant 20 : index
      %254 = vector.load %arg13[%c0_170, %c20_171] : memref<8x32xf32, #tpu.memory_space<vmem>>, vector<8x4xf32>
      %c0_172 = arith.constant 0 : index
      %c5_173 = arith.constant 5 : index
      %255 = vector.load %arg12[%c0_172, %c5_173] : memref<8x8xf32, #tpu.memory_space<vmem>>, vector<8x1xf32>
      %256 = vector.broadcast %255 : vector<8x1xf32> to vector<8x4xf32>
      %257 = arith.divf %254, %256 : vector<8x4xf32>
      %c0_174 = arith.constant 0 : index
      %c20_175 = arith.constant 20 : index
      %258 = vector.load %arg13[%c0_174, %c20_175] : memref<8x32xf32, #tpu.memory_space<vmem>>, vector<8x4xf32>
      tpu.vector_store %arg13[%c0_174, %c20_175], %257 {strides = array<i32>} : memref<8x32xf32, #tpu.memory_space<vmem>>, vector<8x4xf32>,
      %c0_176 = arith.constant 0 : index
      %c24_177 = arith.constant 24 : index
      %259 = vector.load %arg13[%c0_176, %c24_177] : memref<8x32xf32, #tpu.memory_space<vmem>>, vector<8x4xf32>
      %c0_178 = arith.constant 0 : index
      %c6_179 = arith.constant 6 : index
      %260 = vector.load %arg12[%c0_178, %c6_179] : memref<8x8xf32, #tpu.memory_space<vmem>>, vector<8x1xf32>
      %261 = vector.broadcast %260 : vector<8x1xf32> to vector<8x4xf32>
      %262 = arith.divf %259, %261 : vector<8x4xf32>
      %c0_180 = arith.constant 0 : index
      %c24_181 = arith.constant 24 : index
      %263 = vector.load %arg13[%c0_180, %c24_181] : memref<8x32xf32, #tpu.memory_space<vmem>>, vector<8x4xf32>
      tpu.vector_store %arg13[%c0_180, %c24_181], %262 {strides = array<i32>} : memref<8x32xf32, #tpu.memory_space<vmem>>, vector<8x4xf32>,
      %c0_182 = arith.constant 0 : index
      %c28_183 = arith.constant 28 : index
      %264 = vector.load %arg13[%c0_182, %c28_183] : memref<8x32xf32, #tpu.memory_space<vmem>>, vector<8x4xf32>
      %c0_184 = arith.constant 0 : index
      %c7_185 = arith.constant 7 : index
      %265 = vector.load %arg12[%c0_184, %c7_185] : memref<8x8xf32, #tpu.memory_space<vmem>>, vector<8x1xf32>
      %266 = vector.broadcast %265 : vector<8x1xf32> to vector<8x4xf32>
      %267 = arith.divf %264, %266 : vector<8x4xf32>
      %c0_186 = arith.constant 0 : index
      %c28_187 = arith.constant 28 : index
      %268 = vector.load %arg13[%c0_186, %c28_187] : memref<8x32xf32, #tpu.memory_space<vmem>>, vector<8x4xf32>
      tpu.vector_store %arg13[%c0_186, %c28_187], %267 {strides = array<i32>} : memref<8x32xf32, #tpu.memory_space<vmem>>, vector<8x4xf32>,
      %c0_188 = arith.constant 0 : index
      %c0_189 = arith.constant 0 : index
      %269 = vector.load %arg13[%c0_188, %c0_189] : memref<8x32xf32, #tpu.memory_space<vmem>>, vector<8x32xf32>
      %270 = arith.truncf %269 : vector<8x32xf32> to vector<8x32xbf16>
      %c0_190 = arith.constant 0 : index
      %c0_191 = arith.constant 0 : index
      %271 = vector.load %arg6[%c0_190, %c0_191] : memref<32x32xbf16, #tpu.memory_space<vmem>>, vector<32x32xbf16>
      %cst_192 = arith.constant dense<0.000000e+00> : vector<8x32xf32>
      %272 = tpu.matmul %270, %271, %cst_192 {dimension_numbers = #tpu.dot_dimension_numbers<[1], [1], [0], [0], [0, 0, 1, 0], [], []>} : vector<8x32xbf16>, vector<32x32xbf16>, vector<8x32xf32> -> vector<8x32xf32>
      %c0_193 = arith.constant 0 : index
      %c0_194 = arith.constant 0 : index
      %273 = vector.load %arg7[%c0_193, %c0_194] : memref<2x32xf32, #tpu.memory_space<vmem>>, vector<1x32xf32>
      %274 = vector.broadcast %273 : vector<1x32xf32> to vector<8x32xf32>
      %275 = arith.mulf %272, %274 : vector<8x32xf32>
      %cst_195 = arith.constant dense<0.000000e+00> : vector<8xf32>
      %276 = vector.multi_reduction <add>, %275, %cst_195 [1] : vector<8x32xf32> to vector<8xf32>
      %277 = vector.shape_cast %276 : vector<8xf32> to vector<8x1xf32>
      %c1_196 = arith.constant 1 : index
      %c0_197 = arith.constant 0 : index
      %278 = vector.load %arg7[%c1_196, %c0_197] : memref<2x32xf32, #tpu.memory_space<vmem>>, vector<1x32xf32>
      %cst_198 = arith.constant dense<0.000000e+00> : vector<1x8xf32>
      %279 = tpu.matmul %278, %272, %cst_198 {dimension_numbers = #tpu.dot_dimension_numbers<[1], [1], [0], [0], [0, 0, 1, 0], [], []>} : vector<1x32xf32>, vector<8x32xf32>, vector<1x8xf32> -> vector<1x8xf32>
      %280 = vector.broadcast %277 : vector<8x1xf32> to vector<8x8xf32>
      %281 = vector.broadcast %279 : vector<1x8xf32> to vector<8x8xf32>
      %282 = arith.addf %280, %281 : vector<8x8xf32>
      %cst_199 = arith.constant dense<0.000000e+00> : vector<8x8xf32>
      %283 = tpu.matmul %272, %272, %cst_199 {dimension_numbers = #tpu.dot_dimension_numbers<[1], [1], [0], [0], [0, 0, 1, 0], [], []>} : vector<8x32xf32>, vector<8x32xf32>, vector<8x8xf32> -> vector<8x8xf32>
      %cst_200 = arith.constant dense<0xFF800000> : vector<8xf32>
      %284 = vector.multi_reduction <maximumf>, %283, %cst_200 [1] : vector<8x8xf32> to vector<8xf32>
      %285 = vector.shape_cast %284 : vector<8xf32> to vector<8x1xf32>
      %286 = vector.broadcast %285 : vector<8x1xf32> to vector<8x8xf32>
      %287 = arith.subf %283, %286 : vector<8x8xf32>
      %288 = math.exp %287 : vector<8x8xf32>
      %cst_201 = arith.constant dense<0.000000e+00> : vector<8xf32>
      %289 = vector.multi_reduction <add>, %288, %cst_201 [1] : vector<8x8xf32> to vector<8xf32>
      %290 = vector.shape_cast %289 : vector<8xf32> to vector<8x1xf32>
      %291 = vector.broadcast %290 : vector<8x1xf32> to vector<8x8xf32>
      %292 = arith.divf %288, %291 : vector<8x8xf32>
      %293 = arith.addf %282, %292 : vector<8x8xf32>
      %cst_202 = arith.constant dense<0xFF800000> : vector<8xf32>
      %294 = vector.multi_reduction <maximumf>, %293, %cst_202 [1] : vector<8x8xf32> to vector<8xf32>
      %295 = vector.shape_cast %294 : vector<8xf32> to vector<8x1xf32>
      %296 = vector.broadcast %295 : vector<8x1xf32> to vector<8x8xf32>
      %297 = arith.subf %293, %296 : vector<8x8xf32>
      %298 = math.exp %297 : vector<8x8xf32>
      %cst_203 = arith.constant dense<0.000000e+00> : vector<8xf32>
      %299 = vector.multi_reduction <add>, %298, %cst_203 [1] : vector<8x8xf32> to vector<8xf32>
      %300 = vector.shape_cast %299 : vector<8xf32> to vector<8x1xf32>
      %301 = vector.broadcast %300 : vector<8x1xf32> to vector<8x8xf32>
      %302 = arith.divf %298, %301 : vector<8x8xf32>
      %cst_204 = arith.constant dense<0.000000e+00> : vector<8x32xf32>
      %303 = tpu.matmul %302, %272, %cst_204 {dimension_numbers = #tpu.dot_dimension_numbers<[1], [0], [0], [1], [0, 0, 1, 1], [], []>} : vector<8x8xf32>, vector<8x32xf32>, vector<8x32xf32> -> vector<8x32xf32>
      %304 = arith.addf %303, %272 : vector<8x32xf32>
      %c0_205 = arith.constant 0 : index
      %c0_206 = arith.constant 0 : index
      %305 = vector.load %arg8[%c0_205, %c0_206] : memref<4x32xf32, #tpu.memory_space<vmem>>, vector<1x32xf32>
      %c1_207 = arith.constant 1 : index
      %c0_208 = arith.constant 0 : index
      %306 = vector.load %arg8[%c1_207, %c0_208] : memref<4x32xf32, #tpu.memory_space<vmem>>, vector<1x32xf32>
      %cst_209 = arith.constant dense<0.000000e+00> : vector<8xf32>
      %307 = vector.multi_reduction <add>, %304, %cst_209 [1] : vector<8x32xf32> to vector<8xf32>
      %308 = vector.shape_cast %307 : vector<8xf32> to vector<8x1xf32>
      %cst_210 = arith.constant 3.200000e+01 : f32
      %309 = vector.broadcast %cst_210 : f32 to vector<8x1xf32>
      %310 = arith.divf %308, %309 : vector<8x1xf32>
      %311 = vector.broadcast %310 : vector<8x1xf32> to vector<8x32xf32>
      %312 = arith.subf %304, %311 : vector<8x32xf32>
      %313 = arith.mulf %312, %312 : vector<8x32xf32>
      %cst_211 = arith.constant dense<0.000000e+00> : vector<8xf32>
      %314 = vector.multi_reduction <add>, %313, %cst_211 [1] : vector<8x32xf32> to vector<8xf32>
      %315 = vector.shape_cast %314 : vector<8xf32> to vector<8x1xf32>
      %cst_212 = arith.constant 3.200000e+01 : f32
      %316 = vector.broadcast %cst_212 : f32 to vector<8x1xf32>
      %317 = arith.divf %315, %316 : vector<8x1xf32>
      %318 = vector.broadcast %310 : vector<8x1xf32> to vector<8x32xf32>
      %319 = arith.subf %304, %318 : vector<8x32xf32>
      %cst_213 = arith.constant 9.99999997E-7 : f32
      %320 = vector.broadcast %cst_213 : f32 to vector<8x1xf32>
      %321 = arith.addf %317, %320 : vector<8x1xf32>
      %322 = math.rsqrt %321 : vector<8x1xf32>
      %323 = vector.broadcast %322 : vector<8x1xf32> to vector<8x32xf32>
      %324 = arith.mulf %319, %323 : vector<8x32xf32>
      %325 = vector.broadcast %305 : vector<1x32xf32> to vector<8x32xf32>
      %326 = arith.mulf %324, %325 : vector<8x32xf32>
      %327 = vector.broadcast %306 : vector<1x32xf32> to vector<8x32xf32>
      %328 = arith.addf %326, %327 : vector<8x32xf32>
      %329 = arith.addf %328, %228 : vector<8x32xf32>
      %c2_214 = arith.constant 2 : index
      %c0_215 = arith.constant 0 : index
      %330 = vector.load %arg8[%c2_214, %c0_215] : memref<4x32xf32, #tpu.memory_space<vmem>>, vector<1x32xf32>
      %c3_216 = arith.constant 3 : index
      %c0_217 = arith.constant 0 : index
      %331 = vector.load %arg8[%c3_216, %c0_217] : memref<4x32xf32, #tpu.memory_space<vmem>>, vector<1x32xf32>
      %cst_218 = arith.constant dense<0.000000e+00> : vector<8xf32>
      %332 = vector.multi_reduction <add>, %329, %cst_218 [1] : vector<8x32xf32> to vector<8xf32>
      %333 = vector.shape_cast %332 : vector<8xf32> to vector<8x1xf32>
      %cst_219 = arith.constant 3.200000e+01 : f32
      %334 = vector.broadcast %cst_219 : f32 to vector<8x1xf32>
      %335 = arith.divf %333, %334 : vector<8x1xf32>
      %336 = vector.broadcast %335 : vector<8x1xf32> to vector<8x32xf32>
      %337 = arith.subf %329, %336 : vector<8x32xf32>
      %338 = arith.mulf %337, %337 : vector<8x32xf32>
      %cst_220 = arith.constant dense<0.000000e+00> : vector<8xf32>
      %339 = vector.multi_reduction <add>, %338, %cst_220 [1] : vector<8x32xf32> to vector<8xf32>
      %340 = vector.shape_cast %339 : vector<8xf32> to vector<8x1xf32>
      %cst_221 = arith.constant 3.200000e+01 : f32
      %341 = vector.broadcast %cst_221 : f32 to vector<8x1xf32>
      %342 = arith.divf %340, %341 : vector<8x1xf32>
      %343 = vector.broadcast %335 : vector<8x1xf32> to vector<8x32xf32>
      %344 = arith.subf %329, %343 : vector<8x32xf32>
      %cst_222 = arith.constant 9.99999997E-7 : f32
      %345 = vector.broadcast %cst_222 : f32 to vector<8x1xf32>
      %346 = arith.addf %342, %345 : vector<8x1xf32>
      %347 = math.rsqrt %346 : vector<8x1xf32>
      %348 = vector.broadcast %347 : vector<8x1xf32> to vector<8x32xf32>
      %349 = arith.mulf %344, %348 : vector<8x32xf32>
      %350 = vector.broadcast %330 : vector<1x32xf32> to vector<8x32xf32>
      %351 = arith.mulf %349, %350 : vector<8x32xf32>
      %352 = vector.broadcast %331 : vector<1x32xf32> to vector<8x32xf32>
      %353 = arith.addf %351, %352 : vector<8x32xf32>
      %c0_223 = arith.constant 0 : index
      %c0_224 = arith.constant 0 : index
      %c0_225 = arith.constant 0 : index
      %354 = vector.load %arg9[%c0_223, %c0_224, %c0_225] : memref<1x8x32xf32, #tpu.memory_space<vmem>>, vector<1x8x32xf32>
      %355 = vector.shape_cast %354 : vector<1x8x32xf32> to vector<8x32xf32>
      %356 = vector.shape_cast %353 : vector<8x32xf32> to vector<1x8x32xf32>
      tpu.vector_store %arg9[%c0_223, %c0_224, %c0_225], %356 {strides = array<i32>} : memref<1x8x32xf32, #tpu.memory_space<vmem>>, vector<1x8x32xf32>,
    } else {
    }
    return
  }
  func.func @transform_0(%arg0: i32, %arg1: i32) -> (i32, i32, i32) {
    %c0_i32 = arith.constant 0 : i32
    %c0_i32_0 = arith.constant 0 : i32
    %c0_i32_1 = arith.constant 0 : i32
    return %arg0, %c0_i32, %c0_i32_0 : i32, i32, i32
  }
  func.func @transform_1(%arg0: i32, %arg1: i32) -> (i32, i32, i32) {
    %c0_i32 = arith.constant 0 : i32
    %c0_i32_0 = arith.constant 0 : i32
    return %arg0, %arg1, %c0_i32 : i32, i32, i32
  }
  func.func @transform_2(%arg0: i32, %arg1: i32) -> (i32, i32) {
    %c0_i32 = arith.constant 0 : i32
    %c0_i32_0 = arith.constant 0 : i32
    %c0_i32_1 = arith.constant 0 : i32
    return %c0_i32, %c0_i32_0 : i32, i32
  }
  func.func @transform_3(%arg0: i32, %arg1: i32) -> (i32, i32) {
    %c0_i32 = arith.constant 0 : i32
    %c0_i32_0 = arith.constant 0 : i32
    %c0_i32_1 = arith.constant 0 : i32
    return %c0_i32, %c0_i32_0 : i32, i32
  }
  func.func @transform_4(%arg0: i32, %arg1: i32) -> (i32, i32) {
    %c0_i32 = arith.constant 0 : i32
    %c0_i32_0 = arith.constant 0 : i32
    %c0_i32_1 = arith.constant 0 : i32
    return %c0_i32, %c0_i32_0 : i32, i32
  }
  func.func @transform_5(%arg0: i32, %arg1: i32) -> (i32, i32) {
    %c0_i32 = arith.constant 0 : i32
    %c0_i32_0 = arith.constant 0 : i32
    %c0_i32_1 = arith.constant 0 : i32
    return %c0_i32, %c0_i32_0 : i32, i32
  }
  func.func @transform_6(%arg0: i32, %arg1: i32) -> (i32, i32) {
    %c0_i32 = arith.constant 0 : i32
    %c0_i32_0 = arith.constant 0 : i32
    %c0_i32_1 = arith.constant 0 : i32
    return %c0_i32, %c0_i32_0 : i32, i32
  }
  func.func @transform_7(%arg0: i32, %arg1: i32) -> (i32, i32, i32) {
    %c0_i32 = arith.constant 0 : i32
    %c0_i32_0 = arith.constant 0 : i32
    %c0_i32_1 = arith.constant 0 : i32
    return %arg0, %c0_i32, %c0_i32_0 : i32, i32, i32
  }
}

module attributes {stable_mosaic.version = 11 : i64} {
  func.func @_cab_kernel(%arg0: i32, %arg1: i32, %arg2: memref<1x8x32xf32, #tpu.memory_space<vmem>>, %arg3: memref<1x16x32xbf16, #tpu.memory_space<vmem>>, %arg4: memref<32x32xbf16, #tpu.memory_space<vmem>>, %arg5: memref<64x32xbf16, #tpu.memory_space<vmem>>, %arg6: memref<32x32xbf16, #tpu.memory_space<vmem>>, %arg7: memref<2x32xf32, #tpu.memory_space<vmem>>, %arg8: memref<4x32xf32, #tpu.memory_space<vmem>>, %arg9: memref<1x8x32xf32, #tpu.memory_space<vmem>>, %arg10: memref<8x32xbf16, #tpu.memory_space<vmem>>, %arg11: memref<8x8xf32, #tpu.memory_space<vmem>>, %arg12: memref<8x8xf32, #tpu.memory_space<vmem>>, %arg13: memref<8x32xf32, #tpu.memory_space<vmem>>) attributes {dimension_semantics = [#tpu.dimension_semantics<parallel>, #tpu.dimension_semantics<arbitrary>], iteration_bounds = array<i64: 2, 2>, scalar_prefetch = 0 : i64, scratch_operands = 4 : i64, tpu.core_type = #tpu.core_type<tc>, window_params = [{transform_indices = @transform_0, window_bounds = array<i64: 1, 8, 32>}, {transform_indices = @transform_1, window_bounds = array<i64: 1, 16, 32>}, {pipeline_mode = #tpu.pipeline_mode<synchronous>, transform_indices = @transform_2, window_bounds = array<i64: 32, 32>}, {pipeline_mode = #tpu.pipeline_mode<synchronous>, transform_indices = @transform_3, window_bounds = array<i64: 64, 32>}, {pipeline_mode = #tpu.pipeline_mode<synchronous>, transform_indices = @transform_4, window_bounds = array<i64: 32, 32>}, {pipeline_mode = #tpu.pipeline_mode<synchronous>, transform_indices = @transform_5, window_bounds = array<i64: 2, 32>}, {pipeline_mode = #tpu.pipeline_mode<synchronous>, transform_indices = @transform_6, window_bounds = array<i64: 4, 32>}, {transform_indices = @transform_7, window_bounds = array<i64: 1, 8, 32>}]} {
    %c0_i32 = arith.constant 0 : i32
    %0 = arith.cmpi eq, %arg1, %c0_i32 : i32
    %1 = arith.extui %0 : i1 to i32
    %c0_i32_0 = arith.constant 0 : i32
    %2 = arith.cmpi ne, %1, %c0_i32_0 : i32
    scf.if %2 {
      %c0_137 = arith.constant 0 : index
      %c0_138 = arith.constant 0 : index
      %c0_139 = arith.constant 0 : index
      %227 = vector.load %arg2[%c0_137, %c0_138, %c0_139] : memref<1x8x32xf32, #tpu.memory_space<vmem>>, vector<1x8x32xf32>
      %228 = vector.shape_cast %227 : vector<1x8x32xf32> to vector<8x32xf32>
      %229 = arith.truncf %228 : vector<8x32xf32> to vector<8x32xbf16>
      %c0_140 = arith.constant 0 : index
      %c0_141 = arith.constant 0 : index
      %230 = vector.load %arg4[%c0_140, %c0_141] : memref<32x32xbf16, #tpu.memory_space<vmem>>, vector<32x32xbf16>
      %cst_142 = arith.constant dense<0.000000e+00> : vector<8x32xf32>
      %231 = tpu.matmul %229, %230, %cst_142 {dimension_numbers = #tpu.dot_dimension_numbers<[1], [1], [0], [0], [0, 0, 1, 0], [], []>} : vector<8x32xbf16>, vector<32x32xbf16>, vector<8x32xf32> -> vector<8x32xf32>
      %232 = arith.truncf %231 : vector<8x32xf32> to vector<8x32xbf16>
      %c0_143 = arith.constant 0 : index
      %c0_144 = arith.constant 0 : index
      %233 = vector.load %arg10[%c0_143, %c0_144] : memref<8x32xbf16, #tpu.memory_space<vmem>>, vector<8x32xbf16>
      tpu.vector_store %arg10[%c0_143, %c0_144], %232 {strides = array<i32>} : memref<8x32xbf16, #tpu.memory_space<vmem>>, vector<8x32xbf16>,
      %cst_145 = arith.constant 0xFF800000 : f32
      %234 = vector.broadcast %cst_145 : f32 to vector<8x8xf32>
      %c0_146 = arith.constant 0 : index
      %c0_147 = arith.constant 0 : index
      %235 = vector.load %arg11[%c0_146, %c0_147] : memref<8x8xf32, #tpu.memory_space<vmem>>, vector<8x8xf32>
      tpu.vector_store %arg11[%c0_146, %c0_147], %234 {strides = array<i32>} : memref<8x8xf32, #tpu.memory_space<vmem>>, vector<8x8xf32>,
      %cst_148 = arith.constant 0.000000e+00 : f32
      %236 = vector.broadcast %cst_148 : f32 to vector<8x8xf32>
      %c0_149 = arith.constant 0 : index
      %c0_150 = arith.constant 0 : index
      %237 = vector.load %arg12[%c0_149, %c0_150] : memref<8x8xf32, #tpu.memory_space<vmem>>, vector<8x8xf32>
      tpu.vector_store %arg12[%c0_149, %c0_150], %236 {strides = array<i32>} : memref<8x8xf32, #tpu.memory_space<vmem>>, vector<8x8xf32>,
      %cst_151 = arith.constant 0.000000e+00 : f32
      %238 = vector.broadcast %cst_151 : f32 to vector<8x32xf32>
      %c0_152 = arith.constant 0 : index
      %c0_153 = arith.constant 0 : index
      %239 = vector.load %arg13[%c0_152, %c0_153] : memref<8x32xf32, #tpu.memory_space<vmem>>, vector<8x32xf32>
      tpu.vector_store %arg13[%c0_152, %c0_153], %238 {strides = array<i32>} : memref<8x32xf32, #tpu.memory_space<vmem>>, vector<8x32xf32>,
    } else {
    }
    %c0 = arith.constant 0 : index
    %c0_1 = arith.constant 0 : index
    %c0_2 = arith.constant 0 : index
    %3 = vector.load %arg3[%c0, %c0_1, %c0_2] : memref<1x16x32xbf16, #tpu.memory_space<vmem>>, vector<1x16x32xbf16>
    %4 = vector.shape_cast %3 : vector<1x16x32xbf16> to vector<16x32xbf16>
    %c0_3 = arith.constant 0 : index
    %c0_4 = arith.constant 0 : index
    %5 = vector.load %arg5[%c0_3, %c0_4] : memref<64x32xbf16, #tpu.memory_space<vmem>>, vector<64x32xbf16>
    %cst = arith.constant dense<0.000000e+00> : vector<64x16xf32>
    %6 = tpu.matmul %5, %4, %cst {dimension_numbers = #tpu.dot_dimension_numbers<[1], [1], [0], [0], [0, 0, 1, 0], [], []>} : vector<64x32xbf16>, vector<16x32xbf16>, vector<64x16xf32> -> vector<64x16xf32>
    %7 = arith.truncf %6 : vector<64x16xf32> to vector<64x16xbf16>
    %c0_5 = arith.constant 0 : index
    %c0_6 = arith.constant 0 : index
    %8 = vector.load %arg10[%c0_5, %c0_6] : memref<8x32xbf16, #tpu.memory_space<vmem>>, vector<8x4xbf16>
    %9 = vector.extract_strided_slice %7 {offsets = [0, 0], sizes = [4, 16], strides = [1, 1]} : vector<64x16xbf16> to vector<4x16xbf16>
    %10 = vector.extract_strided_slice %7 {offsets = [32, 0], sizes = [4, 16], strides = [1, 1]} : vector<64x16xbf16> to vector<4x16xbf16>
    %cst_7 = arith.constant dense<0.000000e+00> : vector<8x16xf32>
    %11 = tpu.matmul %8, %9, %cst_7 {dimension_numbers = #tpu.dot_dimension_numbers<[1], [0], [0], [1], [0, 0, 1, 1], [], []>} : vector<8x4xbf16>, vector<4x16xbf16>, vector<8x16xf32> -> vector<8x16xf32>
    %c0_8 = arith.constant 0 : index
    %c0_9 = arith.constant 0 : index
    %12 = vector.load %arg11[%c0_8, %c0_9] : memref<8x8xf32, #tpu.memory_space<vmem>>, vector<8x1xf32>
    %cst_10 = arith.constant dense<0xFF800000> : vector<8xf32>
    %13 = vector.multi_reduction <maximumf>, %11, %cst_10 [1] : vector<8x16xf32> to vector<8xf32>
    %14 = vector.shape_cast %13 : vector<8xf32> to vector<8x1xf32>
    %15 = arith.maximumf %12, %14 : vector<8x1xf32>
    %16 = arith.subf %12, %15 : vector<8x1xf32>
    %17 = math.exp %16 : vector<8x1xf32>
    %18 = vector.broadcast %15 : vector<8x1xf32> to vector<8x16xf32>
    %19 = arith.subf %11, %18 : vector<8x16xf32>
    %20 = math.exp %19 : vector<8x16xf32>
    %c0_11 = arith.constant 0 : index
    %c0_12 = arith.constant 0 : index
    %21 = vector.load %arg12[%c0_11, %c0_12] : memref<8x8xf32, #tpu.memory_space<vmem>>, vector<8x1xf32>
    %22 = arith.mulf %17, %21 : vector<8x1xf32>
    %cst_13 = arith.constant dense<0.000000e+00> : vector<8xf32>
    %23 = vector.multi_reduction <add>, %20, %cst_13 [1] : vector<8x16xf32> to vector<8xf32>
    %24 = vector.shape_cast %23 : vector<8xf32> to vector<8x1xf32>
    %25 = arith.addf %22, %24 : vector<8x1xf32>
    %c0_14 = arith.constant 0 : index
    %c0_15 = arith.constant 0 : index
    %26 = vector.load %arg12[%c0_14, %c0_15] : memref<8x8xf32, #tpu.memory_space<vmem>>, vector<8x1xf32>
    tpu.vector_store %arg12[%c0_14, %c0_15], %25 {strides = array<i32>} : memref<8x8xf32, #tpu.memory_space<vmem>>, vector<8x1xf32>,
    %27 = arith.truncf %20 : vector<8x16xf32> to vector<8x16xbf16>
    %cst_16 = arith.constant dense<0.000000e+00> : vector<8x4xf32>
    %28 = tpu.matmul %27, %10, %cst_16 {dimension_numbers = #tpu.dot_dimension_numbers<[1], [1], [0], [0], [0, 0, 1, 0], [], []>} : vector<8x16xbf16>, vector<4x16xbf16>, vector<8x4xf32> -> vector<8x4xf32>
    %c0_17 = arith.constant 0 : index
    %c0_18 = arith.constant 0 : index
    %29 = vector.load %arg13[%c0_17, %c0_18] : memref<8x32xf32, #tpu.memory_space<vmem>>, vector<8x4xf32>
    %30 = vector.broadcast %17 : vector<8x1xf32> to vector<8x4xf32>
    %31 = arith.mulf %30, %29 : vector<8x4xf32>
    %32 = arith.addf %31, %28 : vector<8x4xf32>
    %c0_19 = arith.constant 0 : index
    %c0_20 = arith.constant 0 : index
    %33 = vector.load %arg13[%c0_19, %c0_20] : memref<8x32xf32, #tpu.memory_space<vmem>>, vector<8x4xf32>
    tpu.vector_store %arg13[%c0_19, %c0_20], %32 {strides = array<i32>} : memref<8x32xf32, #tpu.memory_space<vmem>>, vector<8x4xf32>,
    %c0_21 = arith.constant 0 : index
    %c0_22 = arith.constant 0 : index
    %34 = vector.load %arg11[%c0_21, %c0_22] : memref<8x8xf32, #tpu.memory_space<vmem>>, vector<8x1xf32>
    tpu.vector_store %arg11[%c0_21, %c0_22], %15 {strides = array<i32>} : memref<8x8xf32, #tpu.memory_space<vmem>>, vector<8x1xf32>,
    %c0_23 = arith.constant 0 : index
    %c4 = arith.constant 4 : index
    %35 = vector.load %arg10[%c0_23, %c4] : memref<8x32xbf16, #tpu.memory_space<vmem>>, vector<8x4xbf16>
    %36 = vector.extract_strided_slice %7 {offsets = [4, 0], sizes = [4, 16], strides = [1, 1]} : vector<64x16xbf16> to vector<4x16xbf16>
    %37 = vector.extract_strided_slice %7 {offsets = [36, 0], sizes = [4, 16], strides = [1, 1]} : vector<64x16xbf16> to vector<4x16xbf16>
    %cst_24 = arith.constant dense<0.000000e+00> : vector<8x16xf32>
    %38 = tpu.matmul %35, %36, %cst_24 {dimension_numbers = #tpu.dot_dimension_numbers<[1], [0], [0], [1], [0, 0, 1, 1], [], []>} : vector<8x4xbf16>, vector<4x16xbf16>, vector<8x16xf32> -> vector<8x16xf32>
    %c0_25 = arith.constant 0 : index
    %c1 = arith.constant 1 : index
    %39 = vector.load %arg11[%c0_25, %c1] : memref<8x8xf32, #tpu.memory_space<vmem>>, vector<8x1xf32>
    %cst_26 = arith.constant dense<0xFF800000> : vector<8xf32>
    %40 = vector.multi_reduction <maximumf>, %38, %cst_26 [1] : vector<8x16xf32> to vector<8xf32>
    %41 = vector.shape_cast %40 : vector<8xf32> to vector<8x1xf32>
    %42 = arith.maximumf %39, %41 : vector<8x1xf32>
    %43 = arith.subf %39, %42 : vector<8x1xf32>
    %44 = math.exp %43 : vector<8x1xf32>
    %45 = vector.broadcast %42 : vector<8x1xf32> to vector<8x16xf32>
    %46 = arith.subf %38, %45 : vector<8x16xf32>
    %47 = math.exp %46 : vector<8x16xf32>
    %c0_27 = arith.constant 0 : index
    %c1_28 = arith.constant 1 : index
    %48 = vector.load %arg12[%c0_27, %c1_28] : memref<8x8xf32, #tpu.memory_space<vmem>>, vector<8x1xf32>
    %49 = arith.mulf %44, %48 : vector<8x1xf32>
    %cst_29 = arith.constant dense<0.000000e+00> : vector<8xf32>
    %50 = vector.multi_reduction <add>, %47, %cst_29 [1] : vector<8x16xf32> to vector<8xf32>
    %51 = vector.shape_cast %50 : vector<8xf32> to vector<8x1xf32>
    %52 = arith.addf %49, %51 : vector<8x1xf32>
    %c0_30 = arith.constant 0 : index
    %c1_31 = arith.constant 1 : index
    %53 = vector.load %arg12[%c0_30, %c1_31] : memref<8x8xf32, #tpu.memory_space<vmem>>, vector<8x1xf32>
    tpu.vector_store %arg12[%c0_30, %c1_31], %52 {strides = array<i32>} : memref<8x8xf32, #tpu.memory_space<vmem>>, vector<8x1xf32>,
    %54 = arith.truncf %47 : vector<8x16xf32> to vector<8x16xbf16>
    %cst_32 = arith.constant dense<0.000000e+00> : vector<8x4xf32>
    %55 = tpu.matmul %54, %37, %cst_32 {dimension_numbers = #tpu.dot_dimension_numbers<[1], [1], [0], [0], [0, 0, 1, 0], [], []>} : vector<8x16xbf16>, vector<4x16xbf16>, vector<8x4xf32> -> vector<8x4xf32>
    %c0_33 = arith.constant 0 : index
    %c4_34 = arith.constant 4 : index
    %56 = vector.load %arg13[%c0_33, %c4_34] : memref<8x32xf32, #tpu.memory_space<vmem>>, vector<8x4xf32>
    %57 = vector.broadcast %44 : vector<8x1xf32> to vector<8x4xf32>
    %58 = arith.mulf %57, %56 : vector<8x4xf32>
    %59 = arith.addf %58, %55 : vector<8x4xf32>
    %c0_35 = arith.constant 0 : index
    %c4_36 = arith.constant 4 : index
    %60 = vector.load %arg13[%c0_35, %c4_36] : memref<8x32xf32, #tpu.memory_space<vmem>>, vector<8x4xf32>
    tpu.vector_store %arg13[%c0_35, %c4_36], %59 {strides = array<i32>} : memref<8x32xf32, #tpu.memory_space<vmem>>, vector<8x4xf32>,
    %c0_37 = arith.constant 0 : index
    %c1_38 = arith.constant 1 : index
    %61 = vector.load %arg11[%c0_37, %c1_38] : memref<8x8xf32, #tpu.memory_space<vmem>>, vector<8x1xf32>
    tpu.vector_store %arg11[%c0_37, %c1_38], %42 {strides = array<i32>} : memref<8x8xf32, #tpu.memory_space<vmem>>, vector<8x1xf32>,
    %c0_39 = arith.constant 0 : index
    %c8 = arith.constant 8 : index
    %62 = vector.load %arg10[%c0_39, %c8] : memref<8x32xbf16, #tpu.memory_space<vmem>>, vector<8x4xbf16>
    %63 = vector.extract_strided_slice %7 {offsets = [8, 0], sizes = [4, 16], strides = [1, 1]} : vector<64x16xbf16> to vector<4x16xbf16>
    %64 = vector.extract_strided_slice %7 {offsets = [40, 0], sizes = [4, 16], strides = [1, 1]} : vector<64x16xbf16> to vector<4x16xbf16>
    %cst_40 = arith.constant dense<0.000000e+00> : vector<8x16xf32>
    %65 = tpu.matmul %62, %63, %cst_40 {dimension_numbers = #tpu.dot_dimension_numbers<[1], [0], [0], [1], [0, 0, 1, 1], [], []>} : vector<8x4xbf16>, vector<4x16xbf16>, vector<8x16xf32> -> vector<8x16xf32>
    %c0_41 = arith.constant 0 : index
    %c2 = arith.constant 2 : index
    %66 = vector.load %arg11[%c0_41, %c2] : memref<8x8xf32, #tpu.memory_space<vmem>>, vector<8x1xf32>
    %cst_42 = arith.constant dense<0xFF800000> : vector<8xf32>
    %67 = vector.multi_reduction <maximumf>, %65, %cst_42 [1] : vector<8x16xf32> to vector<8xf32>
    %68 = vector.shape_cast %67 : vector<8xf32> to vector<8x1xf32>
    %69 = arith.maximumf %66, %68 : vector<8x1xf32>
    %70 = arith.subf %66, %69 : vector<8x1xf32>
    %71 = math.exp %70 : vector<8x1xf32>
    %72 = vector.broadcast %69 : vector<8x1xf32> to vector<8x16xf32>
    %73 = arith.subf %65, %72 : vector<8x16xf32>
    %74 = math.exp %73 : vector<8x16xf32>
    %c0_43 = arith.constant 0 : index
    %c2_44 = arith.constant 2 : index
    %75 = vector.load %arg12[%c0_43, %c2_44] : memref<8x8xf32, #tpu.memory_space<vmem>>, vector<8x1xf32>
    %76 = arith.mulf %71, %75 : vector<8x1xf32>
    %cst_45 = arith.constant dense<0.000000e+00> : vector<8xf32>
    %77 = vector.multi_reduction <add>, %74, %cst_45 [1] : vector<8x16xf32> to vector<8xf32>
    %78 = vector.shape_cast %77 : vector<8xf32> to vector<8x1xf32>
    %79 = arith.addf %76, %78 : vector<8x1xf32>
    %c0_46 = arith.constant 0 : index
    %c2_47 = arith.constant 2 : index
    %80 = vector.load %arg12[%c0_46, %c2_47] : memref<8x8xf32, #tpu.memory_space<vmem>>, vector<8x1xf32>
    tpu.vector_store %arg12[%c0_46, %c2_47], %79 {strides = array<i32>} : memref<8x8xf32, #tpu.memory_space<vmem>>, vector<8x1xf32>,
    %81 = arith.truncf %74 : vector<8x16xf32> to vector<8x16xbf16>
    %cst_48 = arith.constant dense<0.000000e+00> : vector<8x4xf32>
    %82 = tpu.matmul %81, %64, %cst_48 {dimension_numbers = #tpu.dot_dimension_numbers<[1], [1], [0], [0], [0, 0, 1, 0], [], []>} : vector<8x16xbf16>, vector<4x16xbf16>, vector<8x4xf32> -> vector<8x4xf32>
    %c0_49 = arith.constant 0 : index
    %c8_50 = arith.constant 8 : index
    %83 = vector.load %arg13[%c0_49, %c8_50] : memref<8x32xf32, #tpu.memory_space<vmem>>, vector<8x4xf32>
    %84 = vector.broadcast %71 : vector<8x1xf32> to vector<8x4xf32>
    %85 = arith.mulf %84, %83 : vector<8x4xf32>
    %86 = arith.addf %85, %82 : vector<8x4xf32>
    %c0_51 = arith.constant 0 : index
    %c8_52 = arith.constant 8 : index
    %87 = vector.load %arg13[%c0_51, %c8_52] : memref<8x32xf32, #tpu.memory_space<vmem>>, vector<8x4xf32>
    tpu.vector_store %arg13[%c0_51, %c8_52], %86 {strides = array<i32>} : memref<8x32xf32, #tpu.memory_space<vmem>>, vector<8x4xf32>,
    %c0_53 = arith.constant 0 : index
    %c2_54 = arith.constant 2 : index
    %88 = vector.load %arg11[%c0_53, %c2_54] : memref<8x8xf32, #tpu.memory_space<vmem>>, vector<8x1xf32>
    tpu.vector_store %arg11[%c0_53, %c2_54], %69 {strides = array<i32>} : memref<8x8xf32, #tpu.memory_space<vmem>>, vector<8x1xf32>,
    %c0_55 = arith.constant 0 : index
    %c12 = arith.constant 12 : index
    %89 = vector.load %arg10[%c0_55, %c12] : memref<8x32xbf16, #tpu.memory_space<vmem>>, vector<8x4xbf16>
    %90 = vector.extract_strided_slice %7 {offsets = [12, 0], sizes = [4, 16], strides = [1, 1]} : vector<64x16xbf16> to vector<4x16xbf16>
    %91 = vector.extract_strided_slice %7 {offsets = [44, 0], sizes = [4, 16], strides = [1, 1]} : vector<64x16xbf16> to vector<4x16xbf16>
    %cst_56 = arith.constant dense<0.000000e+00> : vector<8x16xf32>
    %92 = tpu.matmul %89, %90, %cst_56 {dimension_numbers = #tpu.dot_dimension_numbers<[1], [0], [0], [1], [0, 0, 1, 1], [], []>} : vector<8x4xbf16>, vector<4x16xbf16>, vector<8x16xf32> -> vector<8x16xf32>
    %c0_57 = arith.constant 0 : index
    %c3 = arith.constant 3 : index
    %93 = vector.load %arg11[%c0_57, %c3] : memref<8x8xf32, #tpu.memory_space<vmem>>, vector<8x1xf32>
    %cst_58 = arith.constant dense<0xFF800000> : vector<8xf32>
    %94 = vector.multi_reduction <maximumf>, %92, %cst_58 [1] : vector<8x16xf32> to vector<8xf32>
    %95 = vector.shape_cast %94 : vector<8xf32> to vector<8x1xf32>
    %96 = arith.maximumf %93, %95 : vector<8x1xf32>
    %97 = arith.subf %93, %96 : vector<8x1xf32>
    %98 = math.exp %97 : vector<8x1xf32>
    %99 = vector.broadcast %96 : vector<8x1xf32> to vector<8x16xf32>
    %100 = arith.subf %92, %99 : vector<8x16xf32>
    %101 = math.exp %100 : vector<8x16xf32>
    %c0_59 = arith.constant 0 : index
    %c3_60 = arith.constant 3 : index
    %102 = vector.load %arg12[%c0_59, %c3_60] : memref<8x8xf32, #tpu.memory_space<vmem>>, vector<8x1xf32>
    %103 = arith.mulf %98, %102 : vector<8x1xf32>
    %cst_61 = arith.constant dense<0.000000e+00> : vector<8xf32>
    %104 = vector.multi_reduction <add>, %101, %cst_61 [1] : vector<8x16xf32> to vector<8xf32>
    %105 = vector.shape_cast %104 : vector<8xf32> to vector<8x1xf32>
    %106 = arith.addf %103, %105 : vector<8x1xf32>
    %c0_62 = arith.constant 0 : index
    %c3_63 = arith.constant 3 : index
    %107 = vector.load %arg12[%c0_62, %c3_63] : memref<8x8xf32, #tpu.memory_space<vmem>>, vector<8x1xf32>
    tpu.vector_store %arg12[%c0_62, %c3_63], %106 {strides = array<i32>} : memref<8x8xf32, #tpu.memory_space<vmem>>, vector<8x1xf32>,
    %108 = arith.truncf %101 : vector<8x16xf32> to vector<8x16xbf16>
    %cst_64 = arith.constant dense<0.000000e+00> : vector<8x4xf32>
    %109 = tpu.matmul %108, %91, %cst_64 {dimension_numbers = #tpu.dot_dimension_numbers<[1], [1], [0], [0], [0, 0, 1, 0], [], []>} : vector<8x16xbf16>, vector<4x16xbf16>, vector<8x4xf32> -> vector<8x4xf32>
    %c0_65 = arith.constant 0 : index
    %c12_66 = arith.constant 12 : index
    %110 = vector.load %arg13[%c0_65, %c12_66] : memref<8x32xf32, #tpu.memory_space<vmem>>, vector<8x4xf32>
    %111 = vector.broadcast %98 : vector<8x1xf32> to vector<8x4xf32>
    %112 = arith.mulf %111, %110 : vector<8x4xf32>
    %113 = arith.addf %112, %109 : vector<8x4xf32>
    %c0_67 = arith.constant 0 : index
    %c12_68 = arith.constant 12 : index
    %114 = vector.load %arg13[%c0_67, %c12_68] : memref<8x32xf32, #tpu.memory_space<vmem>>, vector<8x4xf32>
    tpu.vector_store %arg13[%c0_67, %c12_68], %113 {strides = array<i32>} : memref<8x32xf32, #tpu.memory_space<vmem>>, vector<8x4xf32>,
    %c0_69 = arith.constant 0 : index
    %c3_70 = arith.constant 3 : index
    %115 = vector.load %arg11[%c0_69, %c3_70] : memref<8x8xf32, #tpu.memory_space<vmem>>, vector<8x1xf32>
    tpu.vector_store %arg11[%c0_69, %c3_70], %96 {strides = array<i32>} : memref<8x8xf32, #tpu.memory_space<vmem>>, vector<8x1xf32>,
    %c0_71 = arith.constant 0 : index
    %c16 = arith.constant 16 : index
    %116 = vector.load %arg10[%c0_71, %c16] : memref<8x32xbf16, #tpu.memory_space<vmem>>, vector<8x4xbf16>
    %117 = vector.extract_strided_slice %7 {offsets = [16, 0], sizes = [4, 16], strides = [1, 1]} : vector<64x16xbf16> to vector<4x16xbf16>
    %118 = vector.extract_strided_slice %7 {offsets = [48, 0], sizes = [4, 16], strides = [1, 1]} : vector<64x16xbf16> to vector<4x16xbf16>
    %cst_72 = arith.constant dense<0.000000e+00> : vector<8x16xf32>
    %119 = tpu.matmul %116, %117, %cst_72 {dimension_numbers = #tpu.dot_dimension_numbers<[1], [0], [0], [1], [0, 0, 1, 1], [], []>} : vector<8x4xbf16>, vector<4x16xbf16>, vector<8x16xf32> -> vector<8x16xf32>
    %c0_73 = arith.constant 0 : index
    %c4_74 = arith.constant 4 : index
    %120 = vector.load %arg11[%c0_73, %c4_74] : memref<8x8xf32, #tpu.memory_space<vmem>>, vector<8x1xf32>
    %cst_75 = arith.constant dense<0xFF800000> : vector<8xf32>
    %121 = vector.multi_reduction <maximumf>, %119, %cst_75 [1] : vector<8x16xf32> to vector<8xf32>
    %122 = vector.shape_cast %121 : vector<8xf32> to vector<8x1xf32>
    %123 = arith.maximumf %120, %122 : vector<8x1xf32>
    %124 = arith.subf %120, %123 : vector<8x1xf32>
    %125 = math.exp %124 : vector<8x1xf32>
    %126 = vector.broadcast %123 : vector<8x1xf32> to vector<8x16xf32>
    %127 = arith.subf %119, %126 : vector<8x16xf32>
    %128 = math.exp %127 : vector<8x16xf32>
    %c0_76 = arith.constant 0 : index
    %c4_77 = arith.constant 4 : index
    %129 = vector.load %arg12[%c0_76, %c4_77] : memref<8x8xf32, #tpu.memory_space<vmem>>, vector<8x1xf32>
    %130 = arith.mulf %125, %129 : vector<8x1xf32>
    %cst_78 = arith.constant dense<0.000000e+00> : vector<8xf32>
    %131 = vector.multi_reduction <add>, %128, %cst_78 [1] : vector<8x16xf32> to vector<8xf32>
    %132 = vector.shape_cast %131 : vector<8xf32> to vector<8x1xf32>
    %133 = arith.addf %130, %132 : vector<8x1xf32>
    %c0_79 = arith.constant 0 : index
    %c4_80 = arith.constant 4 : index
    %134 = vector.load %arg12[%c0_79, %c4_80] : memref<8x8xf32, #tpu.memory_space<vmem>>, vector<8x1xf32>
    tpu.vector_store %arg12[%c0_79, %c4_80], %133 {strides = array<i32>} : memref<8x8xf32, #tpu.memory_space<vmem>>, vector<8x1xf32>,
    %135 = arith.truncf %128 : vector<8x16xf32> to vector<8x16xbf16>
    %cst_81 = arith.constant dense<0.000000e+00> : vector<8x4xf32>
    %136 = tpu.matmul %135, %118, %cst_81 {dimension_numbers = #tpu.dot_dimension_numbers<[1], [1], [0], [0], [0, 0, 1, 0], [], []>} : vector<8x16xbf16>, vector<4x16xbf16>, vector<8x4xf32> -> vector<8x4xf32>
    %c0_82 = arith.constant 0 : index
    %c16_83 = arith.constant 16 : index
    %137 = vector.load %arg13[%c0_82, %c16_83] : memref<8x32xf32, #tpu.memory_space<vmem>>, vector<8x4xf32>
    %138 = vector.broadcast %125 : vector<8x1xf32> to vector<8x4xf32>
    %139 = arith.mulf %138, %137 : vector<8x4xf32>
    %140 = arith.addf %139, %136 : vector<8x4xf32>
    %c0_84 = arith.constant 0 : index
    %c16_85 = arith.constant 16 : index
    %141 = vector.load %arg13[%c0_84, %c16_85] : memref<8x32xf32, #tpu.memory_space<vmem>>, vector<8x4xf32>
    tpu.vector_store %arg13[%c0_84, %c16_85], %140 {strides = array<i32>} : memref<8x32xf32, #tpu.memory_space<vmem>>, vector<8x4xf32>,
    %c0_86 = arith.constant 0 : index
    %c4_87 = arith.constant 4 : index
    %142 = vector.load %arg11[%c0_86, %c4_87] : memref<8x8xf32, #tpu.memory_space<vmem>>, vector<8x1xf32>
    tpu.vector_store %arg11[%c0_86, %c4_87], %123 {strides = array<i32>} : memref<8x8xf32, #tpu.memory_space<vmem>>, vector<8x1xf32>,
    %c0_88 = arith.constant 0 : index
    %c20 = arith.constant 20 : index
    %143 = vector.load %arg10[%c0_88, %c20] : memref<8x32xbf16, #tpu.memory_space<vmem>>, vector<8x4xbf16>
    %144 = vector.extract_strided_slice %7 {offsets = [20, 0], sizes = [4, 16], strides = [1, 1]} : vector<64x16xbf16> to vector<4x16xbf16>
    %145 = vector.extract_strided_slice %7 {offsets = [52, 0], sizes = [4, 16], strides = [1, 1]} : vector<64x16xbf16> to vector<4x16xbf16>
    %cst_89 = arith.constant dense<0.000000e+00> : vector<8x16xf32>
    %146 = tpu.matmul %143, %144, %cst_89 {dimension_numbers = #tpu.dot_dimension_numbers<[1], [0], [0], [1], [0, 0, 1, 1], [], []>} : vector<8x4xbf16>, vector<4x16xbf16>, vector<8x16xf32> -> vector<8x16xf32>
    %c0_90 = arith.constant 0 : index
    %c5 = arith.constant 5 : index
    %147 = vector.load %arg11[%c0_90, %c5] : memref<8x8xf32, #tpu.memory_space<vmem>>, vector<8x1xf32>
    %cst_91 = arith.constant dense<0xFF800000> : vector<8xf32>
    %148 = vector.multi_reduction <maximumf>, %146, %cst_91 [1] : vector<8x16xf32> to vector<8xf32>
    %149 = vector.shape_cast %148 : vector<8xf32> to vector<8x1xf32>
    %150 = arith.maximumf %147, %149 : vector<8x1xf32>
    %151 = arith.subf %147, %150 : vector<8x1xf32>
    %152 = math.exp %151 : vector<8x1xf32>
    %153 = vector.broadcast %150 : vector<8x1xf32> to vector<8x16xf32>
    %154 = arith.subf %146, %153 : vector<8x16xf32>
    %155 = math.exp %154 : vector<8x16xf32>
    %c0_92 = arith.constant 0 : index
    %c5_93 = arith.constant 5 : index
    %156 = vector.load %arg12[%c0_92, %c5_93] : memref<8x8xf32, #tpu.memory_space<vmem>>, vector<8x1xf32>
    %157 = arith.mulf %152, %156 : vector<8x1xf32>
    %cst_94 = arith.constant dense<0.000000e+00> : vector<8xf32>
    %158 = vector.multi_reduction <add>, %155, %cst_94 [1] : vector<8x16xf32> to vector<8xf32>
    %159 = vector.shape_cast %158 : vector<8xf32> to vector<8x1xf32>
    %160 = arith.addf %157, %159 : vector<8x1xf32>
    %c0_95 = arith.constant 0 : index
    %c5_96 = arith.constant 5 : index
    %161 = vector.load %arg12[%c0_95, %c5_96] : memref<8x8xf32, #tpu.memory_space<vmem>>, vector<8x1xf32>
    tpu.vector_store %arg12[%c0_95, %c5_96], %160 {strides = array<i32>} : memref<8x8xf32, #tpu.memory_space<vmem>>, vector<8x1xf32>,
    %162 = arith.truncf %155 : vector<8x16xf32> to vector<8x16xbf16>
    %cst_97 = arith.constant dense<0.000000e+00> : vector<8x4xf32>
    %163 = tpu.matmul %162, %145, %cst_97 {dimension_numbers = #tpu.dot_dimension_numbers<[1], [1], [0], [0], [0, 0, 1, 0], [], []>} : vector<8x16xbf16>, vector<4x16xbf16>, vector<8x4xf32> -> vector<8x4xf32>
    %c0_98 = arith.constant 0 : index
    %c20_99 = arith.constant 20 : index
    %164 = vector.load %arg13[%c0_98, %c20_99] : memref<8x32xf32, #tpu.memory_space<vmem>>, vector<8x4xf32>
    %165 = vector.broadcast %152 : vector<8x1xf32> to vector<8x4xf32>
    %166 = arith.mulf %165, %164 : vector<8x4xf32>
    %167 = arith.addf %166, %163 : vector<8x4xf32>
    %c0_100 = arith.constant 0 : index
    %c20_101 = arith.constant 20 : index
    %168 = vector.load %arg13[%c0_100, %c20_101] : memref<8x32xf32, #tpu.memory_space<vmem>>, vector<8x4xf32>
    tpu.vector_store %arg13[%c0_100, %c20_101], %167 {strides = array<i32>} : memref<8x32xf32, #tpu.memory_space<vmem>>, vector<8x4xf32>,
    %c0_102 = arith.constant 0 : index
    %c5_103 = arith.constant 5 : index
    %169 = vector.load %arg11[%c0_102, %c5_103] : memref<8x8xf32, #tpu.memory_space<vmem>>, vector<8x1xf32>
    tpu.vector_store %arg11[%c0_102, %c5_103], %150 {strides = array<i32>} : memref<8x8xf32, #tpu.memory_space<vmem>>, vector<8x1xf32>,
    %c0_104 = arith.constant 0 : index
    %c24 = arith.constant 24 : index
    %170 = vector.load %arg10[%c0_104, %c24] : memref<8x32xbf16, #tpu.memory_space<vmem>>, vector<8x4xbf16>
    %171 = vector.extract_strided_slice %7 {offsets = [24, 0], sizes = [4, 16], strides = [1, 1]} : vector<64x16xbf16> to vector<4x16xbf16>
    %172 = vector.extract_strided_slice %7 {offsets = [56, 0], sizes = [4, 16], strides = [1, 1]} : vector<64x16xbf16> to vector<4x16xbf16>
    %cst_105 = arith.constant dense<0.000000e+00> : vector<8x16xf32>
    %173 = tpu.matmul %170, %171, %cst_105 {dimension_numbers = #tpu.dot_dimension_numbers<[1], [0], [0], [1], [0, 0, 1, 1], [], []>} : vector<8x4xbf16>, vector<4x16xbf16>, vector<8x16xf32> -> vector<8x16xf32>
    %c0_106 = arith.constant 0 : index
    %c6 = arith.constant 6 : index
    %174 = vector.load %arg11[%c0_106, %c6] : memref<8x8xf32, #tpu.memory_space<vmem>>, vector<8x1xf32>
    %cst_107 = arith.constant dense<0xFF800000> : vector<8xf32>
    %175 = vector.multi_reduction <maximumf>, %173, %cst_107 [1] : vector<8x16xf32> to vector<8xf32>
    %176 = vector.shape_cast %175 : vector<8xf32> to vector<8x1xf32>
    %177 = arith.maximumf %174, %176 : vector<8x1xf32>
    %178 = arith.subf %174, %177 : vector<8x1xf32>
    %179 = math.exp %178 : vector<8x1xf32>
    %180 = vector.broadcast %177 : vector<8x1xf32> to vector<8x16xf32>
    %181 = arith.subf %173, %180 : vector<8x16xf32>
    %182 = math.exp %181 : vector<8x16xf32>
    %c0_108 = arith.constant 0 : index
    %c6_109 = arith.constant 6 : index
    %183 = vector.load %arg12[%c0_108, %c6_109] : memref<8x8xf32, #tpu.memory_space<vmem>>, vector<8x1xf32>
    %184 = arith.mulf %179, %183 : vector<8x1xf32>
    %cst_110 = arith.constant dense<0.000000e+00> : vector<8xf32>
    %185 = vector.multi_reduction <add>, %182, %cst_110 [1] : vector<8x16xf32> to vector<8xf32>
    %186 = vector.shape_cast %185 : vector<8xf32> to vector<8x1xf32>
    %187 = arith.addf %184, %186 : vector<8x1xf32>
    %c0_111 = arith.constant 0 : index
    %c6_112 = arith.constant 6 : index
    %188 = vector.load %arg12[%c0_111, %c6_112] : memref<8x8xf32, #tpu.memory_space<vmem>>, vector<8x1xf32>
    tpu.vector_store %arg12[%c0_111, %c6_112], %187 {strides = array<i32>} : memref<8x8xf32, #tpu.memory_space<vmem>>, vector<8x1xf32>,
    %189 = arith.truncf %182 : vector<8x16xf32> to vector<8x16xbf16>
    %cst_113 = arith.constant dense<0.000000e+00> : vector<8x4xf32>
    %190 = tpu.matmul %189, %172, %cst_113 {dimension_numbers = #tpu.dot_dimension_numbers<[1], [1], [0], [0], [0, 0, 1, 0], [], []>} : vector<8x16xbf16>, vector<4x16xbf16>, vector<8x4xf32> -> vector<8x4xf32>
    %c0_114 = arith.constant 0 : index
    %c24_115 = arith.constant 24 : index
    %191 = vector.load %arg13[%c0_114, %c24_115] : memref<8x32xf32, #tpu.memory_space<vmem>>, vector<8x4xf32>
    %192 = vector.broadcast %179 : vector<8x1xf32> to vector<8x4xf32>
    %193 = arith.mulf %192, %191 : vector<8x4xf32>
    %194 = arith.addf %193, %190 : vector<8x4xf32>
    %c0_116 = arith.constant 0 : index
    %c24_117 = arith.constant 24 : index
    %195 = vector.load %arg13[%c0_116, %c24_117] : memref<8x32xf32, #tpu.memory_space<vmem>>, vector<8x4xf32>
    tpu.vector_store %arg13[%c0_116, %c24_117], %194 {strides = array<i32>} : memref<8x32xf32, #tpu.memory_space<vmem>>, vector<8x4xf32>,
    %c0_118 = arith.constant 0 : index
    %c6_119 = arith.constant 6 : index
    %196 = vector.load %arg11[%c0_118, %c6_119] : memref<8x8xf32, #tpu.memory_space<vmem>>, vector<8x1xf32>
    tpu.vector_store %arg11[%c0_118, %c6_119], %177 {strides = array<i32>} : memref<8x8xf32, #tpu.memory_space<vmem>>, vector<8x1xf32>,
    %c0_120 = arith.constant 0 : index
    %c28 = arith.constant 28 : index
    %197 = vector.load %arg10[%c0_120, %c28] : memref<8x32xbf16, #tpu.memory_space<vmem>>, vector<8x4xbf16>
    %198 = vector.extract_strided_slice %7 {offsets = [28, 0], sizes = [4, 16], strides = [1, 1]} : vector<64x16xbf16> to vector<4x16xbf16>
    %199 = vector.extract_strided_slice %7 {offsets = [60, 0], sizes = [4, 16], strides = [1, 1]} : vector<64x16xbf16> to vector<4x16xbf16>
    %cst_121 = arith.constant dense<0.000000e+00> : vector<8x16xf32>
    %200 = tpu.matmul %197, %198, %cst_121 {dimension_numbers = #tpu.dot_dimension_numbers<[1], [0], [0], [1], [0, 0, 1, 1], [], []>} : vector<8x4xbf16>, vector<4x16xbf16>, vector<8x16xf32> -> vector<8x16xf32>
    %c0_122 = arith.constant 0 : index
    %c7 = arith.constant 7 : index
    %201 = vector.load %arg11[%c0_122, %c7] : memref<8x8xf32, #tpu.memory_space<vmem>>, vector<8x1xf32>
    %cst_123 = arith.constant dense<0xFF800000> : vector<8xf32>
    %202 = vector.multi_reduction <maximumf>, %200, %cst_123 [1] : vector<8x16xf32> to vector<8xf32>
    %203 = vector.shape_cast %202 : vector<8xf32> to vector<8x1xf32>
    %204 = arith.maximumf %201, %203 : vector<8x1xf32>
    %205 = arith.subf %201, %204 : vector<8x1xf32>
    %206 = math.exp %205 : vector<8x1xf32>
    %207 = vector.broadcast %204 : vector<8x1xf32> to vector<8x16xf32>
    %208 = arith.subf %200, %207 : vector<8x16xf32>
    %209 = math.exp %208 : vector<8x16xf32>
    %c0_124 = arith.constant 0 : index
    %c7_125 = arith.constant 7 : index
    %210 = vector.load %arg12[%c0_124, %c7_125] : memref<8x8xf32, #tpu.memory_space<vmem>>, vector<8x1xf32>
    %211 = arith.mulf %206, %210 : vector<8x1xf32>
    %cst_126 = arith.constant dense<0.000000e+00> : vector<8xf32>
    %212 = vector.multi_reduction <add>, %209, %cst_126 [1] : vector<8x16xf32> to vector<8xf32>
    %213 = vector.shape_cast %212 : vector<8xf32> to vector<8x1xf32>
    %214 = arith.addf %211, %213 : vector<8x1xf32>
    %c0_127 = arith.constant 0 : index
    %c7_128 = arith.constant 7 : index
    %215 = vector.load %arg12[%c0_127, %c7_128] : memref<8x8xf32, #tpu.memory_space<vmem>>, vector<8x1xf32>
    tpu.vector_store %arg12[%c0_127, %c7_128], %214 {strides = array<i32>} : memref<8x8xf32, #tpu.memory_space<vmem>>, vector<8x1xf32>,
    %216 = arith.truncf %209 : vector<8x16xf32> to vector<8x16xbf16>
    %cst_129 = arith.constant dense<0.000000e+00> : vector<8x4xf32>
    %217 = tpu.matmul %216, %199, %cst_129 {dimension_numbers = #tpu.dot_dimension_numbers<[1], [1], [0], [0], [0, 0, 1, 0], [], []>} : vector<8x16xbf16>, vector<4x16xbf16>, vector<8x4xf32> -> vector<8x4xf32>
    %c0_130 = arith.constant 0 : index
    %c28_131 = arith.constant 28 : index
    %218 = vector.load %arg13[%c0_130, %c28_131] : memref<8x32xf32, #tpu.memory_space<vmem>>, vector<8x4xf32>
    %219 = vector.broadcast %206 : vector<8x1xf32> to vector<8x4xf32>
    %220 = arith.mulf %219, %218 : vector<8x4xf32>
    %221 = arith.addf %220, %217 : vector<8x4xf32>
    %c0_132 = arith.constant 0 : index
    %c28_133 = arith.constant 28 : index
    %222 = vector.load %arg13[%c0_132, %c28_133] : memref<8x32xf32, #tpu.memory_space<vmem>>, vector<8x4xf32>
    tpu.vector_store %arg13[%c0_132, %c28_133], %221 {strides = array<i32>} : memref<8x32xf32, #tpu.memory_space<vmem>>, vector<8x4xf32>,
    %c0_134 = arith.constant 0 : index
    %c7_135 = arith.constant 7 : index
    %223 = vector.load %arg11[%c0_134, %c7_135] : memref<8x8xf32, #tpu.memory_space<vmem>>, vector<8x1xf32>
    tpu.vector_store %arg11[%c0_134, %c7_135], %204 {strides = array<i32>} : memref<8x8xf32, #tpu.memory_space<vmem>>, vector<8x1xf32>,
    %c1_i32 = arith.constant 1 : i32
    %224 = arith.cmpi eq, %arg1, %c1_i32 : i32
    %225 = arith.extui %224 : i1 to i32
    %c0_i32_136 = arith.constant 0 : i32
    %226 = arith.cmpi ne, %225, %c0_i32_136 : i32
    scf.if %226 {
      %c0_137 = arith.constant 0 : index
      %c0_138 = arith.constant 0 : index
      %c0_139 = arith.constant 0 : index
      %227 = vector.load %arg2[%c0_137, %c0_138, %c0_139] : memref<1x8x32xf32, #tpu.memory_space<vmem>>, vector<1x8x32xf32>
      %228 = vector.shape_cast %227 : vector<1x8x32xf32> to vector<8x32xf32>
      %c0_140 = arith.constant 0 : index
      %c0_141 = arith.constant 0 : index
      %229 = vector.load %arg13[%c0_140, %c0_141] : memref<8x32xf32, #tpu.memory_space<vmem>>, vector<8x4xf32>
      %c0_142 = arith.constant 0 : index
      %c0_143 = arith.constant 0 : index
      %230 = vector.load %arg12[%c0_142, %c0_143] : memref<8x8xf32, #tpu.memory_space<vmem>>, vector<8x1xf32>
      %231 = vector.broadcast %230 : vector<8x1xf32> to vector<8x4xf32>
      %232 = arith.divf %229, %231 : vector<8x4xf32>
      %c0_144 = arith.constant 0 : index
      %c0_145 = arith.constant 0 : index
      %233 = vector.load %arg13[%c0_144, %c0_145] : memref<8x32xf32, #tpu.memory_space<vmem>>, vector<8x4xf32>
      tpu.vector_store %arg13[%c0_144, %c0_145], %232 {strides = array<i32>} : memref<8x32xf32, #tpu.memory_space<vmem>>, vector<8x4xf32>,
      %c0_146 = arith.constant 0 : index
      %c4_147 = arith.constant 4 : index
      %234 = vector.load %arg13[%c0_146, %c4_147] : memref<8x32xf32, #tpu.memory_space<vmem>>, vector<8x4xf32>
      %c0_148 = arith.constant 0 : index
      %c1_149 = arith.constant 1 : index
      %235 = vector.load %arg12[%c0_148, %c1_149] : memref<8x8xf32, #tpu.memory_space<vmem>>, vector<8x1xf32>
      %236 = vector.broadcast %235 : vector<8x1xf32> to vector<8x4xf32>
      %237 = arith.divf %234, %236 : vector<8x4xf32>
      %c0_150 = arith.constant 0 : index
      %c4_151 = arith.constant 4 : index
      %238 = vector.load %arg13[%c0_150, %c4_151] : memref<8x32xf32, #tpu.memory_space<vmem>>, vector<8x4xf32>
      tpu.vector_store %arg13[%c0_150, %c4_151], %237 {strides = array<i32>} : memref<8x32xf32, #tpu.memory_space<vmem>>, vector<8x4xf32>,
      %c0_152 = arith.constant 0 : index
      %c8_153 = arith.constant 8 : index
      %239 = vector.load %arg13[%c0_152, %c8_153] : memref<8x32xf32, #tpu.memory_space<vmem>>, vector<8x4xf32>
      %c0_154 = arith.constant 0 : index
      %c2_155 = arith.constant 2 : index
      %240 = vector.load %arg12[%c0_154, %c2_155] : memref<8x8xf32, #tpu.memory_space<vmem>>, vector<8x1xf32>
      %241 = vector.broadcast %240 : vector<8x1xf32> to vector<8x4xf32>
      %242 = arith.divf %239, %241 : vector<8x4xf32>
      %c0_156 = arith.constant 0 : index
      %c8_157 = arith.constant 8 : index
      %243 = vector.load %arg13[%c0_156, %c8_157] : memref<8x32xf32, #tpu.memory_space<vmem>>, vector<8x4xf32>
      tpu.vector_store %arg13[%c0_156, %c8_157], %242 {strides = array<i32>} : memref<8x32xf32, #tpu.memory_space<vmem>>, vector<8x4xf32>,
      %c0_158 = arith.constant 0 : index
      %c12_159 = arith.constant 12 : index
      %244 = vector.load %arg13[%c0_158, %c12_159] : memref<8x32xf32, #tpu.memory_space<vmem>>, vector<8x4xf32>
      %c0_160 = arith.constant 0 : index
      %c3_161 = arith.constant 3 : index
      %245 = vector.load %arg12[%c0_160, %c3_161] : memref<8x8xf32, #tpu.memory_space<vmem>>, vector<8x1xf32>
      %246 = vector.broadcast %245 : vector<8x1xf32> to vector<8x4xf32>
      %247 = arith.divf %244, %246 : vector<8x4xf32>
      %c0_162 = arith.constant 0 : index
      %c12_163 = arith.constant 12 : index
      %248 = vector.load %arg13[%c0_162, %c12_163] : memref<8x32xf32, #tpu.memory_space<vmem>>, vector<8x4xf32>
      tpu.vector_store %arg13[%c0_162, %c12_163], %247 {strides = array<i32>} : memref<8x32xf32, #tpu.memory_space<vmem>>, vector<8x4xf32>,
      %c0_164 = arith.constant 0 : index
      %c16_165 = arith.constant 16 : index
      %249 = vector.load %arg13[%c0_164, %c16_165] : memref<8x32xf32, #tpu.memory_space<vmem>>, vector<8x4xf32>
      %c0_166 = arith.constant 0 : index
      %c4_167 = arith.constant 4 : index
      %250 = vector.load %arg12[%c0_166, %c4_167] : memref<8x8xf32, #tpu.memory_space<vmem>>, vector<8x1xf32>
      %251 = vector.broadcast %250 : vector<8x1xf32> to vector<8x4xf32>
      %252 = arith.divf %249, %251 : vector<8x4xf32>
      %c0_168 = arith.constant 0 : index
      %c16_169 = arith.constant 16 : index
      %253 = vector.load %arg13[%c0_168, %c16_169] : memref<8x32xf32, #tpu.memory_space<vmem>>, vector<8x4xf32>
      tpu.vector_store %arg13[%c0_168, %c16_169], %252 {strides = array<i32>} : memref<8x32xf32, #tpu.memory_space<vmem>>, vector<8x4xf32>,
      %c0_170 = arith.constant 0 : index
      %c20_171 = arith.constant 20 : index
      %254 = vector.load %arg13[%c0_170, %c20_171] : memref<8x32xf32, #tpu.memory_space<vmem>>, vector<8x4xf32>
      %c0_172 = arith.constant 0 : index
      %c5_173 = arith.constant 5 : index
      %255 = vector.load %arg12[%c0_172, %c5_173] : memref<8x8xf32, #tpu.memory_space<vmem>>, vector<8x1xf32>
      %256 = vector.broadcast %255 : vector<8x1xf32> to vector<8x4xf32>
      %257 = arith.divf %254, %256 : vector<8x4xf32>
      %c0_174 = arith.constant 0 : index
      %c20_175 = arith.constant 20 : index
      %258 = vector.load %arg13[%c0_174, %c20_175] : memref<8x32xf32, #tpu.memory_space<vmem>>, vector<8x4xf32>
      tpu.vector_store %arg13[%c0_174, %c20_175], %257 {strides = array<i32>} : memref<8x32xf32, #tpu.memory_space<vmem>>, vector<8x4xf32>,
      %c0_176 = arith.constant 0 : index
      %c24_177 = arith.constant 24 : index
      %259 = vector.load %arg13[%c0_176, %c24_177] : memref<8x32xf32, #tpu.memory_space<vmem>>, vector<8x4xf32>
      %c0_178 = arith.constant 0 : index
      %c6_179 = arith.constant 6 : index
      %260 = vector.load %arg12[%c0_178, %c6_179] : memref<8x8xf32, #tpu.memory_space<vmem>>, vector<8x1xf32>
      %261 = vector.broadcast %260 : vector<8x1xf32> to vector<8x4xf32>
      %262 = arith.divf %259, %261 : vector<8x4xf32>
      %c0_180 = arith.constant 0 : index
      %c24_181 = arith.constant 24 : index
      %263 = vector.load %arg13[%c0_180, %c24_181] : memref<8x32xf32, #tpu.memory_space<vmem>>, vector<8x4xf32>
      tpu.vector_store %arg13[%c0_180, %c24_181], %262 {strides = array<i32>} : memref<8x32xf32, #tpu.memory_space<vmem>>, vector<8x4xf32>,
      %c0_182 = arith.constant 0 : index
      %c28_183 = arith.constant 28 : index
      %264 = vector.load %arg13[%c0_182, %c28_183] : memref<8x32xf32, #tpu.memory_space<vmem>>, vector<8x4xf32>
      %c0_184 = arith.constant 0 : index
      %c7_185 = arith.constant 7 : index
      %265 = vector.load %arg12[%c0_184, %c7_185] : memref<8x8xf32, #tpu.memory_space<vmem>>, vector<8x1xf32>
      %266 = vector.broadcast %265 : vector<8x1xf32> to vector<8x4xf32>
      %267 = arith.divf %264, %266 : vector<8x4xf32>
      %c0_186 = arith.constant 0 : index
      %c28_187 = arith.constant 28 : index
      %268 = vector.load %arg13[%c0_186, %c28_187] : memref<8x32xf32, #tpu.memory_space<vmem>>, vector<8x4xf32>
      tpu.vector_store %arg13[%c0_186, %c28_187], %267 {strides = array<i32>} : memref<8x32xf32, #tpu.memory_space<vmem>>, vector<8x4xf32>,
      %c0_188 = arith.constant 0 : index
      %c0_189 = arith.constant 0 : index
      %269 = vector.load %arg13[%c0_188, %c0_189] : memref<8x32xf32, #tpu.memory_space<vmem>>, vector<8x32xf32>
      %270 = arith.truncf %269 : vector<8x32xf32> to vector<8x32xbf16>
      %c0_190 = arith.constant 0 : index
      %c0_191 = arith.constant 0 : index
      %271 = vector.load %arg6[%c0_190, %c0_191] : memref<32x32xbf16, #tpu.memory_space<vmem>>, vector<32x32xbf16>
      %cst_192 = arith.constant dense<0.000000e+00> : vector<8x32xf32>
      %272 = tpu.matmul %270, %271, %cst_192 {dimension_numbers = #tpu.dot_dimension_numbers<[1], [1], [0], [0], [0, 0, 1, 0], [], []>} : vector<8x32xbf16>, vector<32x32xbf16>, vector<8x32xf32> -> vector<8x32xf32>
      %c0_193 = arith.constant 0 : index
      %c0_194 = arith.constant 0 : index
      %273 = vector.load %arg7[%c0_193, %c0_194] : memref<2x32xf32, #tpu.memory_space<vmem>>, vector<1x32xf32>
      %274 = vector.broadcast %273 : vector<1x32xf32> to vector<8x32xf32>
      %275 = arith.mulf %272, %274 : vector<8x32xf32>
      %cst_195 = arith.constant dense<0.000000e+00> : vector<8xf32>
      %276 = vector.multi_reduction <add>, %275, %cst_195 [1] : vector<8x32xf32> to vector<8xf32>
      %277 = vector.shape_cast %276 : vector<8xf32> to vector<8x1xf32>
      %c1_196 = arith.constant 1 : index
      %c0_197 = arith.constant 0 : index
      %278 = vector.load %arg7[%c1_196, %c0_197] : memref<2x32xf32, #tpu.memory_space<vmem>>, vector<1x32xf32>
      %cst_198 = arith.constant dense<0.000000e+00> : vector<1x8xf32>
      %279 = tpu.matmul %278, %272, %cst_198 {dimension_numbers = #tpu.dot_dimension_numbers<[1], [1], [0], [0], [0, 0, 1, 0], [], []>} : vector<1x32xf32>, vector<8x32xf32>, vector<1x8xf32> -> vector<1x8xf32>
      %280 = vector.broadcast %277 : vector<8x1xf32> to vector<8x8xf32>
      %281 = vector.broadcast %279 : vector<1x8xf32> to vector<8x8xf32>
      %282 = arith.addf %280, %281 : vector<8x8xf32>
      %cst_199 = arith.constant dense<0.000000e+00> : vector<8x8xf32>
      %283 = tpu.matmul %272, %272, %cst_199 {dimension_numbers = #tpu.dot_dimension_numbers<[1], [1], [0], [0], [0, 0, 1, 0], [], []>} : vector<8x32xf32>, vector<8x32xf32>, vector<8x8xf32> -> vector<8x8xf32>
      %cst_200 = arith.constant dense<0xFF800000> : vector<8xf32>
      %284 = vector.multi_reduction <maximumf>, %283, %cst_200 [1] : vector<8x8xf32> to vector<8xf32>
      %285 = vector.shape_cast %284 : vector<8xf32> to vector<8x1xf32>
      %286 = vector.broadcast %285 : vector<8x1xf32> to vector<8x8xf32>
      %287 = arith.subf %283, %286 : vector<8x8xf32>
      %288 = math.exp %287 : vector<8x8xf32>
      %cst_201 = arith.constant dense<0.000000e+00> : vector<8xf32>
      %289 = vector.multi_reduction <add>, %288, %cst_201 [1] : vector<8x8xf32> to vector<8xf32>
      %290 = vector.shape_cast %289 : vector<8xf32> to vector<8x1xf32>
      %291 = vector.broadcast %290 : vector<8x1xf32> to vector<8x8xf32>
      %292 = arith.divf %288, %291 : vector<8x8xf32>
      %293 = arith.addf %282, %292 : vector<8x8xf32>
      %cst_202 = arith.constant dense<0xFF800000> : vector<8xf32>
      %294 = vector.multi_reduction <maximumf>, %293, %cst_202 [1] : vector<8x8xf32> to vector<8xf32>
      %295 = vector.shape_cast %294 : vector<8xf32> to vector<8x1xf32>
      %296 = vector.broadcast %295 : vector<8x1xf32> to vector<8x8xf32>
      %297 = arith.subf %293, %296 : vector<8x8xf32>
      %298 = math.exp %297 : vector<8x8xf32>
      %cst_203 = arith.constant dense<0.000000e+00> : vector<8xf32>
      %299 = vector.multi_reduction <add>, %298, %cst_203 [1] : vector<8x8xf32> to vector<8xf32>
      %300 = vector.shape_cast %299 : vector<8xf32> to vector<8x1xf32>
      %301 = vector.broadcast %300 : vector<8x1xf32> to vector<8x8xf32>
      %302 = arith.divf %298, %301 : vector<8x8xf32>
      %cst_204 = arith.constant dense<0.000000e+00> : vector<8x32xf32>
      %303 = tpu.matmul %302, %272, %cst_204 {dimension_numbers = #tpu.dot_dimension_numbers<[1], [0], [0], [1], [0, 0, 1, 1], [], []>} : vector<8x8xf32>, vector<8x32xf32>, vector<8x32xf32> -> vector<8x32xf32>
      %304 = arith.addf %303, %272 : vector<8x32xf32>
      %c0_205 = arith.constant 0 : index
      %c0_206 = arith.constant 0 : index
      %305 = vector.load %arg8[%c0_205, %c0_206] : memref<4x32xf32, #tpu.memory_space<vmem>>, vector<1x32xf32>
      %c1_207 = arith.constant 1 : index
      %c0_208 = arith.constant 0 : index
      %306 = vector.load %arg8[%c1_207, %c0_208] : memref<4x32xf32, #tpu.memory_space<vmem>>, vector<1x32xf32>
      %cst_209 = arith.constant dense<0.000000e+00> : vector<8xf32>
      %307 = vector.multi_reduction <add>, %304, %cst_209 [1] : vector<8x32xf32> to vector<8xf32>
      %308 = vector.shape_cast %307 : vector<8xf32> to vector<8x1xf32>
      %cst_210 = arith.constant 3.200000e+01 : f32
      %309 = vector.broadcast %cst_210 : f32 to vector<8x1xf32>
      %310 = arith.divf %308, %309 : vector<8x1xf32>
      %311 = vector.broadcast %310 : vector<8x1xf32> to vector<8x32xf32>
      %312 = arith.subf %304, %311 : vector<8x32xf32>
      %313 = arith.mulf %312, %312 : vector<8x32xf32>
      %cst_211 = arith.constant dense<0.000000e+00> : vector<8xf32>
      %314 = vector.multi_reduction <add>, %313, %cst_211 [1] : vector<8x32xf32> to vector<8xf32>
      %315 = vector.shape_cast %314 : vector<8xf32> to vector<8x1xf32>
      %cst_212 = arith.constant 3.200000e+01 : f32
      %316 = vector.broadcast %cst_212 : f32 to vector<8x1xf32>
      %317 = arith.divf %315, %316 : vector<8x1xf32>
      %318 = vector.broadcast %310 : vector<8x1xf32> to vector<8x32xf32>
      %319 = arith.subf %304, %318 : vector<8x32xf32>
      %cst_213 = arith.constant 9.99999997E-7 : f32
      %320 = vector.broadcast %cst_213 : f32 to vector<8x1xf32>
      %321 = arith.addf %317, %320 : vector<8x1xf32>
      %322 = math.rsqrt %321 : vector<8x1xf32>
      %323 = vector.broadcast %322 : vector<8x1xf32> to vector<8x32xf32>
      %324 = arith.mulf %319, %323 : vector<8x32xf32>
      %325 = vector.broadcast %305 : vector<1x32xf32> to vector<8x32xf32>
      %326 = arith.mulf %324, %325 : vector<8x32xf32>
      %327 = vector.broadcast %306 : vector<1x32xf32> to vector<8x32xf32>
      %328 = arith.addf %326, %327 : vector<8x32xf32>
      %329 = arith.addf %328, %228 : vector<8x32xf32>
      %c2_214 = arith.constant 2 : index
      %c0_215 = arith.constant 0 : index
      %330 = vector.load %arg8[%c2_214, %c0_215] : memref<4x32xf32, #tpu.memory_space<vmem>>, vector<1x32xf32>
      %c3_216 = arith.constant 3 : index
      %c0_217 = arith.constant 0 : index
      %331 = vector.load %arg8[%c3_216, %c0_217] : memref<4x32xf32, #tpu.memory_space<vmem>>, vector<1x32xf32>
      %cst_218 = arith.constant dense<0.000000e+00> : vector<8xf32>
      %332 = vector.multi_reduction <add>, %329, %cst_218 [1] : vector<8x32xf32> to vector<8xf32>
      %333 = vector.shape_cast %332 : vector<8xf32> to vector<8x1xf32>
      %cst_219 = arith.constant 3.200000e+01 : f32
      %334 = vector.broadcast %cst_219 : f32 to vector<8x1xf32>
      %335 = arith.divf %333, %334 : vector<8x1xf32>
      %336 = vector.broadcast %335 : vector<8x1xf32> to vector<8x32xf32>
      %337 = arith.subf %329, %336 : vector<8x32xf32>
      %338 = arith.mulf %337, %337 : vector<8x32xf32>
      %cst_220 = arith.constant dense<0.000000e+00> : vector<8xf32>
      %339 = vector.multi_reduction <add>, %338, %cst_220 [1] : vector<8x32xf32> to vector<8xf32>
      %340 = vector.shape_cast %339 : vector<8xf32> to vector<8x1xf32>
      %cst_221 = arith.constant 3.200000e+01 : f32
      %341 = vector.broadcast %cst_221 : f32 to vector<8x1xf32>
      %342 = arith.divf %340, %341 : vector<8x1xf32>
      %343 = vector.broadcast %335 : vector<8x1xf32> to vector<8x32xf32>
      %344 = arith.subf %329, %343 : vector<8x32xf32>
      %cst_222 = arith.constant 9.99999997E-7 : f32
      %345 = vector.broadcast %cst_222 : f32 to vector<8x1xf32>
      %346 = arith.addf %342, %345 : vector<8x1xf32>
      %347 = math.rsqrt %346 : vector<8x1xf32>
      %348 = vector.broadcast %347 : vector<8x1xf32> to vector<8x32xf32>
      %349 = arith.mulf %344, %348 : vector<8x32xf32>
      %350 = vector.broadcast %330 : vector<1x32xf32> to vector<8x32xf32>
      %351 = arith.mulf %349, %350 : vector<8x32xf32>
      %352 = vector.broadcast %331 : vector<1x32xf32> to vector<8x32xf32>
      %353 = arith.addf %351, %352 : vector<8x32xf32>
      %c0_223 = arith.constant 0 : index
      %c0_224 = arith.constant 0 : index
      %c0_225 = arith.constant 0 : index
      %354 = vector.load %arg9[%c0_223, %c0_224, %c0_225] : memref<1x8x32xf32, #tpu.memory_space<vmem>>, vector<1x8x32xf32>
      %355 = vector.shape_cast %354 : vector<1x8x32xf32> to vector<8x32xf32>
      %356 = vector.shape_cast %353 : vector<8x32xf32> to vector<1x8x32xf32>
      tpu.vector_store %arg9[%c0_223, %c0_224, %c0_225], %356 {strides = array<i32>} : memref<1x8x32xf32, #tpu.memory_space<vmem>>, vector<1x8x32xf32>,
    } else {
    }
    return
  }
  func.func @transform_0(%arg0: i32, %arg1: i32) -> (i32, i32, i32) {
    %c0_i32 = arith.constant 0 : i32
    %c0_i32_0 = arith.constant 0 : i32
    %c0_i32_1 = arith.constant 0 : i32
    return %arg0, %c0_i32, %c0_i32_0 : i32, i32, i32
  }
  func.func @transform_1(%arg0: i32, %arg1: i32) -> (i32, i32, i32) {
    %c0_i32 = arith.constant 0 : i32
    %c0_i32_0 = arith.constant 0 : i32
    return %arg0, %arg1, %c0_i32 : i32, i32, i32
  }
  func.func @transform_2(%arg0: i32, %arg1: i32) -> (i32, i32) {
    %c0_i32 = arith.constant 0 : i32
    %c0_i32_0 = arith.constant 0 : i32
    %c0_i32_1 = arith.constant 0 : i32
    return %c0_i32, %c0_i32_0 : i32, i32
  }
  func.func @transform_3(%arg0: i32, %arg1: i32) -> (i32, i32) {
    %c0_i32 = arith.constant 0 : i32
    %c0_i32_0 = arith.constant 0 : i32
    %c0_i32_1 = arith.constant 0 : i32
    return %c0_i32, %c0_i32_0 : i32, i32
  }
  func.func @transform_4(%arg0: i32, %arg1: i32) -> (i32, i32) {
    %c0_i32 = arith.constant 0 : i32
    %c0_i32_0 = arith.constant 0 : i32
    %c0_i32_1 = arith.constant 0 : i32
    return %c0_i32, %c0_i32_0 : i32, i32
  }
  func.func @transform_5(%arg0: i32, %arg1: i32) -> (i32, i32) {
    %c0_i32 = arith.constant 0 : i32
    %c0_i32_0 = arith.constant 0 : i32
    %c0_i32_1 = arith.constant 0 : i32
    return %c0_i32, %c0_i32_0 : i32, i32
  }
  func.func @transform_6(%arg0: i32, %arg1: i32) -> (i32, i32) {
    %c0_i32 = arith.constant 0 : i32
    %c0_i32_0 = arith.constant 0 : i32
    %c0_i32_1 = arith.constant 0 : i32
    return %c0_i32, %c0_i32_0 : i32, i32
  }
  func.func @transform_7(%arg0: i32, %arg1: i32) -> (i32, i32, i32) {
    %c0_i32 = arith.constant 0 : i32
    %c0_i32_0 = arith.constant 0 : i32
    %c0_i32_1 = arith.constant 0 : i32
    return %arg0, %c0_i32, %c0_i32_0 : i32, i32, i32
  }
}

</mosaic_0001>

<llo_original>
// kernel: tpu_custom_call.1
$region0: #{tpu_custom_call.1}
  #allocation0 [shape = 'u32[]', space=smem, size = 0x4, offset = 0x4, fixed_abs, tag = 'smem constant byte address 0x4 - core index']
  #allocation1 [shape = 'u32[144,128]{1,0:T(1,128)}', space=vmem, size = 0x12000, scoped, tag = 'internal scratch']
  #allocation2 [shape = 'bf16[8,32]{1,0:T(8,128)(2,1)}', space=vmem, size = 0x800, scoped, tag = 'scratch operand']
  #allocation3 [shape = 'f32[8,8]{1,0:T(8,128)}', space=vmem, size = 0x1000, scoped, tag = 'scratch operand']
  #allocation4 [shape = 'f32[8,8]{1,0:T(8,128)}', space=vmem, size = 0x1000, scoped, tag = 'scratch operand']
  #allocation5 [shape = 'f32[8,32]{1,0:T(8,128)}', space=vmem, size = 0x1000, scoped, tag = 'scratch operand']
  %s0 = inlined_call_operand.vmem [shape: f32[2,8,32], index: 0, kind: input, shape index: {}]
  %s1 = inlined_call_operand.vmem [shape: bf16[2,32,32], index: 1, kind: input, shape index: {}]
  %s2 = inlined_call_operand.hbm [shape: bf16[32,32], index: 2, kind: input, shape index: {}]
  %s3 = inlined_call_operand.vmem [shape: bf16[64,32], index: 3, kind: input, shape index: {}]
  %s4 = inlined_call_operand.hbm [shape: bf16[32,32], index: 4, kind: input, shape index: {}]
  %s5 = inlined_call_operand.vmem [shape: f32[2,32], index: 5, kind: input, shape index: {}]
  %s6 = inlined_call_operand.vmem [shape: f32[4,32], index: 6, kind: input, shape index: {}]
  %s7 = inlined_call_operand.hbm [shape: f32[2,8,32], index: 7, kind: output, shape index: {}]
  %s8 = sld [smem:[#allocation0]]
  $region77: #{tpu_custom_call.1} parent=0
    _
  %s10 = ssub.s32 1, %s8
  %s11 = scalar_select 0, %s10, %s8
  $region1: #{tpu_custom_call.1} parent=0
    #allocation6 [shape = 'u8[8192]{0}', space=vmem, size = 0x2000, scoped, tag = 'input window, operand 2, single buffered']
    #allocation7 [shape = 's32[2]{0}', space=sflag, size = 0x8, scoped, tag = 'scoped memory for tpu_custom_call.1']
    #allocation8 [shape = 's32[2]{0}', space=sflag, size = 0x8, scoped, tag = 'scoped memory for tpu_custom_call.1']
    #allocation9 [shape = 'u8[8192]{0}', space=vmem, size = 0x2000, scoped, tag = 'input window, operand 4, single buffered']
    #allocation10 [shape = 's32[1]{0}', space=sflag, size = 0x4, scoped, tag = 'scoped memory for tpu_custom_call.1']
    #allocation11 [shape = 'u8[8192]{0}', space=vmem, size = 0x2000, scoped, tag = 'output window, operand 0']
    %12 = vsyncpa [#allocation7], 0
    %13 = vsyncpa [#allocation10], 0
    %14 = vsyncpa [#allocation8], 0
    %s15 = scalar_lea.sflag [#allocation8], 1
    %16 = vsyncpa %s15, 0
    loop: start=0, step=1, limit=6
    $region2: #{tpu_custom_call.1} parent=1 // loop_pre_header
      _
    $region3: #{tpu_custom_call.1} parent=1 // loop_header
      %s18 = sphi 0, %s22
      %p19 = scmp.ge.s32.totalorder %s18, 6
      %s25 = sphi 0, %s37
      %s26 = sphi 0, %s33
      %s27 = sphi 0, %s25
      %s28 = sphi 0, %s26
      %s29 = sphi 0, %s27
      %s30 = sphi 0, %s28
      %s40 = sphi 0, %s42
      %s43 = sphi 0, %s40
      %s44 = sphi 0, %s43
      %s60 = sphi 0, %s44
      %s68 = sphi 0, %s70
      %s71 = sphi 0, %s68
      %s72 = sphi 0, %s71
      %s88 = sphi 0, %s72
      %s92 = sphi 0, %s92
      %s94 = sphi 0, %s92
      %s95 = sphi 0, %s94
      %s109 = sphi 0, %s95
      %s113 = sphi 0, %s113
      %s115 = sphi 0, %s113
      %s116 = sphi 0, %s115
      %s130 = sphi 0, %s116
      %s134 = sphi 0, %s134
      %s136 = sphi 0, %s134
      %s137 = sphi 0, %s136
      %s151 = sphi 0, %s137
      %s155 = sphi 0, %s155
      %s157 = sphi 0, %s155
      %s158 = sphi 0, %s157
      %s172 = sphi 0, %s158
      %s176 = sphi 0, %s176
      %s178 = sphi 0, %s176
      %s179 = sphi 0, %s178
      %s193 = sphi 0, %s179
      %s199 = sphi 0, %s201
      %s202 = sphi 0, %s199
      %s203 = sphi 0, %s202
      %s219 = sphi 0, %s203
    $region4: #{tpu_custom_call.1} parent=1 // loop_header_branch
      %21 = sbr.rel (%p19) target = $region8
    $region5: #{tpu_custom_call.1} parent=1 // loop_body
      %s23 = ssub.s32 %s18, 1
      %s24 = ssub.s32 %s18, 2
      %s31 = sadd.s32 1, %s26
      %p32 = scmp.ge.s32.totalorder %s31, 2
      %s33 = scalar_select %p32, 0, %s31
      %s34 = sadd.s32 1, %s25
      %s35 = scalar_select %p32, %s34, %s25
      %p36 = scmp.ge.s32.totalorder %s35, 2
      %s37 = scalar_select %p36, 0, %s35
      %s38 = ssub.s32 %s25, %s37
      %p39 = scmp.eq.s32.totalorder %s38, 0
      %s41 = sadd.s32 %s40, 1
      %s42 = scalar_select %p39, %s40, %s41
      %p45 = pneg %p39
      %p46 = scmp.eq.s32.totalorder %s18, 3
      %p47 = por %p45, %p46
      %p48 = scmp.ne.s32.totalorder %s40, %s43
      %p49 = scmp.eq.s32.totalorder %s18, 0
      %p50 = por %p48, %p49
      %p51 = scmp.ne.s32.totalorder %s40, %s43
      %p52 = scmp.eq.s32.totalorder %s23, 3
      %p53 = por %p51, %p52
      %p54 = scmp.ne.s32.totalorder %s43, %s44
      %p55 = scmp.eq.s32.totalorder %s23, 0
      %p56 = por %p54, %p55
      %p57 = scmp.ne.s32.totalorder %s43, %s44
      %p58 = scmp.eq.s32.totalorder %s24, 3
      %p59 = por %p57, %p58
      %p61 = scmp.ne.s32.totalorder %s44, %s60
      %p62 = scmp.eq.s32.totalorder %s24, 0
      %p63 = por %p61, %p62
      %s64 = ssub.s32 %s25, %s37
      %s65 = ssub.s32 %s26, %s33
      %s66 = sor.u32 %s64, %s65
      %p67 = scmp.eq.s32.totalorder %s66, 0
      %s69 = sadd.s32 %s68, 1
      %s70 = scalar_select %p67, %s68, %s69
      %p73 = pneg %p67
      %p74 = scmp.eq.s32.totalorder %s18, 3
      %p75 = por %p73, %p74
      %p76 = scmp.ne.s32.totalorder %s68, %s71
      %p77 = scmp.eq.s32.totalorder %s18, 0
      %p78 = por %p76, %p77
      %p79 = scmp.ne.s32.totalorder %s68, %s71
      %p80 = scmp.eq.s32.totalorder %s23, 3
      %p81 = por %p79, %p80
      %p82 = scmp.ne.s32.totalorder %s71, %s72
      %p83 = scmp.eq.s32.totalorder %s23, 0
      %p84 = por %p82, %p83
      %p85 = scmp.ne.s32.totalorder %s71, %s72
      %p86 = scmp.eq.s32.totalorder %s24, 3
      %p87 = por %p85, %p86
      %p89 = scmp.ne.s32.totalorder %s72, %s88
      %p90 = scmp.eq.s32.totalorder %s24, 0
      %p91 = por %p89, %p90
      %s93 = sadd.s32 %s92, 1
      %p96 = scmp.eq.s32.totalorder %s18, 3
      %p97 = scmp.ne.s32.totalorder %s92, %s94
      %p98 = scmp.eq.s32.totalorder %s18, 0
      %p99 = por %p97, %p98
      %p100 = scmp.ne.s32.totalorder %s92, %s94
      %p101 = scmp.eq.s32.totalorder %s23, 3
      %p102 = por %p100, %p101
      %p103 = scmp.ne.s32.totalorder %s94, %s95
      %p104 = scmp.eq.s32.totalorder %s23, 0
      %p105 = por %p103, %p104
      %p106 = scmp.ne.s32.totalorder %s94, %s95
      %p107 = scmp.eq.s32.totalorder %s24, 3
      %p108 = por %p106, %p107
      %p110 = scmp.ne.s32.totalorder %s95, %s109
      %p111 = scmp.eq.s32.totalorder %s24, 0
      %p112 = por %p110, %p111
      %s114 = sadd.s32 %s113, 1
      %p117 = scmp.eq.s32.totalorder %s18, 3
      %p118 = scmp.ne.s32.totalorder %s113, %s115
      %p119 = scmp.eq.s32.totalorder %s18, 0
      %p120 = por %p118, %p119
      %p121 = scmp.ne.s32.totalorder %s113, %s115
      %p122 = scmp.eq.s32.totalorder %s23, 3
      %p123 = por %p121, %p122
      %p124 = scmp.ne.s32.totalorder %s115, %s116
      %p125 = scmp.eq.s32.totalorder %s23, 0
      %p126 = por %p124, %p125
      %p127 = scmp.ne.s32.totalorder %s115, %s116
      %p128 = scmp.eq.s32.totalorder %s24, 3
      %p129 = por %p127, %p128
      %p131 = scmp.ne.s32.totalorder %s116, %s130
      %p132 = scmp.eq.s32.totalorder %s24, 0
      %p133 = por %p131, %p132
      %s135 = sadd.s32 %s134, 1
      %p138 = scmp.eq.s32.totalorder %s18, 3
      %p139 = scmp.ne.s32.totalorder %s134, %s136
      %p140 = scmp.eq.s32.totalorder %s18, 0
      %p141 = por %p139, %p140
      %p142 = scmp.ne.s32.totalorder %s134, %s136
      %p143 = scmp.eq.s32.totalorder %s23, 3
      %p144 = por %p142, %p143
      %p145 = scmp.ne.s32.totalorder %s136, %s137
      %p146 = scmp.eq.s32.totalorder %s23, 0
      %p147 = por %p145, %p146
      %p148 = scmp.ne.s32.totalorder %s136, %s137
      %p149 = scmp.eq.s32.totalorder %s24, 3
      %p150 = por %p148, %p149
      %p152 = scmp.ne.s32.totalorder %s137, %s151
      %p153 = scmp.eq.s32.totalorder %s24, 0
      %p154 = por %p152, %p153
      %s156 = sadd.s32 %s155, 1
      %p159 = scmp.eq.s32.totalorder %s18, 3
      %p160 = scmp.ne.s32.totalorder %s155, %s157
      %p161 = scmp.eq.s32.totalorder %s18, 0
      %p162 = por %p160, %p161
      %p163 = scmp.ne.s32.totalorder %s155, %s157
      %p164 = scmp.eq.s32.totalorder %s23, 3
      %p165 = por %p163, %p164
      %p166 = scmp.ne.s32.totalorder %s157, %s158
      %p167 = scmp.eq.s32.totalorder %s23, 0
      %p168 = por %p166, %p167
      %p169 = scmp.ne.s32.totalorder %s157, %s158
      %p170 = scmp.eq.s32.totalorder %s24, 3
      %p171 = por %p169, %p170
      %p173 = scmp.ne.s32.totalorder %s158, %s172
      %p174 = scmp.eq.s32.totalorder %s24, 0
      %p175 = por %p173, %p174
      %s177 = sadd.s32 %s176, 1
      %p180 = scmp.eq.s32.totalorder %s18, 3
      %p181 = scmp.ne.s32.totalorder %s176, %s178
      %p182 = scmp.eq.s32.totalorder %s18, 0
      %p183 = por %p181, %p182
      %p184 = scmp.ne.s32.totalorder %s176, %s178
      %p185 = scmp.eq.s32.totalorder %s23, 3
      %p186 = por %p184, %p185
      %p187 = scmp.ne.s32.totalorder %s178, %s179
      %p188 = scmp.eq.s32.totalorder %s23, 0
      %p189 = por %p187, %p188
      %p190 = scmp.ne.s32.totalorder %s178, %s179
      %p191 = scmp.eq.s32.totalorder %s24, 3
      %p192 = por %p190, %p191
      %p194 = scmp.ne.s32.totalorder %s179, %s193
      %p195 = scmp.eq.s32.totalorder %s24, 0
      %p196 = por %p194, %p195
      %s197 = ssub.s32 %s25, %s37
      %p198 = scmp.eq.s32.totalorder %s197, 0
      %s200 = sadd.s32 %s199, 1
      %s201 = scalar_select %p198, %s199, %s200
      %p204 = pneg %p198
      %p205 = scmp.eq.s32.totalorder %s18, 3
      %p206 = por %p204, %p205
      %p207 = scmp.ne.s32.totalorder %s199, %s202
      %p208 = scmp.eq.s32.totalorder %s18, 0
      %p209 = por %p207, %p208
      %p210 = scmp.ne.s32.totalorder %s199, %s202
      %p211 = scmp.eq.s32.totalorder %s23, 3
      %p212 = por %p210, %p211
      %p213 = scmp.ne.s32.totalorder %s202, %s203
      %p214 = scmp.eq.s32.totalorder %s23, 0
      %p215 = por %p213, %p214
      %p216 = scmp.ne.s32.totalorder %s202, %s203
      %p217 = scmp.eq.s32.totalorder %s24, 3
      %p218 = por %p216, %p217
      %p220 = scmp.ne.s32.totalorder %s203, %s219
      %p221 = scmp.eq.s32.totalorder %s24, 0
      %p222 = por %p220, %p221
      %p223 = scmp.le.s32.totalorder 1, %s18
      %p224 = scmp.lt.s32.totalorder %s18, 5
      %p225 = pnand %p223, %p224
      %p226 = pneg %p225
      // Predicated region
      $region9: #{tpu_custom_call.1} parent=5 // pred_check
        _
      $region10: #{tpu_custom_call.1} parent=5 // pred_check_branch
        %228 = sbr.rel (%p225) target = $region12
      $region11: #{tpu_custom_call.1} parent=5 // pred_region
        %s229 = ssub.s32 %s18, 1
        // Predicated region
        $region13: #{tpu_custom_call.1} parent=11 // pred_check
          %p230 = pneg %p105
        $region14: #{tpu_custom_call.1} parent=11 // pred_check_branch
          %232 = sbr.rel (%p230) target = $region16
        $region15: #{tpu_custom_call.1} parent=11 // pred_region
          %s234 = ssub.s32 256, 256
          %235 = vsyncadd [#allocation7], %s234
          %s236 = sshll.u32 [#allocation6], 4
          %s237 = int_to_ptr.vmem [resolvable:$true] %s236
          %242 = dma.hbm_to_vmem [thread:$0]  %s2, 256, %s237, [#allocation7], 64, 64, 4
        $region16: #{tpu_custom_call.1} parent=11 // pred_fallthru
          _
        // Predicated region
        $region17: #{tpu_custom_call.1} parent=11 // pred_check
          %p243 = pneg %p126
        $region18: #{tpu_custom_call.1} parent=11 // pred_check_branch
          %245 = sbr.rel (%p243) target = $region20
        $region19: #{tpu_custom_call.1} parent=11 // pred_region
          _
        $region20: #{tpu_custom_call.1} parent=11 // pred_fallthru
          _
        // Predicated region
        $region21: #{tpu_custom_call.1} parent=11 // pred_check
          %p246 = pneg %p147
        $region22: #{tpu_custom_call.1} parent=11 // pred_check_branch
          %248 = sbr.rel (%p246) target = $region24
        $region23: #{tpu_custom_call.1} parent=11 // pred_region
          %s250 = ssub.s32 256, 256
          %251 = vsyncadd [#allocation10], %s250
          %s252 = sshll.u32 [#allocation9], 4
          %s253 = int_to_ptr.vmem [resolvable:$true] %s252
          %258 = dma.hbm_to_vmem [thread:$0]  %s4, 256, %s253, [#allocation10], 64, 64, 4
        $region24: #{tpu_custom_call.1} parent=11 // pred_fallthru
          _
        // Predicated region
        $region25: #{tpu_custom_call.1} parent=11 // pred_check
          %p259 = pneg %p168
        $region26: #{tpu_custom_call.1} parent=11 // pred_check_branch
          %261 = sbr.rel (%p259) target = $region28
        $region27: #{tpu_custom_call.1} parent=11 // pred_region
          _
        $region28: #{tpu_custom_call.1} parent=11 // pred_fallthru
          _
        // Predicated region
        $region29: #{tpu_custom_call.1} parent=11 // pred_check
          %p262 = pneg %p189
        $region30: #{tpu_custom_call.1} parent=11 // pred_check_branch
          %264 = sbr.rel (%p262) target = $region32
        $region31: #{tpu_custom_call.1} parent=11 // pred_region
          _
        $region32: #{tpu_custom_call.1} parent=11 // pred_fallthru
          _
      $region12: #{tpu_custom_call.1} parent=5 // pred_fallthru
        _
      %p265 = scmp.lt.s32.totalorder %s18, 4
      // Predicated region
      $region33: #{tpu_custom_call.1} parent=5 // pred_check
        %p266 = pneg %p265
      $region34: #{tpu_custom_call.1} parent=5 // pred_check_branch
        %268 = sbr.rel (%p266) target = $region36
      $region35: #{tpu_custom_call.1} parent=5 // pred_region
        // Predicated region
        $region37: #{tpu_custom_call.1} parent=35 // pred_check
          %p269 = pneg %p50
        $region38: #{tpu_custom_call.1} parent=35 // pred_check_branch
          %271 = sbr.rel (%p269) target = $region40
        $region39: #{tpu_custom_call.1} parent=35 // pred_region
          %p272 = scmp.lt.s32.totalorder %s25, 1
          %s273 = scalar_select %p272, %s25, 1
          %s274 = smul.addr %s273, 8
          %s275 = scalar_lea.vmem %s0, %s274
        $region40: #{tpu_custom_call.1} parent=35 // pred_fallthru
          _
        // Predicated region
        $region41: #{tpu_custom_call.1} parent=35 // pred_check
          %p276 = pneg %p78
        $region42: #{tpu_custom_call.1} parent=35 // pred_check_branch
          %278 = sbr.rel (%p276) target = $region44
        $region43: #{tpu_custom_call.1} parent=35 // pred_region
          %s279 = smul.u32 2, %s26
          %p280 = scmp.lt.s32.totalorder %s25, 1
          %s281 = scalar_select %p280, %s25, 1
          %p282 = scmp.lt.s32.totalorder %s279, 3
          %s283 = scalar_select %p282, %s279, 3
          %s284 = smul.addr %s281, 4
          %s285 = sadd.s32 %s283, %s284
          %s286 = smul.addr %s285, 4
          %s287 = scalar_lea.vmem %s1, %s286
          %s288 = smul.u32 2, %s26
        $region44: #{tpu_custom_call.1} parent=35 // pred_fallthru
          _
      $region36: #{tpu_custom_call.1} parent=5 // pred_fallthru
        _
      %p289 = scmp.le.s32.totalorder 1, %s18
      %p290 = scmp.lt.s32.totalorder %s18, 5
      %p291 = pnand %p289, %p290
      %p292 = pneg %p291
      // Predicated region
      $region45: #{tpu_custom_call.1} parent=5 // pred_check
        _
      $region46: #{tpu_custom_call.1} parent=5 // pred_check_branch
        %294 = sbr.rel (%p291) target = $region48
      $region47: #{tpu_custom_call.1} parent=5 // pred_region
        %s295 = ssub.s32 %s18, 1
        // Predicated region
        $region49: #{tpu_custom_call.1} parent=47 // pred_check
          %p296 = pneg %p105
        $region50: #{tpu_custom_call.1} parent=47 // pred_check_branch
          %298 = sbr.rel (%p296) target = $region52
        $region51: #{tpu_custom_call.1} parent=47 // pred_region
          %299 = dma.done [#allocation7], 256
        $region52: #{tpu_custom_call.1} parent=47 // pred_fallthru
          _
        // Predicated region
        $region53: #{tpu_custom_call.1} parent=47 // pred_check
          %p300 = pneg %p147
        $region54: #{tpu_custom_call.1} parent=47 // pred_check_branch
          %302 = sbr.rel (%p300) target = $region56
        $region55: #{tpu_custom_call.1} parent=47 // pred_region
          %303 = dma.done [#allocation10], 256
        $region56: #{tpu_custom_call.1} parent=47 // pred_fallthru
          _
        %p304 = scmp.lt.s32.totalorder %s27, 1
        %s305 = scalar_select %p304, %s27, 1
        %s306 = smul.addr %s305, 8
        %s307 = scalar_lea.vmem %s0, %s306
        %p308 = pneg %p56
        %p309 = pneg %p53
        %s310 = smul.u32 2, %s28
        %p311 = scmp.lt.s32.totalorder %s27, 1
        %s312 = scalar_select %p311, %s27, 1
        %p313 = scmp.lt.s32.totalorder %s310, 3
        %s314 = scalar_select %p313, %s310, 3
        %s315 = smul.addr %s312, 4
        %s316 = sadd.s32 %s314, %s315
        %s317 = smul.addr %s316, 4
        %s318 = scalar_lea.vmem %s1, %s317
        %p319 = pneg %p84
        %p320 = pneg %p81
        %p321 = pneg %p105
        %p322 = pneg %p102
        %p323 = pneg %p126
        %p324 = pneg %p123
        %p325 = pneg %p147
        %p326 = pneg %p144
        %p327 = pneg %p168
        %p328 = pneg %p165
        %p329 = pneg %p189
        %p330 = pneg %p186
        %p331 = pneg %p215
        %p332 = pneg %p212
        %s333 = sand.u32 %s202, 1
        %s334 = scalar_lea.sflag [#allocation8], %s333
        %s335 = sand.u32 %s202, 1
        %s336 = smul.addr %s335, 8
        %s337 = scalar_lea.vmem [#allocation11], %s336
        %p338 = scmp.lt.s32.totalorder %s27, 1
        %s339 = scalar_select %p338, %s27, 1
        %s340 = smul.addr %s339, 8
        %s341 = scalar_lea.vmem %s0, %s340
        %s342 = smul.u32 2, %s28
        %p343 = scmp.lt.s32.totalorder %s27, 1
        %s344 = scalar_select %p343, %s27, 1
        %p345 = scmp.lt.s32.totalorder %s342, 3
        %s346 = scalar_select %p345, %s342, 3
        %s347 = smul.addr %s344, 4
        %s348 = sadd.s32 %s346, %s347
        %s349 = smul.addr %s348, 4
        %s350 = scalar_lea.vmem %s1, %s349
        %s351 = smul.u32 2, %s28
        %p353 = scmp.eq.s32.totalorder %s28, 0
        // Predicated region
        $region57: #{tpu_custom_call.1} parent=47 // pred_check
          %p354 = pneg %p353
        $region58: #{tpu_custom_call.1} parent=47 // pred_check_branch
          %356 = sbr.rel (%p354) target = $region60
        $region59: #{tpu_custom_call.1} parent=47 // pred_region
          %v357 = vld [vmem:[%s341] sm:$0xff]
          %v358 = vpack.c.bf16 %v357, %v357
          %v359 = vld [vmem:[#allocation6] sm:$0xf]
          %v360 = vld [vmem:[#allocation6 + $0x4] sm:$0xf]
          %v361 = vld [vmem:[#allocation6 + $0x8] sm:$0xf]
          %v362 = vld [vmem:[#allocation6 + $0xc] sm:$0xf]
          %v367 = vunpack.c.l.b16 %v359
          %v368 = vunpack.c.l.b16 %v360
          %v369 = vunpack.c.l.b16 %v361
          %v370 = vunpack.c.l.b16 %v362
          %v371 = vpack.c.b16 %v368, %v367
          %v372 = vpack.c.b16 %v370, %v369
          %vm373 = vcmask 261120
          %v375 = vsel %vm373, %v358, 0
          %v378 = vsel %vm373, %v371, 0
          %v381 = vsel %vm373, %v372, 0
          %383 = vmatprep.subr.bf16.mxu0 0
          %384 = vmatpush1.bf16.xpose.msra.mxu0 %v378
          %385 = vmatprep.subr.bf16.mxu0 0
          %386 = vmatpush1.bf16.xpose.msra.mxu0 %v381
          %387 = vmatprep.subr.bf16.mxu0 0
          %388 = vmatpush1.bf16.xpose.msra.mxu0 0
          %389 = vmatprep.subr.bf16.mxu0 0
          %390 = vmatpush1.bf16.xpose.msra.mxu0 0
          %391 = vmatprep.subr.bf16.mxu0 0
          %392 = vmatpush1.bf16.xpose.msra.mxu0 0
          %393 = vmatprep.subr.bf16.mxu0 0
          %394 = vmatpush1.bf16.xpose.msra.mxu0 0
          %395 = vmatprep.subr.bf16.mxu0 0
          %396 = vmatpush1.bf16.xpose.msra.mxu0 0
          %397 = vmatprep.subr.bf16.mxu0 0
          %398 = vmatpush1.bf16.xpose.msra.mxu0 0
          %399 = vmatprep.subr.bf16.mxu0 0
          %400 = vmatpush1.bf16.xpose.msra.mxu0 0
          %401 = vmatprep.subr.bf16.mxu0 0
          %402 = vmatpush1.bf16.xpose.msra.mxu0 0
          %403 = vmatprep.subr.bf16.mxu0 0
          %404 = vmatpush1.bf16.xpose.msra.mxu0 0
          %405 = vmatprep.subr.bf16.mxu0 0
          %406 = vmatpush1.bf16.xpose.msra.mxu0 0
          %407 = vmatprep.subr.bf16.mxu0 0
          %408 = vmatpush1.bf16.xpose.msra.mxu0 0
          %409 = vmatprep.subr.bf16.mxu0 0
          %410 = vmatpush1.bf16.xpose.msra.mxu0 0
          %411 = vmatprep.subr.bf16.mxu0 0
          %412 = vmatpush1.bf16.xpose.msra.mxu0 0
          %413 = vmatprep.subr.bf16.mxu0 0
          %414 = vmatpush1.bf16.xpose.msra.mxu0 0
          %415 = vmatprep.mubr.bf16.mxu0 0
          %416 = vmatmul.mubr.bf16.gmra.mrb[0].mxu0 %v375
          %v417 = vpop.f32.mrb[0].mxu0
          %v418 = vadd.f32 0.0, %v417
          %v419 = vpop.f32.mrb[0].mxu0
          %v420 = vpop.f32.mrb[0].mxu0
          %v421 = vpop.f32.mrb[0].mxu0
          %422 = vdwg.mxu0
          %v423 = vpack.c.bf16 %v418, %v418
          %vm424 = vcmask 257024
          %425 = vst.msk [vmem:[#allocation2] sm:$0xf] %vm424, %v423
          %vm426 = vcmask 64512
          %427 = vst.msk [vmem:[#allocation3] sm:$0xff] %vm426, -inf
          %428 = vst.msk [vmem:[#allocation4] sm:$0xff] %vm426, 0.0
          %429 = vst.msk [vmem:[#allocation5] sm:$0xff] %vm373, 0.0
        $region60: #{tpu_custom_call.1} parent=47 // pred_fallthru
          _
        %v430 = vld [vmem:[%s350] sm:$0xf]
        %v431 = vld [vmem:[%s350 + $0x4] sm:$0xf]
        %v432 = vld [vmem:[%s3] sm:$0xf]
        %v433 = vld [vmem:[%s3 + $0x4] sm:$0xf]
        %v434 = vld [vmem:[%s3 + $0x8] sm:$0xf]
        %v435 = vld [vmem:[%s3 + $0xc] sm:$0xf]
        %v436 = vld [vmem:[%s3 + $0x10] sm:$0xf]
        %v437 = vld [vmem:[%s3 + $0x14] sm:$0xf]
        %v438 = vld [vmem:[%s3 + $0x18] sm:$0xf]
        %v439 = vld [vmem:[%s3 + $0x1c] sm:$0xf]
        %v448 = vunpack.c.l.b16 %v432
        %v449 = vunpack.c.l.b16 %v433
        %v450 = vunpack.c.l.b16 %v434
        %v451 = vunpack.c.l.b16 %v435
        %v452 = vunpack.c.l.b16 %v436
        %v453 = vunpack.c.l.b16 %v437
        %v454 = vunpack.c.l.b16 %v438
        %v455 = vunpack.c.l.b16 %v439
        %v456 = vpack.c.b16 %v449, %v448
        %v457 = vpack.c.b16 %v451, %v450
        %v458 = vpack.c.b16 %v453, %v452
        %v459 = vpack.c.b16 %v455, %v454
        %v462 = vunpack.c.l.b16 %v430
        %v463 = vunpack.c.l.b16 %v431
        %v464 = vpack.c.b16 %v463, %v462
        %vm465 = vcmask 261120
        %v467 = vsel %vm465, %v456, 0
        %v470 = vsel %vm465, %v457, 0
        %v473 = vsel %vm465, %v458, 0
        %v476 = vsel %vm465, %v459, 0
        %v479 = vsel %vm465, %v464, 0
        %481 = vmatprep.subr.bf16.mxu0 0
        %482 = vmatpush1.bf16.xpose.msra.mxu0 %v479
        %483 = vmatprep.subr.bf16.mxu0 0
        %484 = vmatpush1.bf16.xpose.msra.mxu0 0
        %485 = vmatprep.subr.bf16.mxu0 0
        %486 = vmatpush1.bf16.xpose.msra.mxu0 0
        %487 = vmatprep.subr.bf16.mxu0 0
        %488 = vmatpush1.bf16.xpose.msra.mxu0 0
        %489 = vmatprep.subr.bf16.mxu0 0
        %490 = vmatpush1.bf16.xpose.msra.mxu0 0
        %491 = vmatprep.subr.bf16.mxu0 0
        %492 = vmatpush1.bf16.xpose.msra.mxu0 0
        %493 = vmatprep.subr.bf16.mxu0 0
        %494 = vmatpush1.bf16.xpose.msra.mxu0 0
        %495 = vmatprep.subr.bf16.mxu0 0
        %496 = vmatpush1.bf16.xpose.msra.mxu0 0
        %497 = vmatprep.subr.bf16.mxu0 0
        %498 = vmatpush1.bf16.xpose.msra.mxu0 0
        %499 = vmatprep.subr.bf16.mxu0 0
        %500 = vmatpush1.bf16.xpose.msra.mxu0 0
        %501 = vmatprep.subr.bf16.mxu0 0
        %502 = vmatpush1.bf16.xpose.msra.mxu0 0
        %503 = vmatprep.subr.bf16.mxu0 0
        %504 = vmatpush1.bf16.xpose.msra.mxu0 0
        %505 = vmatprep.subr.bf16.mxu0 0
        %506 = vmatpush1.bf16.xpose.msra.mxu0 0
        %507 = vmatprep.subr.bf16.mxu0 0
        %508 = vmatpush1.bf16.xpose.msra.mxu0 0
        %509 = vmatprep.subr.bf16.mxu0 0
        %510 = vmatpush1.bf16.xpose.msra.mxu0 0
        %511 = vmatprep.subr.bf16.mxu0 0
        %512 = vmatpush1.bf16.xpose.msra.mxu0 0
        %513 = vmatprep.mubr.bf16.mxu0 0
        %514 = vmatmul.mubr.bf16.gmra.mrb[0].mxu0 %v467
        %v515 = vpop.f32.mrb[0].mxu0
        %v516 = vadd.f32 0.0, %v515
        %v517 = vpop.f32.mrb[0].mxu0
        %v518 = vpop.f32.mrb[0].mxu0
        %v519 = vadd.f32 0.0, %v518
        %v520 = vpop.f32.mrb[0].mxu0
        %521 = vmatprep.mubr.bf16.mxu0 0
        %522 = vmatmul.mubr.bf16.gmra.mrb[0].mxu0 %v470
        %v523 = vpop.f32.mrb[0].mxu0
        %v524 = vadd.f32 0.0, %v523
        %v525 = vpop.f32.mrb[0].mxu0
        %v526 = vpop.f32.mrb[0].mxu0
        %v527 = vadd.f32 0.0, %v526
        %v528 = vpop.f32.mrb[0].mxu0
        %529 = vmatprep.mubr.bf16.mxu0 0
        %530 = vmatmul.mubr.bf16.gmra.mrb[0].mxu0 %v473
        %v531 = vpop.f32.mrb[0].mxu0
        %v532 = vadd.f32 0.0, %v531
        %v533 = vpop.f32.mrb[0].mxu0
        %v534 = vpop.f32.mrb[0].mxu0
        %v535 = vadd.f32 0.0, %v534
        %v536 = vpop.f32.mrb[0].mxu0
        %537 = vmatprep.mubr.bf16.mxu0 0
        %538 = vmatmul.mubr.bf16.gmra.mrb[0].mxu0 %v476
        %v539 = vpop.f32.mrb[0].mxu0
        %v540 = vadd.f32 0.0, %v539
        %v541 = vpop.f32.mrb[0].mxu0
        %v542 = vpop.f32.mrb[0].mxu0
        %v543 = vadd.f32 0.0, %v542
        %v544 = vpop.f32.mrb[0].mxu0
        %545 = vdwg.mxu0
        %v546 = vpack.c.bf16 %v519, %v516
        %v547 = vpack.c.bf16 %v527, %v524
        %v548 = vpack.c.bf16 %v535, %v532
        %v549 = vpack.c.bf16 %v543, %v540
        %v550 = vld [vmem:[#allocation2] sm:$0xf]
        %vm551 = vcmask 31744
        %v553 = vsel %vm551, %v550, 0
        %vm555 = vcmask 1041408
        %v557 = vsel %vm555, %v546, 0
        %559 = vmatprep.subr.bf16.mxu0 0
        %560 = vmatpush1.bf16.msra.mxu0 %v557
        %561 = vmatprep.subr.bf16.mxu0 0
        %562 = vmatpush1.bf16.msra.mxu0 0
        %563 = vmatprep.subr.bf16.mxu0 0
        %564 = vmatpush1.bf16.msra.mxu0 0
        %565 = vmatprep.subr.bf16.mxu0 0
        %566 = vmatpush1.bf16.msra.mxu0 0
        %567 = vmatprep.subr.bf16.mxu0 0
        %568 = vmatpush1.bf16.msra.mxu0 0
        %569 = vmatprep.subr.bf16.mxu0 0
        %570 = vmatpush1.bf16.msra.mxu0 0
        %571 = vmatprep.subr.bf16.mxu0 0
        %572 = vmatpush1.bf16.msra.mxu0 0
        %573 = vmatprep.subr.bf16.mxu0 0
        %574 = vmatpush1.bf16.msra.mxu0 0
        %575 = vmatprep.subr.bf16.mxu0 0
        %576 = vmatpush1.bf16.msra.mxu0 0
        %577 = vmatprep.subr.bf16.mxu0 0
        %578 = vmatpush1.bf16.msra.mxu0 0
        %579 = vmatprep.subr.bf16.mxu0 0
        %580 = vmatpush1.bf16.msra.mxu0 0
        %581 = vmatprep.subr.bf16.mxu0 0
        %582 = vmatpush1.bf16.msra.mxu0 0
        %583 = vmatprep.subr.bf16.mxu0 0
        %584 = vmatpush1.bf16.msra.mxu0 0
        %585 = vmatprep.subr.bf16.mxu0 0
        %586 = vmatpush1.bf16.msra.mxu0 0
        %587 = vmatprep.subr.bf16.mxu0 0
        %588 = vmatpush1.bf16.msra.mxu0 0
        %589 = vmatprep.subr.bf16.mxu0 0
        %590 = vmatpush1.bf16.msra.mxu0 0
        %591 = vmatprep.mubr.bf16.mxu0 0
        %592 = vmatmul.mubr.bf16.gmra.mrb[0].mxu0 %v553
        %v593 = vpop.f32.mrb[0].mxu0
        %v594 = vadd.f32 0.0, %v593
        %v595 = vpop.f32.mrb[0].mxu0
        %v596 = vpop.f32.mrb[0].mxu0
        %v597 = vpop.f32.mrb[0].mxu0
        %598 = vdwg.mxu0
        %v599 = vld [vmem:[#allocation3] sm:$0xff]
        %vm600 = vcmask 130048
        %v601 = vsel %vm600, %v594, -inf
        %602 = vmax.xlane.f32.xlu0 %v601
        %v603 = vpop.xlane.xlu0 %602
        %v604 = vmax.f32 %v599, %v603
        %v605 = vsub.f32 %v599, %v604
        %v606 = vmul.f32 %v605, 1.442695
        %v607 = vpow.pop %v606
        %609 = vset.pattern.permute.xlu0 0
        %610 = vperm.xlu0 %609, %v604
        %v611 = vpop.permute.xlu0 %610
        %v613 = vsub.f32 %v594, %v611
        %v614 = vmul.f32 %v613, 1.442695
        %v615 = vpow.pop %v614
        %v616 = vld [vmem:[#allocation4] sm:$0xff]
        %v617 = vmul.f32 %v607, %v616
        %v618 = vsel %vm600, %v615, 0.0
        %619 = vadd.xlane.f32.xlu0 %v618
        %v620 = vpop.xlane.xlu0 %619
        %v621 = vadd.f32 %v617, %v620
        %vm622 = vcmask 7168
        %623 = vst.msk [vmem:[#allocation4] sm:$0xff] %vm622, %v621
        %v624 = vpack.c.bf16 %v615, %v615
        %v626 = vsel %vm600, %v624, 0
        %v629 = vsel %vm600, %v548, 0
        %631 = vmatprep.subr.bf16.mxu0 0
        %632 = vmatpush1.bf16.xpose.msra.mxu0 %v629
        %633 = vmatprep.subr.bf16.mxu0 0
        %634 = vmatpush1.bf16.xpose.msra.mxu0 0
        %635 = vmatprep.subr.bf16.mxu0 0
        %636 = vmatpush1.bf16.xpose.msra.mxu0 0
        %637 = vmatprep.subr.bf16.mxu0 0
        %638 = vmatpush1.bf16.xpose.msra.mxu0 0
        %639 = vmatprep.subr.bf16.mxu0 0
        %640 = vmatpush1.bf16.xpose.msra.mxu0 0
        %641 = vmatprep.subr.bf16.mxu0 0
        %642 = vmatpush1.bf16.xpose.msra.mxu0 0
        %643 = vmatprep.subr.bf16.mxu0 0
        %644 = vmatpush1.bf16.xpose.msra.mxu0 0
        %645 = vmatprep.subr.bf16.mxu0 0
        %646 = vmatpush1.bf16.xpose.msra.mxu0 0
        %647 = vmatprep.subr.bf16.mxu0 0
        %648 = vmatpush1.bf16.xpose.msra.mxu0 0
        %649 = vmatprep.subr.bf16.mxu0 0
        %650 = vmatpush1.bf16.xpose.msra.mxu0 0
        %651 = vmatprep.subr.bf16.mxu0 0
        %652 = vmatpush1.bf16.xpose.msra.mxu0 0
        %653 = vmatprep.subr.bf16.mxu0 0
        %654 = vmatpush1.bf16.xpose.msra.mxu0 0
        %655 = vmatprep.subr.bf16.mxu0 0
        %656 = vmatpush1.bf16.xpose.msra.mxu0 0
        %657 = vmatprep.subr.bf16.mxu0 0
        %658 = vmatpush1.bf16.xpose.msra.mxu0 0
        %659 = vmatprep.subr.bf16.mxu0 0
        %660 = vmatpush1.bf16.xpose.msra.mxu0 0
        %661 = vmatprep.subr.bf16.mxu0 0
        %662 = vmatpush1.bf16.xpose.msra.mxu0 0
        %663 = vmatprep.mubr.bf16.mxu0 0
        %664 = vmatmul.mubr.bf16.gmra.mrb[0].mxu0 %v626
        %v665 = vpop.f32.mrb[0].mxu0
        %v666 = vadd.f32 0.0, %v665
        %v667 = vpop.f32.mrb[0].mxu0
        %v668 = vpop.f32.mrb[0].mxu0
        %v669 = vpop.f32.mrb[0].mxu0
        %670 = vdwg.mxu0
        %v671 = vld [vmem:[#allocation5] sm:$0xff]
        %673 = vset.pattern.permute.xlu0 0
        %674 = vperm.xlu0 %673, %v607
        %v675 = vpop.permute.xlu0 %674
        %v677 = vmul.f32 %v675, %v671
        %v678 = vadd.f32 %v677, %v666
        %679 = vst.msk [vmem:[#allocation5] sm:$0xff] %vm551, %v678
        %680 = vst.msk [vmem:[#allocation3] sm:$0xff] %vm622, %v604
        %v681 = vld [vmem:[#allocation2] sm:$0xf]
        %v683 = vunpack.c.l.b16 %v681
        %v684 = vpack.c.b16 %v683, %v683
        %685 = vrot.lane.b32.xlu0 %v684, 124
        %v686 = vpop.permute.xlu0 %685
        %v688 = vrot.slane %v546, 2
        %v690 = vsel %vm551, %v686, 0
        %v693 = vsel %vm555, %v688, 0
        %695 = vmatprep.subr.bf16.mxu0 0
        %696 = vmatpush1.bf16.msra.mxu0 %v693
        %697 = vmatprep.subr.bf16.mxu0 0
        %698 = vmatpush1.bf16.msra.mxu0 0
        %699 = vmatprep.subr.bf16.mxu0 0
        %700 = vmatpush1.bf16.msra.mxu0 0
        %701 = vmatprep.subr.bf16.mxu0 0
        %702 = vmatpush1.bf16.msra.mxu0 0
        %703 = vmatprep.subr.bf16.mxu0 0
        %704 = vmatpush1.bf16.msra.mxu0 0
        %705 = vmatprep.subr.bf16.mxu0 0
        %706 = vmatpush1.bf16.msra.mxu0 0
        %707 = vmatprep.subr.bf16.mxu0 0
        %708 = vmatpush1.bf16.msra.mxu0 0
        %709 = vmatprep.subr.bf16.mxu0 0
        %710 = vmatpush1.bf16.msra.mxu0 0
        %711 = vmatprep.subr.bf16.mxu0 0
        %712 = vmatpush1.bf16.msra.mxu0 0
        %713 = vmatprep.subr.bf16.mxu0 0
        %714 = vmatpush1.bf16.msra.mxu0 0
        %715 = vmatprep.subr.bf16.mxu0 0
        %716 = vmatpush1.bf16.msra.mxu0 0
        %717 = vmatprep.subr.bf16.mxu0 0
        %718 = vmatpush1.bf16.msra.mxu0 0
        %719 = vmatprep.subr.bf16.mxu0 0
        %720 = vmatpush1.bf16.msra.mxu0 0
        %721 = vmatprep.subr.bf16.mxu0 0
        %722 = vmatpush1.bf16.msra.mxu0 0
        %723 = vmatprep.subr.bf16.mxu0 0
        %724 = vmatpush1.bf16.msra.mxu0 0
        %725 = vmatprep.subr.bf16.mxu0 0
        %726 = vmatpush1.bf16.msra.mxu0 0
        %727 = vmatprep.mubr.bf16.mxu0 0
        %728 = vmatmul.mubr.bf16.gmra.mrb[0].mxu0 %v690
        %v729 = vpop.f32.mrb[0].mxu0
        %v730 = vadd.f32 0.0, %v729
        %v731 = vpop.f32.mrb[0].mxu0
        %v732 = vpop.f32.mrb[0].mxu0
        %v733 = vpop.f32.mrb[0].mxu0
        %734 = vdwg.mxu0
        %v735 = vld [vmem:[#allocation3] sm:$0xff]
        %v736 = vsel %vm600, %v730, -inf
        %737 = vmax.xlane.f32.xlu0 %v736
        %v738 = vpop.xlane.xlu0 %737
        %v739 = vmax.f32 %v735, %v738
        %v740 = vsub.f32 %v735, %v739
        %v741 = vmul.f32 %v740, 1.442695
        %v742 = vpow.pop %v741
        %744 = vset.pattern.permute.xlu0 1
        %745 = vperm.xlu0 %744, %v739
        %v746 = vpop.permute.xlu0 %745
        %v748 = vsub.f32 %v730, %v746
        %v749 = vmul.f32 %v748, 1.442695
        %v750 = vpow.pop %v749
        %v751 = vld [vmem:[#allocation4] sm:$0xff]
        %v752 = vmul.f32 %v742, %v751
        %v753 = vsel %vm600, %v750, 0.0
        %754 = vadd.xlane.f32.xlu0 %v753
        %v755 = vpop.xlane.xlu0 %754
        %v756 = vadd.f32 %v752, %v755
        %vm757 = vcmask 15368
        %758 = vst.msk [vmem:[#allocation4] sm:$0xff] %vm757, %v756
        %v759 = vpack.c.bf16 %v750, %v750
        %v761 = vrot.slane %v548, 2
        %v763 = vsel %vm600, %v759, 0
        %v766 = vsel %vm600, %v761, 0
        %768 = vmatprep.subr.bf16.mxu0 0
        %769 = vmatpush1.bf16.xpose.msra.mxu0 %v766
        %770 = vmatprep.subr.bf16.mxu0 0
        %771 = vmatpush1.bf16.xpose.msra.mxu0 0
        %772 = vmatprep.subr.bf16.mxu0 0
        %773 = vmatpush1.bf16.xpose.msra.mxu0 0
        %774 = vmatprep.subr.bf16.mxu0 0
        %775 = vmatpush1.bf16.xpose.msra.mxu0 0
        %776 = vmatprep.subr.bf16.mxu0 0
        %777 = vmatpush1.bf16.xpose.msra.mxu0 0
        %778 = vmatprep.subr.bf16.mxu0 0
        %779 = vmatpush1.bf16.xpose.msra.mxu0 0
        %780 = vmatprep.subr.bf16.mxu0 0
        %781 = vmatpush1.bf16.xpose.msra.mxu0 0
        %782 = vmatprep.subr.bf16.mxu0 0
        %783 = vmatpush1.bf16.xpose.msra.mxu0 0
        %784 = vmatprep.subr.bf16.mxu0 0
        %785 = vmatpush1.bf16.xpose.msra.mxu0 0
        %786 = vmatprep.subr.bf16.mxu0 0
        %787 = vmatpush1.bf16.xpose.msra.mxu0 0
        %788 = vmatprep.subr.bf16.mxu0 0
        %789 = vmatpush1.bf16.xpose.msra.mxu0 0
        %790 = vmatprep.subr.bf16.mxu0 0
        %791 = vmatpush1.bf16.xpose.msra.mxu0 0
        %792 = vmatprep.subr.bf16.mxu0 0
        %793 = vmatpush1.bf16.xpose.msra.mxu0 0
        %794 = vmatprep.subr.bf16.mxu0 0
        %795 = vmatpush1.bf16.xpose.msra.mxu0 0
        %796 = vmatprep.subr.bf16.mxu0 0
        %797 = vmatpush1.bf16.xpose.msra.mxu0 0
        %798 = vmatprep.subr.bf16.mxu0 0
        %799 = vmatpush1.bf16.xpose.msra.mxu0 0
        %800 = vmatprep.mubr.bf16.mxu0 0
        %801 = vmatmul.mubr.bf16.gmra.mrb[0].mxu0 %v763
        %v802 = vpop.f32.mrb[0].mxu0
        %v803 = vadd.f32 0.0, %v802
        %v804 = vpop.f32.mrb[0].mxu0
        %v805 = vpop.f32.mrb[0].mxu0
        %v806 = vpop.f32.mrb[0].mxu0
        %807 = vdwg.mxu0
        %v808 = vld [vmem:[#allocation5] sm:$0xff]
        %810 = vset.pattern.permute.xlu0 1
        %811 = vperm.xlu0 %810, %v742
        %v812 = vpop.permute.xlu0 %811
        %v814 = vmul.f32 %v812, %v808
        %816 = vrot.lane.b32.xlu0 %v803, 4
        %v817 = vpop.permute.xlu0 %816
        %v819 = vadd.f32 %v814, %v817
        %vm820 = vcmask 64544
        %821 = vst.msk [vmem:[#allocation5] sm:$0xff] %vm820, %v819
        %822 = vst.msk [vmem:[#allocation3] sm:$0xff] %vm757, %v739
        %v823 = vld [vmem:[#allocation2] sm:$0xf]
        %v825 = vunpack.c.l.b16 %v823
        %v826 = vpack.c.b16 %v825, %v825
        %827 = vrot.lane.b32.xlu0 %v826, 120
        %v828 = vpop.permute.xlu0 %827
        %v829 = vrot.slane %v546, 4
        %v831 = vsel %vm551, %v828, 0
        %v834 = vsel %vm555, %v829, 0
        %836 = vmatprep.subr.bf16.mxu0 0
        %837 = vmatpush1.bf16.msra.mxu0 %v834
        %838 = vmatprep.subr.bf16.mxu0 0
        %839 = vmatpush1.bf16.msra.mxu0 0
        %840 = vmatprep.subr.bf16.mxu0 0
        %841 = vmatpush1.bf16.msra.mxu0 0
        %842 = vmatprep.subr.bf16.mxu0 0
        %843 = vmatpush1.bf16.msra.mxu0 0
        %844 = vmatprep.subr.bf16.mxu0 0
        %845 = vmatpush1.bf16.msra.mxu0 0
        %846 = vmatprep.subr.bf16.mxu0 0
        %847 = vmatpush1.bf16.msra.mxu0 0
        %848 = vmatprep.subr.bf16.mxu0 0
        %849 = vmatpush1.bf16.msra.mxu0 0
        %850 = vmatprep.subr.bf16.mxu0 0
        %851 = vmatpush1.bf16.msra.mxu0 0
        %852 = vmatprep.subr.bf16.mxu0 0
        %853 = vmatpush1.bf16.msra.mxu0 0
        %854 = vmatprep.subr.bf16.mxu0 0
        %855 = vmatpush1.bf16.msra.mxu0 0
        %856 = vmatprep.subr.bf16.mxu0 0
        %857 = vmatpush1.bf16.msra.mxu0 0
        %858 = vmatprep.subr.bf16.mxu0 0
        %859 = vmatpush1.bf16.msra.mxu0 0
        %860 = vmatprep.subr.bf16.mxu0 0
        %861 = vmatpush1.bf16.msra.mxu0 0
        %862 = vmatprep.subr.bf16.mxu0 0
        %863 = vmatpush1.bf16.msra.mxu0 0
        %864 = vmatprep.subr.bf16.mxu0 0
        %865 = vmatpush1.bf16.msra.mxu0 0
        %866 = vmatprep.subr.bf16.mxu0 0
        %867 = vmatpush1.bf16.msra.mxu0 0
        %868 = vmatprep.mubr.bf16.mxu0 0
        %869 = vmatmul.mubr.bf16.gmra.mrb[0].mxu0 %v831
        %v870 = vpop.f32.mrb[0].mxu0
        %v871 = vadd.f32 0.0, %v870
        %v872 = vpop.f32.mrb[0].mxu0
        %v873 = vpop.f32.mrb[0].mxu0
        %v874 = vpop.f32.mrb[0].mxu0
        %875 = vdwg.mxu0
        %v876 = vld [vmem:[#allocation3] sm:$0xff]
        %v877 = vsel %vm600, %v871, -inf
        %878 = vmax.xlane.f32.xlu0 %v877
        %v879 = vpop.xlane.xlu0 %878
        %v880 = vmax.f32 %v876, %v879
        %v881 = vsub.f32 %v876, %v880
        %v882 = vmul.f32 %v881, 1.442695
        %v883 = vpow.pop %v882
        %885 = vset.pattern.permute.xlu0 2
        %886 = vperm.xlu0 %885, %v880
        %v887 = vpop.permute.xlu0 %886
        %v889 = vsub.f32 %v871, %v887
        %v890 = vmul.f32 %v889, 1.442695
        %v891 = vpow.pop %v890
        %v892 = vld [vmem:[#allocation4] sm:$0xff]
        %v893 = vmul.f32 %v883, %v892
        %v894 = vsel %vm600, %v891, 0.0
        %895 = vadd.xlane.f32.xlu0 %v894
        %v896 = vpop.xlane.xlu0 %895
        %v897 = vadd.f32 %v893, %v896
        %vm898 = vcmask 23568
        %899 = vst.msk [vmem:[#allocation4] sm:$0xff] %vm898, %v897
        %v900 = vpack.c.bf16 %v891, %v891
        %v901 = vrot.slane %v548, 4
        %v903 = vsel %vm600, %v900, 0
        %v906 = vsel %vm600, %v901, 0
        %908 = vmatprep.subr.bf16.mxu0 0
        %909 = vmatpush1.bf16.xpose.msra.mxu0 %v906
        %910 = vmatprep.subr.bf16.mxu0 0
        %911 = vmatpush1.bf16.xpose.msra.mxu0 0
        %912 = vmatprep.subr.bf16.mxu0 0
        %913 = vmatpush1.bf16.xpose.msra.mxu0 0
        %914 = vmatprep.subr.bf16.mxu0 0
        %915 = vmatpush1.bf16.xpose.msra.mxu0 0
        %916 = vmatprep.subr.bf16.mxu0 0
        %917 = vmatpush1.bf16.xpose.msra.mxu0 0
        %918 = vmatprep.subr.bf16.mxu0 0
        %919 = vmatpush1.bf16.xpose.msra.mxu0 0
        %920 = vmatprep.subr.bf16.mxu0 0
        %921 = vmatpush1.bf16.xpose.msra.mxu0 0
        %922 = vmatprep.subr.bf16.mxu0 0
        %923 = vmatpush1.bf16.xpose.msra.mxu0 0
        %924 = vmatprep.subr.bf16.mxu0 0
        %925 = vmatpush1.bf16.xpose.msra.mxu0 0
        %926 = vmatprep.subr.bf16.mxu0 0
        %927 = vmatpush1.bf16.xpose.msra.mxu0 0
        %928 = vmatprep.subr.bf16.mxu0 0
        %929 = vmatpush1.bf16.xpose.msra.mxu0 0
        %930 = vmatprep.subr.bf16.mxu0 0
        %931 = vmatpush1.bf16.xpose.msra.mxu0 0
        %932 = vmatprep.subr.bf16.mxu0 0
        %933 = vmatpush1.bf16.xpose.msra.mxu0 0
        %934 = vmatprep.subr.bf16.mxu0 0
        %935 = vmatpush1.bf16.xpose.msra.mxu0 0
        %936 = vmatprep.subr.bf16.mxu0 0
        %937 = vmatpush1.bf16.xpose.msra.mxu0 0
        %938 = vmatprep.subr.bf16.mxu0 0
        %939 = vmatpush1.bf16.xpose.msra.mxu0 0
        %940 = vmatprep.mubr.bf16.mxu0 0
        %941 = vmatmul.mubr.bf16.gmra.mrb[0].mxu0 %v903
        %v942 = vpop.f32.mrb[0].mxu0
        %v943 = vadd.f32 0.0, %v942
        %v944 = vpop.f32.mrb[0].mxu0
        %v945 = vpop.f32.mrb[0].mxu0
        %v946 = vpop.f32.mrb[0].mxu0
        %947 = vdwg.mxu0
        %v948 = vld [vmem:[#allocation5] sm:$0xff]
        %950 = vset.pattern.permute.xlu0 2
        %951 = vperm.xlu0 %950, %v883
        %v952 = vpop.permute.xlu0 %951
        %v954 = vmul.f32 %v952, %v948
        %956 = vrot.lane.b32.xlu0 %v943, 8
        %v957 = vpop.permute.xlu0 %956
        %v959 = vadd.f32 %v954, %v957
        %vm960 = vcmask 97344
        %961 = vst.msk [vmem:[#allocation5] sm:$0xff] %vm960, %v959
        %962 = vst.msk [vmem:[#allocation3] sm:$0xff] %vm898, %v880
        %v963 = vld [vmem:[#allocation2] sm:$0xf]
        %v965 = vunpack.c.l.b16 %v963
        %v966 = vpack.c.b16 %v965, %v965
        %967 = vrot.lane.b32.xlu0 %v966, 116
        %v968 = vpop.permute.xlu0 %967
        %v969 = vrot.slane %v546, 6
        %v971 = vsel %vm551, %v968, 0
        %v974 = vsel %vm555, %v969, 0
        %976 = vmatprep.subr.bf16.mxu0 0
        %977 = vmatpush1.bf16.msra.mxu0 %v974
        %978 = vmatprep.subr.bf16.mxu0 0
        %979 = vmatpush1.bf16.msra.mxu0 0
        %980 = vmatprep.subr.bf16.mxu0 0
        %981 = vmatpush1.bf16.msra.mxu0 0
        %982 = vmatprep.subr.bf16.mxu0 0
        %983 = vmatpush1.bf16.msra.mxu0 0
        %984 = vmatprep.subr.bf16.mxu0 0
        %985 = vmatpush1.bf16.msra.mxu0 0
        %986 = vmatprep.subr.bf16.mxu0 0
        %987 = vmatpush1.bf16.msra.mxu0 0
        %988 = vmatprep.subr.bf16.mxu0 0
        %989 = vmatpush1.bf16.msra.mxu0 0
        %990 = vmatprep.subr.bf16.mxu0 0
        %991 = vmatpush1.bf16.msra.mxu0 0
        %992 = vmatprep.subr.bf16.mxu0 0
        %993 = vmatpush1.bf16.msra.mxu0 0
        %994 = vmatprep.subr.bf16.mxu0 0
        %995 = vmatpush1.bf16.msra.mxu0 0
        %996 = vmatprep.subr.bf16.mxu0 0
        %997 = vmatpush1.bf16.msra.mxu0 0
        %998 = vmatprep.subr.bf16.mxu0 0
        %999 = vmatpush1.bf16.msra.mxu0 0
        %1000 = vmatprep.subr.bf16.mxu0 0
        %1001 = vmatpush1.bf16.msra.mxu0 0
        %1002 = vmatprep.subr.bf16.mxu0 0
        %1003 = vmatpush1.bf16.msra.mxu0 0
        %1004 = vmatprep.subr.bf16.mxu0 0
        %1005 = vmatpush1.bf16.msra.mxu0 0
        %1006 = vmatprep.subr.bf16.mxu0 0
        %1007 = vmatpush1.bf16.msra.mxu0 0
        %1008 = vmatprep.mubr.bf16.mxu0 0
        %1009 = vmatmul.mubr.bf16.gmra.mrb[0].mxu0 %v971
        %v1010 = vpop.f32.mrb[0].mxu0
        %v1011 = vadd.f32 0.0, %v1010
        %v1012 = vpop.f32.mrb[0].mxu0
        %v1013 = vpop.f32.mrb[0].mxu0
        %v1014 = vpop.f32.mrb[0].mxu0
        %1015 = vdwg.mxu0
        %v1016 = vld [vmem:[#allocation3] sm:$0xff]
        %v1017 = vsel %vm600, %v1011, -inf
        %1018 = vmax.xlane.f32.xlu0 %v1017
        %v1019 = vpop.xlane.xlu0 %1018
        %v1020 = vmax.f32 %v1016, %v1019
        %v1021 = vsub.f32 %v1016, %v1020
        %v1022 = vmul.f32 %v1021, 1.442695
        %v1023 = vpow.pop %v1022
        %1025 = vset.pattern.permute.xlu0 3
        %1026 = vperm.xlu0 %1025, %v1020
        %v1027 = vpop.permute.xlu0 %1026
        %v1029 = vsub.f32 %v1011, %v1027
        %v1030 = vmul.f32 %v1029, 1.442695
        %v1031 = vpow.pop %v1030
        %v1032 = vld [vmem:[#allocation4] sm:$0xff]
        %v1033 = vmul.f32 %v1023, %v1032
        %v1034 = vsel %vm600, %v1031, 0.0
        %1035 = vadd.xlane.f32.xlu0 %v1034
        %v1036 = vpop.xlane.xlu0 %1035
        %v1037 = vadd.f32 %v1033, %v1036
        %vm1038 = vcmask 31768
        %1039 = vst.msk [vmem:[#allocation4] sm:$0xff] %vm1038, %v1037
        %v1040 = vpack.c.bf16 %v1031, %v1031
        %v1041 = vrot.slane %v548, 6
        %v1043 = vsel %vm600, %v1040, 0
        %v1046 = vsel %vm600, %v1041, 0
        %1048 = vmatprep.subr.bf16.mxu0 0
        %1049 = vmatpush1.bf16.xpose.msra.mxu0 %v1046
        %1050 = vmatprep.subr.bf16.mxu0 0
        %1051 = vmatpush1.bf16.xpose.msra.mxu0 0
        %1052 = vmatprep.subr.bf16.mxu0 0
        %1053 = vmatpush1.bf16.xpose.msra.mxu0 0
        %1054 = vmatprep.subr.bf16.mxu0 0
        %1055 = vmatpush1.bf16.xpose.msra.mxu0 0
        %1056 = vmatprep.subr.bf16.mxu0 0
        %1057 = vmatpush1.bf16.xpose.msra.mxu0 0
        %1058 = vmatprep.subr.bf16.mxu0 0
        %1059 = vmatpush1.bf16.xpose.msra.mxu0 0
        %1060 = vmatprep.subr.bf16.mxu0 0
        %1061 = vmatpush1.bf16.xpose.msra.mxu0 0
        %1062 = vmatprep.subr.bf16.mxu0 0
        %1063 = vmatpush1.bf16.xpose.msra.mxu0 0
        %1064 = vmatprep.subr.bf16.mxu0 0
        %1065 = vmatpush1.bf16.xpose.msra.mxu0 0
        %1066 = vmatprep.subr.bf16.mxu0 0
        %1067 = vmatpush1.bf16.xpose.msra.mxu0 0
        %1068 = vmatprep.subr.bf16.mxu0 0
        %1069 = vmatpush1.bf16.xpose.msra.mxu0 0
        %1070 = vmatprep.subr.bf16.mxu0 0
        %1071 = vmatpush1.bf16.xpose.msra.mxu0 0
        %1072 = vmatprep.subr.bf16.mxu0 0
        %1073 = vmatpush1.bf16.xpose.msra.mxu0 0
        %1074 = vmatprep.subr.bf16.mxu0 0
        %1075 = vmatpush1.bf16.xpose.msra.mxu0 0
        %1076 = vmatprep.subr.bf16.mxu0 0
        %1077 = vmatpush1.bf16.xpose.msra.mxu0 0
        %1078 = vmatprep.subr.bf16.mxu0 0
        %1079 = vmatpush1.bf16.xpose.msra.mxu0 0
        %1080 = vmatprep.mubr.bf16.mxu0 0
        %1081 = vmatmul.mubr.bf16.gmra.mrb[0].mxu0 %v1043
        %v1082 = vpop.f32.mrb[0].mxu0
        %v1083 = vadd.f32 0.0, %v1082
        %v1084 = vpop.f32.mrb[0].mxu0
        %v1085 = vpop.f32.mrb[0].mxu0
        %v1086 = vpop.f32.mrb[0].mxu0
        %1087 = vdwg.mxu0
        %v1088 = vld [vmem:[#allocation5] sm:$0xff]
        %1090 = vset.pattern.permute.xlu0 3
        %1091 = vperm.xlu0 %1090, %v1023
        %v1092 = vpop.permute.xlu0 %1091
        %v1094 = vmul.f32 %v1092, %v1088
        %1096 = vrot.lane.b32.xlu0 %v1083, 12
        %v1097 = vpop.permute.xlu0 %1096
        %v1099 = vadd.f32 %v1094, %v1097
        %vm1100 = vcmask 130144
        %1101 = vst.msk [vmem:[#allocation5] sm:$0xff] %vm1100, %v1099
        %1102 = vst.msk [vmem:[#allocation3] sm:$0xff] %vm1038, %v1020
        %v1103 = vld [vmem:[#allocation2] sm:$0xf]
        %v1105 = vunpack.c.l.b16 %v1103
        %v1106 = vpack.c.b16 %v1105, %v1105
        %1107 = vrot.lane.b32.xlu0 %v1106, 112
        %v1108 = vpop.permute.xlu0 %1107
        %v1110 = vsel %vm551, %v1108, 0
        %v1113 = vsel %vm555, %v547, 0
        %1115 = vmatprep.subr.bf16.mxu0 0
        %1116 = vmatpush1.bf16.msra.mxu0 %v1113
        %1117 = vmatprep.subr.bf16.mxu0 0
        %1118 = vmatpush1.bf16.msra.mxu0 0
        %1119 = vmatprep.subr.bf16.mxu0 0
        %1120 = vmatpush1.bf16.msra.mxu0 0
        %1121 = vmatprep.subr.bf16.mxu0 0
        %1122 = vmatpush1.bf16.msra.mxu0 0
        %1123 = vmatprep.subr.bf16.mxu0 0
        %1124 = vmatpush1.bf16.msra.mxu0 0
        %1125 = vmatprep.subr.bf16.mxu0 0
        %1126 = vmatpush1.bf16.msra.mxu0 0
        %1127 = vmatprep.subr.bf16.mxu0 0
        %1128 = vmatpush1.bf16.msra.mxu0 0
        %1129 = vmatprep.subr.bf16.mxu0 0
        %1130 = vmatpush1.bf16.msra.mxu0 0
        %1131 = vmatprep.subr.bf16.mxu0 0
        %1132 = vmatpush1.bf16.msra.mxu0 0
        %1133 = vmatprep.subr.bf16.mxu0 0
        %1134 = vmatpush1.bf16.msra.mxu0 0
        %1135 = vmatprep.subr.bf16.mxu0 0
        %1136 = vmatpush1.bf16.msra.mxu0 0
        %1137 = vmatprep.subr.bf16.mxu0 0
        %1138 = vmatpush1.bf16.msra.mxu0 0
        %1139 = vmatprep.subr.bf16.mxu0 0
        %1140 = vmatpush1.bf16.msra.mxu0 0
        %1141 = vmatprep.subr.bf16.mxu0 0
        %1142 = vmatpush1.bf16.msra.mxu0 0
        %1143 = vmatprep.subr.bf16.mxu0 0
        %1144 = vmatpush1.bf16.msra.mxu0 0
        %1145 = vmatprep.subr.bf16.mxu0 0
        %1146 = vmatpush1.bf16.msra.mxu0 0
        %1147 = vmatprep.mubr.bf16.mxu0 0
        %1148 = vmatmul.mubr.bf16.gmra.mrb[0].mxu0 %v1110
        %v1149 = vpop.f32.mrb[0].mxu0
        %v1150 = vadd.f32 0.0, %v1149
        %v1151 = vpop.f32.mrb[0].mxu0
        %v1152 = vpop.f32.mrb[0].mxu0
        %v1153 = vpop.f32.mrb[0].mxu0
        %1154 = vdwg.mxu0
        %v1155 = vld [vmem:[#allocation3] sm:$0xff]
        %v1156 = vsel %vm600, %v1150, -inf
        %1157 = vmax.xlane.f32.xlu0 %v1156
        %v1158 = vpop.xlane.xlu0 %1157
        %v1159 = vmax.f32 %v1155, %v1158
        %v1160 = vsub.f32 %v1155, %v1159
        %v1161 = vmul.f32 %v1160, 1.442695
        %v1162 = vpow.pop %v1161
        %1164 = vset.pattern.permute.xlu0 4
        %1165 = vperm.xlu0 %1164, %v1159
        %v1166 = vpop.permute.xlu0 %1165
        %v1168 = vsub.f32 %v1150, %v1166
        %v1169 = vmul.f32 %v1168, 1.442695
        %v1170 = vpow.pop %v1169
        %v1171 = vld [vmem:[#allocation4] sm:$0xff]
        %v1172 = vmul.f32 %v1162, %v1171
        %v1173 = vsel %vm600, %v1170, 0.0
        %1174 = vadd.xlane.f32.xlu0 %v1173
        %v1175 = vpop.xlane.xlu0 %1174
        %v1176 = vadd.f32 %v1172, %v1175
        %vm1177 = vcmask 39968
        %1178 = vst.msk [vmem:[#allocation4] sm:$0xff] %vm1177, %v1176
        %v1179 = vpack.c.bf16 %v1170, %v1170
        %v1181 = vsel %vm600, %v1179, 0
        %v1184 = vsel %vm600, %v549, 0
        %1186 = vmatprep.subr.bf16.mxu0 0
        %1187 = vmatpush1.bf16.xpose.msra.mxu0 %v1184
        %1188 = vmatprep.subr.bf16.mxu0 0
        %1189 = vmatpush1.bf16.xpose.msra.mxu0 0
        %1190 = vmatprep.subr.bf16.mxu0 0
        %1191 = vmatpush1.bf16.xpose.msra.mxu0 0
        %1192 = vmatprep.subr.bf16.mxu0 0
        %1193 = vmatpush1.bf16.xpose.msra.mxu0 0
        %1194 = vmatprep.subr.bf16.mxu0 0
        %1195 = vmatpush1.bf16.xpose.msra.mxu0 0
        %1196 = vmatprep.subr.bf16.mxu0 0
        %1197 = vmatpush1.bf16.xpose.msra.mxu0 0
        %1198 = vmatprep.subr.bf16.mxu0 0
        %1199 = vmatpush1.bf16.xpose.msra.mxu0 0
        %1200 = vmatprep.subr.bf16.mxu0 0
        %1201 = vmatpush1.bf16.xpose.msra.mxu0 0
        %1202 = vmatprep.subr.bf16.mxu0 0
        %1203 = vmatpush1.bf16.xpose.msra.mxu0 0
        %1204 = vmatprep.subr.bf16.mxu0 0
        %1205 = vmatpush1.bf16.xpose.msra.mxu0 0
        %1206 = vmatprep.subr.bf16.mxu0 0
        %1207 = vmatpush1.bf16.xpose.msra.mxu0 0
        %1208 = vmatprep.subr.bf16.mxu0 0
        %1209 = vmatpush1.bf16.xpose.msra.mxu0 0
        %1210 = vmatprep.subr.bf16.mxu0 0
        %1211 = vmatpush1.bf16.xpose.msra.mxu0 0
        %1212 = vmatprep.subr.bf16.mxu0 0
        %1213 = vmatpush1.bf16.xpose.msra.mxu0 0
        %1214 = vmatprep.subr.bf16.mxu0 0
        %1215 = vmatpush1.bf16.xpose.msra.mxu0 0
        %1216 = vmatprep.subr.bf16.mxu0 0
        %1217 = vmatpush1.bf16.xpose.msra.mxu0 0
        %1218 = vmatprep.mubr.bf16.mxu0 0
        %1219 = vmatmul.mubr.bf16.gmra.mrb[0].mxu0 %v1181
        %v1220 = vpop.f32.mrb[0].mxu0
        %v1221 = vadd.f32 0.0, %v1220
        %v1222 = vpop.f32.mrb[0].mxu0
        %v1223 = vpop.f32.mrb[0].mxu0
        %v1224 = vpop.f32.mrb[0].mxu0
        %1225 = vdwg.mxu0
        %v1226 = vld [vmem:[#allocation5] sm:$0xff]
        %1228 = vset.pattern.permute.xlu0 4
        %1229 = vperm.xlu0 %1228, %v1162
        %v1230 = vpop.permute.xlu0 %1229
        %v1232 = vmul.f32 %v1230, %v1226
        %1234 = vrot.lane.b32.xlu0 %v1221, 16
        %v1235 = vpop.permute.xlu0 %1234
        %v1237 = vadd.f32 %v1232, %v1235
        %vm1238 = vcmask 162944
        %1239 = vst.msk [vmem:[#allocation5] sm:$0xff] %vm1238, %v1237
        %1240 = vst.msk [vmem:[#allocation3] sm:$0xff] %vm1177, %v1159
        %v1241 = vld [vmem:[#allocation2] sm:$0xf]
        %v1243 = vunpack.c.l.b16 %v1241
        %v1244 = vpack.c.b16 %v1243, %v1243
        %1245 = vrot.lane.b32.xlu0 %v1244, 108
        %v1246 = vpop.permute.xlu0 %1245
        %v1248 = vrot.slane %v547, 2
        %v1250 = vsel %vm551, %v1246, 0
        %v1253 = vsel %vm555, %v1248, 0
        %1255 = vmatprep.subr.bf16.mxu0 0
        %1256 = vmatpush1.bf16.msra.mxu0 %v1253
        %1257 = vmatprep.subr.bf16.mxu0 0
        %1258 = vmatpush1.bf16.msra.mxu0 0
        %1259 = vmatprep.subr.bf16.mxu0 0
        %1260 = vmatpush1.bf16.msra.mxu0 0
        %1261 = vmatprep.subr.bf16.mxu0 0
        %1262 = vmatpush1.bf16.msra.mxu0 0
        %1263 = vmatprep.subr.bf16.mxu0 0
        %1264 = vmatpush1.bf16.msra.mxu0 0
        %1265 = vmatprep.subr.bf16.mxu0 0
        %1266 = vmatpush1.bf16.msra.mxu0 0
        %1267 = vmatprep.subr.bf16.mxu0 0
        %1268 = vmatpush1.bf16.msra.mxu0 0
        %1269 = vmatprep.subr.bf16.mxu0 0
        %1270 = vmatpush1.bf16.msra.mxu0 0
        %1271 = vmatprep.subr.bf16.mxu0 0
        %1272 = vmatpush1.bf16.msra.mxu0 0
        %1273 = vmatprep.subr.bf16.mxu0 0
        %1274 = vmatpush1.bf16.msra.mxu0 0
        %1275 = vmatprep.subr.bf16.mxu0 0
        %1276 = vmatpush1.bf16.msra.mxu0 0
        %1277 = vmatprep.subr.bf16.mxu0 0
        %1278 = vmatpush1.bf16.msra.mxu0 0
        %1279 = vmatprep.subr.bf16.mxu0 0
        %1280 = vmatpush1.bf16.msra.mxu0 0
        %1281 = vmatprep.subr.bf16.mxu0 0
        %1282 = vmatpush1.bf16.msra.mxu0 0
        %1283 = vmatprep.subr.bf16.mxu0 0
        %1284 = vmatpush1.bf16.msra.mxu0 0
        %1285 = vmatprep.subr.bf16.mxu0 0
        %1286 = vmatpush1.bf16.msra.mxu0 0
        %1287 = vmatprep.mubr.bf16.mxu0 0
        %1288 = vmatmul.mubr.bf16.gmra.mrb[0].mxu0 %v1250
        %v1289 = vpop.f32.mrb[0].mxu0
        %v1290 = vadd.f32 0.0, %v1289
        %v1291 = vpop.f32.mrb[0].mxu0
        %v1292 = vpop.f32.mrb[0].mxu0
        %v1293 = vpop.f32.mrb[0].mxu0
        %1294 = vdwg.mxu0
        %v1295 = vld [vmem:[#allocation3] sm:$0xff]
        %v1296 = vsel %vm600, %v1290, -inf
        %1297 = vmax.xlane.f32.xlu0 %v1296
        %v1298 = vpop.xlane.xlu0 %1297
        %v1299 = vmax.f32 %v1295, %v1298
        %v1300 = vsub.f32 %v1295, %v1299
        %v1301 = vmul.f32 %v1300, 1.442695
        %v1302 = vpow.pop %v1301
        %1304 = vset.pattern.permute.xlu0 5
        %1305 = vperm.xlu0 %1304, %v1299
        %v1306 = vpop.permute.xlu0 %1305
        %v1308 = vsub.f32 %v1290, %v1306
        %v1309 = vmul.f32 %v1308, 1.442695
        %v1310 = vpow.pop %v1309
        %v1311 = vld [vmem:[#allocation4] sm:$0xff]
        %v1312 = vmul.f32 %v1302, %v1311
        %v1313 = vsel %vm600, %v1310, 0.0
        %1314 = vadd.xlane.f32.xlu0 %v1313
        %v1315 = vpop.xlane.xlu0 %1314
        %v1316 = vadd.f32 %v1312, %v1315
        %vm1317 = vcmask 48168
        %1318 = vst.msk [vmem:[#allocation4] sm:$0xff] %vm1317, %v1316
        %v1319 = vpack.c.bf16 %v1310, %v1310
        %v1321 = vrot.slane %v549, 2
        %v1323 = vsel %vm600, %v1319, 0
        %v1326 = vsel %vm600, %v1321, 0
        %1328 = vmatprep.subr.bf16.mxu0 0
        %1329 = vmatpush1.bf16.xpose.msra.mxu0 %v1326
        %1330 = vmatprep.subr.bf16.mxu0 0
        %1331 = vmatpush1.bf16.xpose.msra.mxu0 0
        %1332 = vmatprep.subr.bf16.mxu0 0
        %1333 = vmatpush1.bf16.xpose.msra.mxu0 0
        %1334 = vmatprep.subr.bf16.mxu0 0
        %1335 = vmatpush1.bf16.xpose.msra.mxu0 0
        %1336 = vmatprep.subr.bf16.mxu0 0
        %1337 = vmatpush1.bf16.xpose.msra.mxu0 0
        %1338 = vmatprep.subr.bf16.mxu0 0
        %1339 = vmatpush1.bf16.xpose.msra.mxu0 0
        %1340 = vmatprep.subr.bf16.mxu0 0
        %1341 = vmatpush1.bf16.xpose.msra.mxu0 0
        %1342 = vmatprep.subr.bf16.mxu0 0
        %1343 = vmatpush1.bf16.xpose.msra.mxu0 0
        %1344 = vmatprep.subr.bf16.mxu0 0
        %1345 = vmatpush1.bf16.xpose.msra.mxu0 0
        %1346 = vmatprep.subr.bf16.mxu0 0
        %1347 = vmatpush1.bf16.xpose.msra.mxu0 0
        %1348 = vmatprep.subr.bf16.mxu0 0
        %1349 = vmatpush1.bf16.xpose.msra.mxu0 0
        %1350 = vmatprep.subr.bf16.mxu0 0
        %1351 = vmatpush1.bf16.xpose.msra.mxu0 0
        %1352 = vmatprep.subr.bf16.mxu0 0
        %1353 = vmatpush1.bf16.xpose.msra.mxu0 0
        %1354 = vmatprep.subr.bf16.mxu0 0
        %1355 = vmatpush1.bf16.xpose.msra.mxu0 0
        %1356 = vmatprep.subr.bf16.mxu0 0
        %1357 = vmatpush1.bf16.xpose.msra.mxu0 0
        %1358 = vmatprep.subr.bf16.mxu0 0
        %1359 = vmatpush1.bf16.xpose.msra.mxu0 0
        %1360 = vmatprep.mubr.bf16.mxu0 0
        %1361 = vmatmul.mubr.bf16.gmra.mrb[0].mxu0 %v1323
        %v1362 = vpop.f32.mrb[0].mxu0
        %v1363 = vadd.f32 0.0, %v1362
        %v1364 = vpop.f32.mrb[0].mxu0
        %v1365 = vpop.f32.mrb[0].mxu0
        %v1366 = vpop.f32.mrb[0].mxu0
        %1367 = vdwg.mxu0
        %v1368 = vld [vmem:[#allocation5] sm:$0xff]
        %1370 = vset.pattern.permute.xlu0 5
        %1371 = vperm.xlu0 %1370, %v1302
        %v1372 = vpop.permute.xlu0 %1371
        %v1374 = vmul.f32 %v1372, %v1368
        %1376 = vrot.lane.b32.xlu0 %v1363, 20
        %v1377 = vpop.permute.xlu0 %1376
        %v1379 = vadd.f32 %v1374, %v1377
        %vm1380 = vcmask 195744
        %1381 = vst.msk [vmem:[#allocation5] sm:$0xff] %vm1380, %v1379
        %1382 = vst.msk [vmem:[#allocation3] sm:$0xff] %vm1317, %v1299
        %v1383 = vld [vmem:[#allocation2] sm:$0xf]
        %v1385 = vunpack.c.l.b16 %v1383
        %v1386 = vpack.c.b16 %v1385, %v1385
        %1387 = vrot.lane.b32.xlu0 %v1386, 104
        %v1388 = vpop.permute.xlu0 %1387
        %v1389 = vrot.slane %v547, 4
        %v1391 = vsel %vm551, %v1388, 0
        %v1394 = vsel %vm555, %v1389, 0
        %1396 = vmatprep.subr.bf16.mxu0 0
        %1397 = vmatpush1.bf16.msra.mxu0 %v1394
        %1398 = vmatprep.subr.bf16.mxu0 0
        %1399 = vmatpush1.bf16.msra.mxu0 0
        %1400 = vmatprep.subr.bf16.mxu0 0
        %1401 = vmatpush1.bf16.msra.mxu0 0
        %1402 = vmatprep.subr.bf16.mxu0 0
        %1403 = vmatpush1.bf16.msra.mxu0 0
        %1404 = vmatprep.subr.bf16.mxu0 0
        %1405 = vmatpush1.bf16.msra.mxu0 0
        %1406 = vmatprep.subr.bf16.mxu0 0
        %1407 = vmatpush1.bf16.msra.mxu0 0
        %1408 = vmatprep.subr.bf16.mxu0 0
        %1409 = vmatpush1.bf16.msra.mxu0 0
        %1410 = vmatprep.subr.bf16.mxu0 0
        %1411 = vmatpush1.bf16.msra.mxu0 0
        %1412 = vmatprep.subr.bf16.mxu0 0
        %1413 = vmatpush1.bf16.msra.mxu0 0
        %1414 = vmatprep.subr.bf16.mxu0 0
        %1415 = vmatpush1.bf16.msra.mxu0 0
        %1416 = vmatprep.subr.bf16.mxu0 0
        %1417 = vmatpush1.bf16.msra.mxu0 0
        %1418 = vmatprep.subr.bf16.mxu0 0
        %1419 = vmatpush1.bf16.msra.mxu0 0
        %1420 = vmatprep.subr.bf16.mxu0 0
        %1421 = vmatpush1.bf16.msra.mxu0 0
        %1422 = vmatprep.subr.bf16.mxu0 0
        %1423 = vmatpush1.bf16.msra.mxu0 0
        %1424 = vmatprep.subr.bf16.mxu0 0
        %1425 = vmatpush1.bf16.msra.mxu0 0
        %1426 = vmatprep.subr.bf16.mxu0 0
        %1427 = vmatpush1.bf16.msra.mxu0 0
        %1428 = vmatprep.mubr.bf16.mxu0 0
        %1429 = vmatmul.mubr.bf16.gmra.mrb[0].mxu0 %v1391
        %v1430 = vpop.f32.mrb[0].mxu0
        %v1431 = vadd.f32 0.0, %v1430
        %v1432 = vpop.f32.mrb[0].mxu0
        %v1433 = vpop.f32.mrb[0].mxu0
        %v1434 = vpop.f32.mrb[0].mxu0
        %1435 = vdwg.mxu0
        %v1436 = vld [vmem:[#allocation3] sm:$0xff]
        %v1437 = vsel %vm600, %v1431, -inf
        %1438 = vmax.xlane.f32.xlu0 %v1437
        %v1439 = vpop.xlane.xlu0 %1438
        %v1440 = vmax.f32 %v1436, %v1439
        %v1441 = vsub.f32 %v1436, %v1440
        %v1442 = vmul.f32 %v1441, 1.442695
        %v1443 = vpow.pop %v1442
        %1445 = vset.pattern.permute.xlu0 6
        %1446 = vperm.xlu0 %1445, %v1440
        %v1447 = vpop.permute.xlu0 %1446
        %v1449 = vsub.f32 %v1431, %v1447
        %v1450 = vmul.f32 %v1449, 1.442695
        %v1451 = vpow.pop %v1450
        %v1452 = vld [vmem:[#allocation4] sm:$0xff]
        %v1453 = vmul.f32 %v1443, %v1452
        %v1454 = vsel %vm600, %v1451, 0.0
        %1455 = vadd.xlane.f32.xlu0 %v1454
        %v1456 = vpop.xlane.xlu0 %1455
        %v1457 = vadd.f32 %v1453, %v1456
        %vm1458 = vcmask 56368
        %1459 = vst.msk [vmem:[#allocation4] sm:$0xff] %vm1458, %v1457
        %v1460 = vpack.c.bf16 %v1451, %v1451
        %v1461 = vrot.slane %v549, 4
        %v1463 = vsel %vm600, %v1460, 0
        %v1466 = vsel %vm600, %v1461, 0
        %1468 = vmatprep.subr.bf16.mxu0 0
        %1469 = vmatpush1.bf16.xpose.msra.mxu0 %v1466
        %1470 = vmatprep.subr.bf16.mxu0 0
        %1471 = vmatpush1.bf16.xpose.msra.mxu0 0
        %1472 = vmatprep.subr.bf16.mxu0 0
        %1473 = vmatpush1.bf16.xpose.msra.mxu0 0
        %1474 = vmatprep.subr.bf16.mxu0 0
        %1475 = vmatpush1.bf16.xpose.msra.mxu0 0
        %1476 = vmatprep.subr.bf16.mxu0 0
        %1477 = vmatpush1.bf16.xpose.msra.mxu0 0
        %1478 = vmatprep.subr.bf16.mxu0 0
        %1479 = vmatpush1.bf16.xpose.msra.mxu0 0
        %1480 = vmatprep.subr.bf16.mxu0 0
        %1481 = vmatpush1.bf16.xpose.msra.mxu0 0
        %1482 = vmatprep.subr.bf16.mxu0 0
        %1483 = vmatpush1.bf16.xpose.msra.mxu0 0
        %1484 = vmatprep.subr.bf16.mxu0 0
        %1485 = vmatpush1.bf16.xpose.msra.mxu0 0
        %1486 = vmatprep.subr.bf16.mxu0 0
        %1487 = vmatpush1.bf16.xpose.msra.mxu0 0
        %1488 = vmatprep.subr.bf16.mxu0 0
        %1489 = vmatpush1.bf16.xpose.msra.mxu0 0
        %1490 = vmatprep.subr.bf16.mxu0 0
        %1491 = vmatpush1.bf16.xpose.msra.mxu0 0
        %1492 = vmatprep.subr.bf16.mxu0 0
        %1493 = vmatpush1.bf16.xpose.msra.mxu0 0
        %1494 = vmatprep.subr.bf16.mxu0 0
        %1495 = vmatpush1.bf16.xpose.msra.mxu0 0
        %1496 = vmatprep.subr.bf16.mxu0 0
        %1497 = vmatpush1.bf16.xpose.msra.mxu0 0
        %1498 = vmatprep.subr.bf16.mxu0 0
        %1499 = vmatpush1.bf16.xpose.msra.mxu0 0
        %1500 = vmatprep.mubr.bf16.mxu0 0
        %1501 = vmatmul.mubr.bf16.gmra.mrb[0].mxu0 %v1463
        %v1502 = vpop.f32.mrb[0].mxu0
        %v1503 = vadd.f32 0.0, %v1502
        %v1504 = vpop.f32.mrb[0].mxu0
        %v1505 = vpop.f32.mrb[0].mxu0
        %v1506 = vpop.f32.mrb[0].mxu0
        %1507 = vdwg.mxu0
        %v1508 = vld [vmem:[#allocation5] sm:$0xff]
        %1510 = vset.pattern.permute.xlu0 6
        %1511 = vperm.xlu0 %1510, %v1443
        %v1512 = vpop.permute.xlu0 %1511
        %v1514 = vmul.f32 %v1512, %v1508
        %1516 = vrot.lane.b32.xlu0 %v1503, 24
        %v1517 = vpop.permute.xlu0 %1516
        %v1519 = vadd.f32 %v1514, %v1517
        %vm1520 = vcmask 228544
        %1521 = vst.msk [vmem:[#allocation5] sm:$0xff] %vm1520, %v1519
        %1522 = vst.msk [vmem:[#allocation3] sm:$0xff] %vm1458, %v1440
        %v1523 = vld [vmem:[#allocation2] sm:$0xf]
        %v1525 = vunpack.c.l.b16 %v1523
        %v1526 = vpack.c.b16 %v1525, %v1525
        %1527 = vrot.lane.b32.xlu0 %v1526, 100
        %v1528 = vpop.permute.xlu0 %1527
        %v1529 = vrot.slane %v547, 6
        %v1531 = vsel %vm551, %v1528, 0
        %v1534 = vsel %vm555, %v1529, 0
        %1536 = vmatprep.subr.bf16.mxu0 0
        %1537 = vmatpush1.bf16.msra.mxu0 %v1534
        %1538 = vmatprep.subr.bf16.mxu0 0
        %1539 = vmatpush1.bf16.msra.mxu0 0
        %1540 = vmatprep.subr.bf16.mxu0 0
        %1541 = vmatpush1.bf16.msra.mxu0 0
        %1542 = vmatprep.subr.bf16.mxu0 0
        %1543 = vmatpush1.bf16.msra.mxu0 0
        %1544 = vmatprep.subr.bf16.mxu0 0
        %1545 = vmatpush1.bf16.msra.mxu0 0
        %1546 = vmatprep.subr.bf16.mxu0 0
        %1547 = vmatpush1.bf16.msra.mxu0 0
        %1548 = vmatprep.subr.bf16.mxu0 0
        %1549 = vmatpush1.bf16.msra.mxu0 0
        %1550 = vmatprep.subr.bf16.mxu0 0
        %1551 = vmatpush1.bf16.msra.mxu0 0
        %1552 = vmatprep.subr.bf16.mxu0 0
        %1553 = vmatpush1.bf16.msra.mxu0 0
        %1554 = vmatprep.subr.bf16.mxu0 0
        %1555 = vmatpush1.bf16.msra.mxu0 0
        %1556 = vmatprep.subr.bf16.mxu0 0
        %1557 = vmatpush1.bf16.msra.mxu0 0
        %1558 = vmatprep.subr.bf16.mxu0 0
        %1559 = vmatpush1.bf16.msra.mxu0 0
        %1560 = vmatprep.subr.bf16.mxu0 0
        %1561 = vmatpush1.bf16.msra.mxu0 0
        %1562 = vmatprep.subr.bf16.mxu0 0
        %1563 = vmatpush1.bf16.msra.mxu0 0
        %1564 = vmatprep.subr.bf16.mxu0 0
        %1565 = vmatpush1.bf16.msra.mxu0 0
        %1566 = vmatprep.subr.bf16.mxu0 0
        %1567 = vmatpush1.bf16.msra.mxu0 0
        %1568 = vmatprep.mubr.bf16.mxu0 0
        %1569 = vmatmul.mubr.bf16.gmra.mrb[0].mxu0 %v1531
        %v1570 = vpop.f32.mrb[0].mxu0
        %v1571 = vadd.f32 0.0, %v1570
        %v1572 = vpop.f32.mrb[0].mxu0
        %v1573 = vpop.f32.mrb[0].mxu0
        %v1574 = vpop.f32.mrb[0].mxu0
        %1575 = vdwg.mxu0
        %v1576 = vld [vmem:[#allocation3] sm:$0xff]
        %v1577 = vsel %vm600, %v1571, -inf
        %1578 = vmax.xlane.f32.xlu0 %v1577
        %v1579 = vpop.xlane.xlu0 %1578
        %v1580 = vmax.f32 %v1576, %v1579
        %v1581 = vsub.f32 %v1576, %v1580
        %v1582 = vmul.f32 %v1581, 1.442695
        %v1583 = vpow.pop %v1582
        %1585 = vset.pattern.permute.xlu0 7
        %1586 = vperm.xlu0 %1585, %v1580
        %v1587 = vpop.permute.xlu0 %1586
        %v1589 = vsub.f32 %v1571, %v1587
        %v1590 = vmul.f32 %v1589, 1.442695
        %v1591 = vpow.pop %v1590
        %v1592 = vld [vmem:[#allocation4] sm:$0xff]
        %v1593 = vmul.f32 %v1583, %v1592
        %v1594 = vsel %vm600, %v1591, 0.0
        %1595 = vadd.xlane.f32.xlu0 %v1594
        %v1596 = vpop.xlane.xlu0 %1595
        %v1597 = vadd.f32 %v1593, %v1596
        %vm1598 = vcmask 64568
        %1599 = vst.msk [vmem:[#allocation4] sm:$0xff] %vm1598, %v1597
        %v1600 = vpack.c.bf16 %v1591, %v1591
        %v1601 = vrot.slane %v549, 6
        %v1603 = vsel %vm600, %v1600, 0
        %v1606 = vsel %vm600, %v1601, 0
        %1608 = vmatprep.subr.bf16.mxu0 0
        %1609 = vmatpush1.bf16.xpose.msra.mxu0 %v1606
        %1610 = vmatprep.subr.bf16.mxu0 0
        %1611 = vmatpush1.bf16.xpose.msra.mxu0 0
        %1612 = vmatprep.subr.bf16.mxu0 0
        %1613 = vmatpush1.bf16.xpose.msra.mxu0 0
        %1614 = vmatprep.subr.bf16.mxu0 0
        %1615 = vmatpush1.bf16.xpose.msra.mxu0 0
        %1616 = vmatprep.subr.bf16.mxu0 0
        %1617 = vmatpush1.bf16.xpose.msra.mxu0 0
        %1618 = vmatprep.subr.bf16.mxu0 0
        %1619 = vmatpush1.bf16.xpose.msra.mxu0 0
        %1620 = vmatprep.subr.bf16.mxu0 0
        %1621 = vmatpush1.bf16.xpose.msra.mxu0 0
        %1622 = vmatprep.subr.bf16.mxu0 0
        %1623 = vmatpush1.bf16.xpose.msra.mxu0 0
        %1624 = vmatprep.subr.bf16.mxu0 0
        %1625 = vmatpush1.bf16.xpose.msra.mxu0 0
        %1626 = vmatprep.subr.bf16.mxu0 0
        %1627 = vmatpush1.bf16.xpose.msra.mxu0 0
        %1628 = vmatprep.subr.bf16.mxu0 0
        %1629 = vmatpush1.bf16.xpose.msra.mxu0 0
        %1630 = vmatprep.subr.bf16.mxu0 0
        %1631 = vmatpush1.bf16.xpose.msra.mxu0 0
        %1632 = vmatprep.subr.bf16.mxu0 0
        %1633 = vmatpush1.bf16.xpose.msra.mxu0 0
        %1634 = vmatprep.subr.bf16.mxu0 0
        %1635 = vmatpush1.bf16.xpose.msra.mxu0 0
        %1636 = vmatprep.subr.bf16.mxu0 0
        %1637 = vmatpush1.bf16.xpose.msra.mxu0 0
        %1638 = vmatprep.subr.bf16.mxu0 0
        %1639 = vmatpush1.bf16.xpose.msra.mxu0 0
        %1640 = vmatprep.mubr.bf16.mxu0 0
        %1641 = vmatmul.mubr.bf16.gmra.mrb[0].mxu0 %v1603
        %v1642 = vpop.f32.mrb[0].mxu0
        %v1643 = vadd.f32 0.0, %v1642
        %v1644 = vpop.f32.mrb[0].mxu0
        %v1645 = vpop.f32.mrb[0].mxu0
        %v1646 = vpop.f32.mrb[0].mxu0
        %1647 = vdwg.mxu0
        %v1648 = vld [vmem:[#allocation5] sm:$0xff]
        %1650 = vset.pattern.permute.xlu0 7
        %1651 = vperm.xlu0 %1650, %v1583
        %v1652 = vpop.permute.xlu0 %1651
        %v1654 = vmul.f32 %v1652, %v1648
        %1656 = vrot.lane.b32.xlu0 %v1643, 28
        %v1657 = vpop.permute.xlu0 %1656
        %v1659 = vadd.f32 %v1654, %v1657
        %vm1660 = vcmask 261344
        %1661 = vst.msk [vmem:[#allocation5] sm:$0xff] %vm1660, %v1659
        %1662 = vst.msk [vmem:[#allocation3] sm:$0xff] %vm1598, %v1580
        %p1663 = scmp.eq.s32.totalorder %s28, 1
        // Predicated region
        $region61: #{tpu_custom_call.1} parent=47 // pred_check
          %p1664 = pneg %p1663
        $region62: #{tpu_custom_call.1} parent=47 // pred_check_branch
          %1666 = sbr.rel (%p1664) target = $region64
        $region63: #{tpu_custom_call.1} parent=47 // pred_region
          %v1667 = vld [vmem:[%s341] sm:$0xff]
          %v1668 = vld [vmem:[#allocation5] sm:$0xff]
          %v1669 = vld [vmem:[#allocation4] sm:$0xff]
          %1671 = vset.pattern.permute.xlu0 0
          %1672 = vperm.xlu0 %1671, %v1669
          %v1673 = vpop.permute.xlu0 %1672
          %v1675 = vrcp.pop %v1673
          %v1676 = vmul.f32 %v1668, %v1675
          %1677 = vst.msk [vmem:[#allocation5] sm:$0xff] %vm551, %v1676
          %v1678 = vld [vmem:[#allocation5] sm:$0xff]
          %v1679 = vld [vmem:[#allocation4] sm:$0xff]
          %1681 = vset.pattern.permute.xlu0 1
          %1682 = vperm.xlu0 %1681, %v1679
          %v1683 = vpop.permute.xlu0 %1682
          %v1685 = vrcp.pop %v1683
          %v1686 = vmul.f32 %v1678, %v1685
          %1687 = vst.msk [vmem:[#allocation5] sm:$0xff] %vm820, %v1686
          %v1688 = vld [vmem:[#allocation5] sm:$0xff]
          %v1689 = vld [vmem:[#allocation4] sm:$0xff]
          %1691 = vset.pattern.permute.xlu0 2
          %1692 = vperm.xlu0 %1691, %v1689
          %v1693 = vpop.permute.xlu0 %1692
          %v1695 = vrcp.pop %v1693
          %v1696 = vmul.f32 %v1688, %v1695
          %1697 = vst.msk [vmem:[#allocation5] sm:$0xff] %vm960, %v1696
          %v1698 = vld [vmem:[#allocation5] sm:$0xff]
          %v1699 = vld [vmem:[#allocation4] sm:$0xff]
          %1701 = vset.pattern.permute.xlu0 3
          %1702 = vperm.xlu0 %1701, %v1699
          %v1703 = vpop.permute.xlu0 %1702
          %v1705 = vrcp.pop %v1703
          %v1706 = vmul.f32 %v1698, %v1705
          %1707 = vst.msk [vmem:[#allocation5] sm:$0xff] %vm1100, %v1706
          %v1708 = vld [vmem:[#allocation5] sm:$0xff]
          %v1709 = vld [vmem:[#allocation4] sm:$0xff]
          %1711 = vset.pattern.permute.xlu0 4
          %1712 = vperm.xlu0 %1711, %v1709
          %v1713 = vpop.permute.xlu0 %1712
          %v1715 = vrcp.pop %v1713
          %v1716 = vmul.f32 %v1708, %v1715
          %1717 = vst.msk [vmem:[#allocation5] sm:$0xff] %vm1238, %v1716
          %v1718 = vld [vmem:[#allocation5] sm:$0xff]
          %v1719 = vld [vmem:[#allocation4] sm:$0xff]
          %1721 = vset.pattern.permute.xlu0 5
          %1722 = vperm.xlu0 %1721, %v1719
          %v1723 = vpop.permute.xlu0 %1722
          %v1725 = vrcp.pop %v1723
          %v1726 = vmul.f32 %v1718, %v1725
          %1727 = vst.msk [vmem:[#allocation5] sm:$0xff] %vm1380, %v1726
          %v1728 = vld [vmem:[#allocation5] sm:$0xff]
          %v1729 = vld [vmem:[#allocation4] sm:$0xff]
          %1731 = vset.pattern.permute.xlu0 6
          %1732 = vperm.xlu0 %1731, %v1729
          %v1733 = vpop.permute.xlu0 %1732
          %v1735 = vrcp.pop %v1733
          %v1736 = vmul.f32 %v1728, %v1735
          %1737 = vst.msk [vmem:[#allocation5] sm:$0xff] %vm1520, %v1736
          %v1738 = vld [vmem:[#allocation5] sm:$0xff]
          %v1739 = vld [vmem:[#allocation4] sm:$0xff]
          %1741 = vset.pattern.permute.xlu0 7
          %1742 = vperm.xlu0 %1741, %v1739
          %v1743 = vpop.permute.xlu0 %1742
          %v1745 = vrcp.pop %v1743
          %v1746 = vmul.f32 %v1738, %v1745
          %1747 = vst.msk [vmem:[#allocation5] sm:$0xff] %vm1660, %v1746
          %v1748 = vld [vmem:[#allocation5] sm:$0xff]
          %v1749 = vpack.c.bf16 %v1748, %v1748
          %v1750 = vld [vmem:[#allocation9] sm:$0xf]
          %v1751 = vld [vmem:[#allocation9 + $0x4] sm:$0xf]
          %v1752 = vld [vmem:[#allocation9 + $0x8] sm:$0xf]
          %v1753 = vld [vmem:[#allocation9 + $0xc] sm:$0xf]
          %v1758 = vunpack.c.l.b16 %v1750
          %v1759 = vunpack.c.l.b16 %v1751
          %v1760 = vunpack.c.l.b16 %v1752
          %v1761 = vunpack.c.l.b16 %v1753
          %v1762 = vpack.c.b16 %v1759, %v1758
          %v1763 = vpack.c.b16 %v1761, %v1760
          %v1765 = vsel %vm465, %v1749, 0
          %v1768 = vsel %vm465, %v1762, 0
          %v1771 = vsel %vm465, %v1763, 0
          %1773 = vmatprep.subr.bf16.mxu0 0
          %1774 = vmatpush1.bf16.xpose.msra.mxu0 %v1768
          %1775 = vmatprep.subr.bf16.mxu0 0
          %1776 = vmatpush1.bf16.xpose.msra.mxu0 %v1771
          %1777 = vmatprep.subr.bf16.mxu0 0
          %1778 = vmatpush1.bf16.xpose.msra.mxu0 0
          %1779 = vmatprep.subr.bf16.mxu0 0
          %1780 = vmatpush1.bf16.xpose.msra.mxu0 0
          %1781 = vmatprep.subr.bf16.mxu0 0
          %1782 = vmatpush1.bf16.xpose.msra.mxu0 0
          %1783 = vmatprep.subr.bf16.mxu0 0
          %1784 = vmatpush1.bf16.xpose.msra.mxu0 0
          %1785 = vmatprep.subr.bf16.mxu0 0
          %1786 = vmatpush1.bf16.xpose.msra.mxu0 0
          %1787 = vmatprep.subr.bf16.mxu0 0
          %1788 = vmatpush1.bf16.xpose.msra.mxu0 0
          %1789 = vmatprep.subr.bf16.mxu0 0
          %1790 = vmatpush1.bf16.xpose.msra.mxu0 0
          %1791 = vmatprep.subr.bf16.mxu0 0
          %1792 = vmatpush1.bf16.xpose.msra.mxu0 0
          %1793 = vmatprep.subr.bf16.mxu0 0
          %1794 = vmatpush1.bf16.xpose.msra.mxu0 0
          %1795 = vmatprep.subr.bf16.mxu0 0
          %1796 = vmatpush1.bf16.xpose.msra.mxu0 0
          %1797 = vmatprep.subr.bf16.mxu0 0
          %1798 = vmatpush1.bf16.xpose.msra.mxu0 0
          %1799 = vmatprep.subr.bf16.mxu0 0
          %1800 = vmatpush1.bf16.xpose.msra.mxu0 0
          %1801 = vmatprep.subr.bf16.mxu0 0
          %1802 = vmatpush1.bf16.xpose.msra.mxu0 0
          %1803 = vmatprep.subr.bf16.mxu0 0
          %1804 = vmatpush1.bf16.xpose.msra.mxu0 0
          %1805 = vmatprep.mubr.bf16.mxu0 0
          %1806 = vmatmul.mubr.bf16.gmra.mrb[0].mxu0 %v1765
          %v1807 = vpop.f32.mrb[0].mxu0
          %v1808 = vadd.f32 0.0, %v1807
          %v1809 = vpop.f32.mrb[0].mxu0
          %v1810 = vpop.f32.mrb[0].mxu0
          %v1811 = vpop.f32.mrb[0].mxu0
          %1812 = vdwg.mxu0
          %v1813 = vld [vmem:[%s5] sm:$0x1]
          %v1814 = vlaneseq
          %v1815 = vshrl.u32 %v1814, 7
          %v1816 = vsub.s32 0, %v1815
          %v1817 = vrot.slane %v1813, %v1816
          %v1818 = vmul.f32 %v1808, %v1817
          %v1819 = vsel %vm465, %v1818, 0.0
          %1820 = vadd.xlane.f32.xlu0 %v1819
          %v1821 = vpop.xlane.xlu0 %1820
          %v1822 = vld [vmem:[%s5 + $0x1] sm:$0x1]
          %v1824 = vsel %vm465, %v1822, 0
          %v1827 = vsel %vm465, %v1808, 0
          %1829 = vmatprep.subr.mxu0 0.0
          %1830 = vmatpush1.xpose.msra.mxu0 %v1827
          %1831 = vmatprep.subr.mxu0 0.0
          %1832 = vmatpush1.xpose.msra.mxu0 0.0
          %1833 = vmatprep.subr.mxu0 0.0
          %1834 = vmatpush1.xpose.msra.mxu0 0.0
          %1835 = vmatprep.subr.mxu0 0.0
          %1836 = vmatpush1.xpose.msra.mxu0 0.0
          %1837 = vmatprep.subr.mxu0 0.0
          %1838 = vmatpush1.xpose.msra.mxu0 0.0
          %1839 = vmatprep.subr.mxu0 0.0
          %1840 = vmatpush1.xpose.msra.mxu0 0.0
          %1841 = vmatprep.subr.mxu0 0.0
          %1842 = vmatpush1.xpose.msra.mxu0 0.0
          %1843 = vmatprep.subr.mxu0 0.0
          %1844 = vmatpush1.xpose.msra.mxu0 0.0
          %1845 = vmatprep.subr.mxu0 0.0
          %1846 = vmatpush1.xpose.msra.mxu0 0.0
          %1847 = vmatprep.subr.mxu0 0.0
          %1848 = vmatpush1.xpose.msra.mxu0 0.0
          %1849 = vmatprep.subr.mxu0 0.0
          %1850 = vmatpush1.xpose.msra.mxu0 0.0
          %1851 = vmatprep.subr.mxu0 0.0
          %1852 = vmatpush1.xpose.msra.mxu0 0.0
          %1853 = vmatprep.subr.mxu0 0.0
          %1854 = vmatpush1.xpose.msra.mxu0 0.0
          %1855 = vmatprep.subr.mxu0 0.0
          %1856 = vmatpush1.xpose.msra.mxu0 0.0
          %1857 = vmatprep.subr.mxu0 0.0
          %1858 = vmatpush1.xpose.msra.mxu0 0.0
          %1859 = vmatprep.subr.mxu0 0.0
          %1860 = vmatpush1.xpose.msra.mxu0 0.0
          %1861 = vmatprep.subr.mxu0 0.0
          %1862 = vmatpush1.xpose.msra.mxu0 0.0
          %1863 = vmatprep.subr.mxu0 0.0
          %1864 = vmatpush1.xpose.msra.mxu0 0.0
          %1865 = vmatprep.subr.mxu0 0.0
          %1866 = vmatpush1.xpose.msra.mxu0 0.0
          %1867 = vmatprep.subr.mxu0 0.0
          %1868 = vmatpush1.xpose.msra.mxu0 0.0
          %1869 = vmatprep.subr.mxu0 0.0
          %1870 = vmatpush1.xpose.msra.mxu0 0.0
          %1871 = vmatprep.subr.mxu0 0.0
          %1872 = vmatpush1.xpose.msra.mxu0 0.0
          %1873 = vmatprep.subr.mxu0 0.0
          %1874 = vmatpush1.xpose.msra.mxu0 0.0
          %1875 = vmatprep.subr.mxu0 0.0
          %1876 = vmatpush1.xpose.msra.mxu0 0.0
          %1877 = vmatprep.subr.mxu0 0.0
          %1878 = vmatpush1.xpose.msra.mxu0 0.0
          %1879 = vmatprep.subr.mxu0 0.0
          %1880 = vmatpush1.xpose.msra.mxu0 0.0
          %1881 = vmatprep.subr.mxu0 0.0
          %1882 = vmatpush1.xpose.msra.mxu0 0.0
          %1883 = vmatprep.subr.mxu0 0.0
          %1884 = vmatpush1.xpose.msra.mxu0 0.0
          %1885 = vmatprep.subr.mxu0 0.0
          %1886 = vmatpush1.xpose.msra.mxu0 0.0
          %1887 = vmatprep.subr.mxu0 0.0
          %1888 = vmatpush1.xpose.msra.mxu0 0.0
          %1889 = vmatprep.subr.mxu0 0.0
          %1890 = vmatpush1.xpose.msra.mxu0 0.0
          %1891 = vmatprep.subr.mxu0 0.0
          %1892 = vmatpush1.xpose.msra.mxu0 0.0
          %1893 = vmatprep.mubr.f32.mxu0 0.0
          %1894 = vmatmul.mubr.f32.gmra.mrb[0].mxu0 %v1824
          %v1895 = vpop.f32.mrb[0].mxu0
          %v1896 = vadd.f32 0.0, %v1895
          %v1897 = vpop.f32.mrb[0].mxu0
          %1898 = vdwg.mxu0
          %v1899 = vlaneseq
          %v1900 = vshrl.u32 %v1899, 7
          %v1901 = vsub.s32 0, %v1900
          %v1902 = vrot.slane %v1896, %v1901
          %v1903 = vadd.f32 %v1821, %v1902
          %1904 = vmatprep.subr.mxu0 0.0
          %1905 = vmatpush1.xpose.msra.mxu0 %v1827
          %1906 = vmatprep.subr.mxu0 0.0
          %1907 = vmatpush1.xpose.msra.mxu0 0.0
          %1908 = vmatprep.subr.mxu0 0.0
          %1909 = vmatpush1.xpose.msra.mxu0 0.0
          %1910 = vmatprep.subr.mxu0 0.0
          %1911 = vmatpush1.xpose.msra.mxu0 0.0
          %1912 = vmatprep.subr.mxu0 0.0
          %1913 = vmatpush1.xpose.msra.mxu0 0.0
          %1914 = vmatprep.subr.mxu0 0.0
          %1915 = vmatpush1.xpose.msra.mxu0 0.0
          %1916 = vmatprep.subr.mxu0 0.0
          %1917 = vmatpush1.xpose.msra.mxu0 0.0
          %1918 = vmatprep.subr.mxu0 0.0
          %1919 = vmatpush1.xpose.msra.mxu0 0.0
          %1920 = vmatprep.subr.mxu0 0.0
          %1921 = vmatpush1.xpose.msra.mxu0 0.0
          %1922 = vmatprep.subr.mxu0 0.0
          %1923 = vmatpush1.xpose.msra.mxu0 0.0
          %1924 = vmatprep.subr.mxu0 0.0
          %1925 = vmatpush1.xpose.msra.mxu0 0.0
          %1926 = vmatprep.subr.mxu0 0.0
          %1927 = vmatpush1.xpose.msra.mxu0 0.0
          %1928 = vmatprep.subr.mxu0 0.0
          %1929 = vmatpush1.xpose.msra.mxu0 0.0
          %1930 = vmatprep.subr.mxu0 0.0
          %1931 = vmatpush1.xpose.msra.mxu0 0.0
          %1932 = vmatprep.subr.mxu0 0.0
          %1933 = vmatpush1.xpose.msra.mxu0 0.0
          %1934 = vmatprep.subr.mxu0 0.0
          %1935 = vmatpush1.xpose.msra.mxu0 0.0
          %1936 = vmatprep.subr.mxu0 0.0
          %1937 = vmatpush1.xpose.msra.mxu0 0.0
          %1938 = vmatprep.subr.mxu0 0.0
          %1939 = vmatpush1.xpose.msra.mxu0 0.0
          %1940 = vmatprep.subr.mxu0 0.0
          %1941 = vmatpush1.xpose.msra.mxu0 0.0
          %1942 = vmatprep.subr.mxu0 0.0
          %1943 = vmatpush1.xpose.msra.mxu0 0.0
          %1944 = vmatprep.subr.mxu0 0.0
          %1945 = vmatpush1.xpose.msra.mxu0 0.0
          %1946 = vmatprep.subr.mxu0 0.0
          %1947 = vmatpush1.xpose.msra.mxu0 0.0
          %1948 = vmatprep.subr.mxu0 0.0
          %1949 = vmatpush1.xpose.msra.mxu0 0.0
          %1950 = vmatprep.subr.mxu0 0.0
          %1951 = vmatpush1.xpose.msra.mxu0 0.0
          %1952 = vmatprep.subr.mxu0 0.0
          %1953 = vmatpush1.xpose.msra.mxu0 0.0
          %1954 = vmatprep.subr.mxu0 0.0
          %1955 = vmatpush1.xpose.msra.mxu0 0.0
          %1956 = vmatprep.subr.mxu0 0.0
          %1957 = vmatpush1.xpose.msra.mxu0 0.0
          %1958 = vmatprep.subr.mxu0 0.0
          %1959 = vmatpush1.xpose.msra.mxu0 0.0
          %1960 = vmatprep.subr.mxu0 0.0
          %1961 = vmatpush1.xpose.msra.mxu0 0.0
          %1962 = vmatprep.subr.mxu0 0.0
          %1963 = vmatpush1.xpose.msra.mxu0 0.0
          %1964 = vmatprep.subr.mxu0 0.0
          %1965 = vmatpush1.xpose.msra.mxu0 0.0
          %1966 = vmatprep.subr.mxu0 0.0
          %1967 = vmatpush1.xpose.msra.mxu0 0.0
          %1968 = vmatprep.mubr.f32.mxu0 0.0
          %1969 = vmatmul.mubr.f32.gmra.mrb[0].mxu0 %v1827
          %v1970 = vpop.f32.mrb[0].mxu0
          %v1971 = vadd.f32 0.0, %v1970
          %v1972 = vpop.f32.mrb[0].mxu0
          %1973 = vdwg.mxu0
          %vm1974 = vcmask 64512
          %v1975 = vsel %vm1974, %v1971, -inf
          %1976 = vmax.xlane.f32.xlu0 %v1975
          %v1977 = vpop.xlane.xlu0 %1976
          %v1978 = vsub.f32 %v1971, %v1977
          %v1979 = vmul.f32 %v1978, 1.442695
          %v1980 = vpow.pop %v1979
          %v1981 = vsel %vm1974, %v1980, 0.0
          %1982 = vadd.xlane.f32.xlu0 %v1981
          %v1983 = vpop.xlane.xlu0 %1982
          %v1984 = vrcp.pop %v1983
          %v1985 = vmul.f32 %v1980, %v1984
          %v1986 = vadd.f32 %v1903, %v1985
          %v1987 = vsel %vm1974, %v1986, -inf
          %1988 = vmax.xlane.f32.xlu0 %v1987
          %v1989 = vpop.xlane.xlu0 %1988
          %v1990 = vsub.f32 %v1986, %v1989
          %v1991 = vmul.f32 %v1990, 1.442695
          %v1992 = vpow.pop %v1991
          %v1993 = vsel %vm1974, %v1992, 0.0
          %1994 = vadd.xlane.f32.xlu0 %v1993
          %v1995 = vpop.xlane.xlu0 %1994
          %v1996 = vrcp.pop %v1995
          %v1997 = vmul.f32 %v1992, %v1996
          %v1999 = vsel %vm1974, %v1997, 0
          %2001 = vmatprep.subr.mxu0 0.0
          %2002 = vmatpush1.msra.mxu0 %v1808
          %2003 = vmatprep.subr.mxu0 0.0
          %2004 = vmatpush1.msra.mxu0 0.0
          %2005 = vmatprep.subr.mxu0 0.0
          %2006 = vmatpush1.msra.mxu0 0.0
          %2007 = vmatprep.subr.mxu0 0.0
          %2008 = vmatpush1.msra.mxu0 0.0
          %2009 = vmatprep.subr.mxu0 0.0
          %2010 = vmatpush1.msra.mxu0 0.0
          %2011 = vmatprep.subr.mxu0 0.0
          %2012 = vmatpush1.msra.mxu0 0.0
          %2013 = vmatprep.subr.mxu0 0.0
          %2014 = vmatpush1.msra.mxu0 0.0
          %2015 = vmatprep.subr.mxu0 0.0
          %2016 = vmatpush1.msra.mxu0 0.0
          %2017 = vmatprep.subr.mxu0 0.0
          %2018 = vmatpush1.msra.mxu0 0.0
          %2019 = vmatprep.subr.mxu0 0.0
          %2020 = vmatpush1.msra.mxu0 0.0
          %2021 = vmatprep.subr.mxu0 0.0
          %2022 = vmatpush1.msra.mxu0 0.0
          %2023 = vmatprep.subr.mxu0 0.0
          %2024 = vmatpush1.msra.mxu0 0.0
          %2025 = vmatprep.subr.mxu0 0.0
          %2026 = vmatpush1.msra.mxu0 0.0
          %2027 = vmatprep.subr.mxu0 0.0
          %2028 = vmatpush1.msra.mxu0 0.0
          %2029 = vmatprep.subr.mxu0 0.0
          %2030 = vmatpush1.msra.mxu0 0.0
          %2031 = vmatprep.subr.mxu0 0.0
          %2032 = vmatpush1.msra.mxu0 0.0
          %2033 = vmatprep.subr.mxu0 0.0
          %2034 = vmatpush1.msra.mxu0 0.0
          %2035 = vmatprep.subr.mxu0 0.0
          %2036 = vmatpush1.msra.mxu0 0.0
          %2037 = vmatprep.subr.mxu0 0.0
          %2038 = vmatpush1.msra.mxu0 0.0
          %2039 = vmatprep.subr.mxu0 0.0
          %2040 = vmatpush1.msra.mxu0 0.0
          %2041 = vmatprep.subr.mxu0 0.0
          %2042 = vmatpush1.msra.mxu0 0.0
          %2043 = vmatprep.subr.mxu0 0.0
          %2044 = vmatpush1.msra.mxu0 0.0
          %2045 = vmatprep.subr.mxu0 0.0
          %2046 = vmatpush1.msra.mxu0 0.0
          %2047 = vmatprep.subr.mxu0 0.0
          %2048 = vmatpush1.msra.mxu0 0.0
          %2049 = vmatprep.subr.mxu0 0.0
          %2050 = vmatpush1.msra.mxu0 0.0
          %2051 = vmatprep.subr.mxu0 0.0
          %2052 = vmatpush1.msra.mxu0 0.0
          %2053 = vmatprep.subr.mxu0 0.0
          %2054 = vmatpush1.msra.mxu0 0.0
          %2055 = vmatprep.subr.mxu0 0.0
          %2056 = vmatpush1.msra.mxu0 0.0
          %2057 = vmatprep.subr.mxu0 0.0
          %2058 = vmatpush1.msra.mxu0 0.0
          %2059 = vmatprep.subr.mxu0 0.0
          %2060 = vmatpush1.msra.mxu0 0.0
          %2061 = vmatprep.subr.mxu0 0.0
          %2062 = vmatpush1.msra.mxu0 0.0
          %2063 = vmatprep.subr.mxu0 0.0
          %2064 = vmatpush1.msra.mxu0 0.0
          %2065 = vmatprep.mubr.f32.mxu0 0.0
          %2066 = vmatmul.mubr.f32.gmra.mrb[0].mxu0 %v1999
          %v2067 = vpop.f32.mrb[0].mxu0
          %v2068 = vadd.f32 %v1808, %v2067
          %v2069 = vpop.f32.mrb[0].mxu0
          %2070 = vdwg.mxu0
          %v2071 = vld [vmem:[%s6] sm:$0x1]
          %v2072 = vld [vmem:[%s6 + $0x1] sm:$0x1]
          %v2073 = vsel %vm465, %v2068, 0.0
          %2074 = vadd.xlane.f32.xlu0 %v2073
          %v2075 = vpop.xlane.xlu0 %2074
          %v2076 = vrcp.pop 32.0
          %v2077 = vmul.f32 %v2075, %v2076
          %v2078 = vsub.f32 %v2068, %v2077
          %v2079 = vmul.f32 %v2078, %v2078
          %v2080 = vsel %vm465, %v2079, 0.0
          %2081 = vadd.xlane.f32.xlu0 %v2080
          %v2082 = vpop.xlane.xlu0 %2081
          %v2083 = vmul.f32 %v2082, %v2076
          %v2084 = vadd.f32 %v2083, 1e-06
          %v2085 = vrsqrt.pop %v2084
          %v2086 = vmul.f32 %v2078, %v2085
          %v2087 = vlaneseq
          %v2088 = vshrl.u32 %v2087, 7
          %v2089 = vsub.s32 0, %v2088
          %v2090 = vrot.slane %v2071, %v2089
          %v2091 = vmul.f32 %v2086, %v2090
          %v2092 = vlaneseq
          %v2093 = vshrl.u32 %v2092, 7
          %v2094 = vsub.s32 0, %v2093
          %v2095 = vrot.slane %v2072, %v2094
          %v2096 = vadd.f32 %v2091, %v2095
          %v2097 = vadd.f32 %v2096, %v1667
          %v2098 = vld [vmem:[%s6 + $0x2] sm:$0x1]
          %v2099 = vld [vmem:[%s6 + $0x3] sm:$0x1]
          %v2100 = vsel %vm465, %v2097, 0.0
          %2101 = vadd.xlane.f32.xlu0 %v2100
          %v2102 = vpop.xlane.xlu0 %2101
          %v2103 = vmul.f32 %v2102, %v2076
          %v2104 = vsub.f32 %v2097, %v2103
          %v2105 = vmul.f32 %v2104, %v2104
          %v2106 = vsel %vm465, %v2105, 0.0
          %2107 = vadd.xlane.f32.xlu0 %v2106
          %v2108 = vpop.xlane.xlu0 %2107
          %v2109 = vmul.f32 %v2108, %v2076
          %v2110 = vadd.f32 %v2109, 1e-06
          %v2111 = vrsqrt.pop %v2110
          %v2112 = vmul.f32 %v2104, %v2111
          %v2113 = vlaneseq
          %v2114 = vshrl.u32 %v2113, 7
          %v2115 = vsub.s32 0, %v2114
          %v2116 = vrot.slane %v2098, %v2115
          %v2117 = vmul.f32 %v2112, %v2116
          %v2118 = vlaneseq
          %v2119 = vshrl.u32 %v2118, 7
          %v2120 = vsub.s32 0, %v2119
          %v2121 = vrot.slane %v2099, %v2120
          %v2122 = vadd.f32 %v2117, %v2121
          %2123 = vst.msk [vmem:[%s337] sm:$0xff] %vm465, %v2122
        $region64: #{tpu_custom_call.1} parent=47 // pred_fallthru
          _
        %s2124 = sand.u32 %s202, 1
        %s2125 = scalar_lea.sflag [#allocation8], %s2124
        %s2126 = sand.u32 %s202, 1
        %s2127 = smul.addr %s2126, 8
        %s2128 = scalar_lea.vmem [#allocation11], %s2127
        // Predicated region
        $region65: #{tpu_custom_call.1} parent=47 // pred_check
          %p2129 = pneg %p212
        $region66: #{tpu_custom_call.1} parent=47 // pred_check_branch
          %2131 = sbr.rel (%p2129) target = $region68
        $region67: #{tpu_custom_call.1} parent=47 // pred_region
          %s2133 = ssub.s32 128, 128
          %2134 = vsyncadd %s2125, %s2133
          %s2135 = smul.addr %s27, 128
          %s2136 = scalar_lea.hbm %s7, %s2135
          %s2138 = sshll.u32 %s2128, 4
          %s2139 = int_to_ptr.vmem [resolvable:$true] %s2138
          %2141 = dma.vmem_to_hbm [thread:$0]  %s2139, 128, %s2136, %s2125
        $region68: #{tpu_custom_call.1} parent=47 // pred_fallthru
          _
      $region48: #{tpu_custom_call.1} parent=5 // pred_fallthru
        _
      %p2142 = scmp.le.s32.totalorder 2, %s18
      // Predicated region
      $region69: #{tpu_custom_call.1} parent=5 // pred_check
        %p2143 = pneg %p2142
      $region70: #{tpu_custom_call.1} parent=5 // pred_check_branch
        %2145 = sbr.rel (%p2143) target = $region72
      $region71: #{tpu_custom_call.1} parent=5 // pred_region
        %s2146 = ssub.s32 %s18, 2
        // Predicated region
        $region73: #{tpu_custom_call.1} parent=71 // pred_check
          %p2147 = pneg %p218
        $region74: #{tpu_custom_call.1} parent=71 // pred_check_branch
          %2149 = sbr.rel (%p2147) target = $region76
        $region75: #{tpu_custom_call.1} parent=71 // pred_region
          %s2150 = sand.u32 %s203, 1
          %s2151 = scalar_lea.sflag [#allocation8], %s2150
          %s2152 = sand.u32 %s203, 1
          %s2153 = smul.addr %s2152, 8
          %s2154 = scalar_lea.vmem [#allocation11], %s2153
          %2155 = dma.done %s2151, 128
        $region76: #{tpu_custom_call.1} parent=71 // pred_fallthru
          _
      $region72: #{tpu_custom_call.1} parent=5 // pred_fallthru
        _
    $region6: #{tpu_custom_call.1} parent=1 // loop_footer
      %s22 = sadd.s32 1, %s18
    $region7: #{tpu_custom_call.1} parent=1 // loop_footer_branch
      %17 = sbr.rel target = $region3
    $region8: #{tpu_custom_call.1} parent=1 // loop_exit
      _
    %2156 = vsyncpa [#allocation7], 1
    %s2157 = scalar_lea.sflag [#allocation7], 1
    %2158 = vsyncpa %s2157, 1
    %2159 = vsyncpa [#allocation10], 1
    %2160 = vsyncpa [#allocation8], 1
    %s2161 = scalar_lea.sflag [#allocation8], 1
    %2162 = vsyncpa %s2161, 1

// kernel: tpu_custom_call.1
$region0: #{tpu_custom_call.1}
  #allocation0 [shape = 'u32[]', space=smem, size = 0x4, offset = 0x4, fixed_abs, tag = 'smem constant byte address 0x4 - core index']
  #allocation1 [shape = 'u32[144,128]{1,0:T(1,128)}', space=vmem, size = 0x12000, scoped, tag = 'internal scratch']
  #allocation2 [shape = 'bf16[8,32]{1,0:T(8,128)(2,1)}', space=vmem, size = 0x800, scoped, tag = 'scratch operand']
  #allocation3 [shape = 'f32[8,8]{1,0:T(8,128)}', space=vmem, size = 0x1000, scoped, tag = 'scratch operand']
  #allocation4 [shape = 'f32[8,8]{1,0:T(8,128)}', space=vmem, size = 0x1000, scoped, tag = 'scratch operand']
  #allocation5 [shape = 'f32[8,32]{1,0:T(8,128)}', space=vmem, size = 0x1000, scoped, tag = 'scratch operand']
  %s0 = inlined_call_operand.vmem [shape: f32[2,8,32], index: 0, kind: input, shape index: {}]
  %s1 = inlined_call_operand.vmem [shape: bf16[2,32,32], index: 1, kind: input, shape index: {}]
  %s2 = inlined_call_operand.hbm [shape: bf16[32,32], index: 2, kind: input, shape index: {}]
  %s3 = inlined_call_operand.vmem [shape: bf16[64,32], index: 3, kind: input, shape index: {}]
  %s4 = inlined_call_operand.hbm [shape: bf16[32,32], index: 4, kind: input, shape index: {}]
  %s5 = inlined_call_operand.vmem [shape: f32[2,32], index: 5, kind: input, shape index: {}]
  %s6 = inlined_call_operand.vmem [shape: f32[4,32], index: 6, kind: input, shape index: {}]
  %s7 = inlined_call_operand.hbm [shape: f32[2,8,32], index: 7, kind: output, shape index: {}]
  %s8 = sld [smem:[#allocation0]]
  $region77: #{tpu_custom_call.1} parent=0
    _
  %s10 = ssub.s32 1, %s8
  %s11 = scalar_select 0, %s10, %s8
  $region1: #{tpu_custom_call.1} parent=0
    #allocation6 [shape = 'u8[8192]{0}', space=vmem, size = 0x2000, scoped, tag = 'input window, operand 2, single buffered']
    #allocation7 [shape = 's32[2]{0}', space=sflag, size = 0x8, scoped, tag = 'scoped memory for tpu_custom_call.1']
    #allocation8 [shape = 's32[2]{0}', space=sflag, size = 0x8, scoped, tag = 'scoped memory for tpu_custom_call.1']
    #allocation9 [shape = 'u8[8192]{0}', space=vmem, size = 0x2000, scoped, tag = 'input window, operand 4, single buffered']
    #allocation10 [shape = 's32[1]{0}', space=sflag, size = 0x4, scoped, tag = 'scoped memory for tpu_custom_call.1']
    #allocation11 [shape = 'u8[8192]{0}', space=vmem, size = 0x2000, scoped, tag = 'output window, operand 0']
    %12 = vsyncpa [#allocation7], 0
    %13 = vsyncpa [#allocation10], 0
    %14 = vsyncpa [#allocation8], 0
    %s15 = scalar_lea.sflag [#allocation8], 1
    %16 = vsyncpa %s15, 0
    loop: start=0, step=1, limit=6
    $region2: #{tpu_custom_call.1} parent=1 // loop_pre_header
      _
    $region3: #{tpu_custom_call.1} parent=1 // loop_header
      %s18 = sphi 0, %s22
      %p19 = scmp.ge.s32.totalorder %s18, 6
      %s25 = sphi 0, %s37
      %s26 = sphi 0, %s33
      %s27 = sphi 0, %s25
      %s28 = sphi 0, %s26
      %s29 = sphi 0, %s27
      %s30 = sphi 0, %s28
      %s40 = sphi 0, %s42
      %s43 = sphi 0, %s40
      %s44 = sphi 0, %s43
      %s60 = sphi 0, %s44
      %s68 = sphi 0, %s70
      %s71 = sphi 0, %s68
      %s72 = sphi 0, %s71
      %s88 = sphi 0, %s72
      %s92 = sphi 0, %s92
      %s94 = sphi 0, %s92
      %s95 = sphi 0, %s94
      %s109 = sphi 0, %s95
      %s113 = sphi 0, %s113
      %s115 = sphi 0, %s113
      %s116 = sphi 0, %s115
      %s130 = sphi 0, %s116
      %s134 = sphi 0, %s134
      %s136 = sphi 0, %s134
      %s137 = sphi 0, %s136
      %s151 = sphi 0, %s137
      %s155 = sphi 0, %s155
      %s157 = sphi 0, %s155
      %s158 = sphi 0, %s157
      %s172 = sphi 0, %s158
      %s176 = sphi 0, %s176
      %s178 = sphi 0, %s176
      %s179 = sphi 0, %s178
      %s193 = sphi 0, %s179
      %s199 = sphi 0, %s201
      %s202 = sphi 0, %s199
      %s203 = sphi 0, %s202
      %s219 = sphi 0, %s203
    $region4: #{tpu_custom_call.1} parent=1 // loop_header_branch
      %21 = sbr.rel (%p19) target = $region8
    $region5: #{tpu_custom_call.1} parent=1 // loop_body
      %s23 = ssub.s32 %s18, 1
      %s24 = ssub.s32 %s18, 2
      %s31 = sadd.s32 1, %s26
      %p32 = scmp.ge.s32.totalorder %s31, 2
      %s33 = scalar_select %p32, 0, %s31
      %s34 = sadd.s32 1, %s25
      %s35 = scalar_select %p32, %s34, %s25
      %p36 = scmp.ge.s32.totalorder %s35, 2
      %s37 = scalar_select %p36, 0, %s35
      %s38 = ssub.s32 %s25, %s37
      %p39 = scmp.eq.s32.totalorder %s38, 0
      %s41 = sadd.s32 %s40, 1
      %s42 = scalar_select %p39, %s40, %s41
      %p45 = pneg %p39
      %p46 = scmp.eq.s32.totalorder %s18, 3
      %p47 = por %p45, %p46
      %p48 = scmp.ne.s32.totalorder %s40, %s43
      %p49 = scmp.eq.s32.totalorder %s18, 0
      %p50 = por %p48, %p49
      %p51 = scmp.ne.s32.totalorder %s40, %s43
      %p52 = scmp.eq.s32.totalorder %s23, 3
      %p53 = por %p51, %p52
      %p54 = scmp.ne.s32.totalorder %s43, %s44
      %p55 = scmp.eq.s32.totalorder %s23, 0
      %p56 = por %p54, %p55
      %p57 = scmp.ne.s32.totalorder %s43, %s44
      %p58 = scmp.eq.s32.totalorder %s24, 3
      %p59 = por %p57, %p58
      %p61 = scmp.ne.s32.totalorder %s44, %s60
      %p62 = scmp.eq.s32.totalorder %s24, 0
      %p63 = por %p61, %p62
      %s64 = ssub.s32 %s25, %s37
      %s65 = ssub.s32 %s26, %s33
      %s66 = sor.u32 %s64, %s65
      %p67 = scmp.eq.s32.totalorder %s66, 0
      %s69 = sadd.s32 %s68, 1
      %s70 = scalar_select %p67, %s68, %s69
      %p73 = pneg %p67
      %p74 = scmp.eq.s32.totalorder %s18, 3
      %p75 = por %p73, %p74
      %p76 = scmp.ne.s32.totalorder %s68, %s71
      %p77 = scmp.eq.s32.totalorder %s18, 0
      %p78 = por %p76, %p77
      %p79 = scmp.ne.s32.totalorder %s68, %s71
      %p80 = scmp.eq.s32.totalorder %s23, 3
      %p81 = por %p79, %p80
      %p82 = scmp.ne.s32.totalorder %s71, %s72
      %p83 = scmp.eq.s32.totalorder %s23, 0
      %p84 = por %p82, %p83
      %p85 = scmp.ne.s32.totalorder %s71, %s72
      %p86 = scmp.eq.s32.totalorder %s24, 3
      %p87 = por %p85, %p86
      %p89 = scmp.ne.s32.totalorder %s72, %s88
      %p90 = scmp.eq.s32.totalorder %s24, 0
      %p91 = por %p89, %p90
      %s93 = sadd.s32 %s92, 1
      %p96 = scmp.eq.s32.totalorder %s18, 3
      %p97 = scmp.ne.s32.totalorder %s92, %s94
      %p98 = scmp.eq.s32.totalorder %s18, 0
      %p99 = por %p97, %p98
      %p100 = scmp.ne.s32.totalorder %s92, %s94
      %p101 = scmp.eq.s32.totalorder %s23, 3
      %p102 = por %p100, %p101
      %p103 = scmp.ne.s32.totalorder %s94, %s95
      %p104 = scmp.eq.s32.totalorder %s23, 0
      %p105 = por %p103, %p104
      %p106 = scmp.ne.s32.totalorder %s94, %s95
      %p107 = scmp.eq.s32.totalorder %s24, 3
      %p108 = por %p106, %p107
      %p110 = scmp.ne.s32.totalorder %s95, %s109
      %p111 = scmp.eq.s32.totalorder %s24, 0
      %p112 = por %p110, %p111
      %s114 = sadd.s32 %s113, 1
      %p117 = scmp.eq.s32.totalorder %s18, 3
      %p118 = scmp.ne.s32.totalorder %s113, %s115
      %p119 = scmp.eq.s32.totalorder %s18, 0
      %p120 = por %p118, %p119
      %p121 = scmp.ne.s32.totalorder %s113, %s115
      %p122 = scmp.eq.s32.totalorder %s23, 3
      %p123 = por %p121, %p122
      %p124 = scmp.ne.s32.totalorder %s115, %s116
      %p125 = scmp.eq.s32.totalorder %s23, 0
      %p126 = por %p124, %p125
      %p127 = scmp.ne.s32.totalorder %s115, %s116
      %p128 = scmp.eq.s32.totalorder %s24, 3
      %p129 = por %p127, %p128
      %p131 = scmp.ne.s32.totalorder %s116, %s130
      %p132 = scmp.eq.s32.totalorder %s24, 0
      %p133 = por %p131, %p132
      %s135 = sadd.s32 %s134, 1
      %p138 = scmp.eq.s32.totalorder %s18, 3
      %p139 = scmp.ne.s32.totalorder %s134, %s136
      %p140 = scmp.eq.s32.totalorder %s18, 0
      %p141 = por %p139, %p140
      %p142 = scmp.ne.s32.totalorder %s134, %s136
      %p143 = scmp.eq.s32.totalorder %s23, 3
      %p144 = por %p142, %p143
      %p145 = scmp.ne.s32.totalorder %s136, %s137
      %p146 = scmp.eq.s32.totalorder %s23, 0
      %p147 = por %p145, %p146
      %p148 = scmp.ne.s32.totalorder %s136, %s137
      %p149 = scmp.eq.s32.totalorder %s24, 3
      %p150 = por %p148, %p149
      %p152 = scmp.ne.s32.totalorder %s137, %s151
      %p153 = scmp.eq.s32.totalorder %s24, 0
      %p154 = por %p152, %p153
      %s156 = sadd.s32 %s155, 1
      %p159 = scmp.eq.s32.totalorder %s18, 3
      %p160 = scmp.ne.s32.totalorder %s155, %s157
      %p161 = scmp.eq.s32.totalorder %s18, 0
      %p162 = por %p160, %p161
      %p163 = scmp.ne.s32.totalorder %s155, %s157
      %p164 = scmp.eq.s32.totalorder %s23, 3
      %p165 = por %p163, %p164
      %p166 = scmp.ne.s32.totalorder %s157, %s158
      %p167 = scmp.eq.s32.totalorder %s23, 0
      %p168 = por %p166, %p167
      %p169 = scmp.ne.s32.totalorder %s157, %s158
      %p170 = scmp.eq.s32.totalorder %s24, 3
      %p171 = por %p169, %p170
      %p173 = scmp.ne.s32.totalorder %s158, %s172
      %p174 = scmp.eq.s32.totalorder %s24, 0
      %p175 = por %p173, %p174
      %s177 = sadd.s32 %s176, 1
      %p180 = scmp.eq.s32.totalorder %s18, 3
      %p181 = scmp.ne.s32.totalorder %s176, %s178
      %p182 = scmp.eq.s32.totalorder %s18, 0
      %p183 = por %p181, %p182
      %p184 = scmp.ne.s32.totalorder %s176, %s178
      %p185 = scmp.eq.s32.totalorder %s23, 3
      %p186 = por %p184, %p185
      %p187 = scmp.ne.s32.totalorder %s178, %s179
      %p188 = scmp.eq.s32.totalorder %s23, 0
      %p189 = por %p187, %p188
      %p190 = scmp.ne.s32.totalorder %s178, %s179
      %p191 = scmp.eq.s32.totalorder %s24, 3
      %p192 = por %p190, %p191
      %p194 = scmp.ne.s32.totalorder %s179, %s193
      %p195 = scmp.eq.s32.totalorder %s24, 0
      %p196 = por %p194, %p195
      %s197 = ssub.s32 %s25, %s37
      %p198 = scmp.eq.s32.totalorder %s197, 0
      %s200 = sadd.s32 %s199, 1
      %s201 = scalar_select %p198, %s199, %s200
      %p204 = pneg %p198
      %p205 = scmp.eq.s32.totalorder %s18, 3
      %p206 = por %p204, %p205
      %p207 = scmp.ne.s32.totalorder %s199, %s202
      %p208 = scmp.eq.s32.totalorder %s18, 0
      %p209 = por %p207, %p208
      %p210 = scmp.ne.s32.totalorder %s199, %s202
      %p211 = scmp.eq.s32.totalorder %s23, 3
      %p212 = por %p210, %p211
      %p213 = scmp.ne.s32.totalorder %s202, %s203
      %p214 = scmp.eq.s32.totalorder %s23, 0
      %p215 = por %p213, %p214
      %p216 = scmp.ne.s32.totalorder %s202, %s203
      %p217 = scmp.eq.s32.totalorder %s24, 3
      %p218 = por %p216, %p217
      %p220 = scmp.ne.s32.totalorder %s203, %s219
      %p221 = scmp.eq.s32.totalorder %s24, 0
      %p222 = por %p220, %p221
      %p223 = scmp.le.s32.totalorder 1, %s18
      %p224 = scmp.lt.s32.totalorder %s18, 5
      %p225 = pnand %p223, %p224
      %p226 = pneg %p225
      // Predicated region
      $region9: #{tpu_custom_call.1} parent=5 // pred_check
        _
      $region10: #{tpu_custom_call.1} parent=5 // pred_check_branch
        %228 = sbr.rel (%p225) target = $region12
      $region11: #{tpu_custom_call.1} parent=5 // pred_region
        %s229 = ssub.s32 %s18, 1
        // Predicated region
        $region13: #{tpu_custom_call.1} parent=11 // pred_check
          %p230 = pneg %p105
        $region14: #{tpu_custom_call.1} parent=11 // pred_check_branch
          %232 = sbr.rel (%p230) target = $region16
        $region15: #{tpu_custom_call.1} parent=11 // pred_region
          %s234 = ssub.s32 256, 256
          %235 = vsyncadd [#allocation7], %s234
          %s236 = sshll.u32 [#allocation6], 4
          %s237 = int_to_ptr.vmem [resolvable:$true] %s236
          %242 = dma.hbm_to_vmem [thread:$0]  %s2, 256, %s237, [#allocation7], 64, 64, 4
        $region16: #{tpu_custom_call.1} parent=11 // pred_fallthru
          _
        // Predicated region
        $region17: #{tpu_custom_call.1} parent=11 // pred_check
          %p243 = pneg %p126
        $region18: #{tpu_custom_call.1} parent=11 // pred_check_branch
          %245 = sbr.rel (%p243) target = $region20
        $region19: #{tpu_custom_call.1} parent=11 // pred_region
          _
        $region20: #{tpu_custom_call.1} parent=11 // pred_fallthru
          _
        // Predicated region
        $region21: #{tpu_custom_call.1} parent=11 // pred_check
          %p246 = pneg %p147
        $region22: #{tpu_custom_call.1} parent=11 // pred_check_branch
          %248 = sbr.rel (%p246) target = $region24
        $region23: #{tpu_custom_call.1} parent=11 // pred_region
          %s250 = ssub.s32 256, 256
          %251 = vsyncadd [#allocation10], %s250
          %s252 = sshll.u32 [#allocation9], 4
          %s253 = int_to_ptr.vmem [resolvable:$true] %s252
          %258 = dma.hbm_to_vmem [thread:$0]  %s4, 256, %s253, [#allocation10], 64, 64, 4
        $region24: #{tpu_custom_call.1} parent=11 // pred_fallthru
          _
        // Predicated region
        $region25: #{tpu_custom_call.1} parent=11 // pred_check
          %p259 = pneg %p168
        $region26: #{tpu_custom_call.1} parent=11 // pred_check_branch
          %261 = sbr.rel (%p259) target = $region28
        $region27: #{tpu_custom_call.1} parent=11 // pred_region
          _
        $region28: #{tpu_custom_call.1} parent=11 // pred_fallthru
          _
        // Predicated region
        $region29: #{tpu_custom_call.1} parent=11 // pred_check
          %p262 = pneg %p189
        $region30: #{tpu_custom_call.1} parent=11 // pred_check_branch
          %264 = sbr.rel (%p262) target = $region32
        $region31: #{tpu_custom_call.1} parent=11 // pred_region
          _
        $region32: #{tpu_custom_call.1} parent=11 // pred_fallthru
          _
      $region12: #{tpu_custom_call.1} parent=5 // pred_fallthru
        _
      %p265 = scmp.lt.s32.totalorder %s18, 4
      // Predicated region
      $region33: #{tpu_custom_call.1} parent=5 // pred_check
        %p266 = pneg %p265
      $region34: #{tpu_custom_call.1} parent=5 // pred_check_branch
        %268 = sbr.rel (%p266) target = $region36
      $region35: #{tpu_custom_call.1} parent=5 // pred_region
        // Predicated region
        $region37: #{tpu_custom_call.1} parent=35 // pred_check
          %p269 = pneg %p50
        $region38: #{tpu_custom_call.1} parent=35 // pred_check_branch
          %271 = sbr.rel (%p269) target = $region40
        $region39: #{tpu_custom_call.1} parent=35 // pred_region
          %p272 = scmp.lt.s32.totalorder %s25, 1
          %s273 = scalar_select %p272, %s25, 1
          %s274 = smul.addr %s273, 8
          %s275 = scalar_lea.vmem %s0, %s274
        $region40: #{tpu_custom_call.1} parent=35 // pred_fallthru
          _
        // Predicated region
        $region41: #{tpu_custom_call.1} parent=35 // pred_check
          %p276 = pneg %p78
        $region42: #{tpu_custom_call.1} parent=35 // pred_check_branch
          %278 = sbr.rel (%p276) target = $region44
        $region43: #{tpu_custom_call.1} parent=35 // pred_region
          %s279 = smul.u32 2, %s26
          %p280 = scmp.lt.s32.totalorder %s25, 1
          %s281 = scalar_select %p280, %s25, 1
          %p282 = scmp.lt.s32.totalorder %s279, 3
          %s283 = scalar_select %p282, %s279, 3
          %s284 = smul.addr %s281, 4
          %s285 = sadd.s32 %s283, %s284
          %s286 = smul.addr %s285, 4
          %s287 = scalar_lea.vmem %s1, %s286
          %s288 = smul.u32 2, %s26
        $region44: #{tpu_custom_call.1} parent=35 // pred_fallthru
          _
      $region36: #{tpu_custom_call.1} parent=5 // pred_fallthru
        _
      %p289 = scmp.le.s32.totalorder 1, %s18
      %p290 = scmp.lt.s32.totalorder %s18, 5
      %p291 = pnand %p289, %p290
      %p292 = pneg %p291
      // Predicated region
      $region45: #{tpu_custom_call.1} parent=5 // pred_check
        _
      $region46: #{tpu_custom_call.1} parent=5 // pred_check_branch
        %294 = sbr.rel (%p291) target = $region48
      $region47: #{tpu_custom_call.1} parent=5 // pred_region
        %s295 = ssub.s32 %s18, 1
        // Predicated region
        $region49: #{tpu_custom_call.1} parent=47 // pred_check
          %p296 = pneg %p105
        $region50: #{tpu_custom_call.1} parent=47 // pred_check_branch
          %298 = sbr.rel (%p296) target = $region52
        $region51: #{tpu_custom_call.1} parent=47 // pred_region
          %299 = dma.done [#allocation7], 256
        $region52: #{tpu_custom_call.1} parent=47 // pred_fallthru
          _
        // Predicated region
        $region53: #{tpu_custom_call.1} parent=47 // pred_check
          %p300 = pneg %p147
        $region54: #{tpu_custom_call.1} parent=47 // pred_check_branch
          %302 = sbr.rel (%p300) target = $region56
        $region55: #{tpu_custom_call.1} parent=47 // pred_region
          %303 = dma.done [#allocation10], 256
        $region56: #{tpu_custom_call.1} parent=47 // pred_fallthru
          _
        %p304 = scmp.lt.s32.totalorder %s27, 1
        %s305 = scalar_select %p304, %s27, 1
        %s306 = smul.addr %s305, 8
        %s307 = scalar_lea.vmem %s0, %s306
        %p308 = pneg %p56
        %p309 = pneg %p53
        %s310 = smul.u32 2, %s28
        %p311 = scmp.lt.s32.totalorder %s27, 1
        %s312 = scalar_select %p311, %s27, 1
        %p313 = scmp.lt.s32.totalorder %s310, 3
        %s314 = scalar_select %p313, %s310, 3
        %s315 = smul.addr %s312, 4
        %s316 = sadd.s32 %s314, %s315
        %s317 = smul.addr %s316, 4
        %s318 = scalar_lea.vmem %s1, %s317
        %p319 = pneg %p84
        %p320 = pneg %p81
        %p321 = pneg %p105
        %p322 = pneg %p102
        %p323 = pneg %p126
        %p324 = pneg %p123
        %p325 = pneg %p147
        %p326 = pneg %p144
        %p327 = pneg %p168
        %p328 = pneg %p165
        %p329 = pneg %p189
        %p330 = pneg %p186
        %p331 = pneg %p215
        %p332 = pneg %p212
        %s333 = sand.u32 %s202, 1
        %s334 = scalar_lea.sflag [#allocation8], %s333
        %s335 = sand.u32 %s202, 1
        %s336 = smul.addr %s335, 8
        %s337 = scalar_lea.vmem [#allocation11], %s336
        %p338 = scmp.lt.s32.totalorder %s27, 1
        %s339 = scalar_select %p338, %s27, 1
        %s340 = smul.addr %s339, 8
        %s341 = scalar_lea.vmem %s0, %s340
        %s342 = smul.u32 2, %s28
        %p343 = scmp.lt.s32.totalorder %s27, 1
        %s344 = scalar_select %p343, %s27, 1
        %p345 = scmp.lt.s32.totalorder %s342, 3
        %s346 = scalar_select %p345, %s342, 3
        %s347 = smul.addr %s344, 4
        %s348 = sadd.s32 %s346, %s347
        %s349 = smul.addr %s348, 4
        %s350 = scalar_lea.vmem %s1, %s349
        %s351 = smul.u32 2, %s28
        %p353 = scmp.eq.s32.totalorder %s28, 0
        // Predicated region
        $region57: #{tpu_custom_call.1} parent=47 // pred_check
          %p354 = pneg %p353
        $region58: #{tpu_custom_call.1} parent=47 // pred_check_branch
          %356 = sbr.rel (%p354) target = $region60
        $region59: #{tpu_custom_call.1} parent=47 // pred_region
          %v357 = vld [vmem:[%s341] sm:$0xff]
          %v358 = vpack.c.bf16 %v357, %v357
          %v359 = vld [vmem:[#allocation6] sm:$0xf]
          %v360 = vld [vmem:[#allocation6 + $0x4] sm:$0xf]
          %v361 = vld [vmem:[#allocation6 + $0x8] sm:$0xf]
          %v362 = vld [vmem:[#allocation6 + $0xc] sm:$0xf]
          %v367 = vunpack.c.l.b16 %v359
          %v368 = vunpack.c.l.b16 %v360
          %v369 = vunpack.c.l.b16 %v361
          %v370 = vunpack.c.l.b16 %v362
          %v371 = vpack.c.b16 %v368, %v367
          %v372 = vpack.c.b16 %v370, %v369
          %vm373 = vcmask 261120
          %v375 = vsel %vm373, %v358, 0
          %v378 = vsel %vm373, %v371, 0
          %v381 = vsel %vm373, %v372, 0
          %383 = vmatprep.subr.bf16.mxu0 0
          %384 = vmatpush1.bf16.xpose.msra.mxu0 %v378
          %385 = vmatprep.subr.bf16.mxu0 0
          %386 = vmatpush1.bf16.xpose.msra.mxu0 %v381
          %387 = vmatprep.subr.bf16.mxu0 0
          %388 = vmatpush1.bf16.xpose.msra.mxu0 0
          %389 = vmatprep.subr.bf16.mxu0 0
          %390 = vmatpush1.bf16.xpose.msra.mxu0 0
          %391 = vmatprep.subr.bf16.mxu0 0
          %392 = vmatpush1.bf16.xpose.msra.mxu0 0
          %393 = vmatprep.subr.bf16.mxu0 0
          %394 = vmatpush1.bf16.xpose.msra.mxu0 0
          %395 = vmatprep.subr.bf16.mxu0 0
          %396 = vmatpush1.bf16.xpose.msra.mxu0 0
          %397 = vmatprep.subr.bf16.mxu0 0
          %398 = vmatpush1.bf16.xpose.msra.mxu0 0
          %399 = vmatprep.subr.bf16.mxu0 0
          %400 = vmatpush1.bf16.xpose.msra.mxu0 0
          %401 = vmatprep.subr.bf16.mxu0 0
          %402 = vmatpush1.bf16.xpose.msra.mxu0 0
          %403 = vmatprep.subr.bf16.mxu0 0
          %404 = vmatpush1.bf16.xpose.msra.mxu0 0
          %405 = vmatprep.subr.bf16.mxu0 0
          %406 = vmatpush1.bf16.xpose.msra.mxu0 0
          %407 = vmatprep.subr.bf16.mxu0 0
          %408 = vmatpush1.bf16.xpose.msra.mxu0 0
          %409 = vmatprep.subr.bf16.mxu0 0
          %410 = vmatpush1.bf16.xpose.msra.mxu0 0
          %411 = vmatprep.subr.bf16.mxu0 0
          %412 = vmatpush1.bf16.xpose.msra.mxu0 0
          %413 = vmatprep.subr.bf16.mxu0 0
          %414 = vmatpush1.bf16.xpose.msra.mxu0 0
          %415 = vmatprep.mubr.bf16.mxu0 0
          %416 = vmatmul.mubr.bf16.gmra.mrb[0].mxu0 %v375
          %v417 = vpop.f32.mrb[0].mxu0
          %v418 = vadd.f32 0.0, %v417
          %v419 = vpop.f32.mrb[0].mxu0
          %v420 = vpop.f32.mrb[0].mxu0
          %v421 = vpop.f32.mrb[0].mxu0
          %422 = vdwg.mxu0
          %v423 = vpack.c.bf16 %v418, %v418
          %vm424 = vcmask 257024
          %425 = vst.msk [vmem:[#allocation2] sm:$0xf] %vm424, %v423
          %vm426 = vcmask 64512
          %427 = vst.msk [vmem:[#allocation3] sm:$0xff] %vm426, -inf
          %428 = vst.msk [vmem:[#allocation4] sm:$0xff] %vm426, 0.0
          %429 = vst.msk [vmem:[#allocation5] sm:$0xff] %vm373, 0.0
        $region60: #{tpu_custom_call.1} parent=47 // pred_fallthru
          _
        %v430 = vld [vmem:[%s350] sm:$0xf]
        %v431 = vld [vmem:[%s350 + $0x4] sm:$0xf]
        %v432 = vld [vmem:[%s3] sm:$0xf]
        %v433 = vld [vmem:[%s3 + $0x4] sm:$0xf]
        %v434 = vld [vmem:[%s3 + $0x8] sm:$0xf]
        %v435 = vld [vmem:[%s3 + $0xc] sm:$0xf]
        %v436 = vld [vmem:[%s3 + $0x10] sm:$0xf]
        %v437 = vld [vmem:[%s3 + $0x14] sm:$0xf]
        %v438 = vld [vmem:[%s3 + $0x18] sm:$0xf]
        %v439 = vld [vmem:[%s3 + $0x1c] sm:$0xf]
        %v448 = vunpack.c.l.b16 %v432
        %v449 = vunpack.c.l.b16 %v433
        %v450 = vunpack.c.l.b16 %v434
        %v451 = vunpack.c.l.b16 %v435
        %v452 = vunpack.c.l.b16 %v436
        %v453 = vunpack.c.l.b16 %v437
        %v454 = vunpack.c.l.b16 %v438
        %v455 = vunpack.c.l.b16 %v439
        %v456 = vpack.c.b16 %v449, %v448
        %v457 = vpack.c.b16 %v451, %v450
        %v458 = vpack.c.b16 %v453, %v452
        %v459 = vpack.c.b16 %v455, %v454
        %v462 = vunpack.c.l.b16 %v430
        %v463 = vunpack.c.l.b16 %v431
        %v464 = vpack.c.b16 %v463, %v462
        %vm465 = vcmask 261120
        %v467 = vsel %vm465, %v456, 0
        %v470 = vsel %vm465, %v457, 0
        %v473 = vsel %vm465, %v458, 0
        %v476 = vsel %vm465, %v459, 0
        %v479 = vsel %vm465, %v464, 0
        %481 = vmatprep.subr.bf16.mxu0 0
        %482 = vmatpush1.bf16.xpose.msra.mxu0 %v479
        %483 = vmatprep.subr.bf16.mxu0 0
        %484 = vmatpush1.bf16.xpose.msra.mxu0 0
        %485 = vmatprep.subr.bf16.mxu0 0
        %486 = vmatpush1.bf16.xpose.msra.mxu0 0
        %487 = vmatprep.subr.bf16.mxu0 0
        %488 = vmatpush1.bf16.xpose.msra.mxu0 0
        %489 = vmatprep.subr.bf16.mxu0 0
        %490 = vmatpush1.bf16.xpose.msra.mxu0 0
        %491 = vmatprep.subr.bf16.mxu0 0
        %492 = vmatpush1.bf16.xpose.msra.mxu0 0
        %493 = vmatprep.subr.bf16.mxu0 0
        %494 = vmatpush1.bf16.xpose.msra.mxu0 0
        %495 = vmatprep.subr.bf16.mxu0 0
        %496 = vmatpush1.bf16.xpose.msra.mxu0 0
        %497 = vmatprep.subr.bf16.mxu0 0
        %498 = vmatpush1.bf16.xpose.msra.mxu0 0
        %499 = vmatprep.subr.bf16.mxu0 0
        %500 = vmatpush1.bf16.xpose.msra.mxu0 0
        %501 = vmatprep.subr.bf16.mxu0 0
        %502 = vmatpush1.bf16.xpose.msra.mxu0 0
        %503 = vmatprep.subr.bf16.mxu0 0
        %504 = vmatpush1.bf16.xpose.msra.mxu0 0
        %505 = vmatprep.subr.bf16.mxu0 0
        %506 = vmatpush1.bf16.xpose.msra.mxu0 0
        %507 = vmatprep.subr.bf16.mxu0 0
        %508 = vmatpush1.bf16.xpose.msra.mxu0 0
        %509 = vmatprep.subr.bf16.mxu0 0
        %510 = vmatpush1.bf16.xpose.msra.mxu0 0
        %511 = vmatprep.subr.bf16.mxu0 0
        %512 = vmatpush1.bf16.xpose.msra.mxu0 0
        %513 = vmatprep.mubr.bf16.mxu0 0
        %514 = vmatmul.mubr.bf16.gmra.mrb[0].mxu0 %v467
        %v515 = vpop.f32.mrb[0].mxu0
        %v516 = vadd.f32 0.0, %v515
        %v517 = vpop.f32.mrb[0].mxu0
        %v518 = vpop.f32.mrb[0].mxu0
        %v519 = vadd.f32 0.0, %v518
        %v520 = vpop.f32.mrb[0].mxu0
        %521 = vmatprep.mubr.bf16.mxu0 0
        %522 = vmatmul.mubr.bf16.gmra.mrb[0].mxu0 %v470
        %v523 = vpop.f32.mrb[0].mxu0
        %v524 = vadd.f32 0.0, %v523
        %v525 = vpop.f32.mrb[0].mxu0
        %v526 = vpop.f32.mrb[0].mxu0
        %v527 = vadd.f32 0.0, %v526
        %v528 = vpop.f32.mrb[0].mxu0
        %529 = vmatprep.mubr.bf16.mxu0 0
        %530 = vmatmul.mubr.bf16.gmra.mrb[0].mxu0 %v473
        %v531 = vpop.f32.mrb[0].mxu0
        %v532 = vadd.f32 0.0, %v531
        %v533 = vpop.f32.mrb[0].mxu0
        %v534 = vpop.f32.mrb[0].mxu0
        %v535 = vadd.f32 0.0, %v534
        %v536 = vpop.f32.mrb[0].mxu0
        %537 = vmatprep.mubr.bf16.mxu0 0
        %538 = vmatmul.mubr.bf16.gmra.mrb[0].mxu0 %v476
        %v539 = vpop.f32.mrb[0].mxu0
        %v540 = vadd.f32 0.0, %v539
        %v541 = vpop.f32.mrb[0].mxu0
        %v542 = vpop.f32.mrb[0].mxu0
        %v543 = vadd.f32 0.0, %v542
        %v544 = vpop.f32.mrb[0].mxu0
        %545 = vdwg.mxu0
        %v546 = vpack.c.bf16 %v519, %v516
        %v547 = vpack.c.bf16 %v527, %v524
        %v548 = vpack.c.bf16 %v535, %v532
        %v549 = vpack.c.bf16 %v543, %v540
        %v550 = vld [vmem:[#allocation2] sm:$0xf]
        %vm551 = vcmask 31744
        %v553 = vsel %vm551, %v550, 0
        %vm555 = vcmask 1041408
        %v557 = vsel %vm555, %v546, 0
        %559 = vmatprep.subr.bf16.mxu0 0
        %560 = vmatpush1.bf16.msra.mxu0 %v557
        %561 = vmatprep.subr.bf16.mxu0 0
        %562 = vmatpush1.bf16.msra.mxu0 0
        %563 = vmatprep.subr.bf16.mxu0 0
        %564 = vmatpush1.bf16.msra.mxu0 0
        %565 = vmatprep.subr.bf16.mxu0 0
        %566 = vmatpush1.bf16.msra.mxu0 0
        %567 = vmatprep.subr.bf16.mxu0 0
        %568 = vmatpush1.bf16.msra.mxu0 0
        %569 = vmatprep.subr.bf16.mxu0 0
        %570 = vmatpush1.bf16.msra.mxu0 0
        %571 = vmatprep.subr.bf16.mxu0 0
        %572 = vmatpush1.bf16.msra.mxu0 0
        %573 = vmatprep.subr.bf16.mxu0 0
        %574 = vmatpush1.bf16.msra.mxu0 0
        %575 = vmatprep.subr.bf16.mxu0 0
        %576 = vmatpush1.bf16.msra.mxu0 0
        %577 = vmatprep.subr.bf16.mxu0 0
        %578 = vmatpush1.bf16.msra.mxu0 0
        %579 = vmatprep.subr.bf16.mxu0 0
        %580 = vmatpush1.bf16.msra.mxu0 0
        %581 = vmatprep.subr.bf16.mxu0 0
        %582 = vmatpush1.bf16.msra.mxu0 0
        %583 = vmatprep.subr.bf16.mxu0 0
        %584 = vmatpush1.bf16.msra.mxu0 0
        %585 = vmatprep.subr.bf16.mxu0 0
        %586 = vmatpush1.bf16.msra.mxu0 0
        %587 = vmatprep.subr.bf16.mxu0 0
        %588 = vmatpush1.bf16.msra.mxu0 0
        %589 = vmatprep.subr.bf16.mxu0 0
        %590 = vmatpush1.bf16.msra.mxu0 0
        %591 = vmatprep.mubr.bf16.mxu0 0
        %592 = vmatmul.mubr.bf16.gmra.mrb[0].mxu0 %v553
        %v593 = vpop.f32.mrb[0].mxu0
        %v594 = vadd.f32 0.0, %v593
        %v595 = vpop.f32.mrb[0].mxu0
        %v596 = vpop.f32.mrb[0].mxu0
        %v597 = vpop.f32.mrb[0].mxu0
        %598 = vdwg.mxu0
        %v599 = vld [vmem:[#allocation3] sm:$0xff]
        %vm600 = vcmask 130048
        %v601 = vsel %vm600, %v594, -inf
        %602 = vmax.xlane.f32.xlu0 %v601
        %v603 = vpop.xlane.xlu0 %602
        %v604 = vmax.f32 %v599, %v603
        %v605 = vsub.f32 %v599, %v604
        %v606 = vmul.f32 %v605, 1.442695
        %v607 = vpow.pop %v606
        %609 = vset.pattern.permute.xlu0 0
        %610 = vperm.xlu0 %609, %v604
        %v611 = vpop.permute.xlu0 %610
        %v613 = vsub.f32 %v594, %v611
        %v614 = vmul.f32 %v613, 1.442695
        %v615 = vpow.pop %v614
        %v616 = vld [vmem:[#allocation4] sm:$0xff]
        %v617 = vmul.f32 %v607, %v616
        %v618 = vsel %vm600, %v615, 0.0
        %619 = vadd.xlane.f32.xlu0 %v618
        %v620 = vpop.xlane.xlu0 %619
        %v621 = vadd.f32 %v617, %v620
        %vm622 = vcmask 7168
        %623 = vst.msk [vmem:[#allocation4] sm:$0xff] %vm622, %v621
        %v624 = vpack.c.bf16 %v615, %v615
        %v626 = vsel %vm600, %v624, 0
        %v629 = vsel %vm600, %v548, 0
        %631 = vmatprep.subr.bf16.mxu0 0
        %632 = vmatpush1.bf16.xpose.msra.mxu0 %v629
        %633 = vmatprep.subr.bf16.mxu0 0
        %634 = vmatpush1.bf16.xpose.msra.mxu0 0
        %635 = vmatprep.subr.bf16.mxu0 0
        %636 = vmatpush1.bf16.xpose.msra.mxu0 0
        %637 = vmatprep.subr.bf16.mxu0 0
        %638 = vmatpush1.bf16.xpose.msra.mxu0 0
        %639 = vmatprep.subr.bf16.mxu0 0
        %640 = vmatpush1.bf16.xpose.msra.mxu0 0
        %641 = vmatprep.subr.bf16.mxu0 0
        %642 = vmatpush1.bf16.xpose.msra.mxu0 0
        %643 = vmatprep.subr.bf16.mxu0 0
        %644 = vmatpush1.bf16.xpose.msra.mxu0 0
        %645 = vmatprep.subr.bf16.mxu0 0
        %646 = vmatpush1.bf16.xpose.msra.mxu0 0
        %647 = vmatprep.subr.bf16.mxu0 0
        %648 = vmatpush1.bf16.xpose.msra.mxu0 0
        %649 = vmatprep.subr.bf16.mxu0 0
        %650 = vmatpush1.bf16.xpose.msra.mxu0 0
        %651 = vmatprep.subr.bf16.mxu0 0
        %652 = vmatpush1.bf16.xpose.msra.mxu0 0
        %653 = vmatprep.subr.bf16.mxu0 0
        %654 = vmatpush1.bf16.xpose.msra.mxu0 0
        %655 = vmatprep.subr.bf16.mxu0 0
        %656 = vmatpush1.bf16.xpose.msra.mxu0 0
        %657 = vmatprep.subr.bf16.mxu0 0
        %658 = vmatpush1.bf16.xpose.msra.mxu0 0
        %659 = vmatprep.subr.bf16.mxu0 0
        %660 = vmatpush1.bf16.xpose.msra.mxu0 0
        %661 = vmatprep.subr.bf16.mxu0 0
        %662 = vmatpush1.bf16.xpose.msra.mxu0 0
        %663 = vmatprep.mubr.bf16.mxu0 0
        %664 = vmatmul.mubr.bf16.gmra.mrb[0].mxu0 %v626
        %v665 = vpop.f32.mrb[0].mxu0
        %v666 = vadd.f32 0.0, %v665
        %v667 = vpop.f32.mrb[0].mxu0
        %v668 = vpop.f32.mrb[0].mxu0
        %v669 = vpop.f32.mrb[0].mxu0
        %670 = vdwg.mxu0
        %v671 = vld [vmem:[#allocation5] sm:$0xff]
        %673 = vset.pattern.permute.xlu0 0
        %674 = vperm.xlu0 %673, %v607
        %v675 = vpop.permute.xlu0 %674
        %v677 = vmul.f32 %v675, %v671
        %v678 = vadd.f32 %v677, %v666
        %679 = vst.msk [vmem:[#allocation5] sm:$0xff] %vm551, %v678
        %680 = vst.msk [vmem:[#allocation3] sm:$0xff] %vm622, %v604
        %v681 = vld [vmem:[#allocation2] sm:$0xf]
        %v683 = vunpack.c.l.b16 %v681
        %v684 = vpack.c.b16 %v683, %v683
        %685 = vrot.lane.b32.xlu0 %v684, 124
        %v686 = vpop.permute.xlu0 %685
        %v688 = vrot.slane %v546, 2
        %v690 = vsel %vm551, %v686, 0
        %v693 = vsel %vm555, %v688, 0
        %695 = vmatprep.subr.bf16.mxu0 0
        %696 = vmatpush1.bf16.msra.mxu0 %v693
        %697 = vmatprep.subr.bf16.mxu0 0
        %698 = vmatpush1.bf16.msra.mxu0 0
        %699 = vmatprep.subr.bf16.mxu0 0
        %700 = vmatpush1.bf16.msra.mxu0 0
        %701 = vmatprep.subr.bf16.mxu0 0
        %702 = vmatpush1.bf16.msra.mxu0 0
        %703 = vmatprep.subr.bf16.mxu0 0
        %704 = vmatpush1.bf16.msra.mxu0 0
        %705 = vmatprep.subr.bf16.mxu0 0
        %706 = vmatpush1.bf16.msra.mxu0 0
        %707 = vmatprep.subr.bf16.mxu0 0
        %708 = vmatpush1.bf16.msra.mxu0 0
        %709 = vmatprep.subr.bf16.mxu0 0
        %710 = vmatpush1.bf16.msra.mxu0 0
        %711 = vmatprep.subr.bf16.mxu0 0
        %712 = vmatpush1.bf16.msra.mxu0 0
        %713 = vmatprep.subr.bf16.mxu0 0
        %714 = vmatpush1.bf16.msra.mxu0 0
        %715 = vmatprep.subr.bf16.mxu0 0
        %716 = vmatpush1.bf16.msra.mxu0 0
        %717 = vmatprep.subr.bf16.mxu0 0
        %718 = vmatpush1.bf16.msra.mxu0 0
        %719 = vmatprep.subr.bf16.mxu0 0
        %720 = vmatpush1.bf16.msra.mxu0 0
        %721 = vmatprep.subr.bf16.mxu0 0
        %722 = vmatpush1.bf16.msra.mxu0 0
        %723 = vmatprep.subr.bf16.mxu0 0
        %724 = vmatpush1.bf16.msra.mxu0 0
        %725 = vmatprep.subr.bf16.mxu0 0
        %726 = vmatpush1.bf16.msra.mxu0 0
        %727 = vmatprep.mubr.bf16.mxu0 0
        %728 = vmatmul.mubr.bf16.gmra.mrb[0].mxu0 %v690
        %v729 = vpop.f32.mrb[0].mxu0
        %v730 = vadd.f32 0.0, %v729
        %v731 = vpop.f32.mrb[0].mxu0
        %v732 = vpop.f32.mrb[0].mxu0
        %v733 = vpop.f32.mrb[0].mxu0
        %734 = vdwg.mxu0
        %v735 = vld [vmem:[#allocation3] sm:$0xff]
        %v736 = vsel %vm600, %v730, -inf
        %737 = vmax.xlane.f32.xlu0 %v736
        %v738 = vpop.xlane.xlu0 %737
        %v739 = vmax.f32 %v735, %v738
        %v740 = vsub.f32 %v735, %v739
        %v741 = vmul.f32 %v740, 1.442695
        %v742 = vpow.pop %v741
        %744 = vset.pattern.permute.xlu0 1
        %745 = vperm.xlu0 %744, %v739
        %v746 = vpop.permute.xlu0 %745
        %v748 = vsub.f32 %v730, %v746
        %v749 = vmul.f32 %v748, 1.442695
        %v750 = vpow.pop %v749
        %v751 = vld [vmem:[#allocation4] sm:$0xff]
        %v752 = vmul.f32 %v742, %v751
        %v753 = vsel %vm600, %v750, 0.0
        %754 = vadd.xlane.f32.xlu0 %v753
        %v755 = vpop.xlane.xlu0 %754
        %v756 = vadd.f32 %v752, %v755
        %vm757 = vcmask 15368
        %758 = vst.msk [vmem:[#allocation4] sm:$0xff] %vm757, %v756
        %v759 = vpack.c.bf16 %v750, %v750
        %v761 = vrot.slane %v548, 2
        %v763 = vsel %vm600, %v759, 0
        %v766 = vsel %vm600, %v761, 0
        %768 = vmatprep.subr.bf16.mxu0 0
        %769 = vmatpush1.bf16.xpose.msra.mxu0 %v766
        %770 = vmatprep.subr.bf16.mxu0 0
        %771 = vmatpush1.bf16.xpose.msra.mxu0 0
        %772 = vmatprep.subr.bf16.mxu0 0
        %773 = vmatpush1.bf16.xpose.msra.mxu0 0
        %774 = vmatprep.subr.bf16.mxu0 0
        %775 = vmatpush1.bf16.xpose.msra.mxu0 0
        %776 = vmatprep.subr.bf16.mxu0 0
        %777 = vmatpush1.bf16.xpose.msra.mxu0 0
        %778 = vmatprep.subr.bf16.mxu0 0
        %779 = vmatpush1.bf16.xpose.msra.mxu0 0
        %780 = vmatprep.subr.bf16.mxu0 0
        %781 = vmatpush1.bf16.xpose.msra.mxu0 0
        %782 = vmatprep.subr.bf16.mxu0 0
        %783 = vmatpush1.bf16.xpose.msra.mxu0 0
        %784 = vmatprep.subr.bf16.mxu0 0
        %785 = vmatpush1.bf16.xpose.msra.mxu0 0
        %786 = vmatprep.subr.bf16.mxu0 0
        %787 = vmatpush1.bf16.xpose.msra.mxu0 0
        %788 = vmatprep.subr.bf16.mxu0 0
        %789 = vmatpush1.bf16.xpose.msra.mxu0 0
        %790 = vmatprep.subr.bf16.mxu0 0
        %791 = vmatpush1.bf16.xpose.msra.mxu0 0
        %792 = vmatprep.subr.bf16.mxu0 0
        %793 = vmatpush1.bf16.xpose.msra.mxu0 0
        %794 = vmatprep.subr.bf16.mxu0 0
        %795 = vmatpush1.bf16.xpose.msra.mxu0 0
        %796 = vmatprep.subr.bf16.mxu0 0
        %797 = vmatpush1.bf16.xpose.msra.mxu0 0
        %798 = vmatprep.subr.bf16.mxu0 0
        %799 = vmatpush1.bf16.xpose.msra.mxu0 0
        %800 = vmatprep.mubr.bf16.mxu0 0
        %801 = vmatmul.mubr.bf16.gmra.mrb[0].mxu0 %v763
        %v802 = vpop.f32.mrb[0].mxu0
        %v803 = vadd.f32 0.0, %v802
        %v804 = vpop.f32.mrb[0].mxu0
        %v805 = vpop.f32.mrb[0].mxu0
        %v806 = vpop.f32.mrb[0].mxu0
        %807 = vdwg.mxu0
        %v808 = vld [vmem:[#allocation5] sm:$0xff]
        %810 = vset.pattern.permute.xlu0 1
        %811 = vperm.xlu0 %810, %v742
        %v812 = vpop.permute.xlu0 %811
        %v814 = vmul.f32 %v812, %v808
        %816 = vrot.lane.b32.xlu0 %v803, 4
        %v817 = vpop.permute.xlu0 %816
        %v819 = vadd.f32 %v814, %v817
        %vm820 = vcmask 64544
        %821 = vst.msk [vmem:[#allocation5] sm:$0xff] %vm820, %v819
        %822 = vst.msk [vmem:[#allocation3] sm:$0xff] %vm757, %v739
        %v823 = vld [vmem:[#allocation2] sm:$0xf]
        %v825 = vunpack.c.l.b16 %v823
        %v826 = vpack.c.b16 %v825, %v825
        %827 = vrot.lane.b32.xlu0 %v826, 120
        %v828 = vpop.permute.xlu0 %827
        %v829 = vrot.slane %v546, 4
        %v831 = vsel %vm551, %v828, 0
        %v834 = vsel %vm555, %v829, 0
        %836 = vmatprep.subr.bf16.mxu0 0
        %837 = vmatpush1.bf16.msra.mxu0 %v834
        %838 = vmatprep.subr.bf16.mxu0 0
        %839 = vmatpush1.bf16.msra.mxu0 0
        %840 = vmatprep.subr.bf16.mxu0 0
        %841 = vmatpush1.bf16.msra.mxu0 0
        %842 = vmatprep.subr.bf16.mxu0 0
        %843 = vmatpush1.bf16.msra.mxu0 0
        %844 = vmatprep.subr.bf16.mxu0 0
        %845 = vmatpush1.bf16.msra.mxu0 0
        %846 = vmatprep.subr.bf16.mxu0 0
        %847 = vmatpush1.bf16.msra.mxu0 0
        %848 = vmatprep.subr.bf16.mxu0 0
        %849 = vmatpush1.bf16.msra.mxu0 0
        %850 = vmatprep.subr.bf16.mxu0 0
        %851 = vmatpush1.bf16.msra.mxu0 0
        %852 = vmatprep.subr.bf16.mxu0 0
        %853 = vmatpush1.bf16.msra.mxu0 0
        %854 = vmatprep.subr.bf16.mxu0 0
        %855 = vmatpush1.bf16.msra.mxu0 0
        %856 = vmatprep.subr.bf16.mxu0 0
        %857 = vmatpush1.bf16.msra.mxu0 0
        %858 = vmatprep.subr.bf16.mxu0 0
        %859 = vmatpush1.bf16.msra.mxu0 0
        %860 = vmatprep.subr.bf16.mxu0 0
        %861 = vmatpush1.bf16.msra.mxu0 0
        %862 = vmatprep.subr.bf16.mxu0 0
        %863 = vmatpush1.bf16.msra.mxu0 0
        %864 = vmatprep.subr.bf16.mxu0 0
        %865 = vmatpush1.bf16.msra.mxu0 0
        %866 = vmatprep.subr.bf16.mxu0 0
        %867 = vmatpush1.bf16.msra.mxu0 0
        %868 = vmatprep.mubr.bf16.mxu0 0
        %869 = vmatmul.mubr.bf16.gmra.mrb[0].mxu0 %v831
        %v870 = vpop.f32.mrb[0].mxu0
        %v871 = vadd.f32 0.0, %v870
        %v872 = vpop.f32.mrb[0].mxu0
        %v873 = vpop.f32.mrb[0].mxu0
        %v874 = vpop.f32.mrb[0].mxu0
        %875 = vdwg.mxu0
        %v876 = vld [vmem:[#allocation3] sm:$0xff]
        %v877 = vsel %vm600, %v871, -inf
        %878 = vmax.xlane.f32.xlu0 %v877
        %v879 = vpop.xlane.xlu0 %878
        %v880 = vmax.f32 %v876, %v879
        %v881 = vsub.f32 %v876, %v880
        %v882 = vmul.f32 %v881, 1.442695
        %v883 = vpow.pop %v882
        %885 = vset.pattern.permute.xlu0 2
        %886 = vperm.xlu0 %885, %v880
        %v887 = vpop.permute.xlu0 %886
        %v889 = vsub.f32 %v871, %v887
        %v890 = vmul.f32 %v889, 1.442695
        %v891 = vpow.pop %v890
        %v892 = vld [vmem:[#allocation4] sm:$0xff]
        %v893 = vmul.f32 %v883, %v892
        %v894 = vsel %vm600, %v891, 0.0
        %895 = vadd.xlane.f32.xlu0 %v894
        %v896 = vpop.xlane.xlu0 %895
        %v897 = vadd.f32 %v893, %v896
        %vm898 = vcmask 23568
        %899 = vst.msk [vmem:[#allocation4] sm:$0xff] %vm898, %v897
        %v900 = vpack.c.bf16 %v891, %v891
        %v901 = vrot.slane %v548, 4
        %v903 = vsel %vm600, %v900, 0
        %v906 = vsel %vm600, %v901, 0
        %908 = vmatprep.subr.bf16.mxu0 0
        %909 = vmatpush1.bf16.xpose.msra.mxu0 %v906
        %910 = vmatprep.subr.bf16.mxu0 0
        %911 = vmatpush1.bf16.xpose.msra.mxu0 0
        %912 = vmatprep.subr.bf16.mxu0 0
        %913 = vmatpush1.bf16.xpose.msra.mxu0 0
        %914 = vmatprep.subr.bf16.mxu0 0
        %915 = vmatpush1.bf16.xpose.msra.mxu0 0
        %916 = vmatprep.subr.bf16.mxu0 0
        %917 = vmatpush1.bf16.xpose.msra.mxu0 0
        %918 = vmatprep.subr.bf16.mxu0 0
        %919 = vmatpush1.bf16.xpose.msra.mxu0 0
        %920 = vmatprep.subr.bf16.mxu0 0
        %921 = vmatpush1.bf16.xpose.msra.mxu0 0
        %922 = vmatprep.subr.bf16.mxu0 0
        %923 = vmatpush1.bf16.xpose.msra.mxu0 0
        %924 = vmatprep.subr.bf16.mxu0 0
        %925 = vmatpush1.bf16.xpose.msra.mxu0 0
        %926 = vmatprep.subr.bf16.mxu0 0
        %927 = vmatpush1.bf16.xpose.msra.mxu0 0
        %928 = vmatprep.subr.bf16.mxu0 0
        %929 = vmatpush1.bf16.xpose.msra.mxu0 0
        %930 = vmatprep.subr.bf16.mxu0 0
        %931 = vmatpush1.bf16.xpose.msra.mxu0 0
        %932 = vmatprep.subr.bf16.mxu0 0
        %933 = vmatpush1.bf16.xpose.msra.mxu0 0
        %934 = vmatprep.subr.bf16.mxu0 0
        %935 = vmatpush1.bf16.xpose.msra.mxu0 0
        %936 = vmatprep.subr.bf16.mxu0 0
        %937 = vmatpush1.bf16.xpose.msra.mxu0 0
        %938 = vmatprep.subr.bf16.mxu0 0
        %939 = vmatpush1.bf16.xpose.msra.mxu0 0
        %940 = vmatprep.mubr.bf16.mxu0 0
        %941 = vmatmul.mubr.bf16.gmra.mrb[0].mxu0 %v903
        %v942 = vpop.f32.mrb[0].mxu0
        %v943 = vadd.f32 0.0, %v942
        %v944 = vpop.f32.mrb[0].mxu0
        %v945 = vpop.f32.mrb[0].mxu0
        %v946 = vpop.f32.mrb[0].mxu0
        %947 = vdwg.mxu0
        %v948 = vld [vmem:[#allocation5] sm:$0xff]
        %950 = vset.pattern.permute.xlu0 2
        %951 = vperm.xlu0 %950, %v883
        %v952 = vpop.permute.xlu0 %951
        %v954 = vmul.f32 %v952, %v948
        %956 = vrot.lane.b32.xlu0 %v943, 8
        %v957 = vpop.permute.xlu0 %956
        %v959 = vadd.f32 %v954, %v957
        %vm960 = vcmask 97344
        %961 = vst.msk [vmem:[#allocation5] sm:$0xff] %vm960, %v959
        %962 = vst.msk [vmem:[#allocation3] sm:$0xff] %vm898, %v880
        %v963 = vld [vmem:[#allocation2] sm:$0xf]
        %v965 = vunpack.c.l.b16 %v963
        %v966 = vpack.c.b16 %v965, %v965
        %967 = vrot.lane.b32.xlu0 %v966, 116
        %v968 = vpop.permute.xlu0 %967
        %v969 = vrot.slane %v546, 6
        %v971 = vsel %vm551, %v968, 0
        %v974 = vsel %vm555, %v969, 0
        %976 = vmatprep.subr.bf16.mxu0 0
        %977 = vmatpush1.bf16.msra.mxu0 %v974
        %978 = vmatprep.subr.bf16.mxu0 0
        %979 = vmatpush1.bf16.msra.mxu0 0
        %980 = vmatprep.subr.bf16.mxu0 0
        %981 = vmatpush1.bf16.msra.mxu0 0
        %982 = vmatprep.subr.bf16.mxu0 0
        %983 = vmatpush1.bf16.msra.mxu0 0
        %984 = vmatprep.subr.bf16.mxu0 0
        %985 = vmatpush1.bf16.msra.mxu0 0
        %986 = vmatprep.subr.bf16.mxu0 0
        %987 = vmatpush1.bf16.msra.mxu0 0
        %988 = vmatprep.subr.bf16.mxu0 0
        %989 = vmatpush1.bf16.msra.mxu0 0
        %990 = vmatprep.subr.bf16.mxu0 0
        %991 = vmatpush1.bf16.msra.mxu0 0
        %992 = vmatprep.subr.bf16.mxu0 0
        %993 = vmatpush1.bf16.msra.mxu0 0
        %994 = vmatprep.subr.bf16.mxu0 0
        %995 = vmatpush1.bf16.msra.mxu0 0
        %996 = vmatprep.subr.bf16.mxu0 0
        %997 = vmatpush1.bf16.msra.mxu0 0
        %998 = vmatprep.subr.bf16.mxu0 0
        %999 = vmatpush1.bf16.msra.mxu0 0
        %1000 = vmatprep.subr.bf16.mxu0 0
        %1001 = vmatpush1.bf16.msra.mxu0 0
        %1002 = vmatprep.subr.bf16.mxu0 0
        %1003 = vmatpush1.bf16.msra.mxu0 0
        %1004 = vmatprep.subr.bf16.mxu0 0
        %1005 = vmatpush1.bf16.msra.mxu0 0
        %1006 = vmatprep.subr.bf16.mxu0 0
        %1007 = vmatpush1.bf16.msra.mxu0 0
        %1008 = vmatprep.mubr.bf16.mxu0 0
        %1009 = vmatmul.mubr.bf16.gmra.mrb[0].mxu0 %v971
        %v1010 = vpop.f32.mrb[0].mxu0
        %v1011 = vadd.f32 0.0, %v1010
        %v1012 = vpop.f32.mrb[0].mxu0
        %v1013 = vpop.f32.mrb[0].mxu0
        %v1014 = vpop.f32.mrb[0].mxu0
        %1015 = vdwg.mxu0
        %v1016 = vld [vmem:[#allocation3] sm:$0xff]
        %v1017 = vsel %vm600, %v1011, -inf
        %1018 = vmax.xlane.f32.xlu0 %v1017
        %v1019 = vpop.xlane.xlu0 %1018
        %v1020 = vmax.f32 %v1016, %v1019
        %v1021 = vsub.f32 %v1016, %v1020
        %v1022 = vmul.f32 %v1021, 1.442695
        %v1023 = vpow.pop %v1022
        %1025 = vset.pattern.permute.xlu0 3
        %1026 = vperm.xlu0 %1025, %v1020
        %v1027 = vpop.permute.xlu0 %1026
        %v1029 = vsub.f32 %v1011, %v1027
        %v1030 = vmul.f32 %v1029, 1.442695
        %v1031 = vpow.pop %v1030
        %v1032 = vld [vmem:[#allocation4] sm:$0xff]
        %v1033 = vmul.f32 %v1023, %v1032
        %v1034 = vsel %vm600, %v1031, 0.0
        %1035 = vadd.xlane.f32.xlu0 %v1034
        %v1036 = vpop.xlane.xlu0 %1035
        %v1037 = vadd.f32 %v1033, %v1036
        %vm1038 = vcmask 31768
        %1039 = vst.msk [vmem:[#allocation4] sm:$0xff] %vm1038, %v1037
        %v1040 = vpack.c.bf16 %v1031, %v1031
        %v1041 = vrot.slane %v548, 6
        %v1043 = vsel %vm600, %v1040, 0
        %v1046 = vsel %vm600, %v1041, 0
        %1048 = vmatprep.subr.bf16.mxu0 0
        %1049 = vmatpush1.bf16.xpose.msra.mxu0 %v1046
        %1050 = vmatprep.subr.bf16.mxu0 0
        %1051 = vmatpush1.bf16.xpose.msra.mxu0 0
        %1052 = vmatprep.subr.bf16.mxu0 0
        %1053 = vmatpush1.bf16.xpose.msra.mxu0 0
        %1054 = vmatprep.subr.bf16.mxu0 0
        %1055 = vmatpush1.bf16.xpose.msra.mxu0 0
        %1056 = vmatprep.subr.bf16.mxu0 0
        %1057 = vmatpush1.bf16.xpose.msra.mxu0 0
        %1058 = vmatprep.subr.bf16.mxu0 0
        %1059 = vmatpush1.bf16.xpose.msra.mxu0 0
        %1060 = vmatprep.subr.bf16.mxu0 0
        %1061 = vmatpush1.bf16.xpose.msra.mxu0 0
        %1062 = vmatprep.subr.bf16.mxu0 0
        %1063 = vmatpush1.bf16.xpose.msra.mxu0 0
        %1064 = vmatprep.subr.bf16.mxu0 0
        %1065 = vmatpush1.bf16.xpose.msra.mxu0 0
        %1066 = vmatprep.subr.bf16.mxu0 0
        %1067 = vmatpush1.bf16.xpose.msra.mxu0 0
        %1068 = vmatprep.subr.bf16.mxu0 0
        %1069 = vmatpush1.bf16.xpose.msra.mxu0 0
        %1070 = vmatprep.subr.bf16.mxu0 0
        %1071 = vmatpush1.bf16.xpose.msra.mxu0 0
        %1072 = vmatprep.subr.bf16.mxu0 0
        %1073 = vmatpush1.bf16.xpose.msra.mxu0 0
        %1074 = vmatprep.subr.bf16.mxu0 0
        %1075 = vmatpush1.bf16.xpose.msra.mxu0 0
        %1076 = vmatprep.subr.bf16.mxu0 0
        %1077 = vmatpush1.bf16.xpose.msra.mxu0 0
        %1078 = vmatprep.subr.bf16.mxu0 0
        %1079 = vmatpush1.bf16.xpose.msra.mxu0 0
        %1080 = vmatprep.mubr.bf16.mxu0 0
        %1081 = vmatmul.mubr.bf16.gmra.mrb[0].mxu0 %v1043
        %v1082 = vpop.f32.mrb[0].mxu0
        %v1083 = vadd.f32 0.0, %v1082
        %v1084 = vpop.f32.mrb[0].mxu0
        %v1085 = vpop.f32.mrb[0].mxu0
        %v1086 = vpop.f32.mrb[0].mxu0
        %1087 = vdwg.mxu0
        %v1088 = vld [vmem:[#allocation5] sm:$0xff]
        %1090 = vset.pattern.permute.xlu0 3
        %1091 = vperm.xlu0 %1090, %v1023
        %v1092 = vpop.permute.xlu0 %1091
        %v1094 = vmul.f32 %v1092, %v1088
        %1096 = vrot.lane.b32.xlu0 %v1083, 12
        %v1097 = vpop.permute.xlu0 %1096
        %v1099 = vadd.f32 %v1094, %v1097
        %vm1100 = vcmask 130144
        %1101 = vst.msk [vmem:[#allocation5] sm:$0xff] %vm1100, %v1099
        %1102 = vst.msk [vmem:[#allocation3] sm:$0xff] %vm1038, %v1020
        %v1103 = vld [vmem:[#allocation2] sm:$0xf]
        %v1105 = vunpack.c.l.b16 %v1103
        %v1106 = vpack.c.b16 %v1105, %v1105
        %1107 = vrot.lane.b32.xlu0 %v1106, 112
        %v1108 = vpop.permute.xlu0 %1107
        %v1110 = vsel %vm551, %v1108, 0
        %v1113 = vsel %vm555, %v547, 0
        %1115 = vmatprep.subr.bf16.mxu0 0
        %1116 = vmatpush1.bf16.msra.mxu0 %v1113
        %1117 = vmatprep.subr.bf16.mxu0 0
        %1118 = vmatpush1.bf16.msra.mxu0 0
        %1119 = vmatprep.subr.bf16.mxu0 0
        %1120 = vmatpush1.bf16.msra.mxu0 0
        %1121 = vmatprep.subr.bf16.mxu0 0
        %1122 = vmatpush1.bf16.msra.mxu0 0
        %1123 = vmatprep.subr.bf16.mxu0 0
        %1124 = vmatpush1.bf16.msra.mxu0 0
        %1125 = vmatprep.subr.bf16.mxu0 0
        %1126 = vmatpush1.bf16.msra.mxu0 0
        %1127 = vmatprep.subr.bf16.mxu0 0
        %1128 = vmatpush1.bf16.msra.mxu0 0
        %1129 = vmatprep.subr.bf16.mxu0 0
        %1130 = vmatpush1.bf16.msra.mxu0 0
        %1131 = vmatprep.subr.bf16.mxu0 0
        %1132 = vmatpush1.bf16.msra.mxu0 0
        %1133 = vmatprep.subr.bf16.mxu0 0
        %1134 = vmatpush1.bf16.msra.mxu0 0
        %1135 = vmatprep.subr.bf16.mxu0 0
        %1136 = vmatpush1.bf16.msra.mxu0 0
        %1137 = vmatprep.subr.bf16.mxu0 0
        %1138 = vmatpush1.bf16.msra.mxu0 0
        %1139 = vmatprep.subr.bf16.mxu0 0
        %1140 = vmatpush1.bf16.msra.mxu0 0
        %1141 = vmatprep.subr.bf16.mxu0 0
        %1142 = vmatpush1.bf16.msra.mxu0 0
        %1143 = vmatprep.subr.bf16.mxu0 0
        %1144 = vmatpush1.bf16.msra.mxu0 0
        %1145 = vmatprep.subr.bf16.mxu0 0
        %1146 = vmatpush1.bf16.msra.mxu0 0
        %1147 = vmatprep.mubr.bf16.mxu0 0
        %1148 = vmatmul.mubr.bf16.gmra.mrb[0].mxu0 %v1110
        %v1149 = vpop.f32.mrb[0].mxu0
        %v1150 = vadd.f32 0.0, %v1149
        %v1151 = vpop.f32.mrb[0].mxu0
        %v1152 = vpop.f32.mrb[0].mxu0
        %v1153 = vpop.f32.mrb[0].mxu0
        %1154 = vdwg.mxu0
        %v1155 = vld [vmem:[#allocation3] sm:$0xff]
        %v1156 = vsel %vm600, %v1150, -inf
        %1157 = vmax.xlane.f32.xlu0 %v1156
        %v1158 = vpop.xlane.xlu0 %1157
        %v1159 = vmax.f32 %v1155, %v1158
        %v1160 = vsub.f32 %v1155, %v1159
        %v1161 = vmul.f32 %v1160, 1.442695
        %v1162 = vpow.pop %v1161
        %1164 = vset.pattern.permute.xlu0 4
        %1165 = vperm.xlu0 %1164, %v1159
        %v1166 = vpop.permute.xlu0 %1165
        %v1168 = vsub.f32 %v1150, %v1166
        %v1169 = vmul.f32 %v1168, 1.442695
        %v1170 = vpow.pop %v1169
        %v1171 = vld [vmem:[#allocation4] sm:$0xff]
        %v1172 = vmul.f32 %v1162, %v1171
        %v1173 = vsel %vm600, %v1170, 0.0
        %1174 = vadd.xlane.f32.xlu0 %v1173
        %v1175 = vpop.xlane.xlu0 %1174
        %v1176 = vadd.f32 %v1172, %v1175
        %vm1177 = vcmask 39968
        %1178 = vst.msk [vmem:[#allocation4] sm:$0xff] %vm1177, %v1176
        %v1179 = vpack.c.bf16 %v1170, %v1170
        %v1181 = vsel %vm600, %v1179, 0
        %v1184 = vsel %vm600, %v549, 0
        %1186 = vmatprep.subr.bf16.mxu0 0
        %1187 = vmatpush1.bf16.xpose.msra.mxu0 %v1184
        %1188 = vmatprep.subr.bf16.mxu0 0
        %1189 = vmatpush1.bf16.xpose.msra.mxu0 0
        %1190 = vmatprep.subr.bf16.mxu0 0
        %1191 = vmatpush1.bf16.xpose.msra.mxu0 0
        %1192 = vmatprep.subr.bf16.mxu0 0
        %1193 = vmatpush1.bf16.xpose.msra.mxu0 0
        %1194 = vmatprep.subr.bf16.mxu0 0
        %1195 = vmatpush1.bf16.xpose.msra.mxu0 0
        %1196 = vmatprep.subr.bf16.mxu0 0
        %1197 = vmatpush1.bf16.xpose.msra.mxu0 0
        %1198 = vmatprep.subr.bf16.mxu0 0
        %1199 = vmatpush1.bf16.xpose.msra.mxu0 0
        %1200 = vmatprep.subr.bf16.mxu0 0
        %1201 = vmatpush1.bf16.xpose.msra.mxu0 0
        %1202 = vmatprep.subr.bf16.mxu0 0
        %1203 = vmatpush1.bf16.xpose.msra.mxu0 0
        %1204 = vmatprep.subr.bf16.mxu0 0
        %1205 = vmatpush1.bf16.xpose.msra.mxu0 0
        %1206 = vmatprep.subr.bf16.mxu0 0
        %1207 = vmatpush1.bf16.xpose.msra.mxu0 0
        %1208 = vmatprep.subr.bf16.mxu0 0
        %1209 = vmatpush1.bf16.xpose.msra.mxu0 0
        %1210 = vmatprep.subr.bf16.mxu0 0
        %1211 = vmatpush1.bf16.xpose.msra.mxu0 0
        %1212 = vmatprep.subr.bf16.mxu0 0
        %1213 = vmatpush1.bf16.xpose.msra.mxu0 0
        %1214 = vmatprep.subr.bf16.mxu0 0
        %1215 = vmatpush1.bf16.xpose.msra.mxu0 0
        %1216 = vmatprep.subr.bf16.mxu0 0
        %1217 = vmatpush1.bf16.xpose.msra.mxu0 0
        %1218 = vmatprep.mubr.bf16.mxu0 0
        %1219 = vmatmul.mubr.bf16.gmra.mrb[0].mxu0 %v1181
        %v1220 = vpop.f32.mrb[0].mxu0
        %v1221 = vadd.f32 0.0, %v1220
        %v1222 = vpop.f32.mrb[0].mxu0
        %v1223 = vpop.f32.mrb[0].mxu0
        %v1224 = vpop.f32.mrb[0].mxu0
        %1225 = vdwg.mxu0
        %v1226 = vld [vmem:[#allocation5] sm:$0xff]
        %1228 = vset.pattern.permute.xlu0 4
        %1229 = vperm.xlu0 %1228, %v1162
        %v1230 = vpop.permute.xlu0 %1229
        %v1232 = vmul.f32 %v1230, %v1226
        %1234 = vrot.lane.b32.xlu0 %v1221, 16
        %v1235 = vpop.permute.xlu0 %1234
        %v1237 = vadd.f32 %v1232, %v1235
        %vm1238 = vcmask 162944
        %1239 = vst.msk [vmem:[#allocation5] sm:$0xff] %vm1238, %v1237
        %1240 = vst.msk [vmem:[#allocation3] sm:$0xff] %vm1177, %v1159
        %v1241 = vld [vmem:[#allocation2] sm:$0xf]
        %v1243 = vunpack.c.l.b16 %v1241
        %v1244 = vpack.c.b16 %v1243, %v1243
        %1245 = vrot.lane.b32.xlu0 %v1244, 108
        %v1246 = vpop.permute.xlu0 %1245
        %v1248 = vrot.slane %v547, 2
        %v1250 = vsel %vm551, %v1246, 0
        %v1253 = vsel %vm555, %v1248, 0
        %1255 = vmatprep.subr.bf16.mxu0 0
        %1256 = vmatpush1.bf16.msra.mxu0 %v1253
        %1257 = vmatprep.subr.bf16.mxu0 0
        %1258 = vmatpush1.bf16.msra.mxu0 0
        %1259 = vmatprep.subr.bf16.mxu0 0
        %1260 = vmatpush1.bf16.msra.mxu0 0
        %1261 = vmatprep.subr.bf16.mxu0 0
        %1262 = vmatpush1.bf16.msra.mxu0 0
        %1263 = vmatprep.subr.bf16.mxu0 0
        %1264 = vmatpush1.bf16.msra.mxu0 0
        %1265 = vmatprep.subr.bf16.mxu0 0
        %1266 = vmatpush1.bf16.msra.mxu0 0
        %1267 = vmatprep.subr.bf16.mxu0 0
        %1268 = vmatpush1.bf16.msra.mxu0 0
        %1269 = vmatprep.subr.bf16.mxu0 0
        %1270 = vmatpush1.bf16.msra.mxu0 0
        %1271 = vmatprep.subr.bf16.mxu0 0
        %1272 = vmatpush1.bf16.msra.mxu0 0
        %1273 = vmatprep.subr.bf16.mxu0 0
        %1274 = vmatpush1.bf16.msra.mxu0 0
        %1275 = vmatprep.subr.bf16.mxu0 0
        %1276 = vmatpush1.bf16.msra.mxu0 0
        %1277 = vmatprep.subr.bf16.mxu0 0
        %1278 = vmatpush1.bf16.msra.mxu0 0
        %1279 = vmatprep.subr.bf16.mxu0 0
        %1280 = vmatpush1.bf16.msra.mxu0 0
        %1281 = vmatprep.subr.bf16.mxu0 0
        %1282 = vmatpush1.bf16.msra.mxu0 0
        %1283 = vmatprep.subr.bf16.mxu0 0
        %1284 = vmatpush1.bf16.msra.mxu0 0
        %1285 = vmatprep.subr.bf16.mxu0 0
        %1286 = vmatpush1.bf16.msra.mxu0 0
        %1287 = vmatprep.mubr.bf16.mxu0 0
        %1288 = vmatmul.mubr.bf16.gmra.mrb[0].mxu0 %v1250
        %v1289 = vpop.f32.mrb[0].mxu0
        %v1290 = vadd.f32 0.0, %v1289
        %v1291 = vpop.f32.mrb[0].mxu0
        %v1292 = vpop.f32.mrb[0].mxu0
        %v1293 = vpop.f32.mrb[0].mxu0
        %1294 = vdwg.mxu0
        %v1295 = vld [vmem:[#allocation3] sm:$0xff]
        %v1296 = vsel %vm600, %v1290, -inf
        %1297 = vmax.xlane.f32.xlu0 %v1296
        %v1298 = vpop.xlane.xlu0 %1297
        %v1299 = vmax.f32 %v1295, %v1298
        %v1300 = vsub.f32 %v1295, %v1299
        %v1301 = vmul.f32 %v1300, 1.442695
        %v1302 = vpow.pop %v1301
        %1304 = vset.pattern.permute.xlu0 5
        %1305 = vperm.xlu0 %1304, %v1299
        %v1306 = vpop.permute.xlu0 %1305
        %v1308 = vsub.f32 %v1290, %v1306
        %v1309 = vmul.f32 %v1308, 1.442695
        %v1310 = vpow.pop %v1309
        %v1311 = vld [vmem:[#allocation4] sm:$0xff]
        %v1312 = vmul.f32 %v1302, %v1311
        %v1313 = vsel %vm600, %v1310, 0.0
        %1314 = vadd.xlane.f32.xlu0 %v1313
        %v1315 = vpop.xlane.xlu0 %1314
        %v1316 = vadd.f32 %v1312, %v1315
        %vm1317 = vcmask 48168
        %1318 = vst.msk [vmem:[#allocation4] sm:$0xff] %vm1317, %v1316
        %v1319 = vpack.c.bf16 %v1310, %v1310
        %v1321 = vrot.slane %v549, 2
        %v1323 = vsel %vm600, %v1319, 0
        %v1326 = vsel %vm600, %v1321, 0
        %1328 = vmatprep.subr.bf16.mxu0 0
        %1329 = vmatpush1.bf16.xpose.msra.mxu0 %v1326
        %1330 = vmatprep.subr.bf16.mxu0 0
        %1331 = vmatpush1.bf16.xpose.msra.mxu0 0
        %1332 = vmatprep.subr.bf16.mxu0 0
        %1333 = vmatpush1.bf16.xpose.msra.mxu0 0
        %1334 = vmatprep.subr.bf16.mxu0 0
        %1335 = vmatpush1.bf16.xpose.msra.mxu0 0
        %1336 = vmatprep.subr.bf16.mxu0 0
        %1337 = vmatpush1.bf16.xpose.msra.mxu0 0
        %1338 = vmatprep.subr.bf16.mxu0 0
        %1339 = vmatpush1.bf16.xpose.msra.mxu0 0
        %1340 = vmatprep.subr.bf16.mxu0 0
        %1341 = vmatpush1.bf16.xpose.msra.mxu0 0
        %1342 = vmatprep.subr.bf16.mxu0 0
        %1343 = vmatpush1.bf16.xpose.msra.mxu0 0
        %1344 = vmatprep.subr.bf16.mxu0 0
        %1345 = vmatpush1.bf16.xpose.msra.mxu0 0
        %1346 = vmatprep.subr.bf16.mxu0 0
        %1347 = vmatpush1.bf16.xpose.msra.mxu0 0
        %1348 = vmatprep.subr.bf16.mxu0 0
        %1349 = vmatpush1.bf16.xpose.msra.mxu0 0
        %1350 = vmatprep.subr.bf16.mxu0 0
        %1351 = vmatpush1.bf16.xpose.msra.mxu0 0
        %1352 = vmatprep.subr.bf16.mxu0 0
        %1353 = vmatpush1.bf16.xpose.msra.mxu0 0
        %1354 = vmatprep.subr.bf16.mxu0 0
        %1355 = vmatpush1.bf16.xpose.msra.mxu0 0
        %1356 = vmatprep.subr.bf16.mxu0 0
        %1357 = vmatpush1.bf16.xpose.msra.mxu0 0
        %1358 = vmatprep.subr.bf16.mxu0 0
        %1359 = vmatpush1.bf16.xpose.msra.mxu0 0
        %1360 = vmatprep.mubr.bf16.mxu0 0
        %1361 = vmatmul.mubr.bf16.gmra.mrb[0].mxu0 %v1323
        %v1362 = vpop.f32.mrb[0].mxu0
        %v1363 = vadd.f32 0.0, %v1362
        %v1364 = vpop.f32.mrb[0].mxu0
        %v1365 = vpop.f32.mrb[0].mxu0
        %v1366 = vpop.f32.mrb[0].mxu0
        %1367 = vdwg.mxu0
        %v1368 = vld [vmem:[#allocation5] sm:$0xff]
        %1370 = vset.pattern.permute.xlu0 5
        %1371 = vperm.xlu0 %1370, %v1302
        %v1372 = vpop.permute.xlu0 %1371
        %v1374 = vmul.f32 %v1372, %v1368
        %1376 = vrot.lane.b32.xlu0 %v1363, 20
        %v1377 = vpop.permute.xlu0 %1376
        %v1379 = vadd.f32 %v1374, %v1377
        %vm1380 = vcmask 195744
        %1381 = vst.msk [vmem:[#allocation5] sm:$0xff] %vm1380, %v1379
        %1382 = vst.msk [vmem:[#allocation3] sm:$0xff] %vm1317, %v1299
        %v1383 = vld [vmem:[#allocation2] sm:$0xf]
        %v1385 = vunpack.c.l.b16 %v1383
        %v1386 = vpack.c.b16 %v1385, %v1385
        %1387 = vrot.lane.b32.xlu0 %v1386, 104
        %v1388 = vpop.permute.xlu0 %1387
        %v1389 = vrot.slane %v547, 4
        %v1391 = vsel %vm551, %v1388, 0
        %v1394 = vsel %vm555, %v1389, 0
        %1396 = vmatprep.subr.bf16.mxu0 0
        %1397 = vmatpush1.bf16.msra.mxu0 %v1394
        %1398 = vmatprep.subr.bf16.mxu0 0
        %1399 = vmatpush1.bf16.msra.mxu0 0
        %1400 = vmatprep.subr.bf16.mxu0 0
        %1401 = vmatpush1.bf16.msra.mxu0 0
        %1402 = vmatprep.subr.bf16.mxu0 0
        %1403 = vmatpush1.bf16.msra.mxu0 0
        %1404 = vmatprep.subr.bf16.mxu0 0
        %1405 = vmatpush1.bf16.msra.mxu0 0
        %1406 = vmatprep.subr.bf16.mxu0 0
        %1407 = vmatpush1.bf16.msra.mxu0 0
        %1408 = vmatprep.subr.bf16.mxu0 0
        %1409 = vmatpush1.bf16.msra.mxu0 0
        %1410 = vmatprep.subr.bf16.mxu0 0
        %1411 = vmatpush1.bf16.msra.mxu0 0
        %1412 = vmatprep.subr.bf16.mxu0 0
        %1413 = vmatpush1.bf16.msra.mxu0 0
        %1414 = vmatprep.subr.bf16.mxu0 0
        %1415 = vmatpush1.bf16.msra.mxu0 0
        %1416 = vmatprep.subr.bf16.mxu0 0
        %1417 = vmatpush1.bf16.msra.mxu0 0
        %1418 = vmatprep.subr.bf16.mxu0 0
        %1419 = vmatpush1.bf16.msra.mxu0 0
        %1420 = vmatprep.subr.bf16.mxu0 0
        %1421 = vmatpush1.bf16.msra.mxu0 0
        %1422 = vmatprep.subr.bf16.mxu0 0
        %1423 = vmatpush1.bf16.msra.mxu0 0
        %1424 = vmatprep.subr.bf16.mxu0 0
        %1425 = vmatpush1.bf16.msra.mxu0 0
        %1426 = vmatprep.subr.bf16.mxu0 0
        %1427 = vmatpush1.bf16.msra.mxu0 0
        %1428 = vmatprep.mubr.bf16.mxu0 0
        %1429 = vmatmul.mubr.bf16.gmra.mrb[0].mxu0 %v1391
        %v1430 = vpop.f32.mrb[0].mxu0
        %v1431 = vadd.f32 0.0, %v1430
        %v1432 = vpop.f32.mrb[0].mxu0
        %v1433 = vpop.f32.mrb[0].mxu0
        %v1434 = vpop.f32.mrb[0].mxu0
        %1435 = vdwg.mxu0
        %v1436 = vld [vmem:[#allocation3] sm:$0xff]
        %v1437 = vsel %vm600, %v1431, -inf
        %1438 = vmax.xlane.f32.xlu0 %v1437
        %v1439 = vpop.xlane.xlu0 %1438
        %v1440 = vmax.f32 %v1436, %v1439
        %v1441 = vsub.f32 %v1436, %v1440
        %v1442 = vmul.f32 %v1441, 1.442695
        %v1443 = vpow.pop %v1442
        %1445 = vset.pattern.permute.xlu0 6
        %1446 = vperm.xlu0 %1445, %v1440
        %v1447 = vpop.permute.xlu0 %1446
        %v1449 = vsub.f32 %v1431, %v1447
        %v1450 = vmul.f32 %v1449, 1.442695
        %v1451 = vpow.pop %v1450
        %v1452 = vld [vmem:[#allocation4] sm:$0xff]
        %v1453 = vmul.f32 %v1443, %v1452
        %v1454 = vsel %vm600, %v1451, 0.0
        %1455 = vadd.xlane.f32.xlu0 %v1454
        %v1456 = vpop.xlane.xlu0 %1455
        %v1457 = vadd.f32 %v1453, %v1456
        %vm1458 = vcmask 56368
        %1459 = vst.msk [vmem:[#allocation4] sm:$0xff] %vm1458, %v1457
        %v1460 = vpack.c.bf16 %v1451, %v1451
        %v1461 = vrot.slane %v549, 4
        %v1463 = vsel %vm600, %v1460, 0
        %v1466 = vsel %vm600, %v1461, 0
        %1468 = vmatprep.subr.bf16.mxu0 0
        %1469 = vmatpush1.bf16.xpose.msra.mxu0 %v1466
        %1470 = vmatprep.subr.bf16.mxu0 0
        %1471 = vmatpush1.bf16.xpose.msra.mxu0 0
        %1472 = vmatprep.subr.bf16.mxu0 0
        %1473 = vmatpush1.bf16.xpose.msra.mxu0 0
        %1474 = vmatprep.subr.bf16.mxu0 0
        %1475 = vmatpush1.bf16.xpose.msra.mxu0 0
        %1476 = vmatprep.subr.bf16.mxu0 0
        %1477 = vmatpush1.bf16.xpose.msra.mxu0 0
        %1478 = vmatprep.subr.bf16.mxu0 0
        %1479 = vmatpush1.bf16.xpose.msra.mxu0 0
        %1480 = vmatprep.subr.bf16.mxu0 0
        %1481 = vmatpush1.bf16.xpose.msra.mxu0 0
        %1482 = vmatprep.subr.bf16.mxu0 0
        %1483 = vmatpush1.bf16.xpose.msra.mxu0 0
        %1484 = vmatprep.subr.bf16.mxu0 0
        %1485 = vmatpush1.bf16.xpose.msra.mxu0 0
        %1486 = vmatprep.subr.bf16.mxu0 0
        %1487 = vmatpush1.bf16.xpose.msra.mxu0 0
        %1488 = vmatprep.subr.bf16.mxu0 0
        %1489 = vmatpush1.bf16.xpose.msra.mxu0 0
        %1490 = vmatprep.subr.bf16.mxu0 0
        %1491 = vmatpush1.bf16.xpose.msra.mxu0 0
        %1492 = vmatprep.subr.bf16.mxu0 0
        %1493 = vmatpush1.bf16.xpose.msra.mxu0 0
        %1494 = vmatprep.subr.bf16.mxu0 0
        %1495 = vmatpush1.bf16.xpose.msra.mxu0 0
        %1496 = vmatprep.subr.bf16.mxu0 0
        %1497 = vmatpush1.bf16.xpose.msra.mxu0 0
        %1498 = vmatprep.subr.bf16.mxu0 0
        %1499 = vmatpush1.bf16.xpose.msra.mxu0 0
        %1500 = vmatprep.mubr.bf16.mxu0 0
        %1501 = vmatmul.mubr.bf16.gmra.mrb[0].mxu0 %v1463
        %v1502 = vpop.f32.mrb[0].mxu0
        %v1503 = vadd.f32 0.0, %v1502
        %v1504 = vpop.f32.mrb[0].mxu0
        %v1505 = vpop.f32.mrb[0].mxu0
        %v1506 = vpop.f32.mrb[0].mxu0
        %1507 = vdwg.mxu0
        %v1508 = vld [vmem:[#allocation5] sm:$0xff]
        %1510 = vset.pattern.permute.xlu0 6
        %1511 = vperm.xlu0 %1510, %v1443
        %v1512 = vpop.permute.xlu0 %1511
        %v1514 = vmul.f32 %v1512, %v1508
        %1516 = vrot.lane.b32.xlu0 %v1503, 24
        %v1517 = vpop.permute.xlu0 %1516
        %v1519 = vadd.f32 %v1514, %v1517
        %vm1520 = vcmask 228544
        %1521 = vst.msk [vmem:[#allocation5] sm:$0xff] %vm1520, %v1519
        %1522 = vst.msk [vmem:[#allocation3] sm:$0xff] %vm1458, %v1440
        %v1523 = vld [vmem:[#allocation2] sm:$0xf]
        %v1525 = vunpack.c.l.b16 %v1523
        %v1526 = vpack.c.b16 %v1525, %v1525
        %1527 = vrot.lane.b32.xlu0 %v1526, 100
        %v1528 = vpop.permute.xlu0 %1527
        %v1529 = vrot.slane %v547, 6
        %v1531 = vsel %vm551, %v1528, 0
        %v1534 = vsel %vm555, %v1529, 0
        %1536 = vmatprep.subr.bf16.mxu0 0
        %1537 = vmatpush1.bf16.msra.mxu0 %v1534
        %1538 = vmatprep.subr.bf16.mxu0 0
        %1539 = vmatpush1.bf16.msra.mxu0 0
        %1540 = vmatprep.subr.bf16.mxu0 0
        %1541 = vmatpush1.bf16.msra.mxu0 0
        %1542 = vmatprep.subr.bf16.mxu0 0
        %1543 = vmatpush1.bf16.msra.mxu0 0
        %1544 = vmatprep.subr.bf16.mxu0 0
        %1545 = vmatpush1.bf16.msra.mxu0 0
        %1546 = vmatprep.subr.bf16.mxu0 0
        %1547 = vmatpush1.bf16.msra.mxu0 0
        %1548 = vmatprep.subr.bf16.mxu0 0
        %1549 = vmatpush1.bf16.msra.mxu0 0
        %1550 = vmatprep.subr.bf16.mxu0 0
        %1551 = vmatpush1.bf16.msra.mxu0 0
        %1552 = vmatprep.subr.bf16.mxu0 0
        %1553 = vmatpush1.bf16.msra.mxu0 0
        %1554 = vmatprep.subr.bf16.mxu0 0
        %1555 = vmatpush1.bf16.msra.mxu0 0
        %1556 = vmatprep.subr.bf16.mxu0 0
        %1557 = vmatpush1.bf16.msra.mxu0 0
        %1558 = vmatprep.subr.bf16.mxu0 0
        %1559 = vmatpush1.bf16.msra.mxu0 0
        %1560 = vmatprep.subr.bf16.mxu0 0
        %1561 = vmatpush1.bf16.msra.mxu0 0
        %1562 = vmatprep.subr.bf16.mxu0 0
        %1563 = vmatpush1.bf16.msra.mxu0 0
        %1564 = vmatprep.subr.bf16.mxu0 0
        %1565 = vmatpush1.bf16.msra.mxu0 0
        %1566 = vmatprep.subr.bf16.mxu0 0
        %1567 = vmatpush1.bf16.msra.mxu0 0
        %1568 = vmatprep.mubr.bf16.mxu0 0
        %1569 = vmatmul.mubr.bf16.gmra.mrb[0].mxu0 %v1531
        %v1570 = vpop.f32.mrb[0].mxu0
        %v1571 = vadd.f32 0.0, %v1570
        %v1572 = vpop.f32.mrb[0].mxu0
        %v1573 = vpop.f32.mrb[0].mxu0
        %v1574 = vpop.f32.mrb[0].mxu0
        %1575 = vdwg.mxu0
        %v1576 = vld [vmem:[#allocation3] sm:$0xff]
        %v1577 = vsel %vm600, %v1571, -inf
        %1578 = vmax.xlane.f32.xlu0 %v1577
        %v1579 = vpop.xlane.xlu0 %1578
        %v1580 = vmax.f32 %v1576, %v1579
        %v1581 = vsub.f32 %v1576, %v1580
        %v1582 = vmul.f32 %v1581, 1.442695
        %v1583 = vpow.pop %v1582
        %1585 = vset.pattern.permute.xlu0 7
        %1586 = vperm.xlu0 %1585, %v1580
        %v1587 = vpop.permute.xlu0 %1586
        %v1589 = vsub.f32 %v1571, %v1587
        %v1590 = vmul.f32 %v1589, 1.442695
        %v1591 = vpow.pop %v1590
        %v1592 = vld [vmem:[#allocation4] sm:$0xff]
        %v1593 = vmul.f32 %v1583, %v1592
        %v1594 = vsel %vm600, %v1591, 0.0
        %1595 = vadd.xlane.f32.xlu0 %v1594
        %v1596 = vpop.xlane.xlu0 %1595
        %v1597 = vadd.f32 %v1593, %v1596
        %vm1598 = vcmask 64568
        %1599 = vst.msk [vmem:[#allocation4] sm:$0xff] %vm1598, %v1597
        %v1600 = vpack.c.bf16 %v1591, %v1591
        %v1601 = vrot.slane %v549, 6
        %v1603 = vsel %vm600, %v1600, 0
        %v1606 = vsel %vm600, %v1601, 0
        %1608 = vmatprep.subr.bf16.mxu0 0
        %1609 = vmatpush1.bf16.xpose.msra.mxu0 %v1606
        %1610 = vmatprep.subr.bf16.mxu0 0
        %1611 = vmatpush1.bf16.xpose.msra.mxu0 0
        %1612 = vmatprep.subr.bf16.mxu0 0
        %1613 = vmatpush1.bf16.xpose.msra.mxu0 0
        %1614 = vmatprep.subr.bf16.mxu0 0
        %1615 = vmatpush1.bf16.xpose.msra.mxu0 0
        %1616 = vmatprep.subr.bf16.mxu0 0
        %1617 = vmatpush1.bf16.xpose.msra.mxu0 0
        %1618 = vmatprep.subr.bf16.mxu0 0
        %1619 = vmatpush1.bf16.xpose.msra.mxu0 0
        %1620 = vmatprep.subr.bf16.mxu0 0
        %1621 = vmatpush1.bf16.xpose.msra.mxu0 0
        %1622 = vmatprep.subr.bf16.mxu0 0
        %1623 = vmatpush1.bf16.xpose.msra.mxu0 0
        %1624 = vmatprep.subr.bf16.mxu0 0
        %1625 = vmatpush1.bf16.xpose.msra.mxu0 0
        %1626 = vmatprep.subr.bf16.mxu0 0
        %1627 = vmatpush1.bf16.xpose.msra.mxu0 0
        %1628 = vmatprep.subr.bf16.mxu0 0
        %1629 = vmatpush1.bf16.xpose.msra.mxu0 0
        %1630 = vmatprep.subr.bf16.mxu0 0
        %1631 = vmatpush1.bf16.xpose.msra.mxu0 0
        %1632 = vmatprep.subr.bf16.mxu0 0
        %1633 = vmatpush1.bf16.xpose.msra.mxu0 0
        %1634 = vmatprep.subr.bf16.mxu0 0
        %1635 = vmatpush1.bf16.xpose.msra.mxu0 0
        %1636 = vmatprep.subr.bf16.mxu0 0
        %1637 = vmatpush1.bf16.xpose.msra.mxu0 0
        %1638 = vmatprep.subr.bf16.mxu0 0
        %1639 = vmatpush1.bf16.xpose.msra.mxu0 0
        %1640 = vmatprep.mubr.bf16.mxu0 0
        %1641 = vmatmul.mubr.bf16.gmra.mrb[0].mxu0 %v1603
        %v1642 = vpop.f32.mrb[0].mxu0
        %v1643 = vadd.f32 0.0, %v1642
        %v1644 = vpop.f32.mrb[0].mxu0
        %v1645 = vpop.f32.mrb[0].mxu0
        %v1646 = vpop.f32.mrb[0].mxu0
        %1647 = vdwg.mxu0
        %v1648 = vld [vmem:[#allocation5] sm:$0xff]
        %1650 = vset.pattern.permute.xlu0 7
        %1651 = vperm.xlu0 %1650, %v1583
        %v1652 = vpop.permute.xlu0 %1651
        %v1654 = vmul.f32 %v1652, %v1648
        %1656 = vrot.lane.b32.xlu0 %v1643, 28
        %v1657 = vpop.permute.xlu0 %1656
        %v1659 = vadd.f32 %v1654, %v1657
        %vm1660 = vcmask 261344
        %1661 = vst.msk [vmem:[#allocation5] sm:$0xff] %vm1660, %v1659
        %1662 = vst.msk [vmem:[#allocation3] sm:$0xff] %vm1598, %v1580
        %p1663 = scmp.eq.s32.totalorder %s28, 1
        // Predicated region
        $region61: #{tpu_custom_call.1} parent=47 // pred_check
          %p1664 = pneg %p1663
        $region62: #{tpu_custom_call.1} parent=47 // pred_check_branch
          %1666 = sbr.rel (%p1664) target = $region64
        $region63: #{tpu_custom_call.1} parent=47 // pred_region
          %v1667 = vld [vmem:[%s341] sm:$0xff]
          %v1668 = vld [vmem:[#allocation5] sm:$0xff]
          %v1669 = vld [vmem:[#allocation4] sm:$0xff]
          %1671 = vset.pattern.permute.xlu0 0
          %1672 = vperm.xlu0 %1671, %v1669
          %v1673 = vpop.permute.xlu0 %1672
          %v1675 = vrcp.pop %v1673
          %v1676 = vmul.f32 %v1668, %v1675
          %1677 = vst.msk [vmem:[#allocation5] sm:$0xff] %vm551, %v1676
          %v1678 = vld [vmem:[#allocation5] sm:$0xff]
          %v1679 = vld [vmem:[#allocation4] sm:$0xff]
          %1681 = vset.pattern.permute.xlu0 1
          %1682 = vperm.xlu0 %1681, %v1679
          %v1683 = vpop.permute.xlu0 %1682
          %v1685 = vrcp.pop %v1683
          %v1686 = vmul.f32 %v1678, %v1685
          %1687 = vst.msk [vmem:[#allocation5] sm:$0xff] %vm820, %v1686
          %v1688 = vld [vmem:[#allocation5] sm:$0xff]
          %v1689 = vld [vmem:[#allocation4] sm:$0xff]
          %1691 = vset.pattern.permute.xlu0 2
          %1692 = vperm.xlu0 %1691, %v1689
          %v1693 = vpop.permute.xlu0 %1692
          %v1695 = vrcp.pop %v1693
          %v1696 = vmul.f32 %v1688, %v1695
          %1697 = vst.msk [vmem:[#allocation5] sm:$0xff] %vm960, %v1696
          %v1698 = vld [vmem:[#allocation5] sm:$0xff]
          %v1699 = vld [vmem:[#allocation4] sm:$0xff]
          %1701 = vset.pattern.permute.xlu0 3
          %1702 = vperm.xlu0 %1701, %v1699
          %v1703 = vpop.permute.xlu0 %1702
          %v1705 = vrcp.pop %v1703
          %v1706 = vmul.f32 %v1698, %v1705
          %1707 = vst.msk [vmem:[#allocation5] sm:$0xff] %vm1100, %v1706
          %v1708 = vld [vmem:[#allocation5] sm:$0xff]
          %v1709 = vld [vmem:[#allocation4] sm:$0xff]
          %1711 = vset.pattern.permute.xlu0 4
          %1712 = vperm.xlu0 %1711, %v1709
          %v1713 = vpop.permute.xlu0 %1712
          %v1715 = vrcp.pop %v1713
          %v1716 = vmul.f32 %v1708, %v1715
          %1717 = vst.msk [vmem:[#allocation5] sm:$0xff] %vm1238, %v1716
          %v1718 = vld [vmem:[#allocation5] sm:$0xff]
          %v1719 = vld [vmem:[#allocation4] sm:$0xff]
          %1721 = vset.pattern.permute.xlu0 5
          %1722 = vperm.xlu0 %1721, %v1719
          %v1723 = vpop.permute.xlu0 %1722
          %v1725 = vrcp.pop %v1723
          %v1726 = vmul.f32 %v1718, %v1725
          %1727 = vst.msk [vmem:[#allocation5] sm:$0xff] %vm1380, %v1726
          %v1728 = vld [vmem:[#allocation5] sm:$0xff]
          %v1729 = vld [vmem:[#allocation4] sm:$0xff]
          %1731 = vset.pattern.permute.xlu0 6
          %1732 = vperm.xlu0 %1731, %v1729
          %v1733 = vpop.permute.xlu0 %1732
          %v1735 = vrcp.pop %v1733
          %v1736 = vmul.f32 %v1728, %v1735
          %1737 = vst.msk [vmem:[#allocation5] sm:$0xff] %vm1520, %v1736
          %v1738 = vld [vmem:[#allocation5] sm:$0xff]
          %v1739 = vld [vmem:[#allocation4] sm:$0xff]
          %1741 = vset.pattern.permute.xlu0 7
          %1742 = vperm.xlu0 %1741, %v1739
          %v1743 = vpop.permute.xlu0 %1742
          %v1745 = vrcp.pop %v1743
          %v1746 = vmul.f32 %v1738, %v1745
          %1747 = vst.msk [vmem:[#allocation5] sm:$0xff] %vm1660, %v1746
          %v1748 = vld [vmem:[#allocation5] sm:$0xff]
          %v1749 = vpack.c.bf16 %v1748, %v1748
          %v1750 = vld [vmem:[#allocation9] sm:$0xf]
          %v1751 = vld [vmem:[#allocation9 + $0x4] sm:$0xf]
          %v1752 = vld [vmem:[#allocation9 + $0x8] sm:$0xf]
          %v1753 = vld [vmem:[#allocation9 + $0xc] sm:$0xf]
          %v1758 = vunpack.c.l.b16 %v1750
          %v1759 = vunpack.c.l.b16 %v1751
          %v1760 = vunpack.c.l.b16 %v1752
          %v1761 = vunpack.c.l.b16 %v1753
          %v1762 = vpack.c.b16 %v1759, %v1758
          %v1763 = vpack.c.b16 %v1761, %v1760
          %v1765 = vsel %vm465, %v1749, 0
          %v1768 = vsel %vm465, %v1762, 0
          %v1771 = vsel %vm465, %v1763, 0
          %1773 = vmatprep.subr.bf16.mxu0 0
          %1774 = vmatpush1.bf16.xpose.msra.mxu0 %v1768
          %1775 = vmatprep.subr.bf16.mxu0 0
          %1776 = vmatpush1.bf16.xpose.msra.mxu0 %v1771
          %1777 = vmatprep.subr.bf16.mxu0 0
          %1778 = vmatpush1.bf16.xpose.msra.mxu0 0
          %1779 = vmatprep.subr.bf16.mxu0 0
          %1780 = vmatpush1.bf16.xpose.msra.mxu0 0
          %1781 = vmatprep.subr.bf16.mxu0 0
          %1782 = vmatpush1.bf16.xpose.msra.mxu0 0
          %1783 = vmatprep.subr.bf16.mxu0 0
          %1784 = vmatpush1.bf16.xpose.msra.mxu0 0
          %1785 = vmatprep.subr.bf16.mxu0 0
          %1786 = vmatpush1.bf16.xpose.msra.mxu0 0
          %1787 = vmatprep.subr.bf16.mxu0 0
          %1788 = vmatpush1.bf16.xpose.msra.mxu0 0
          %1789 = vmatprep.subr.bf16.mxu0 0
          %1790 = vmatpush1.bf16.xpose.msra.mxu0 0
          %1791 = vmatprep.subr.bf16.mxu0 0
          %1792 = vmatpush1.bf16.xpose.msra.mxu0 0
          %1793 = vmatprep.subr.bf16.mxu0 0
          %1794 = vmatpush1.bf16.xpose.msra.mxu0 0
          %1795 = vmatprep.subr.bf16.mxu0 0
          %1796 = vmatpush1.bf16.xpose.msra.mxu0 0
          %1797 = vmatprep.subr.bf16.mxu0 0
          %1798 = vmatpush1.bf16.xpose.msra.mxu0 0
          %1799 = vmatprep.subr.bf16.mxu0 0
          %1800 = vmatpush1.bf16.xpose.msra.mxu0 0
          %1801 = vmatprep.subr.bf16.mxu0 0
          %1802 = vmatpush1.bf16.xpose.msra.mxu0 0
          %1803 = vmatprep.subr.bf16.mxu0 0
          %1804 = vmatpush1.bf16.xpose.msra.mxu0 0
          %1805 = vmatprep.mubr.bf16.mxu0 0
          %1806 = vmatmul.mubr.bf16.gmra.mrb[0].mxu0 %v1765
          %v1807 = vpop.f32.mrb[0].mxu0
          %v1808 = vadd.f32 0.0, %v1807
          %v1809 = vpop.f32.mrb[0].mxu0
          %v1810 = vpop.f32.mrb[0].mxu0
          %v1811 = vpop.f32.mrb[0].mxu0
          %1812 = vdwg.mxu0
          %v1813 = vld [vmem:[%s5] sm:$0x1]
          %v1814 = vlaneseq
          %v1815 = vshrl.u32 %v1814, 7
          %v1816 = vsub.s32 0, %v1815
          %v1817 = vrot.slane %v1813, %v1816
          %v1818 = vmul.f32 %v1808, %v1817
          %v1819 = vsel %vm465, %v1818, 0.0
          %1820 = vadd.xlane.f32.xlu0 %v1819
          %v1821 = vpop.xlane.xlu0 %1820
          %v1822 = vld [vmem:[%s5 + $0x1] sm:$0x1]
          %v1824 = vsel %vm465, %v1822, 0
          %v1827 = vsel %vm465, %v1808, 0
          %1829 = vmatprep.subr.mxu0 0.0
          %1830 = vmatpush1.xpose.msra.mxu0 %v1827
          %1831 = vmatprep.subr.mxu0 0.0
          %1832 = vmatpush1.xpose.msra.mxu0 0.0
          %1833 = vmatprep.subr.mxu0 0.0
          %1834 = vmatpush1.xpose.msra.mxu0 0.0
          %1835 = vmatprep.subr.mxu0 0.0
          %1836 = vmatpush1.xpose.msra.mxu0 0.0
          %1837 = vmatprep.subr.mxu0 0.0
          %1838 = vmatpush1.xpose.msra.mxu0 0.0
          %1839 = vmatprep.subr.mxu0 0.0
          %1840 = vmatpush1.xpose.msra.mxu0 0.0
          %1841 = vmatprep.subr.mxu0 0.0
          %1842 = vmatpush1.xpose.msra.mxu0 0.0
          %1843 = vmatprep.subr.mxu0 0.0
          %1844 = vmatpush1.xpose.msra.mxu0 0.0
          %1845 = vmatprep.subr.mxu0 0.0
          %1846 = vmatpush1.xpose.msra.mxu0 0.0
          %1847 = vmatprep.subr.mxu0 0.0
          %1848 = vmatpush1.xpose.msra.mxu0 0.0
          %1849 = vmatprep.subr.mxu0 0.0
          %1850 = vmatpush1.xpose.msra.mxu0 0.0
          %1851 = vmatprep.subr.mxu0 0.0
          %1852 = vmatpush1.xpose.msra.mxu0 0.0
          %1853 = vmatprep.subr.mxu0 0.0
          %1854 = vmatpush1.xpose.msra.mxu0 0.0
          %1855 = vmatprep.subr.mxu0 0.0
          %1856 = vmatpush1.xpose.msra.mxu0 0.0
          %1857 = vmatprep.subr.mxu0 0.0
          %1858 = vmatpush1.xpose.msra.mxu0 0.0
          %1859 = vmatprep.subr.mxu0 0.0
          %1860 = vmatpush1.xpose.msra.mxu0 0.0
          %1861 = vmatprep.subr.mxu0 0.0
          %1862 = vmatpush1.xpose.msra.mxu0 0.0
          %1863 = vmatprep.subr.mxu0 0.0
          %1864 = vmatpush1.xpose.msra.mxu0 0.0
          %1865 = vmatprep.subr.mxu0 0.0
          %1866 = vmatpush1.xpose.msra.mxu0 0.0
          %1867 = vmatprep.subr.mxu0 0.0
          %1868 = vmatpush1.xpose.msra.mxu0 0.0
          %1869 = vmatprep.subr.mxu0 0.0
          %1870 = vmatpush1.xpose.msra.mxu0 0.0
          %1871 = vmatprep.subr.mxu0 0.0
          %1872 = vmatpush1.xpose.msra.mxu0 0.0
          %1873 = vmatprep.subr.mxu0 0.0
          %1874 = vmatpush1.xpose.msra.mxu0 0.0
          %1875 = vmatprep.subr.mxu0 0.0
          %1876 = vmatpush1.xpose.msra.mxu0 0.0
          %1877 = vmatprep.subr.mxu0 0.0
          %1878 = vmatpush1.xpose.msra.mxu0 0.0
          %1879 = vmatprep.subr.mxu0 0.0
          %1880 = vmatpush1.xpose.msra.mxu0 0.0
          %1881 = vmatprep.subr.mxu0 0.0
          %1882 = vmatpush1.xpose.msra.mxu0 0.0
          %1883 = vmatprep.subr.mxu0 0.0
          %1884 = vmatpush1.xpose.msra.mxu0 0.0
          %1885 = vmatprep.subr.mxu0 0.0
          %1886 = vmatpush1.xpose.msra.mxu0 0.0
          %1887 = vmatprep.subr.mxu0 0.0
          %1888 = vmatpush1.xpose.msra.mxu0 0.0
          %1889 = vmatprep.subr.mxu0 0.0
          %1890 = vmatpush1.xpose.msra.mxu0 0.0
          %1891 = vmatprep.subr.mxu0 0.0
          %1892 = vmatpush1.xpose.msra.mxu0 0.0
          %1893 = vmatprep.mubr.f32.mxu0 0.0
          %1894 = vmatmul.mubr.f32.gmra.mrb[0].mxu0 %v1824
          %v1895 = vpop.f32.mrb[0].mxu0
          %v1896 = vadd.f32 0.0, %v1895
          %v1897 = vpop.f32.mrb[0].mxu0
          %1898 = vdwg.mxu0
          %v1899 = vlaneseq
          %v1900 = vshrl.u32 %v1899, 7
          %v1901 = vsub.s32 0, %v1900
          %v1902 = vrot.slane %v1896, %v1901
          %v1903 = vadd.f32 %v1821, %v1902
          %1904 = vmatprep.subr.mxu0 0.0
          %1905 = vmatpush1.xpose.msra.mxu0 %v1827
          %1906 = vmatprep.subr.mxu0 0.0
          %1907 = vmatpush1.xpose.msra.mxu0 0.0
          %1908 = vmatprep.subr.mxu0 0.0
          %1909 = vmatpush1.xpose.msra.mxu0 0.0
          %1910 = vmatprep.subr.mxu0 0.0
          %1911 = vmatpush1.xpose.msra.mxu0 0.0
          %1912 = vmatprep.subr.mxu0 0.0
          %1913 = vmatpush1.xpose.msra.mxu0 0.0
          %1914 = vmatprep.subr.mxu0 0.0
          %1915 = vmatpush1.xpose.msra.mxu0 0.0
          %1916 = vmatprep.subr.mxu0 0.0
          %1917 = vmatpush1.xpose.msra.mxu0 0.0
          %1918 = vmatprep.subr.mxu0 0.0
          %1919 = vmatpush1.xpose.msra.mxu0 0.0
          %1920 = vmatprep.subr.mxu0 0.0
          %1921 = vmatpush1.xpose.msra.mxu0 0.0
          %1922 = vmatprep.subr.mxu0 0.0
          %1923 = vmatpush1.xpose.msra.mxu0 0.0
          %1924 = vmatprep.subr.mxu0 0.0
          %1925 = vmatpush1.xpose.msra.mxu0 0.0
          %1926 = vmatprep.subr.mxu0 0.0
          %1927 = vmatpush1.xpose.msra.mxu0 0.0
          %1928 = vmatprep.subr.mxu0 0.0
          %1929 = vmatpush1.xpose.msra.mxu0 0.0
          %1930 = vmatprep.subr.mxu0 0.0
          %1931 = vmatpush1.xpose.msra.mxu0 0.0
          %1932 = vmatprep.subr.mxu0 0.0
          %1933 = vmatpush1.xpose.msra.mxu0 0.0
          %1934 = vmatprep.subr.mxu0 0.0
          %1935 = vmatpush1.xpose.msra.mxu0 0.0
          %1936 = vmatprep.subr.mxu0 0.0
          %1937 = vmatpush1.xpose.msra.mxu0 0.0
          %1938 = vmatprep.subr.mxu0 0.0
          %1939 = vmatpush1.xpose.msra.mxu0 0.0
          %1940 = vmatprep.subr.mxu0 0.0
          %1941 = vmatpush1.xpose.msra.mxu0 0.0
          %1942 = vmatprep.subr.mxu0 0.0
          %1943 = vmatpush1.xpose.msra.mxu0 0.0
          %1944 = vmatprep.subr.mxu0 0.0
          %1945 = vmatpush1.xpose.msra.mxu0 0.0
          %1946 = vmatprep.subr.mxu0 0.0
          %1947 = vmatpush1.xpose.msra.mxu0 0.0
          %1948 = vmatprep.subr.mxu0 0.0
          %1949 = vmatpush1.xpose.msra.mxu0 0.0
          %1950 = vmatprep.subr.mxu0 0.0
          %1951 = vmatpush1.xpose.msra.mxu0 0.0
          %1952 = vmatprep.subr.mxu0 0.0
          %1953 = vmatpush1.xpose.msra.mxu0 0.0
          %1954 = vmatprep.subr.mxu0 0.0
          %1955 = vmatpush1.xpose.msra.mxu0 0.0
          %1956 = vmatprep.subr.mxu0 0.0
          %1957 = vmatpush1.xpose.msra.mxu0 0.0
          %1958 = vmatprep.subr.mxu0 0.0
          %1959 = vmatpush1.xpose.msra.mxu0 0.0
          %1960 = vmatprep.subr.mxu0 0.0
          %1961 = vmatpush1.xpose.msra.mxu0 0.0
          %1962 = vmatprep.subr.mxu0 0.0
          %1963 = vmatpush1.xpose.msra.mxu0 0.0
          %1964 = vmatprep.subr.mxu0 0.0
          %1965 = vmatpush1.xpose.msra.mxu0 0.0
          %1966 = vmatprep.subr.mxu0 0.0
          %1967 = vmatpush1.xpose.msra.mxu0 0.0
          %1968 = vmatprep.mubr.f32.mxu0 0.0
          %1969 = vmatmul.mubr.f32.gmra.mrb[0].mxu0 %v1827
          %v1970 = vpop.f32.mrb[0].mxu0
          %v1971 = vadd.f32 0.0, %v1970
          %v1972 = vpop.f32.mrb[0].mxu0
          %1973 = vdwg.mxu0
          %vm1974 = vcmask 64512
          %v1975 = vsel %vm1974, %v1971, -inf
          %1976 = vmax.xlane.f32.xlu0 %v1975
          %v1977 = vpop.xlane.xlu0 %1976
          %v1978 = vsub.f32 %v1971, %v1977
          %v1979 = vmul.f32 %v1978, 1.442695
          %v1980 = vpow.pop %v1979
          %v1981 = vsel %vm1974, %v1980, 0.0
          %1982 = vadd.xlane.f32.xlu0 %v1981
          %v1983 = vpop.xlane.xlu0 %1982
          %v1984 = vrcp.pop %v1983
          %v1985 = vmul.f32 %v1980, %v1984
          %v1986 = vadd.f32 %v1903, %v1985
          %v1987 = vsel %vm1974, %v1986, -inf
          %1988 = vmax.xlane.f32.xlu0 %v1987
          %v1989 = vpop.xlane.xlu0 %1988
          %v1990 = vsub.f32 %v1986, %v1989
          %v1991 = vmul.f32 %v1990, 1.442695
          %v1992 = vpow.pop %v1991
          %v1993 = vsel %vm1974, %v1992, 0.0
          %1994 = vadd.xlane.f32.xlu0 %v1993
          %v1995 = vpop.xlane.xlu0 %1994
          %v1996 = vrcp.pop %v1995
          %v1997 = vmul.f32 %v1992, %v1996
          %v1999 = vsel %vm1974, %v1997, 0
          %2001 = vmatprep.subr.mxu0 0.0
          %2002 = vmatpush1.msra.mxu0 %v1808
          %2003 = vmatprep.subr.mxu0 0.0
          %2004 = vmatpush1.msra.mxu0 0.0
          %2005 = vmatprep.subr.mxu0 0.0
          %2006 = vmatpush1.msra.mxu0 0.0
          %2007 = vmatprep.subr.mxu0 0.0
          %2008 = vmatpush1.msra.mxu0 0.0
          %2009 = vmatprep.subr.mxu0 0.0
          %2010 = vmatpush1.msra.mxu0 0.0
          %2011 = vmatprep.subr.mxu0 0.0
          %2012 = vmatpush1.msra.mxu0 0.0
          %2013 = vmatprep.subr.mxu0 0.0
          %2014 = vmatpush1.msra.mxu0 0.0
          %2015 = vmatprep.subr.mxu0 0.0
          %2016 = vmatpush1.msra.mxu0 0.0
          %2017 = vmatprep.subr.mxu0 0.0
          %2018 = vmatpush1.msra.mxu0 0.0
          %2019 = vmatprep.subr.mxu0 0.0
          %2020 = vmatpush1.msra.mxu0 0.0
          %2021 = vmatprep.subr.mxu0 0.0
          %2022 = vmatpush1.msra.mxu0 0.0
          %2023 = vmatprep.subr.mxu0 0.0
          %2024 = vmatpush1.msra.mxu0 0.0
          %2025 = vmatprep.subr.mxu0 0.0
          %2026 = vmatpush1.msra.mxu0 0.0
          %2027 = vmatprep.subr.mxu0 0.0
          %2028 = vmatpush1.msra.mxu0 0.0
          %2029 = vmatprep.subr.mxu0 0.0
          %2030 = vmatpush1.msra.mxu0 0.0
          %2031 = vmatprep.subr.mxu0 0.0
          %2032 = vmatpush1.msra.mxu0 0.0
          %2033 = vmatprep.subr.mxu0 0.0
          %2034 = vmatpush1.msra.mxu0 0.0
          %2035 = vmatprep.subr.mxu0 0.0
          %2036 = vmatpush1.msra.mxu0 0.0
          %2037 = vmatprep.subr.mxu0 0.0
          %2038 = vmatpush1.msra.mxu0 0.0
          %2039 = vmatprep.subr.mxu0 0.0
          %2040 = vmatpush1.msra.mxu0 0.0
          %2041 = vmatprep.subr.mxu0 0.0
          %2042 = vmatpush1.msra.mxu0 0.0
          %2043 = vmatprep.subr.mxu0 0.0
          %2044 = vmatpush1.msra.mxu0 0.0
          %2045 = vmatprep.subr.mxu0 0.0
          %2046 = vmatpush1.msra.mxu0 0.0
          %2047 = vmatprep.subr.mxu0 0.0
          %2048 = vmatpush1.msra.mxu0 0.0
          %2049 = vmatprep.subr.mxu0 0.0
          %2050 = vmatpush1.msra.mxu0 0.0
          %2051 = vmatprep.subr.mxu0 0.0
          %2052 = vmatpush1.msra.mxu0 0.0
          %2053 = vmatprep.subr.mxu0 0.0
          %2054 = vmatpush1.msra.mxu0 0.0
          %2055 = vmatprep.subr.mxu0 0.0
          %2056 = vmatpush1.msra.mxu0 0.0
          %2057 = vmatprep.subr.mxu0 0.0
          %2058 = vmatpush1.msra.mxu0 0.0
          %2059 = vmatprep.subr.mxu0 0.0
          %2060 = vmatpush1.msra.mxu0 0.0
          %2061 = vmatprep.subr.mxu0 0.0
          %2062 = vmatpush1.msra.mxu0 0.0
          %2063 = vmatprep.subr.mxu0 0.0
          %2064 = vmatpush1.msra.mxu0 0.0
          %2065 = vmatprep.mubr.f32.mxu0 0.0
          %2066 = vmatmul.mubr.f32.gmra.mrb[0].mxu0 %v1999
          %v2067 = vpop.f32.mrb[0].mxu0
          %v2068 = vadd.f32 %v1808, %v2067
          %v2069 = vpop.f32.mrb[0].mxu0
          %2070 = vdwg.mxu0
          %v2071 = vld [vmem:[%s6] sm:$0x1]
          %v2072 = vld [vmem:[%s6 + $0x1] sm:$0x1]
          %v2073 = vsel %vm465, %v2068, 0.0
          %2074 = vadd.xlane.f32.xlu0 %v2073
          %v2075 = vpop.xlane.xlu0 %2074
          %v2076 = vrcp.pop 32.0
          %v2077 = vmul.f32 %v2075, %v2076
          %v2078 = vsub.f32 %v2068, %v2077
          %v2079 = vmul.f32 %v2078, %v2078
          %v2080 = vsel %vm465, %v2079, 0.0
          %2081 = vadd.xlane.f32.xlu0 %v2080
          %v2082 = vpop.xlane.xlu0 %2081
          %v2083 = vmul.f32 %v2082, %v2076
          %v2084 = vadd.f32 %v2083, 1e-06
          %v2085 = vrsqrt.pop %v2084
          %v2086 = vmul.f32 %v2078, %v2085
          %v2087 = vlaneseq
          %v2088 = vshrl.u32 %v2087, 7
          %v2089 = vsub.s32 0, %v2088
          %v2090 = vrot.slane %v2071, %v2089
          %v2091 = vmul.f32 %v2086, %v2090
          %v2092 = vlaneseq
          %v2093 = vshrl.u32 %v2092, 7
          %v2094 = vsub.s32 0, %v2093
          %v2095 = vrot.slane %v2072, %v2094
          %v2096 = vadd.f32 %v2091, %v2095
          %v2097 = vadd.f32 %v2096, %v1667
          %v2098 = vld [vmem:[%s6 + $0x2] sm:$0x1]
          %v2099 = vld [vmem:[%s6 + $0x3] sm:$0x1]
          %v2100 = vsel %vm465, %v2097, 0.0
          %2101 = vadd.xlane.f32.xlu0 %v2100
          %v2102 = vpop.xlane.xlu0 %2101
          %v2103 = vmul.f32 %v2102, %v2076
          %v2104 = vsub.f32 %v2097, %v2103
          %v2105 = vmul.f32 %v2104, %v2104
          %v2106 = vsel %vm465, %v2105, 0.0
          %2107 = vadd.xlane.f32.xlu0 %v2106
          %v2108 = vpop.xlane.xlu0 %2107
          %v2109 = vmul.f32 %v2108, %v2076
          %v2110 = vadd.f32 %v2109, 1e-06
          %v2111 = vrsqrt.pop %v2110
          %v2112 = vmul.f32 %v2104, %v2111
          %v2113 = vlaneseq
          %v2114 = vshrl.u32 %v2113, 7
          %v2115 = vsub.s32 0, %v2114
          %v2116 = vrot.slane %v2098, %v2115
          %v2117 = vmul.f32 %v2112, %v2116
          %v2118 = vlaneseq
          %v2119 = vshrl.u32 %v2118, 7
          %v2120 = vsub.s32 0, %v2119
          %v2121 = vrot.slane %v2099, %v2120
          %v2122 = vadd.f32 %v2117, %v2121
          %2123 = vst.msk [vmem:[%s337] sm:$0xff] %vm465, %v2122
        $region64: #{tpu_custom_call.1} parent=47 // pred_fallthru
          _
        %s2124 = sand.u32 %s202, 1
        %s2125 = scalar_lea.sflag [#allocation8], %s2124
        %s2126 = sand.u32 %s202, 1
        %s2127 = smul.addr %s2126, 8
        %s2128 = scalar_lea.vmem [#allocation11], %s2127
        // Predicated region
        $region65: #{tpu_custom_call.1} parent=47 // pred_check
          %p2129 = pneg %p212
        $region66: #{tpu_custom_call.1} parent=47 // pred_check_branch
          %2131 = sbr.rel (%p2129) target = $region68
        $region67: #{tpu_custom_call.1} parent=47 // pred_region
          %s2133 = ssub.s32 128, 128
          %2134 = vsyncadd %s2125, %s2133
          %s2135 = smul.addr %s27, 128
          %s2136 = scalar_lea.hbm %s7, %s2135
          %s2138 = sshll.u32 %s2128, 4
          %s2139 = int_to_ptr.vmem [resolvable:$true] %s2138
          %2141 = dma.vmem_to_hbm [thread:$0]  %s2139, 128, %s2136, %s2125
        $region68: #{tpu_custom_call.1} parent=47 // pred_fallthru
          _
      $region48: #{tpu_custom_call.1} parent=5 // pred_fallthru
        _
      %p2142 = scmp.le.s32.totalorder 2, %s18
      // Predicated region
      $region69: #{tpu_custom_call.1} parent=5 // pred_check
        %p2143 = pneg %p2142
      $region70: #{tpu_custom_call.1} parent=5 // pred_check_branch
        %2145 = sbr.rel (%p2143) target = $region72
      $region71: #{tpu_custom_call.1} parent=5 // pred_region
        %s2146 = ssub.s32 %s18, 2
        // Predicated region
        $region73: #{tpu_custom_call.1} parent=71 // pred_check
          %p2147 = pneg %p218
        $region74: #{tpu_custom_call.1} parent=71 // pred_check_branch
          %2149 = sbr.rel (%p2147) target = $region76
        $region75: #{tpu_custom_call.1} parent=71 // pred_region
          %s2150 = sand.u32 %s203, 1
          %s2151 = scalar_lea.sflag [#allocation8], %s2150
          %s2152 = sand.u32 %s203, 1
          %s2153 = smul.addr %s2152, 8
          %s2154 = scalar_lea.vmem [#allocation11], %s2153
          %2155 = dma.done %s2151, 128
        $region76: #{tpu_custom_call.1} parent=71 // pred_fallthru
          _
      $region72: #{tpu_custom_call.1} parent=5 // pred_fallthru
        _
    $region6: #{tpu_custom_call.1} parent=1 // loop_footer
      %s22 = sadd.s32 1, %s18
    $region7: #{tpu_custom_call.1} parent=1 // loop_footer_branch
      %17 = sbr.rel target = $region3
    $region8: #{tpu_custom_call.1} parent=1 // loop_exit
      _
    %2156 = vsyncpa [#allocation7], 1
    %s2157 = scalar_lea.sflag [#allocation7], 1
    %2158 = vsyncpa %s2157, 1
    %2159 = vsyncpa [#allocation10], 1
    %2160 = vsyncpa [#allocation8], 1
    %s2161 = scalar_lea.sflag [#allocation8], 1
    %2162 = vsyncpa %s2161, 1

</llo_original>
